<compile_context>
chip_gen: v5e
topology: v5e:2x2
jax: 0.10.0
libtpu: 0.0.40
codegen_flags: <defaults>
</compile_context>

<pallas_src>
import math

import jax
import jax.numpy as jnp
from jax.experimental import pallas as pl
from jax.experimental.pallas import tpu as pltpu

DIM = 256            # d_model (original: 1024)
NHEAD = 8
DHEAD = DIM // NHEAD
DFF = 512            # dim_feedforward (original: 2048)
NUM_LAYERS = 4
LN_EPS = 1e-5


# ---------------------------------------------------------------------------
# In-kernel helpers (pure jnp on loaded values)
# ---------------------------------------------------------------------------

def _layernorm(x, gamma, beta):
    """PyTorch-style LayerNorm over the last dim (biased variance), f32."""
    mean = jnp.mean(x, axis=-1, keepdims=True)
    c = x - mean
    var = jnp.mean(c * c, axis=-1, keepdims=True)
    return c * jax.lax.rsqrt(var + LN_EPS) * gamma + beta


def _matmul(x, w_t, bias):
    """x @ W^T + b with bf16 MXU operands and f32 accumulation (W pre-transposed, bf16)."""
    return jnp.dot(x.astype(jnp.bfloat16), w_t,
                   preferred_element_type=jnp.float32) + bias


def _mha(x, kv_src, w_ref, b_ref, wo_ref, bo_ref):
    """Multi-head attention on one batch slab.

    x: (nq, D) f32 queries source.  kv_src: (nk, D) f32/bf16 key/value source (== x for
    self-attention, memory slab for cross-attention).  Weights are head-major:
      w_ref[0]  : (3H, D, DHEAD) bf16   rows [0:H)=Wq, [H:2H)=Wk, [2H:3H)=Wv (pre-transposed)
      b_ref[0]  : (3H, 1, DHEAD) f32
      wo_ref[0] : (H, DHEAD, D)  bf16   out-projection, pre-transposed per head
      bo_ref[0] : (1, D)         f32
    Everything stays a leading-batch einsum (no lane-unaligned slices, no transposes).
    """
    w = w_ref[0]
    b = b_ref[0]
    wo = wo_ref[0]
    nq = x.shape[0]
    nk = kv_src.shape[0]

    x_b = x.astype(jnp.bfloat16)
    kv_b = x_b if kv_src is x else kv_src.astype(jnp.bfloat16)

    # Q : (H, nq, DHEAD) ;  K/V fused : (2H, nk, DHEAD)  -- f32 accumulators
    q_h = jnp.einsum('htc,hcd->htd',
                     jnp.broadcast_to(x_b[None], (NHEAD, nq, DIM)), w[:NHEAD],
                     preferred_element_type=jnp.float32) + b[:NHEAD]
    kv_h = jnp.einsum('htc,hcd->htd',
                      jnp.broadcast_to(kv_b[None], (2 * NHEAD, nk, DIM)), w[NHEAD:],
                      preferred_element_type=jnp.float32) + b[NHEAD:]
    k_h = kv_h[:NHEAD]
    v_h = kv_h[NHEAD:]

    # scores / softmax in f32, matmul operands bf16
    s = jnp.einsum('hqd,hkd->hqk',
                   q_h.astype(jnp.bfloat16), k_h.astype(jnp.bfloat16),
                   preferred_element_type=jnp.float32) * (1.0 / math.sqrt(DHEAD))
    s = s - jnp.max(s, axis=-1, keepdims=True)
    p = jnp.exp(s)
    p = p * pl.reciprocal(jnp.sum(p, axis=-1, keepdims=True), approx=True)

    ctx = jnp.einsum('hqk,hkd->hqd',
                     p.astype(jnp.bfloat16), v_h.astype(jnp.bfloat16),
                     preferred_element_type=jnp.float32)          # (H, nq, DHEAD)

    # out-projection: per-head matmul then sum over the (leading) head axis
    o_h = jnp.einsum('hqd,hde->hqe',
                     ctx.astype(jnp.bfloat16), wo,
                     preferred_element_type=jnp.float32)          # (H, nq, D)
    return jnp.sum(o_h, axis=0) + bo_ref[0]                       # (nq, D) f32


# ---------------------------------------------------------------------------
# The fused kernel: prelude + 4 decoder layers (grid axis 1) + output head
# ---------------------------------------------------------------------------

def _decoder_stack_kernel(
    # inputs (order matches in_specs)
    tgt_ref, mem_ref,
    lin1_wt_ref, lin1_b_ref, lin2_wt_ref, lin2_b_ref, pn_g_ref, pn_b_ref,
    sa_w_ref, sa_b_ref, sa_wo_ref, sa_bo_ref,
    ca_w_ref, ca_b_ref, ca_wo_ref, ca_bo_ref,
    ff1_wt_ref, ff1_b_ref, ff2_wt_ref, ff2_b_ref,
    ln_g_ref, ln_b_ref,
    last1_wt_ref, last1_b_ref, last2_w_ref, last2_b_ref,
    # output
    out_ref,
    # scratch
    x_ref):
  layer = pl.program_id(1)

  # ---- prelude: norm1(linear2(tanh(linear1(tgt)))), once per batch slab at layer 0 ---------
  # (dropout1/dropout2 are eval-mode identities)
  @pl.when(layer == 0)
  def _prelude():
    # Linear(1, D) is an outer product: (T,1) * (1,D) + (1,D)
    h = jnp.tanh(tgt_ref[0] * lin1_wt_ref[...] + lin1_b_ref[...])     # (T, D) f32
    h = _matmul(h, lin2_wt_ref[...], lin2_b_ref[...])
    x_ref[...] = _layernorm(h, pn_g_ref[...], pn_b_ref[...])

  # ---- one post-norm nn.TransformerDecoderLayer per layer grid step ------------------------
  x = x_ref[...]                       # (T, D) f32; at layer 0 this reads the prelude's store
  mem = mem_ref[0]                     # (S, D) bf16
  ln_g = ln_g_ref[0]                   # (3, D)
  ln_b = ln_b_ref[0]

  sa = _mha(x, x, sa_w_ref, sa_b_ref, sa_wo_ref, sa_bo_ref)
  x = _layernorm(x + sa, ln_g[0:1], ln_b[0:1])

  ca = _mha(x, mem, ca_w_ref, ca_b_ref, ca_wo_ref, ca_bo_ref)
  x = _layernorm(x + ca, ln_g[1:2], ln_b[1:2])

  ff = jnp.maximum(_matmul(x, ff1_wt_ref[0], ff1_b_ref[0]), 0.0)      # relu
  ff = _matmul(ff, ff2_wt_ref[0], ff2_b_ref[0])
  x = _layernorm(x + ff, ln_g[2:3], ln_b[2:3])
  x_ref[...] = x

  # ---- output head: linear_last2(tanh(linear_last1(x))), once after the last layer ---------
  @pl.when(layer == pl.num_programs(1) - 1)
  def _epilogue():
    y = jnp.tanh(_matmul(x, last1_wt_ref[...], last1_b_ref[...]))     # (T, D//2) f32
    # lane-major (1, T) row: w_row (1, D//2) contracted against y on the feature axis
    row = jax.lax.dot_general(last2_w_ref[...], y, (((1,), (1,)), ((), ())),
                              preferred_element_type=jnp.float32) + last2_b_ref[...]
    out_ref[...] = row[None]                                          # (1, 1, T)


# ---------------------------------------------------------------------------
# Wrapper: layout plumbing + pallas_call
# ---------------------------------------------------------------------------

def transformer_decoder_forward(params, src, tgt):
    """src: (S, B, D) memory; tgt: (T, B, 1)  ->  output (B, 1, T)."""
    t_len, batch, _ = tgt.shape
    s_len, _, d = src.shape
    assert d == DIM

    tgt_b = jnp.transpose(tgt, (1, 0, 2))                       # (B, T, 1) f32
    mem_b = jnp.transpose(src, (1, 0, 2)).astype(jnp.bfloat16)  # (B, S, D) bf16 (review item 4)

    fixed2 = lambda b, l: (0, 0)
    per_batch3 = lambda b, l: (b, 0, 0)
    per_layer3 = lambda b, l: (l, 0, 0)
    per_layer4 = lambda b, l: (l, 0, 0, 0)

    grid_spec = pltpu.PrefetchScalarGridSpec(
        num_scalar_prefetch=0,
        grid=(batch, NUM_LAYERS),
        in_specs=[
            pl.BlockSpec((1, t_len, 1), per_batch3),            # tgt slab
            pl.BlockSpec((1, s_len, d), per_batch3),            # memory slab (bf16)
            pl.BlockSpec((1, d), fixed2),                       # linear1 W^T
            pl.BlockSpec((1, d), fixed2),                       # linear1 b
            pl.BlockSpec((d, d), fixed2),                       # linear2 W^T (bf16)
            pl.BlockSpec((1, d), fixed2),                       # linear2 b
            pl.BlockSpec((1, d), fixed2),                       # outer norm1 gamma
            pl.BlockSpec((1, d), fixed2),                       # outer norm1 beta
            pl.BlockSpec((1, 3 * NHEAD, d, DHEAD), per_layer4),  # self-attn in_proj (head-major)
            pl.BlockSpec((1, 3 * NHEAD, 1, DHEAD), per_layer4),  # self-attn in_proj bias
            pl.BlockSpec((1, NHEAD, DHEAD, d), per_layer4),      # self-attn out_proj
            pl.BlockSpec((1, 1, d), per_layer3),                 # self-attn out_proj bias
            pl.BlockSpec((1, 3 * NHEAD, d, DHEAD), per_layer4),  # cross-attn in_proj
            pl.BlockSpec((1, 3 * NHEAD, 1, DHEAD), per_layer4),  # cross-attn in_proj bias
            pl.BlockSpec((1, NHEAD, DHEAD, d), per_layer4),      # cross-attn out_proj
            pl.BlockSpec((1, 1, d), per_layer3),                 # cross-attn out_proj bias
            pl.BlockSpec((1, d, DFF), per_layer3),               # FF linear1 W^T (bf16)
            pl.BlockSpec((1, 1, DFF), per_layer3),               # FF linear1 b
            pl.BlockSpec((1, DFF, d), per_layer3),               # FF linear2 W^T (bf16)
            pl.BlockSpec((1, 1, d), per_layer3),                 # FF linear2 b
            pl.BlockSpec((1, 3, d), per_layer3),                 # layer LN gammas (norm1..3)
            pl.BlockSpec((1, 3, d), per_layer3),                 # layer LN betas
            pl.BlockSpec((d, d // 2), fixed2),                   # linear_last1 W^T (bf16)
            pl.BlockSpec((1, d // 2), fixed2),                   # linear_last1 b
            pl.BlockSpec((1, d // 2), fixed2),                   # linear_last2 W row (f32)
            pl.BlockSpec((1, 1), fixed2),                        # linear_last2 b
        ],
        out_specs=pl.BlockSpec((1, 1, t_len), per_batch3),
        scratch_shapes=[
            pltpu.VMEM((t_len, d), jnp.float32),   # activation carried across the layer axis
        ],
    )

    out = pl.pallas_call(
        _decoder_stack_kernel,
        out_shape=jax.ShapeDtypeStruct((batch, 1, t_len), jnp.float32),
        grid_spec=grid_spec,
        # batch axis is independent work (usable by v7x's second TensorCore); the layer axis
        # carries the activation scratch and must stay "arbitrary".
        # At the original d_model=1024 sizes also set vmem_limit_bytes / pl.Buffered(1) on the
        # constant-index weights (see review) -- irrelevant at this toy size.
        compiler_params=pltpu.CompilerParams(
            dimension_semantics=("parallel", "arbitrary")),
    )(
        tgt_b, mem_b,
        params["lin1_wt"], params["lin1_b"],
        params["lin2_wt"], params["lin2_b"],
        params["pn_g"], params["pn_b"],
        params["sa_w"], params["sa_b"], params["sa_wo"], params["sa_bo"],
        params["ca_w"], params["ca_b"], params["ca_wo"], params["ca_bo"],
        params["ff1_wt"], params["ff1_b"],
        params["ff2_wt"], params["ff2_b"],
        params["ln_g"], params["ln_b"],
        params["last1_wt"], params["last1_b"],
        params["last2_w"], params["last2_b"],
    )
    return out                                                    # (B, 1, T)


# ---------------------------------------------------------------------------
# Deterministic synthetic parameters.
# Matmul weights are stored pre-transposed in bf16; attention projections are stored
# head-major:  sa_w[l, h]        == in_proj_weight[h*DHEAD:(h+1)*DHEAD, :].T   (q heads, etc.)
#              sa_wo[l, h, :, :] == out_proj.weight[:, h*DHEAD:(h+1)*DHEAD].T
# Biases / LayerNorm params stay f32.
# ---------------------------------------------------------------------------

def init_params(key):
    d, h, dh = DIM, NHEAD, DHEAD
    keys = iter(jax.random.split(key, 64))

    def unif(shape, bound, dtype=jnp.float32):
        return jax.random.uniform(next(keys), shape, jnp.float32, -bound, bound).astype(dtype)

    def lin_t(din, dout, dtype=jnp.bfloat16):
        bound = 1.0 / math.sqrt(din)
        return unif((din, dout), bound, dtype), unif((1, dout), bound)

    def lin_t_stack(din, dout):
        bound = 1.0 / math.sqrt(din)
        return (unif((NUM_LAYERS, din, dout), bound, jnp.bfloat16),
                unif((NUM_LAYERS, 1, dout), bound))

    def attn_stack():
        bound = 1.0 / math.sqrt(d)
        w = unif((NUM_LAYERS, 3 * h, d, dh), bound, jnp.bfloat16)   # q|k|v, head-major, pre-T
        b = unif((NUM_LAYERS, 3 * h, 1, dh), bound)
        wo = unif((NUM_LAYERS, h, dh, d), bound, jnp.bfloat16)      # out proj, head-major, pre-T
        bo = unif((NUM_LAYERS, 1, d), bound)
        return w, b, wo, bo

    p = {}
    p["lin1_wt"], p["lin1_b"] = lin_t(1, d, jnp.float32)            # Linear(1, dim)
    p["lin2_wt"], p["lin2_b"] = lin_t(d, d)                         # Linear(dim, dim)
    p["pn_g"] = jnp.ones((1, d), jnp.float32)                       # outer LayerNorm(dim)
    p["pn_b"] = jnp.zeros((1, d), jnp.float32)

    p["sa_w"], p["sa_b"], p["sa_wo"], p["sa_bo"] = attn_stack()     # self-attention
    p["ca_w"], p["ca_b"], p["ca_wo"], p["ca_bo"] = attn_stack()     # cross-attention
    p["ff1_wt"], p["ff1_b"] = lin_t_stack(d, DFF)
    p["ff2_wt"], p["ff2_b"] = lin_t_stack(DFF, d)
    p["ln_g"] = jnp.ones((NUM_LAYERS, 3, d), jnp.float32)           # norm1..3 per layer
    p["ln_b"] = jnp.zeros((NUM_LAYERS, 3, d), jnp.float32)

    p["last1_wt"], p["last1_b"] = lin_t(d, d // 2)                  # Linear(dim, dim//2)
    bound = 1.0 / math.sqrt(d // 2)
    p["last2_w"] = unif((1, d // 2), bound)                         # Linear(dim//2, 1) weight row
    p["last2_b"] = unif((1, 1), bound)
    return p


# ---------------------------------------------------------------------------

if __name__ == "__main__":
    T_LEN, S_LEN, BATCH = 8, 8, 2
    key = jax.random.PRNGKey(0)
    k_src, k_tgt, k_par = jax.random.split(key, 3)
    src = jax.random.normal(k_src, (S_LEN, BATCH, DIM), jnp.float32)   # memory
    tgt = jax.random.normal(k_tgt, (T_LEN, BATCH, 1), jnp.float32)     # target (last dim 1)

    params = init_params(k_par)

    out = jax.jit(transformer_decoder_forward)(params, src, tgt)
    out = jax.block_until_ready(out)

    assert out.shape == (BATCH, 1, T_LEN), out.shape
    assert bool(jnp.all(jnp.isfinite(out)))
    print("KERNEL_OK")
</pallas_src>

<mosaic_0001>
module attributes {stable_mosaic.version = 11 : i64} {
  func.func @_decoder_stack_kernel(%arg0: i32, %arg1: i32, %arg2: memref<1x8x1xf32, #tpu.memory_space<vmem>>, %arg3: memref<1x8x256xbf16, #tpu.memory_space<vmem>>, %arg4: memref<1x256xf32, #tpu.memory_space<vmem>>, %arg5: memref<1x256xf32, #tpu.memory_space<vmem>>, %arg6: memref<256x256xbf16, #tpu.memory_space<vmem>>, %arg7: memref<1x256xf32, #tpu.memory_space<vmem>>, %arg8: memref<1x256xf32, #tpu.memory_space<vmem>>, %arg9: memref<1x256xf32, #tpu.memory_space<vmem>>, %arg10: memref<1x24x256x32xbf16, #tpu.memory_space<vmem>>, %arg11: memref<1x24x1x32xf32, #tpu.memory_space<vmem>>, %arg12: memref<1x8x32x256xbf16, #tpu.memory_space<vmem>>, %arg13: memref<1x1x256xf32, #tpu.memory_space<vmem>>, %arg14: memref<1x24x256x32xbf16, #tpu.memory_space<vmem>>, %arg15: memref<1x24x1x32xf32, #tpu.memory_space<vmem>>, %arg16: memref<1x8x32x256xbf16, #tpu.memory_space<vmem>>, %arg17: memref<1x1x256xf32, #tpu.memory_space<vmem>>, %arg18: memref<1x256x512xbf16, #tpu.memory_space<vmem>>, %arg19: memref<1x1x512xf32, #tpu.memory_space<vmem>>, %arg20: memref<1x512x256xbf16, #tpu.memory_space<vmem>>, %arg21: memref<1x1x256xf32, #tpu.memory_space<vmem>>, %arg22: memref<1x3x256xf32, #tpu.memory_space<vmem>>, %arg23: memref<1x3x256xf32, #tpu.memory_space<vmem>>, %arg24: memref<256x128xbf16, #tpu.memory_space<vmem>>, %arg25: memref<1x128xf32, #tpu.memory_space<vmem>>, %arg26: memref<1x128xf32, #tpu.memory_space<vmem>>, %arg27: memref<1x1xf32, #tpu.memory_space<vmem>>, %arg28: memref<1x1x8xf32, #tpu.memory_space<vmem>>, %arg29: memref<8x256xf32, #tpu.memory_space<vmem>>) attributes {dimension_semantics = [#tpu.dimension_semantics<parallel>, #tpu.dimension_semantics<arbitrary>], iteration_bounds = array<i64: 2, 4>, scalar_prefetch = 0 : i64, scratch_operands = 1 : i64, tpu.core_type = #tpu.core_type<tc>, window_params = [{transform_indices = @transform_0, window_bounds = array<i64: 1, 8, 1>}, {transform_indices = @transform_1, window_bounds = array<i64: 1, 8, 256>}, {pipeline_mode = #tpu.pipeline_mode<synchronous>, transform_indices = @transform_2, window_bounds = array<i64: 1, 256>}, {pipeline_mode = #tpu.pipeline_mode<synchronous>, transform_indices = @transform_3, window_bounds = array<i64: 1, 256>}, {pipeline_mode = #tpu.pipeline_mode<synchronous>, transform_indices = @transform_4, window_bounds = array<i64: 256, 256>}, {pipeline_mode = #tpu.pipeline_mode<synchronous>, transform_indices = @transform_5, window_bounds = array<i64: 1, 256>}, {pipeline_mode = #tpu.pipeline_mode<synchronous>, transform_indices = @transform_6, window_bounds = array<i64: 1, 256>}, {pipeline_mode = #tpu.pipeline_mode<synchronous>, transform_indices = @transform_7, window_bounds = array<i64: 1, 256>}, {transform_indices = @transform_8, window_bounds = array<i64: 1, 24, 256, 32>}, {transform_indices = @transform_9, window_bounds = array<i64: 1, 24, 1, 32>}, {transform_indices = @transform_10, window_bounds = array<i64: 1, 8, 32, 256>}, {transform_indices = @transform_11, window_bounds = array<i64: 1, 1, 256>}, {transform_indices = @transform_12, window_bounds = array<i64: 1, 24, 256, 32>}, {transform_indices = @transform_13, window_bounds = array<i64: 1, 24, 1, 32>}, {transform_indices = @transform_14, window_bounds = array<i64: 1, 8, 32, 256>}, {transform_indices = @transform_15, window_bounds = array<i64: 1, 1, 256>}, {transform_indices = @transform_16, window_bounds = array<i64: 1, 256, 512>}, {transform_indices = @transform_17, window_bounds = array<i64: 1, 1, 512>}, {transform_indices = @transform_18, window_bounds = array<i64: 1, 512, 256>}, {transform_indices = @transform_19, window_bounds = array<i64: 1, 1, 256>}, {transform_indices = @transform_20, window_bounds = array<i64: 1, 3, 256>}, {transform_indices = @transform_21, window_bounds = array<i64: 1, 3, 256>}, {pipeline_mode = #tpu.pipeline_mode<synchronous>, transform_indices = @transform_22, window_bounds = array<i64: 256, 128>}, {pipeline_mode = #tpu.pipeline_mode<synchronous>, transform_indices = @transform_23, window_bounds = array<i64: 1, 128>}, {pipeline_mode = #tpu.pipeline_mode<synchronous>, transform_indices = @transform_24, window_bounds = array<i64: 1, 128>}, {pipeline_mode = #tpu.pipeline_mode<synchronous>, transform_indices = @transform_25, window_bounds = array<i64: 1, 1>}, {transform_indices = @transform_26, window_bounds = array<i64: 1, 1, 8>}]} {
    %c0_i32 = arith.constant 0 : i32
    %0 = arith.cmpi eq, %arg1, %c0_i32 : i32
    %1 = arith.extui %0 : i1 to i32
    %c0_i32_0 = arith.constant 0 : i32
    %2 = arith.cmpi ne, %1, %c0_i32_0 : i32
    scf.if %2 {
      %c0_91 = arith.constant 0 : index
      %c0_92 = arith.constant 0 : index
      %c0_93 = arith.constant 0 : index
      %201 = vector.load %arg2[%c0_91, %c0_92, %c0_93] : memref<1x8x1xf32, #tpu.memory_space<vmem>>, vector<1x8x1xf32>
      %202 = vector.shape_cast %201 : vector<1x8x1xf32> to vector<8x1xf32>
      %c0_94 = arith.constant 0 : index
      %c0_95 = arith.constant 0 : index
      %203 = vector.load %arg4[%c0_94, %c0_95] : memref<1x256xf32, #tpu.memory_space<vmem>>, vector<1x256xf32>
      %204 = vector.broadcast %202 : vector<8x1xf32> to vector<8x256xf32>
      %205 = vector.broadcast %203 : vector<1x256xf32> to vector<8x256xf32>
      %206 = arith.mulf %204, %205 : vector<8x256xf32>
      %c0_96 = arith.constant 0 : index
      %c0_97 = arith.constant 0 : index
      %207 = vector.load %arg5[%c0_96, %c0_97] : memref<1x256xf32, #tpu.memory_space<vmem>>, vector<1x256xf32>
      %208 = vector.broadcast %207 : vector<1x256xf32> to vector<8x256xf32>
      %209 = arith.addf %206, %208 : vector<8x256xf32>
      %210 = math.tanh %209 : vector<8x256xf32>
      %c0_98 = arith.constant 0 : index
      %c0_99 = arith.constant 0 : index
      %211 = vector.load %arg6[%c0_98, %c0_99] : memref<256x256xbf16, #tpu.memory_space<vmem>>, vector<256x256xbf16>
      %c0_100 = arith.constant 0 : index
      %c0_101 = arith.constant 0 : index
      %212 = vector.load %arg7[%c0_100, %c0_101] : memref<1x256xf32, #tpu.memory_space<vmem>>, vector<1x256xf32>
      %213 = arith.truncf %210 : vector<8x256xf32> to vector<8x256xbf16>
      %cst_102 = arith.constant dense<0.000000e+00> : vector<8x256xf32>
      %214 = tpu.matmul %213, %211, %cst_102 {dimension_numbers = #tpu.dot_dimension_numbers<[1], [0], [0], [1], [0, 0, 1, 1], [], []>} : vector<8x256xbf16>, vector<256x256xbf16>, vector<8x256xf32> -> vector<8x256xf32>
      %215 = vector.broadcast %212 : vector<1x256xf32> to vector<8x256xf32>
      %216 = arith.addf %214, %215 : vector<8x256xf32>
      %c0_103 = arith.constant 0 : index
      %c0_104 = arith.constant 0 : index
      %217 = vector.load %arg8[%c0_103, %c0_104] : memref<1x256xf32, #tpu.memory_space<vmem>>, vector<1x256xf32>
      %c0_105 = arith.constant 0 : index
      %c0_106 = arith.constant 0 : index
      %218 = vector.load %arg9[%c0_105, %c0_106] : memref<1x256xf32, #tpu.memory_space<vmem>>, vector<1x256xf32>
      %cst_107 = arith.constant dense<0.000000e+00> : vector<8xf32>
      %219 = vector.multi_reduction <add>, %216, %cst_107 [1] : vector<8x256xf32> to vector<8xf32>
      %220 = vector.shape_cast %219 : vector<8xf32> to vector<8x1xf32>
      %cst_108 = arith.constant 2.560000e+02 : f32
      %221 = vector.broadcast %cst_108 : f32 to vector<8x1xf32>
      %222 = arith.divf %220, %221 : vector<8x1xf32>
      %223 = vector.broadcast %222 : vector<8x1xf32> to vector<8x256xf32>
      %224 = arith.subf %216, %223 : vector<8x256xf32>
      %225 = arith.mulf %224, %224 : vector<8x256xf32>
      %cst_109 = arith.constant dense<0.000000e+00> : vector<8xf32>
      %226 = vector.multi_reduction <add>, %225, %cst_109 [1] : vector<8x256xf32> to vector<8xf32>
      %227 = vector.shape_cast %226 : vector<8xf32> to vector<8x1xf32>
      %cst_110 = arith.constant 2.560000e+02 : f32
      %228 = vector.broadcast %cst_110 : f32 to vector<8x1xf32>
      %229 = arith.divf %227, %228 : vector<8x1xf32>
      %cst_111 = arith.constant 9.99999974E-6 : f32
      %230 = vector.broadcast %cst_111 : f32 to vector<8x1xf32>
      %231 = arith.addf %229, %230 : vector<8x1xf32>
      %232 = math.rsqrt %231 : vector<8x1xf32>
      %233 = vector.broadcast %232 : vector<8x1xf32> to vector<8x256xf32>
      %234 = arith.mulf %224, %233 : vector<8x256xf32>
      %235 = vector.broadcast %217 : vector<1x256xf32> to vector<8x256xf32>
      %236 = arith.mulf %234, %235 : vector<8x256xf32>
      %237 = vector.broadcast %218 : vector<1x256xf32> to vector<8x256xf32>
      %238 = arith.addf %236, %237 : vector<8x256xf32>
      %c0_112 = arith.constant 0 : index
      %c0_113 = arith.constant 0 : index
      %239 = vector.load %arg29[%c0_112, %c0_113] : memref<8x256xf32, #tpu.memory_space<vmem>>, vector<8x256xf32>
      tpu.vector_store %arg29[%c0_112, %c0_113], %238 {strides = array<i32>} : memref<8x256xf32, #tpu.memory_space<vmem>>, vector<8x256xf32>,
    } else {
    }
    %c0 = arith.constant 0 : index
    %c0_1 = arith.constant 0 : index
    %3 = vector.load %arg29[%c0, %c0_1] : memref<8x256xf32, #tpu.memory_space<vmem>>, vector<8x256xf32>
    %c0_2 = arith.constant 0 : index
    %c0_3 = arith.constant 0 : index
    %c0_4 = arith.constant 0 : index
    %4 = vector.load %arg3[%c0_2, %c0_3, %c0_4] : memref<1x8x256xbf16, #tpu.memory_space<vmem>>, vector<1x8x256xbf16>
    %5 = vector.shape_cast %4 : vector<1x8x256xbf16> to vector<8x256xbf16>
    %c0_5 = arith.constant 0 : index
    %c0_6 = arith.constant 0 : index
    %c0_7 = arith.constant 0 : index
    %6 = vector.load %arg22[%c0_5, %c0_6, %c0_7] : memref<1x3x256xf32, #tpu.memory_space<vmem>>, vector<1x3x256xf32>
    %7 = vector.shape_cast %6 : vector<1x3x256xf32> to vector<3x256xf32>
    %c0_8 = arith.constant 0 : index
    %c0_9 = arith.constant 0 : index
    %c0_10 = arith.constant 0 : index
    %8 = vector.load %arg23[%c0_8, %c0_9, %c0_10] : memref<1x3x256xf32, #tpu.memory_space<vmem>>, vector<1x3x256xf32>
    %9 = vector.shape_cast %8 : vector<1x3x256xf32> to vector<3x256xf32>
    %c0_11 = arith.constant 0 : index
    %c0_12 = arith.constant 0 : index
    %c0_13 = arith.constant 0 : index
    %c0_14 = arith.constant 0 : index
    %10 = vector.load %arg10[%c0_11, %c0_12, %c0_13, %c0_14] : memref<1x24x256x32xbf16, #tpu.memory_space<vmem>>, vector<1x24x256x32xbf16>
    %11 = vector.shape_cast %10 : vector<1x24x256x32xbf16> to vector<24x256x32xbf16>
    %c0_15 = arith.constant 0 : index
    %c0_16 = arith.constant 0 : index
    %c0_17 = arith.constant 0 : index
    %c0_18 = arith.constant 0 : index
    %12 = vector.load %arg11[%c0_15, %c0_16, %c0_17, %c0_18] : memref<1x24x1x32xf32, #tpu.memory_space<vmem>>, vector<1x24x1x32xf32>
    %13 = vector.shape_cast %12 : vector<1x24x1x32xf32> to vector<24x1x32xf32>
    %c0_19 = arith.constant 0 : index
    %c0_20 = arith.constant 0 : index
    %c0_21 = arith.constant 0 : index
    %c0_22 = arith.constant 0 : index
    %14 = vector.load %arg12[%c0_19, %c0_20, %c0_21, %c0_22] : memref<1x8x32x256xbf16, #tpu.memory_space<vmem>>, vector<1x8x32x256xbf16>
    %15 = vector.shape_cast %14 : vector<1x8x32x256xbf16> to vector<8x32x256xbf16>
    %16 = arith.truncf %3 : vector<8x256xf32> to vector<8x256xbf16>
    %17 = vector.shape_cast %16 : vector<8x256xbf16> to vector<1x8x256xbf16>
    %18 = vector.shape_cast %17 : vector<1x8x256xbf16> to vector<1x8x256xbf16>
    %19 = vector.broadcast %18 : vector<1x8x256xbf16> to vector<8x8x256xbf16>
    %20 = vector.extract_strided_slice %11 {offsets = [0, 0, 0], sizes = [8, 256, 32], strides = [1, 1, 1]} : vector<24x256x32xbf16> to vector<8x256x32xbf16>
    "tpu.trace_start"() <{level = 10 : i32, message = "htc,hcd->htd"}> : () -> ()
    %cst = arith.constant dense<0.000000e+00> : vector<8x8x32xf32>
    %21 = tpu.matmul %19, %20, %cst {dimension_numbers = #tpu.dot_dimension_numbers<[2], [1], [1], [2], [0, 0, 0, 1, 1, 2], [0], [0]>} : vector<8x8x256xbf16>, vector<8x256x32xbf16>, vector<8x8x32xf32> -> vector<8x8x32xf32>
    "tpu.trace_stop"() : () -> ()
    %22 = vector.extract_strided_slice %13 {offsets = [0, 0, 0], sizes = [8, 1, 32], strides = [1, 1, 1]} : vector<24x1x32xf32> to vector<8x1x32xf32>
    %23 = vector.broadcast %22 : vector<8x1x32xf32> to vector<8x8x32xf32>
    %24 = arith.addf %21, %23 : vector<8x8x32xf32>
    %25 = vector.shape_cast %16 : vector<8x256xbf16> to vector<1x8x256xbf16>
    %26 = vector.shape_cast %25 : vector<1x8x256xbf16> to vector<1x8x256xbf16>
    %27 = vector.broadcast %26 : vector<1x8x256xbf16> to vector<16x8x256xbf16>
    %28 = vector.extract_strided_slice %11 {offsets = [8, 0, 0], sizes = [16, 256, 32], strides = [1, 1, 1]} : vector<24x256x32xbf16> to vector<16x256x32xbf16>
    "tpu.trace_start"() <{level = 10 : i32, message = "htc,hcd->htd"}> : () -> ()
    %cst_23 = arith.constant dense<0.000000e+00> : vector<16x8x32xf32>
    %29 = tpu.matmul %27, %28, %cst_23 {dimension_numbers = #tpu.dot_dimension_numbers<[2], [1], [1], [2], [0, 0, 0, 1, 1, 2], [0], [0]>} : vector<16x8x256xbf16>, vector<16x256x32xbf16>, vector<16x8x32xf32> -> vector<16x8x32xf32>
    "tpu.trace_stop"() : () -> ()
    %30 = vector.extract_strided_slice %13 {offsets = [8, 0, 0], sizes = [16, 1, 32], strides = [1, 1, 1]} : vector<24x1x32xf32> to vector<16x1x32xf32>
    %31 = vector.broadcast %30 : vector<16x1x32xf32> to vector<16x8x32xf32>
    %32 = arith.addf %29, %31 : vector<16x8x32xf32>
    %33 = vector.extract_strided_slice %32 {offsets = [0, 0, 0], sizes = [8, 8, 32], strides = [1, 1, 1]} : vector<16x8x32xf32> to vector<8x8x32xf32>
    %34 = vector.extract_strided_slice %32 {offsets = [8, 0, 0], sizes = [8, 8, 32], strides = [1, 1, 1]} : vector<16x8x32xf32> to vector<8x8x32xf32>
    %35 = arith.truncf %24 : vector<8x8x32xf32> to vector<8x8x32xbf16>
    %36 = arith.truncf %33 : vector<8x8x32xf32> to vector<8x8x32xbf16>
    "tpu.trace_start"() <{level = 10 : i32, message = "hqd,hkd->hqk"}> : () -> ()
    %cst_24 = arith.constant dense<0.000000e+00> : vector<8x8x8xf32>
    %37 = tpu.matmul %35, %36, %cst_24 {dimension_numbers = #tpu.dot_dimension_numbers<[2], [2], [1], [1], [0, 0, 0, 1, 1, 1], [0], [0]>} : vector<8x8x32xbf16>, vector<8x8x32xbf16>, vector<8x8x8xf32> -> vector<8x8x8xf32>
    "tpu.trace_stop"() : () -> ()
    %cst_25 = arith.constant 0.176776692 : f32
    %38 = vector.broadcast %cst_25 : f32 to vector<8x8x8xf32>
    %39 = arith.mulf %37, %38 : vector<8x8x8xf32>
    %cst_26 = arith.constant dense<0xFF800000> : vector<8x8xf32>
    %40 = vector.multi_reduction <maximumf>, %39, %cst_26 [2] : vector<8x8x8xf32> to vector<8x8xf32>
    %41 = vector.shape_cast %40 : vector<8x8xf32> to vector<8x8x1xf32>
    %42 = vector.broadcast %41 : vector<8x8x1xf32> to vector<8x8x8xf32>
    %43 = arith.subf %39, %42 : vector<8x8x8xf32>
    %44 = math.exp %43 : vector<8x8x8xf32>
    %cst_27 = arith.constant dense<0.000000e+00> : vector<8x8xf32>
    %45 = vector.multi_reduction <add>, %44, %cst_27 [2] : vector<8x8x8xf32> to vector<8x8xf32>
    %46 = vector.shape_cast %45 : vector<8x8xf32> to vector<8x8x1xf32>
    %47 = tpu.reciprocal %46 {approx = true} : vector<8x8x1xf32> -> vector<8x8x1xf32>
    %48 = vector.broadcast %47 : vector<8x8x1xf32> to vector<8x8x8xf32>
    %49 = arith.mulf %44, %48 : vector<8x8x8xf32>
    %50 = arith.truncf %49 : vector<8x8x8xf32> to vector<8x8x8xbf16>
    %51 = arith.truncf %34 : vector<8x8x32xf32> to vector<8x8x32xbf16>
    "tpu.trace_start"() <{level = 10 : i32, message = "hqk,hkd->hqd"}> : () -> ()
    %cst_28 = arith.constant dense<0.000000e+00> : vector<8x8x32xf32>
    %52 = tpu.matmul %50, %51, %cst_28 {dimension_numbers = #tpu.dot_dimension_numbers<[2], [1], [1], [2], [0, 0, 0, 1, 1, 2], [0], [0]>} : vector<8x8x8xbf16>, vector<8x8x32xbf16>, vector<8x8x32xf32> -> vector<8x8x32xf32>
    "tpu.trace_stop"() : () -> ()
    %53 = arith.truncf %52 : vector<8x8x32xf32> to vector<8x8x32xbf16>
    "tpu.trace_start"() <{level = 10 : i32, message = "hqd,hde->hqe"}> : () -> ()
    %cst_29 = arith.constant dense<0.000000e+00> : vector<8x8x256xf32>
    %54 = tpu.matmul %53, %15, %cst_29 {dimension_numbers = #tpu.dot_dimension_numbers<[2], [1], [1], [2], [0, 0, 0, 1, 1, 2], [0], [0]>} : vector<8x8x32xbf16>, vector<8x32x256xbf16>, vector<8x8x256xf32> -> vector<8x8x256xf32>
    "tpu.trace_stop"() : () -> ()
    %cst_30 = arith.constant dense<0.000000e+00> : vector<8x256xf32>
    %55 = vector.multi_reduction <add>, %54, %cst_30 [0] : vector<8x8x256xf32> to vector<8x256xf32>
    %c0_31 = arith.constant 0 : index
    %c0_32 = arith.constant 0 : index
    %c0_33 = arith.constant 0 : index
    %56 = vector.load %arg13[%c0_31, %c0_32, %c0_33] : memref<1x1x256xf32, #tpu.memory_space<vmem>>, vector<1x1x256xf32>
    %57 = vector.shape_cast %56 : vector<1x1x256xf32> to vector<1x256xf32>
    %58 = vector.broadcast %57 : vector<1x256xf32> to vector<8x256xf32>
    %59 = arith.addf %55, %58 : vector<8x256xf32>
    %60 = arith.addf %3, %59 : vector<8x256xf32>
    %61 = vector.extract_strided_slice %7 {offsets = [0, 0], sizes = [1, 256], strides = [1, 1]} : vector<3x256xf32> to vector<1x256xf32>
    %62 = vector.extract_strided_slice %9 {offsets = [0, 0], sizes = [1, 256], strides = [1, 1]} : vector<3x256xf32> to vector<1x256xf32>
    %cst_34 = arith.constant dense<0.000000e+00> : vector<8xf32>
    %63 = vector.multi_reduction <add>, %60, %cst_34 [1] : vector<8x256xf32> to vector<8xf32>
    %64 = vector.shape_cast %63 : vector<8xf32> to vector<8x1xf32>
    %cst_35 = arith.constant 2.560000e+02 : f32
    %65 = vector.broadcast %cst_35 : f32 to vector<8x1xf32>
    %66 = arith.divf %64, %65 : vector<8x1xf32>
    %67 = vector.broadcast %66 : vector<8x1xf32> to vector<8x256xf32>
    %68 = arith.subf %60, %67 : vector<8x256xf32>
    %69 = arith.mulf %68, %68 : vector<8x256xf32>
    %cst_36 = arith.constant dense<0.000000e+00> : vector<8xf32>
    %70 = vector.multi_reduction <add>, %69, %cst_36 [1] : vector<8x256xf32> to vector<8xf32>
    %71 = vector.shape_cast %70 : vector<8xf32> to vector<8x1xf32>
    %cst_37 = arith.constant 2.560000e+02 : f32
    %72 = vector.broadcast %cst_37 : f32 to vector<8x1xf32>
    %73 = arith.divf %71, %72 : vector<8x1xf32>
    %cst_38 = arith.constant 9.99999974E-6 : f32
    %74 = vector.broadcast %cst_38 : f32 to vector<8x1xf32>
    %75 = arith.addf %73, %74 : vector<8x1xf32>
    %76 = math.rsqrt %75 : vector<8x1xf32>
    %77 = vector.broadcast %76 : vector<8x1xf32> to vector<8x256xf32>
    %78 = arith.mulf %68, %77 : vector<8x256xf32>
    %79 = vector.broadcast %61 : vector<1x256xf32> to vector<8x256xf32>
    %80 = arith.mulf %78, %79 : vector<8x256xf32>
    %81 = vector.broadcast %62 : vector<1x256xf32> to vector<8x256xf32>
    %82 = arith.addf %80, %81 : vector<8x256xf32>
    %c0_39 = arith.constant 0 : index
    %c0_40 = arith.constant 0 : index
    %c0_41 = arith.constant 0 : index
    %c0_42 = arith.constant 0 : index
    %83 = vector.load %arg14[%c0_39, %c0_40, %c0_41, %c0_42] : memref<1x24x256x32xbf16, #tpu.memory_space<vmem>>, vector<1x24x256x32xbf16>
    %84 = vector.shape_cast %83 : vector<1x24x256x32xbf16> to vector<24x256x32xbf16>
    %c0_43 = arith.constant 0 : index
    %c0_44 = arith.constant 0 : index
    %c0_45 = arith.constant 0 : index
    %c0_46 = arith.constant 0 : index
    %85 = vector.load %arg15[%c0_43, %c0_44, %c0_45, %c0_46] : memref<1x24x1x32xf32, #tpu.memory_space<vmem>>, vector<1x24x1x32xf32>
    %86 = vector.shape_cast %85 : vector<1x24x1x32xf32> to vector<24x1x32xf32>
    %c0_47 = arith.constant 0 : index
    %c0_48 = arith.constant 0 : index
    %c0_49 = arith.constant 0 : index
    %c0_50 = arith.constant 0 : index
    %87 = vector.load %arg16[%c0_47, %c0_48, %c0_49, %c0_50] : memref<1x8x32x256xbf16, #tpu.memory_space<vmem>>, vector<1x8x32x256xbf16>
    %88 = vector.shape_cast %87 : vector<1x8x32x256xbf16> to vector<8x32x256xbf16>
    %89 = arith.truncf %82 : vector<8x256xf32> to vector<8x256xbf16>
    %90 = vector.shape_cast %89 : vector<8x256xbf16> to vector<1x8x256xbf16>
    %91 = vector.shape_cast %90 : vector<1x8x256xbf16> to vector<1x8x256xbf16>
    %92 = vector.broadcast %91 : vector<1x8x256xbf16> to vector<8x8x256xbf16>
    %93 = vector.extract_strided_slice %84 {offsets = [0, 0, 0], sizes = [8, 256, 32], strides = [1, 1, 1]} : vector<24x256x32xbf16> to vector<8x256x32xbf16>
    "tpu.trace_start"() <{level = 10 : i32, message = "htc,hcd->htd"}> : () -> ()
    %cst_51 = arith.constant dense<0.000000e+00> : vector<8x8x32xf32>
    %94 = tpu.matmul %92, %93, %cst_51 {dimension_numbers = #tpu.dot_dimension_numbers<[2], [1], [1], [2], [0, 0, 0, 1, 1, 2], [0], [0]>} : vector<8x8x256xbf16>, vector<8x256x32xbf16>, vector<8x8x32xf32> -> vector<8x8x32xf32>
    "tpu.trace_stop"() : () -> ()
    %95 = vector.extract_strided_slice %86 {offsets = [0, 0, 0], sizes = [8, 1, 32], strides = [1, 1, 1]} : vector<24x1x32xf32> to vector<8x1x32xf32>
    %96 = vector.broadcast %95 : vector<8x1x32xf32> to vector<8x8x32xf32>
    %97 = arith.addf %94, %96 : vector<8x8x32xf32>
    %98 = vector.shape_cast %5 : vector<8x256xbf16> to vector<1x8x256xbf16>
    %99 = vector.shape_cast %98 : vector<1x8x256xbf16> to vector<1x8x256xbf16>
    %100 = vector.broadcast %99 : vector<1x8x256xbf16> to vector<16x8x256xbf16>
    %101 = vector.extract_strided_slice %84 {offsets = [8, 0, 0], sizes = [16, 256, 32], strides = [1, 1, 1]} : vector<24x256x32xbf16> to vector<16x256x32xbf16>
    "tpu.trace_start"() <{level = 10 : i32, message = "htc,hcd->htd"}> : () -> ()
    %cst_52 = arith.constant dense<0.000000e+00> : vector<16x8x32xf32>
    %102 = tpu.matmul %100, %101, %cst_52 {dimension_numbers = #tpu.dot_dimension_numbers<[2], [1], [1], [2], [0, 0, 0, 1, 1, 2], [0], [0]>} : vector<16x8x256xbf16>, vector<16x256x32xbf16>, vector<16x8x32xf32> -> vector<16x8x32xf32>
    "tpu.trace_stop"() : () -> ()
    %103 = vector.extract_strided_slice %86 {offsets = [8, 0, 0], sizes = [16, 1, 32], strides = [1, 1, 1]} : vector<24x1x32xf32> to vector<16x1x32xf32>
    %104 = vector.broadcast %103 : vector<16x1x32xf32> to vector<16x8x32xf32>
    %105 = arith.addf %102, %104 : vector<16x8x32xf32>
    %106 = vector.extract_strided_slice %105 {offsets = [0, 0, 0], sizes = [8, 8, 32], strides = [1, 1, 1]} : vector<16x8x32xf32> to vector<8x8x32xf32>
    %107 = vector.extract_strided_slice %105 {offsets = [8, 0, 0], sizes = [8, 8, 32], strides = [1, 1, 1]} : vector<16x8x32xf32> to vector<8x8x32xf32>
    %108 = arith.truncf %97 : vector<8x8x32xf32> to vector<8x8x32xbf16>
    %109 = arith.truncf %106 : vector<8x8x32xf32> to vector<8x8x32xbf16>
    "tpu.trace_start"() <{level = 10 : i32, message = "hqd,hkd->hqk"}> : () -> ()
    %cst_53 = arith.constant dense<0.000000e+00> : vector<8x8x8xf32>
    %110 = tpu.matmul %108, %109, %cst_53 {dimension_numbers = #tpu.dot_dimension_numbers<[2], [2], [1], [1], [0, 0, 0, 1, 1, 1], [0], [0]>} : vector<8x8x32xbf16>, vector<8x8x32xbf16>, vector<8x8x8xf32> -> vector<8x8x8xf32>
    "tpu.trace_stop"() : () -> ()
    %cst_54 = arith.constant 0.176776692 : f32
    %111 = vector.broadcast %cst_54 : f32 to vector<8x8x8xf32>
    %112 = arith.mulf %110, %111 : vector<8x8x8xf32>
    %cst_55 = arith.constant dense<0xFF800000> : vector<8x8xf32>
    %113 = vector.multi_reduction <maximumf>, %112, %cst_55 [2] : vector<8x8x8xf32> to vector<8x8xf32>
    %114 = vector.shape_cast %113 : vector<8x8xf32> to vector<8x8x1xf32>
    %115 = vector.broadcast %114 : vector<8x8x1xf32> to vector<8x8x8xf32>
    %116 = arith.subf %112, %115 : vector<8x8x8xf32>
    %117 = math.exp %116 : vector<8x8x8xf32>
    %cst_56 = arith.constant dense<0.000000e+00> : vector<8x8xf32>
    %118 = vector.multi_reduction <add>, %117, %cst_56 [2] : vector<8x8x8xf32> to vector<8x8xf32>
    %119 = vector.shape_cast %118 : vector<8x8xf32> to vector<8x8x1xf32>
    %120 = tpu.reciprocal %119 {approx = true} : vector<8x8x1xf32> -> vector<8x8x1xf32>
    %121 = vector.broadcast %120 : vector<8x8x1xf32> to vector<8x8x8xf32>
    %122 = arith.mulf %117, %121 : vector<8x8x8xf32>
    %123 = arith.truncf %122 : vector<8x8x8xf32> to vector<8x8x8xbf16>
    %124 = arith.truncf %107 : vector<8x8x32xf32> to vector<8x8x32xbf16>
    "tpu.trace_start"() <{level = 10 : i32, message = "hqk,hkd->hqd"}> : () -> ()
    %cst_57 = arith.constant dense<0.000000e+00> : vector<8x8x32xf32>
    %125 = tpu.matmul %123, %124, %cst_57 {dimension_numbers = #tpu.dot_dimension_numbers<[2], [1], [1], [2], [0, 0, 0, 1, 1, 2], [0], [0]>} : vector<8x8x8xbf16>, vector<8x8x32xbf16>, vector<8x8x32xf32> -> vector<8x8x32xf32>
    "tpu.trace_stop"() : () -> ()
    %126 = arith.truncf %125 : vector<8x8x32xf32> to vector<8x8x32xbf16>
    "tpu.trace_start"() <{level = 10 : i32, message = "hqd,hde->hqe"}> : () -> ()
    %cst_58 = arith.constant dense<0.000000e+00> : vector<8x8x256xf32>
    %127 = tpu.matmul %126, %88, %cst_58 {dimension_numbers = #tpu.dot_dimension_numbers<[2], [1], [1], [2], [0, 0, 0, 1, 1, 2], [0], [0]>} : vector<8x8x32xbf16>, vector<8x32x256xbf16>, vector<8x8x256xf32> -> vector<8x8x256xf32>
    "tpu.trace_stop"() : () -> ()
    %cst_59 = arith.constant dense<0.000000e+00> : vector<8x256xf32>
    %128 = vector.multi_reduction <add>, %127, %cst_59 [0] : vector<8x8x256xf32> to vector<8x256xf32>
    %c0_60 = arith.constant 0 : index
    %c0_61 = arith.constant 0 : index
    %c0_62 = arith.constant 0 : index
    %129 = vector.load %arg17[%c0_60, %c0_61, %c0_62] : memref<1x1x256xf32, #tpu.memory_space<vmem>>, vector<1x1x256xf32>
    %130 = vector.shape_cast %129 : vector<1x1x256xf32> to vector<1x256xf32>
    %131 = vector.broadcast %130 : vector<1x256xf32> to vector<8x256xf32>
    %132 = arith.addf %128, %131 : vector<8x256xf32>
    %133 = arith.addf %82, %132 : vector<8x256xf32>
    %134 = vector.extract_strided_slice %7 {offsets = [1, 0], sizes = [1, 256], strides = [1, 1]} : vector<3x256xf32> to vector<1x256xf32>
    %135 = vector.extract_strided_slice %9 {offsets = [1, 0], sizes = [1, 256], strides = [1, 1]} : vector<3x256xf32> to vector<1x256xf32>
    %cst_63 = arith.constant dense<0.000000e+00> : vector<8xf32>
    %136 = vector.multi_reduction <add>, %133, %cst_63 [1] : vector<8x256xf32> to vector<8xf32>
    %137 = vector.shape_cast %136 : vector<8xf32> to vector<8x1xf32>
    %cst_64 = arith.constant 2.560000e+02 : f32
    %138 = vector.broadcast %cst_64 : f32 to vector<8x1xf32>
    %139 = arith.divf %137, %138 : vector<8x1xf32>
    %140 = vector.broadcast %139 : vector<8x1xf32> to vector<8x256xf32>
    %141 = arith.subf %133, %140 : vector<8x256xf32>
    %142 = arith.mulf %141, %141 : vector<8x256xf32>
    %cst_65 = arith.constant dense<0.000000e+00> : vector<8xf32>
    %143 = vector.multi_reduction <add>, %142, %cst_65 [1] : vector<8x256xf32> to vector<8xf32>
    %144 = vector.shape_cast %143 : vector<8xf32> to vector<8x1xf32>
    %cst_66 = arith.constant 2.560000e+02 : f32
    %145 = vector.broadcast %cst_66 : f32 to vector<8x1xf32>
    %146 = arith.divf %144, %145 : vector<8x1xf32>
    %cst_67 = arith.constant 9.99999974E-6 : f32
    %147 = vector.broadcast %cst_67 : f32 to vector<8x1xf32>
    %148 = arith.addf %146, %147 : vector<8x1xf32>
    %149 = math.rsqrt %148 : vector<8x1xf32>
    %150 = vector.broadcast %149 : vector<8x1xf32> to vector<8x256xf32>
    %151 = arith.mulf %141, %150 : vector<8x256xf32>
    %152 = vector.broadcast %134 : vector<1x256xf32> to vector<8x256xf32>
    %153 = arith.mulf %151, %152 : vector<8x256xf32>
    %154 = vector.broadcast %135 : vector<1x256xf32> to vector<8x256xf32>
    %155 = arith.addf %153, %154 : vector<8x256xf32>
    %c0_68 = arith.constant 0 : index
    %c0_69 = arith.constant 0 : index
    %c0_70 = arith.constant 0 : index
    %156 = vector.load %arg18[%c0_68, %c0_69, %c0_70] : memref<1x256x512xbf16, #tpu.memory_space<vmem>>, vector<1x256x512xbf16>
    %157 = vector.shape_cast %156 : vector<1x256x512xbf16> to vector<256x512xbf16>
    %c0_71 = arith.constant 0 : index
    %c0_72 = arith.constant 0 : index
    %c0_73 = arith.constant 0 : index
    %158 = vector.load %arg19[%c0_71, %c0_72, %c0_73] : memref<1x1x512xf32, #tpu.memory_space<vmem>>, vector<1x1x512xf32>
    %159 = vector.shape_cast %158 : vector<1x1x512xf32> to vector<1x512xf32>
    %160 = arith.truncf %155 : vector<8x256xf32> to vector<8x256xbf16>
    %cst_74 = arith.constant dense<0.000000e+00> : vector<8x512xf32>
    %161 = tpu.matmul %160, %157, %cst_74 {dimension_numbers = #tpu.dot_dimension_numbers<[1], [0], [0], [1], [0, 0, 1, 1], [], []>} : vector<8x256xbf16>, vector<256x512xbf16>, vector<8x512xf32> -> vector<8x512xf32>
    %162 = vector.broadcast %159 : vector<1x512xf32> to vector<8x512xf32>
    %163 = arith.addf %161, %162 : vector<8x512xf32>
    %cst_75 = arith.constant 0.000000e+00 : f32
    %164 = vector.broadcast %cst_75 : f32 to vector<8x512xf32>
    %165 = arith.maximumf %163, %164 : vector<8x512xf32>
    %c0_76 = arith.constant 0 : index
    %c0_77 = arith.constant 0 : index
    %c0_78 = arith.constant 0 : index
    %166 = vector.load %arg20[%c0_76, %c0_77, %c0_78] : memref<1x512x256xbf16, #tpu.memory_space<vmem>>, vector<1x512x256xbf16>
    %167 = vector.shape_cast %166 : vector<1x512x256xbf16> to vector<512x256xbf16>
    %c0_79 = arith.constant 0 : index
    %c0_80 = arith.constant 0 : index
    %c0_81 = arith.constant 0 : index
    %168 = vector.load %arg21[%c0_79, %c0_80, %c0_81] : memref<1x1x256xf32, #tpu.memory_space<vmem>>, vector<1x1x256xf32>
    %169 = vector.shape_cast %168 : vector<1x1x256xf32> to vector<1x256xf32>
    %170 = arith.truncf %165 : vector<8x512xf32> to vector<8x512xbf16>
    %cst_82 = arith.constant dense<0.000000e+00> : vector<8x256xf32>
    %171 = tpu.matmul %170, %167, %cst_82 {dimension_numbers = #tpu.dot_dimension_numbers<[1], [0], [0], [1], [0, 0, 1, 1], [], []>} : vector<8x512xbf16>, vector<512x256xbf16>, vector<8x256xf32> -> vector<8x256xf32>
    %172 = vector.broadcast %169 : vector<1x256xf32> to vector<8x256xf32>
    %173 = arith.addf %171, %172 : vector<8x256xf32>
    %174 = arith.addf %155, %173 : vector<8x256xf32>
    %175 = vector.extract_strided_slice %7 {offsets = [2, 0], sizes = [1, 256], strides = [1, 1]} : vector<3x256xf32> to vector<1x256xf32>
    %176 = vector.extract_strided_slice %9 {offsets = [2, 0], sizes = [1, 256], strides = [1, 1]} : vector<3x256xf32> to vector<1x256xf32>
    %cst_83 = arith.constant dense<0.000000e+00> : vector<8xf32>
    %177 = vector.multi_reduction <add>, %174, %cst_83 [1] : vector<8x256xf32> to vector<8xf32>
    %178 = vector.shape_cast %177 : vector<8xf32> to vector<8x1xf32>
    %cst_84 = arith.constant 2.560000e+02 : f32
    %179 = vector.broadcast %cst_84 : f32 to vector<8x1xf32>
    %180 = arith.divf %178, %179 : vector<8x1xf32>
    %181 = vector.broadcast %180 : vector<8x1xf32> to vector<8x256xf32>
    %182 = arith.subf %174, %181 : vector<8x256xf32>
    %183 = arith.mulf %182, %182 : vector<8x256xf32>
    %cst_85 = arith.constant dense<0.000000e+00> : vector<8xf32>
    %184 = vector.multi_reduction <add>, %183, %cst_85 [1] : vector<8x256xf32> to vector<8xf32>
    %185 = vector.shape_cast %184 : vector<8xf32> to vector<8x1xf32>
    %cst_86 = arith.constant 2.560000e+02 : f32
    %186 = vector.broadcast %cst_86 : f32 to vector<8x1xf32>
    %187 = arith.divf %185, %186 : vector<8x1xf32>
    %cst_87 = arith.constant 9.99999974E-6 : f32
    %188 = vector.broadcast %cst_87 : f32 to vector<8x1xf32>
    %189 = arith.addf %187, %188 : vector<8x1xf32>
    %190 = math.rsqrt %189 : vector<8x1xf32>
    %191 = vector.broadcast %190 : vector<8x1xf32> to vector<8x256xf32>
    %192 = arith.mulf %182, %191 : vector<8x256xf32>
    %193 = vector.broadcast %175 : vector<1x256xf32> to vector<8x256xf32>
    %194 = arith.mulf %192, %193 : vector<8x256xf32>
    %195 = vector.broadcast %176 : vector<1x256xf32> to vector<8x256xf32>
    %196 = arith.addf %194, %195 : vector<8x256xf32>
    %c0_88 = arith.constant 0 : index
    %c0_89 = arith.constant 0 : index
    %197 = vector.load %arg29[%c0_88, %c0_89] : memref<8x256xf32, #tpu.memory_space<vmem>>, vector<8x256xf32>
    tpu.vector_store %arg29[%c0_88, %c0_89], %196 {strides = array<i32>} : memref<8x256xf32, #tpu.memory_space<vmem>>, vector<8x256xf32>,
    %c3_i32 = arith.constant 3 : i32
    %198 = arith.cmpi eq, %arg1, %c3_i32 : i32
    %199 = arith.extui %198 : i1 to i32
    %c0_i32_90 = arith.constant 0 : i32
    %200 = arith.cmpi ne, %199, %c0_i32_90 : i32
    scf.if %200 {
      %c0_91 = arith.constant 0 : index
      %c0_92 = arith.constant 0 : index
      %201 = vector.load %arg24[%c0_91, %c0_92] : memref<256x128xbf16, #tpu.memory_space<vmem>>, vector<256x128xbf16>
      %c0_93 = arith.constant 0 : index
      %c0_94 = arith.constant 0 : index
      %202 = vector.load %arg25[%c0_93, %c0_94] : memref<1x128xf32, #tpu.memory_space<vmem>>, vector<1x128xf32>
      %203 = arith.truncf %196 : vector<8x256xf32> to vector<8x256xbf16>
      %cst_95 = arith.constant dense<0.000000e+00> : vector<8x128xf32>
      %204 = tpu.matmul %203, %201, %cst_95 {dimension_numbers = #tpu.dot_dimension_numbers<[1], [0], [0], [1], [0, 0, 1, 1], [], []>} : vector<8x256xbf16>, vector<256x128xbf16>, vector<8x128xf32> -> vector<8x128xf32>
      %205 = vector.broadcast %202 : vector<1x128xf32> to vector<8x128xf32>
      %206 = arith.addf %204, %205 : vector<8x128xf32>
      %207 = math.tanh %206 : vector<8x128xf32>
      %c0_96 = arith.constant 0 : index
      %c0_97 = arith.constant 0 : index
      %208 = vector.load %arg26[%c0_96, %c0_97] : memref<1x128xf32, #tpu.memory_space<vmem>>, vector<1x128xf32>
      %cst_98 = arith.constant dense<0.000000e+00> : vector<1x8xf32>
      %209 = tpu.matmul %208, %207, %cst_98 {dimension_numbers = #tpu.dot_dimension_numbers<[1], [1], [0], [0], [0, 0, 1, 0], [], []>} : vector<1x128xf32>, vector<8x128xf32>, vector<1x8xf32> -> vector<1x8xf32>
      %c0_99 = arith.constant 0 : index
      %c0_100 = arith.constant 0 : index
      %210 = vector.load %arg27[%c0_99, %c0_100] : memref<1x1xf32, #tpu.memory_space<vmem>>, vector<1x1xf32>
      %211 = vector.broadcast %210 : vector<1x1xf32> to vector<1x8xf32>
      %212 = arith.addf %209, %211 : vector<1x8xf32>
      %213 = vector.shape_cast %212 : vector<1x8xf32> to vector<1x1x8xf32>
      %c0_101 = arith.constant 0 : index
      %c0_102 = arith.constant 0 : index
      %c0_103 = arith.constant 0 : index
      %214 = vector.load %arg28[%c0_101, %c0_102, %c0_103] : memref<1x1x8xf32, #tpu.memory_space<vmem>>, vector<1x1x8xf32>
      tpu.vector_store %arg28[%c0_101, %c0_102, %c0_103], %213 {strides = array<i32>} : memref<1x1x8xf32, #tpu.memory_space<vmem>>, vector<1x1x8xf32>,
    } else {
    }
    return
  }
  func.func @transform_0(%arg0: i32, %arg1: i32) -> (i32, i32, i32) {
    %c0_i32 = arith.constant 0 : i32
    %c0_i32_0 = arith.constant 0 : i32
    %c0_i32_1 = arith.constant 0 : i32
    return %arg0, %c0_i32, %c0_i32_0 : i32, i32, i32
  }
  func.func @transform_1(%arg0: i32, %arg1: i32) -> (i32, i32, i32) {
    %c0_i32 = arith.constant 0 : i32
    %c0_i32_0 = arith.constant 0 : i32
    %c0_i32_1 = arith.constant 0 : i32
    return %arg0, %c0_i32, %c0_i32_0 : i32, i32, i32
  }
  func.func @transform_2(%arg0: i32, %arg1: i32) -> (i32, i32) {
    %c0_i32 = arith.constant 0 : i32
    %c0_i32_0 = arith.constant 0 : i32
    %c0_i32_1 = arith.constant 0 : i32
    return %c0_i32, %c0_i32_0 : i32, i32
  }
  func.func @transform_3(%arg0: i32, %arg1: i32) -> (i32, i32) {
    %c0_i32 = arith.constant 0 : i32
    %c0_i32_0 = arith.constant 0 : i32
    %c0_i32_1 = arith.constant 0 : i32
    return %c0_i32, %c0_i32_0 : i32, i32
  }
  func.func @transform_4(%arg0: i32, %arg1: i32) -> (i32, i32) {
    %c0_i32 = arith.constant 0 : i32
    %c0_i32_0 = arith.constant 0 : i32
    %c0_i32_1 = arith.constant 0 : i32
    return %c0_i32, %c0_i32_0 : i32, i32
  }
  func.func @transform_5(%arg0: i32, %arg1: i32) -> (i32, i32) {
    %c0_i32 = arith.constant 0 : i32
    %c0_i32_0 = arith.constant 0 : i32
    %c0_i32_1 = arith.constant 0 : i32
    return %c0_i32, %c0_i32_0 : i32, i32
  }
  func.func @transform_6(%arg0: i32, %arg1: i32) -> (i32, i32) {
    %c0_i32 = arith.constant 0 : i32
    %c0_i32_0 = arith.constant 0 : i32
    %c0_i32_1 = arith.constant 0 : i32
    return %c0_i32, %c0_i32_0 : i32, i32
  }
  func.func @transform_7(%arg0: i32, %arg1: i32) -> (i32, i32) {
    %c0_i32 = arith.constant 0 : i32
    %c0_i32_0 = arith.constant 0 : i32
    %c0_i32_1 = arith.constant 0 : i32
    return %c0_i32, %c0_i32_0 : i32, i32
  }
  func.func @transform_8(%arg0: i32, %arg1: i32) -> (i32, i32, i32, i32) {
    %c0_i32 = arith.constant 0 : i32
    %c0_i32_0 = arith.constant 0 : i32
    %c0_i32_1 = arith.constant 0 : i32
    %c0_i32_2 = arith.constant 0 : i32
    return %arg1, %c0_i32, %c0_i32_0, %c0_i32_1 : i32, i32, i32, i32
  }
  func.func @transform_9(%arg0: i32, %arg1: i32) -> (i32, i32, i32, i32) {
    %c0_i32 = arith.constant 0 : i32
    %c0_i32_0 = arith.constant 0 : i32
    %c0_i32_1 = arith.constant 0 : i32
    %c0_i32_2 = arith.constant 0 : i32
    return %arg1, %c0_i32, %c0_i32_0, %c0_i32_1 : i32, i32, i32, i32
  }
  func.func @transform_10(%arg0: i32, %arg1: i32) -> (i32, i32, i32, i32) {
    %c0_i32 = arith.constant 0 : i32
    %c0_i32_0 = arith.constant 0 : i32
    %c0_i32_1 = arith.constant 0 : i32
    %c0_i32_2 = arith.constant 0 : i32
    return %arg1, %c0_i32, %c0_i32_0, %c0_i32_1 : i32, i32, i32, i32
  }
  func.func @transform_11(%arg0: i32, %arg1: i32) -> (i32, i32, i32) {
    %c0_i32 = arith.constant 0 : i32
    %c0_i32_0 = arith.constant 0 : i32
    %c0_i32_1 = arith.constant 0 : i32
    return %arg1, %c0_i32, %c0_i32_0 : i32, i32, i32
  }
  func.func @transform_12(%arg0: i32, %arg1: i32) -> (i32, i32, i32, i32) {
    %c0_i32 = arith.constant 0 : i32
    %c0_i32_0 = arith.constant 0 : i32
    %c0_i32_1 = arith.constant 0 : i32
    %c0_i32_2 = arith.constant 0 : i32
    return %arg1, %c0_i32, %c0_i32_0, %c0_i32_1 : i32, i32, i32, i32
  }
  func.func @transform_13(%arg0: i32, %arg1: i32) -> (i32, i32, i32, i32) {
    %c0_i32 = arith.constant 0 : i32
    %c0_i32_0 = arith.constant 0 : i32
    %c0_i32_1 = arith.constant 0 : i32
    %c0_i32_2 = arith.constant 0 : i32
    return %arg1, %c0_i32, %c0_i32_0, %c0_i32_1 : i32, i32, i32, i32
  }
  func.func @transform_14(%arg0: i32, %arg1: i32) -> (i32, i32, i32, i32) {
    %c0_i32 = arith.constant 0 : i32
    %c0_i32_0 = arith.constant 0 : i32
    %c0_i32_1 = arith.constant 0 : i32
    %c0_i32_2 = arith.constant 0 : i32
    return %arg1, %c0_i32, %c0_i32_0, %c0_i32_1 : i32, i32, i32, i32
  }
  func.func @transform_15(%arg0: i32, %arg1: i32) -> (i32, i32, i32) {
    %c0_i32 = arith.constant 0 : i32
    %c0_i32_0 = arith.constant 0 : i32
    %c0_i32_1 = arith.constant 0 : i32
    return %arg1, %c0_i32, %c0_i32_0 : i32, i32, i32
  }
  func.func @transform_16(%arg0: i32, %arg1: i32) -> (i32, i32, i32) {
    %c0_i32 = arith.constant 0 : i32
    %c0_i32_0 = arith.constant 0 : i32
    %c0_i32_1 = arith.constant 0 : i32
    return %arg1, %c0_i32, %c0_i32_0 : i32, i32, i32
  }
  func.func @transform_17(%arg0: i32, %arg1: i32) -> (i32, i32, i32) {
    %c0_i32 = arith.constant 0 : i32
    %c0_i32_0 = arith.constant 0 : i32
    %c0_i32_1 = arith.constant 0 : i32
    return %arg1, %c0_i32, %c0_i32_0 : i32, i32, i32
  }
  func.func @transform_18(%arg0: i32, %arg1: i32) -> (i32, i32, i32) {
    %c0_i32 = arith.constant 0 : i32
    %c0_i32_0 = arith.constant 0 : i32
    %c0_i32_1 = arith.constant 0 : i32
    return %arg1, %c0_i32, %c0_i32_0 : i32, i32, i32
  }
  func.func @transform_19(%arg0: i32, %arg1: i32) -> (i32, i32, i32) {
    %c0_i32 = arith.constant 0 : i32
    %c0_i32_0 = arith.constant 0 : i32
    %c0_i32_1 = arith.constant 0 : i32
    return %arg1, %c0_i32, %c0_i32_0 : i32, i32, i32
  }
  func.func @transform_20(%arg0: i32, %arg1: i32) -> (i32, i32, i32) {
    %c0_i32 = arith.constant 0 : i32
    %c0_i32_0 = arith.constant 0 : i32
    %c0_i32_1 = arith.constant 0 : i32
    return %arg1, %c0_i32, %c0_i32_0 : i32, i32, i32
  }
  func.func @transform_21(%arg0: i32, %arg1: i32) -> (i32, i32, i32) {
    %c0_i32 = arith.constant 0 : i32
    %c0_i32_0 = arith.constant 0 : i32
    %c0_i32_1 = arith.constant 0 : i32
    return %arg1, %c0_i32, %c0_i32_0 : i32, i32, i32
  }
  func.func @transform_22(%arg0: i32, %arg1: i32) -> (i32, i32) {
    %c0_i32 = arith.constant 0 : i32
    %c0_i32_0 = arith.constant 0 : i32
    %c0_i32_1 = arith.constant 0 : i32
    return %c0_i32, %c0_i32_0 : i32, i32
  }
  func.func @transform_23(%arg0: i32, %arg1: i32) -> (i32, i32) {
    %c0_i32 = arith.constant 0 : i32
    %c0_i32_0 = arith.constant 0 : i32
    %c0_i32_1 = arith.constant 0 : i32
    return %c0_i32, %c0_i32_0 : i32, i32
  }
  func.func @transform_24(%arg0: i32, %arg1: i32) -> (i32, i32) {
    %c0_i32 = arith.constant 0 : i32
    %c0_i32_0 = arith.constant 0 : i32
    %c0_i32_1 = arith.constant 0 : i32
    return %c0_i32, %c0_i32_0 : i32, i32
  }
  func.func @transform_25(%arg0: i32, %arg1: i32) -> (i32, i32) {
    %c0_i32 = arith.constant 0 : i32
    %c0_i32_0 = arith.constant 0 : i32
    %c0_i32_1 = arith.constant 0 : i32
    return %c0_i32, %c0_i32_0 : i32, i32
  }
  func.func @transform_26(%arg0: i32, %arg1: i32) -> (i32, i32, i32) {
    %c0_i32 = arith.constant 0 : i32
    %c0_i32_0 = arith.constant 0 : i32
    %c0_i32_1 = arith.constant 0 : i32
    return %arg0, %c0_i32, %c0_i32_0 : i32, i32, i32
  }
}

</mosaic_0001>

<llo_original>
// kernel: transformer_decoder_forward.1
$region0: #{transformer_decoder_forward.1}
  #allocation0 [shape = 'u32[]', space=smem, size = 0x4, offset = 0x4, fixed_abs, tag = 'smem constant byte address 0x4 - core index']
  #allocation1 [shape = 'u32[72,128]{1,0:T(1,128)}', space=vmem, size = 0x9000, scoped, tag = 'internal scratch']
  #allocation2 [shape = 'f32[8,256]{1,0:T(8,128)}', space=vmem, size = 0x2000, scoped, tag = 'scratch operand']
  #allocation3 [shape = 'f32[1,1]{1,0:T(1,128)S(1)}', space=vmem, size = 0x200, scoped, tag = 'scoped memory for transformer_decoder_forward.1']
  %s0 = inlined_call_operand.vmem [shape: f32[2,8,1], index: 0, kind: input, shape index: {}]
  %s1 = inlined_call_operand.vmem [shape: bf16[2,8,256], index: 1, kind: input, shape index: {}]
  %s2 = inlined_call_operand.vmem [shape: f32[1,256], index: 2, kind: input, shape index: {}]
  %s3 = inlined_call_operand.vmem [shape: f32[1,256], index: 3, kind: input, shape index: {}]
  %s4 = inlined_call_operand.vmem [shape: bf16[256,256], index: 4, kind: input, shape index: {}]
  %s5 = inlined_call_operand.vmem [shape: f32[1,256], index: 5, kind: input, shape index: {}]
  %s6 = inlined_call_operand.vmem [shape: f32[1,256], index: 6, kind: input, shape index: {}]
  %s7 = inlined_call_operand.vmem [shape: f32[1,256], index: 7, kind: input, shape index: {}]
  %s8 = inlined_call_operand.vmem [shape: bf16[4,24,256,32], index: 8, kind: input, shape index: {}]
  %s9 = inlined_call_operand.vmem [shape: f32[4,24,1,32], index: 9, kind: input, shape index: {}]
  %s10 = inlined_call_operand.vmem [shape: bf16[4,8,32,256], index: 10, kind: input, shape index: {}]
  %s11 = inlined_call_operand.vmem [shape: f32[4,1,256], index: 11, kind: input, shape index: {}]
  %s12 = inlined_call_operand.vmem [shape: bf16[4,24,256,32], index: 12, kind: input, shape index: {}]
  %s13 = inlined_call_operand.vmem [shape: f32[4,24,1,32], index: 13, kind: input, shape index: {}]
  %s14 = inlined_call_operand.vmem [shape: bf16[4,8,32,256], index: 14, kind: input, shape index: {}]
  %s15 = inlined_call_operand.vmem [shape: f32[4,1,256], index: 15, kind: input, shape index: {}]
  %s16 = inlined_call_operand.vmem [shape: bf16[4,256,512], index: 16, kind: input, shape index: {}]
  %s17 = inlined_call_operand.vmem [shape: f32[4,1,512], index: 17, kind: input, shape index: {}]
  %s18 = inlined_call_operand.vmem [shape: bf16[4,512,256], index: 18, kind: input, shape index: {}]
  %s19 = inlined_call_operand.vmem [shape: f32[4,1,256], index: 19, kind: input, shape index: {}]
  %s20 = inlined_call_operand.vmem [shape: f32[4,3,256], index: 20, kind: input, shape index: {}]
  %s21 = inlined_call_operand.vmem [shape: f32[4,3,256], index: 21, kind: input, shape index: {}]
  %s22 = inlined_call_operand.vmem [shape: bf16[256,128], index: 22, kind: input, shape index: {}]
  %s23 = inlined_call_operand.vmem [shape: f32[1,128], index: 23, kind: input, shape index: {}]
  %s24 = inlined_call_operand.vmem [shape: f32[1,128], index: 24, kind: input, shape index: {}]
  %s25 = inlined_call_operand.<no memory space> [shape: f32[1,1], index: 25, kind: input, shape index: {}]
  %s26 = inlined_call_operand.hbm [shape: f32[2,1,8], index: 26, kind: output, shape index: {}]
  %s27 = sld [smem:[#allocation0]]
  $region145: #{transformer_decoder_forward.1} parent=0
    _
  %s29 = ssub.s32 1, %s27
  %s30 = scalar_select 0, %s29, %s27
  %v31 = vstv %s25
  %32 = vst [vmem:[#allocation3] sm:$0x1] %v31
  $region1: #{transformer_decoder_forward.1} parent=0
    #allocation4 [shape = 'u8[1024]{0}', space=vmem, size = 0x400, scoped, tag = 'output window, operand 0']
    #allocation5 [shape = 's32[2]{0}', space=sflag, size = 0x8, scoped, tag = 'scoped memory for transformer_decoder_forward.1']
    %33 = vsyncpa [#allocation5], 0
    %s34 = scalar_lea.sflag [#allocation5], 1
    %35 = vsyncpa %s34, 0
    loop: start=0, step=1, limit=10
    $region2: #{transformer_decoder_forward.1} parent=1 // loop_pre_header
      _
    $region3: #{transformer_decoder_forward.1} parent=1 // loop_header
      %s37 = sphi 0, %s41
      %p38 = scmp.ge.s32.totalorder %s37, 10
      %s44 = sphi 0, %s56
      %s45 = sphi 0, %s52
      %s46 = sphi 0, %s44
      %s47 = sphi 0, %s45
      %s48 = sphi 0, %s46
      %s49 = sphi 0, %s47
      %s59 = sphi 0, %s61
      %s62 = sphi 0, %s59
      %s63 = sphi 0, %s62
      %s79 = sphi 0, %s63
      %s85 = sphi 0, %s87
      %s88 = sphi 0, %s85
      %s89 = sphi 0, %s88
      %s105 = sphi 0, %s89
      %s109 = sphi 0, %s109
      %s111 = sphi 0, %s109
      %s112 = sphi 0, %s111
      %s126 = sphi 0, %s112
      %s130 = sphi 0, %s130
      %s132 = sphi 0, %s130
      %s133 = sphi 0, %s132
      %s147 = sphi 0, %s133
      %s151 = sphi 0, %s151
      %s153 = sphi 0, %s151
      %s154 = sphi 0, %s153
      %s168 = sphi 0, %s154
      %s172 = sphi 0, %s172
      %s174 = sphi 0, %s172
      %s175 = sphi 0, %s174
      %s189 = sphi 0, %s175
      %s193 = sphi 0, %s193
      %s195 = sphi 0, %s193
      %s196 = sphi 0, %s195
      %s210 = sphi 0, %s196
      %s214 = sphi 0, %s214
      %s216 = sphi 0, %s214
      %s217 = sphi 0, %s216
      %s231 = sphi 0, %s217
      %s237 = sphi 0, %s239
      %s240 = sphi 0, %s237
      %s241 = sphi 0, %s240
      %s257 = sphi 0, %s241
      %s263 = sphi 0, %s265
      %s266 = sphi 0, %s263
      %s267 = sphi 0, %s266
      %s283 = sphi 0, %s267
      %s289 = sphi 0, %s291
      %s292 = sphi 0, %s289
      %s293 = sphi 0, %s292
      %s309 = sphi 0, %s293
      %s315 = sphi 0, %s317
      %s318 = sphi 0, %s315
      %s319 = sphi 0, %s318
      %s335 = sphi 0, %s319
      %s341 = sphi 0, %s343
      %s344 = sphi 0, %s341
      %s345 = sphi 0, %s344
      %s361 = sphi 0, %s345
      %s367 = sphi 0, %s369
      %s370 = sphi 0, %s367
      %s371 = sphi 0, %s370
      %s387 = sphi 0, %s371
      %s393 = sphi 0, %s395
      %s396 = sphi 0, %s393
      %s397 = sphi 0, %s396
      %s413 = sphi 0, %s397
      %s419 = sphi 0, %s421
      %s422 = sphi 0, %s419
      %s423 = sphi 0, %s422
      %s439 = sphi 0, %s423
      %s445 = sphi 0, %s447
      %s448 = sphi 0, %s445
      %s449 = sphi 0, %s448
      %s465 = sphi 0, %s449
      %s471 = sphi 0, %s473
      %s474 = sphi 0, %s471
      %s475 = sphi 0, %s474
      %s491 = sphi 0, %s475
      %s497 = sphi 0, %s499
      %s500 = sphi 0, %s497
      %s501 = sphi 0, %s500
      %s517 = sphi 0, %s501
      %s523 = sphi 0, %s525
      %s526 = sphi 0, %s523
      %s527 = sphi 0, %s526
      %s543 = sphi 0, %s527
      %s549 = sphi 0, %s551
      %s552 = sphi 0, %s549
      %s553 = sphi 0, %s552
      %s569 = sphi 0, %s553
      %s575 = sphi 0, %s577
      %s578 = sphi 0, %s575
      %s579 = sphi 0, %s578
      %s595 = sphi 0, %s579
      %s599 = sphi 0, %s599
      %s601 = sphi 0, %s599
      %s602 = sphi 0, %s601
      %s616 = sphi 0, %s602
      %s620 = sphi 0, %s620
      %s622 = sphi 0, %s620
      %s623 = sphi 0, %s622
      %s637 = sphi 0, %s623
      %s641 = sphi 0, %s641
      %s643 = sphi 0, %s641
      %s644 = sphi 0, %s643
      %s658 = sphi 0, %s644
      %s662 = sphi 0, %s662
      %s664 = sphi 0, %s662
      %s665 = sphi 0, %s664
      %s679 = sphi 0, %s665
      %s685 = sphi 0, %s687
      %s688 = sphi 0, %s685
      %s689 = sphi 0, %s688
      %s705 = sphi 0, %s689
    $region4: #{transformer_decoder_forward.1} parent=1 // loop_header_branch
      %40 = sbr.rel (%p38) target = $region8
    $region5: #{transformer_decoder_forward.1} parent=1 // loop_body
      %s42 = ssub.s32 %s37, 1
      %s43 = ssub.s32 %s37, 2
      %s50 = sadd.s32 1, %s45
      %p51 = scmp.ge.s32.totalorder %s50, 4
      %s52 = scalar_select %p51, 0, %s50
      %s53 = sadd.s32 1, %s44
      %s54 = scalar_select %p51, %s53, %s44
      %p55 = scmp.ge.s32.totalorder %s54, 2
      %s56 = scalar_select %p55, 0, %s54
      %s57 = ssub.s32 %s44, %s56
      %p58 = scmp.eq.s32.totalorder %s57, 0
      %s60 = sadd.s32 %s59, 1
      %s61 = scalar_select %p58, %s59, %s60
      %p64 = pneg %p58
      %p65 = scmp.eq.s32.totalorder %s37, 7
      %p66 = por %p64, %p65
      %p67 = scmp.ne.s32.totalorder %s59, %s62
      %p68 = scmp.eq.s32.totalorder %s37, 0
      %p69 = por %p67, %p68
      %p70 = scmp.ne.s32.totalorder %s59, %s62
      %p71 = scmp.eq.s32.totalorder %s42, 7
      %p72 = por %p70, %p71
      %p73 = scmp.ne.s32.totalorder %s62, %s63
      %p74 = scmp.eq.s32.totalorder %s42, 0
      %p75 = por %p73, %p74
      %p76 = scmp.ne.s32.totalorder %s62, %s63
      %p77 = scmp.eq.s32.totalorder %s43, 7
      %p78 = por %p76, %p77
      %p80 = scmp.ne.s32.totalorder %s63, %s79
      %p81 = scmp.eq.s32.totalorder %s43, 0
      %p82 = por %p80, %p81
      %s83 = ssub.s32 %s44, %s56
      %p84 = scmp.eq.s32.totalorder %s83, 0
      %s86 = sadd.s32 %s85, 1
      %s87 = scalar_select %p84, %s85, %s86
      %p90 = pneg %p84
      %p91 = scmp.eq.s32.totalorder %s37, 7
      %p92 = por %p90, %p91
      %p93 = scmp.ne.s32.totalorder %s85, %s88
      %p94 = scmp.eq.s32.totalorder %s37, 0
      %p95 = por %p93, %p94
      %p96 = scmp.ne.s32.totalorder %s85, %s88
      %p97 = scmp.eq.s32.totalorder %s42, 7
      %p98 = por %p96, %p97
      %p99 = scmp.ne.s32.totalorder %s88, %s89
      %p100 = scmp.eq.s32.totalorder %s42, 0
      %p101 = por %p99, %p100
      %p102 = scmp.ne.s32.totalorder %s88, %s89
      %p103 = scmp.eq.s32.totalorder %s43, 7
      %p104 = por %p102, %p103
      %p106 = scmp.ne.s32.totalorder %s89, %s105
      %p107 = scmp.eq.s32.totalorder %s43, 0
      %p108 = por %p106, %p107
      %s110 = sadd.s32 %s109, 1
      %p113 = scmp.eq.s32.totalorder %s37, 7
      %p114 = scmp.ne.s32.totalorder %s109, %s111
      %p115 = scmp.eq.s32.totalorder %s37, 0
      %p116 = por %p114, %p115
      %p117 = scmp.ne.s32.totalorder %s109, %s111
      %p118 = scmp.eq.s32.totalorder %s42, 7
      %p119 = por %p117, %p118
      %p120 = scmp.ne.s32.totalorder %s111, %s112
      %p121 = scmp.eq.s32.totalorder %s42, 0
      %p122 = por %p120, %p121
      %p123 = scmp.ne.s32.totalorder %s111, %s112
      %p124 = scmp.eq.s32.totalorder %s43, 7
      %p125 = por %p123, %p124
      %p127 = scmp.ne.s32.totalorder %s112, %s126
      %p128 = scmp.eq.s32.totalorder %s43, 0
      %p129 = por %p127, %p128
      %s131 = sadd.s32 %s130, 1
      %p134 = scmp.eq.s32.totalorder %s37, 7
      %p135 = scmp.ne.s32.totalorder %s130, %s132
      %p136 = scmp.eq.s32.totalorder %s37, 0
      %p137 = por %p135, %p136
      %p138 = scmp.ne.s32.totalorder %s130, %s132
      %p139 = scmp.eq.s32.totalorder %s42, 7
      %p140 = por %p138, %p139
      %p141 = scmp.ne.s32.totalorder %s132, %s133
      %p142 = scmp.eq.s32.totalorder %s42, 0
      %p143 = por %p141, %p142
      %p144 = scmp.ne.s32.totalorder %s132, %s133
      %p145 = scmp.eq.s32.totalorder %s43, 7
      %p146 = por %p144, %p145
      %p148 = scmp.ne.s32.totalorder %s133, %s147
      %p149 = scmp.eq.s32.totalorder %s43, 0
      %p150 = por %p148, %p149
      %s152 = sadd.s32 %s151, 1
      %p155 = scmp.eq.s32.totalorder %s37, 7
      %p156 = scmp.ne.s32.totalorder %s151, %s153
      %p157 = scmp.eq.s32.totalorder %s37, 0
      %p158 = por %p156, %p157
      %p159 = scmp.ne.s32.totalorder %s151, %s153
      %p160 = scmp.eq.s32.totalorder %s42, 7
      %p161 = por %p159, %p160
      %p162 = scmp.ne.s32.totalorder %s153, %s154
      %p163 = scmp.eq.s32.totalorder %s42, 0
      %p164 = por %p162, %p163
      %p165 = scmp.ne.s32.totalorder %s153, %s154
      %p166 = scmp.eq.s32.totalorder %s43, 7
      %p167 = por %p165, %p166
      %p169 = scmp.ne.s32.totalorder %s154, %s168
      %p170 = scmp.eq.s32.totalorder %s43, 0
      %p171 = por %p169, %p170
      %s173 = sadd.s32 %s172, 1
      %p176 = scmp.eq.s32.totalorder %s37, 7
      %p177 = scmp.ne.s32.totalorder %s172, %s174
      %p178 = scmp.eq.s32.totalorder %s37, 0
      %p179 = por %p177, %p178
      %p180 = scmp.ne.s32.totalorder %s172, %s174
      %p181 = scmp.eq.s32.totalorder %s42, 7
      %p182 = por %p180, %p181
      %p183 = scmp.ne.s32.totalorder %s174, %s175
      %p184 = scmp.eq.s32.totalorder %s42, 0
      %p185 = por %p183, %p184
      %p186 = scmp.ne.s32.totalorder %s174, %s175
      %p187 = scmp.eq.s32.totalorder %s43, 7
      %p188 = por %p186, %p187
      %p190 = scmp.ne.s32.totalorder %s175, %s189
      %p191 = scmp.eq.s32.totalorder %s43, 0
      %p192 = por %p190, %p191
      %s194 = sadd.s32 %s193, 1
      %p197 = scmp.eq.s32.totalorder %s37, 7
      %p198 = scmp.ne.s32.totalorder %s193, %s195
      %p199 = scmp.eq.s32.totalorder %s37, 0
      %p200 = por %p198, %p199
      %p201 = scmp.ne.s32.totalorder %s193, %s195
      %p202 = scmp.eq.s32.totalorder %s42, 7
      %p203 = por %p201, %p202
      %p204 = scmp.ne.s32.totalorder %s195, %s196
      %p205 = scmp.eq.s32.totalorder %s42, 0
      %p206 = por %p204, %p205
      %p207 = scmp.ne.s32.totalorder %s195, %s196
      %p208 = scmp.eq.s32.totalorder %s43, 7
      %p209 = por %p207, %p208
      %p211 = scmp.ne.s32.totalorder %s196, %s210
      %p212 = scmp.eq.s32.totalorder %s43, 0
      %p213 = por %p211, %p212
      %s215 = sadd.s32 %s214, 1
      %p218 = scmp.eq.s32.totalorder %s37, 7
      %p219 = scmp.ne.s32.totalorder %s214, %s216
      %p220 = scmp.eq.s32.totalorder %s37, 0
      %p221 = por %p219, %p220
      %p222 = scmp.ne.s32.totalorder %s214, %s216
      %p223 = scmp.eq.s32.totalorder %s42, 7
      %p224 = por %p222, %p223
      %p225 = scmp.ne.s32.totalorder %s216, %s217
      %p226 = scmp.eq.s32.totalorder %s42, 0
      %p227 = por %p225, %p226
      %p228 = scmp.ne.s32.totalorder %s216, %s217
      %p229 = scmp.eq.s32.totalorder %s43, 7
      %p230 = por %p228, %p229
      %p232 = scmp.ne.s32.totalorder %s217, %s231
      %p233 = scmp.eq.s32.totalorder %s43, 0
      %p234 = por %p232, %p233
      %s235 = ssub.s32 %s45, %s52
      %p236 = scmp.eq.s32.totalorder %s235, 0
      %s238 = sadd.s32 %s237, 1
      %s239 = scalar_select %p236, %s237, %s238
      %p242 = pneg %p236
      %p243 = scmp.eq.s32.totalorder %s37, 7
      %p244 = por %p242, %p243
      %p245 = scmp.ne.s32.totalorder %s237, %s240
      %p246 = scmp.eq.s32.totalorder %s37, 0
      %p247 = por %p245, %p246
      %p248 = scmp.ne.s32.totalorder %s237, %s240
      %p249 = scmp.eq.s32.totalorder %s42, 7
      %p250 = por %p248, %p249
      %p251 = scmp.ne.s32.totalorder %s240, %s241
      %p252 = scmp.eq.s32.totalorder %s42, 0
      %p253 = por %p251, %p252
      %p254 = scmp.ne.s32.totalorder %s240, %s241
      %p255 = scmp.eq.s32.totalorder %s43, 7
      %p256 = por %p254, %p255
      %p258 = scmp.ne.s32.totalorder %s241, %s257
      %p259 = scmp.eq.s32.totalorder %s43, 0
      %p260 = por %p258, %p259
      %s261 = ssub.s32 %s45, %s52
      %p262 = scmp.eq.s32.totalorder %s261, 0
      %s264 = sadd.s32 %s263, 1
      %s265 = scalar_select %p262, %s263, %s264
      %p268 = pneg %p262
      %p269 = scmp.eq.s32.totalorder %s37, 7
      %p270 = por %p268, %p269
      %p271 = scmp.ne.s32.totalorder %s263, %s266
      %p272 = scmp.eq.s32.totalorder %s37, 0
      %p273 = por %p271, %p272
      %p274 = scmp.ne.s32.totalorder %s263, %s266
      %p275 = scmp.eq.s32.totalorder %s42, 7
      %p276 = por %p274, %p275
      %p277 = scmp.ne.s32.totalorder %s266, %s267
      %p278 = scmp.eq.s32.totalorder %s42, 0
      %p279 = por %p277, %p278
      %p280 = scmp.ne.s32.totalorder %s266, %s267
      %p281 = scmp.eq.s32.totalorder %s43, 7
      %p282 = por %p280, %p281
      %p284 = scmp.ne.s32.totalorder %s267, %s283
      %p285 = scmp.eq.s32.totalorder %s43, 0
      %p286 = por %p284, %p285
      %s287 = ssub.s32 %s45, %s52
      %p288 = scmp.eq.s32.totalorder %s287, 0
      %s290 = sadd.s32 %s289, 1
      %s291 = scalar_select %p288, %s289, %s290
      %p294 = pneg %p288
      %p295 = scmp.eq.s32.totalorder %s37, 7
      %p296 = por %p294, %p295
      %p297 = scmp.ne.s32.totalorder %s289, %s292
      %p298 = scmp.eq.s32.totalorder %s37, 0
      %p299 = por %p297, %p298
      %p300 = scmp.ne.s32.totalorder %s289, %s292
      %p301 = scmp.eq.s32.totalorder %s42, 7
      %p302 = por %p300, %p301
      %p303 = scmp.ne.s32.totalorder %s292, %s293
      %p304 = scmp.eq.s32.totalorder %s42, 0
      %p305 = por %p303, %p304
      %p306 = scmp.ne.s32.totalorder %s292, %s293
      %p307 = scmp.eq.s32.totalorder %s43, 7
      %p308 = por %p306, %p307
      %p310 = scmp.ne.s32.totalorder %s293, %s309
      %p311 = scmp.eq.s32.totalorder %s43, 0
      %p312 = por %p310, %p311
      %s313 = ssub.s32 %s45, %s52
      %p314 = scmp.eq.s32.totalorder %s313, 0
      %s316 = sadd.s32 %s315, 1
      %s317 = scalar_select %p314, %s315, %s316
      %p320 = pneg %p314
      %p321 = scmp.eq.s32.totalorder %s37, 7
      %p322 = por %p320, %p321
      %p323 = scmp.ne.s32.totalorder %s315, %s318
      %p324 = scmp.eq.s32.totalorder %s37, 0
      %p325 = por %p323, %p324
      %p326 = scmp.ne.s32.totalorder %s315, %s318
      %p327 = scmp.eq.s32.totalorder %s42, 7
      %p328 = por %p326, %p327
      %p329 = scmp.ne.s32.totalorder %s318, %s319
      %p330 = scmp.eq.s32.totalorder %s42, 0
      %p331 = por %p329, %p330
      %p332 = scmp.ne.s32.totalorder %s318, %s319
      %p333 = scmp.eq.s32.totalorder %s43, 7
      %p334 = por %p332, %p333
      %p336 = scmp.ne.s32.totalorder %s319, %s335
      %p337 = scmp.eq.s32.totalorder %s43, 0
      %p338 = por %p336, %p337
      %s339 = ssub.s32 %s45, %s52
      %p340 = scmp.eq.s32.totalorder %s339, 0
      %s342 = sadd.s32 %s341, 1
      %s343 = scalar_select %p340, %s341, %s342
      %p346 = pneg %p340
      %p347 = scmp.eq.s32.totalorder %s37, 7
      %p348 = por %p346, %p347
      %p349 = scmp.ne.s32.totalorder %s341, %s344
      %p350 = scmp.eq.s32.totalorder %s37, 0
      %p351 = por %p349, %p350
      %p352 = scmp.ne.s32.totalorder %s341, %s344
      %p353 = scmp.eq.s32.totalorder %s42, 7
      %p354 = por %p352, %p353
      %p355 = scmp.ne.s32.totalorder %s344, %s345
      %p356 = scmp.eq.s32.totalorder %s42, 0
      %p357 = por %p355, %p356
      %p358 = scmp.ne.s32.totalorder %s344, %s345
      %p359 = scmp.eq.s32.totalorder %s43, 7
      %p360 = por %p358, %p359
      %p362 = scmp.ne.s32.totalorder %s345, %s361
      %p363 = scmp.eq.s32.totalorder %s43, 0
      %p364 = por %p362, %p363
      %s365 = ssub.s32 %s45, %s52
      %p366 = scmp.eq.s32.totalorder %s365, 0
      %s368 = sadd.s32 %s367, 1
      %s369 = scalar_select %p366, %s367, %s368
      %p372 = pneg %p366
      %p373 = scmp.eq.s32.totalorder %s37, 7
      %p374 = por %p372, %p373
      %p375 = scmp.ne.s32.totalorder %s367, %s370
      %p376 = scmp.eq.s32.totalorder %s37, 0
      %p377 = por %p375, %p376
      %p378 = scmp.ne.s32.totalorder %s367, %s370
      %p379 = scmp.eq.s32.totalorder %s42, 7
      %p380 = por %p378, %p379
      %p381 = scmp.ne.s32.totalorder %s370, %s371
      %p382 = scmp.eq.s32.totalorder %s42, 0
      %p383 = por %p381, %p382
      %p384 = scmp.ne.s32.totalorder %s370, %s371
      %p385 = scmp.eq.s32.totalorder %s43, 7
      %p386 = por %p384, %p385
      %p388 = scmp.ne.s32.totalorder %s371, %s387
      %p389 = scmp.eq.s32.totalorder %s43, 0
      %p390 = por %p388, %p389
      %s391 = ssub.s32 %s45, %s52
      %p392 = scmp.eq.s32.totalorder %s391, 0
      %s394 = sadd.s32 %s393, 1
      %s395 = scalar_select %p392, %s393, %s394
      %p398 = pneg %p392
      %p399 = scmp.eq.s32.totalorder %s37, 7
      %p400 = por %p398, %p399
      %p401 = scmp.ne.s32.totalorder %s393, %s396
      %p402 = scmp.eq.s32.totalorder %s37, 0
      %p403 = por %p401, %p402
      %p404 = scmp.ne.s32.totalorder %s393, %s396
      %p405 = scmp.eq.s32.totalorder %s42, 7
      %p406 = por %p404, %p405
      %p407 = scmp.ne.s32.totalorder %s396, %s397
      %p408 = scmp.eq.s32.totalorder %s42, 0
      %p409 = por %p407, %p408
      %p410 = scmp.ne.s32.totalorder %s396, %s397
      %p411 = scmp.eq.s32.totalorder %s43, 7
      %p412 = por %p410, %p411
      %p414 = scmp.ne.s32.totalorder %s397, %s413
      %p415 = scmp.eq.s32.totalorder %s43, 0
      %p416 = por %p414, %p415
      %s417 = ssub.s32 %s45, %s52
      %p418 = scmp.eq.s32.totalorder %s417, 0
      %s420 = sadd.s32 %s419, 1
      %s421 = scalar_select %p418, %s419, %s420
      %p424 = pneg %p418
      %p425 = scmp.eq.s32.totalorder %s37, 7
      %p426 = por %p424, %p425
      %p427 = scmp.ne.s32.totalorder %s419, %s422
      %p428 = scmp.eq.s32.totalorder %s37, 0
      %p429 = por %p427, %p428
      %p430 = scmp.ne.s32.totalorder %s419, %s422
      %p431 = scmp.eq.s32.totalorder %s42, 7
      %p432 = por %p430, %p431
      %p433 = scmp.ne.s32.totalorder %s422, %s423
      %p434 = scmp.eq.s32.totalorder %s42, 0
      %p435 = por %p433, %p434
      %p436 = scmp.ne.s32.totalorder %s422, %s423
      %p437 = scmp.eq.s32.totalorder %s43, 7
      %p438 = por %p436, %p437
      %p440 = scmp.ne.s32.totalorder %s423, %s439
      %p441 = scmp.eq.s32.totalorder %s43, 0
      %p442 = por %p440, %p441
      %s443 = ssub.s32 %s45, %s52
      %p444 = scmp.eq.s32.totalorder %s443, 0
      %s446 = sadd.s32 %s445, 1
      %s447 = scalar_select %p444, %s445, %s446
      %p450 = pneg %p444
      %p451 = scmp.eq.s32.totalorder %s37, 7
      %p452 = por %p450, %p451
      %p453 = scmp.ne.s32.totalorder %s445, %s448
      %p454 = scmp.eq.s32.totalorder %s37, 0
      %p455 = por %p453, %p454
      %p456 = scmp.ne.s32.totalorder %s445, %s448
      %p457 = scmp.eq.s32.totalorder %s42, 7
      %p458 = por %p456, %p457
      %p459 = scmp.ne.s32.totalorder %s448, %s449
      %p460 = scmp.eq.s32.totalorder %s42, 0
      %p461 = por %p459, %p460
      %p462 = scmp.ne.s32.totalorder %s448, %s449
      %p463 = scmp.eq.s32.totalorder %s43, 7
      %p464 = por %p462, %p463
      %p466 = scmp.ne.s32.totalorder %s449, %s465
      %p467 = scmp.eq.s32.totalorder %s43, 0
      %p468 = por %p466, %p467
      %s469 = ssub.s32 %s45, %s52
      %p470 = scmp.eq.s32.totalorder %s469, 0
      %s472 = sadd.s32 %s471, 1
      %s473 = scalar_select %p470, %s471, %s472
      %p476 = pneg %p470
      %p477 = scmp.eq.s32.totalorder %s37, 7
      %p478 = por %p476, %p477
      %p479 = scmp.ne.s32.totalorder %s471, %s474
      %p480 = scmp.eq.s32.totalorder %s37, 0
      %p481 = por %p479, %p480
      %p482 = scmp.ne.s32.totalorder %s471, %s474
      %p483 = scmp.eq.s32.totalorder %s42, 7
      %p484 = por %p482, %p483
      %p485 = scmp.ne.s32.totalorder %s474, %s475
      %p486 = scmp.eq.s32.totalorder %s42, 0
      %p487 = por %p485, %p486
      %p488 = scmp.ne.s32.totalorder %s474, %s475
      %p489 = scmp.eq.s32.totalorder %s43, 7
      %p490 = por %p488, %p489
      %p492 = scmp.ne.s32.totalorder %s475, %s491
      %p493 = scmp.eq.s32.totalorder %s43, 0
      %p494 = por %p492, %p493
      %s495 = ssub.s32 %s45, %s52
      %p496 = scmp.eq.s32.totalorder %s495, 0
      %s498 = sadd.s32 %s497, 1
      %s499 = scalar_select %p496, %s497, %s498
      %p502 = pneg %p496
      %p503 = scmp.eq.s32.totalorder %s37, 7
      %p504 = por %p502, %p503
      %p505 = scmp.ne.s32.totalorder %s497, %s500
      %p506 = scmp.eq.s32.totalorder %s37, 0
      %p507 = por %p505, %p506
      %p508 = scmp.ne.s32.totalorder %s497, %s500
      %p509 = scmp.eq.s32.totalorder %s42, 7
      %p510 = por %p508, %p509
      %p511 = scmp.ne.s32.totalorder %s500, %s501
      %p512 = scmp.eq.s32.totalorder %s42, 0
      %p513 = por %p511, %p512
      %p514 = scmp.ne.s32.totalorder %s500, %s501
      %p515 = scmp.eq.s32.totalorder %s43, 7
      %p516 = por %p514, %p515
      %p518 = scmp.ne.s32.totalorder %s501, %s517
      %p519 = scmp.eq.s32.totalorder %s43, 0
      %p520 = por %p518, %p519
      %s521 = ssub.s32 %s45, %s52
      %p522 = scmp.eq.s32.totalorder %s521, 0
      %s524 = sadd.s32 %s523, 1
      %s525 = scalar_select %p522, %s523, %s524
      %p528 = pneg %p522
      %p529 = scmp.eq.s32.totalorder %s37, 7
      %p530 = por %p528, %p529
      %p531 = scmp.ne.s32.totalorder %s523, %s526
      %p532 = scmp.eq.s32.totalorder %s37, 0
      %p533 = por %p531, %p532
      %p534 = scmp.ne.s32.totalorder %s523, %s526
      %p535 = scmp.eq.s32.totalorder %s42, 7
      %p536 = por %p534, %p535
      %p537 = scmp.ne.s32.totalorder %s526, %s527
      %p538 = scmp.eq.s32.totalorder %s42, 0
      %p539 = por %p537, %p538
      %p540 = scmp.ne.s32.totalorder %s526, %s527
      %p541 = scmp.eq.s32.totalorder %s43, 7
      %p542 = por %p540, %p541
      %p544 = scmp.ne.s32.totalorder %s527, %s543
      %p545 = scmp.eq.s32.totalorder %s43, 0
      %p546 = por %p544, %p545
      %s547 = ssub.s32 %s45, %s52
      %p548 = scmp.eq.s32.totalorder %s547, 0
      %s550 = sadd.s32 %s549, 1
      %s551 = scalar_select %p548, %s549, %s550
      %p554 = pneg %p548
      %p555 = scmp.eq.s32.totalorder %s37, 7
      %p556 = por %p554, %p555
      %p557 = scmp.ne.s32.totalorder %s549, %s552
      %p558 = scmp.eq.s32.totalorder %s37, 0
      %p559 = por %p557, %p558
      %p560 = scmp.ne.s32.totalorder %s549, %s552
      %p561 = scmp.eq.s32.totalorder %s42, 7
      %p562 = por %p560, %p561
      %p563 = scmp.ne.s32.totalorder %s552, %s553
      %p564 = scmp.eq.s32.totalorder %s42, 0
      %p565 = por %p563, %p564
      %p566 = scmp.ne.s32.totalorder %s552, %s553
      %p567 = scmp.eq.s32.totalorder %s43, 7
      %p568 = por %p566, %p567
      %p570 = scmp.ne.s32.totalorder %s553, %s569
      %p571 = scmp.eq.s32.totalorder %s43, 0
      %p572 = por %p570, %p571
      %s573 = ssub.s32 %s45, %s52
      %p574 = scmp.eq.s32.totalorder %s573, 0
      %s576 = sadd.s32 %s575, 1
      %s577 = scalar_select %p574, %s575, %s576
      %p580 = pneg %p574
      %p581 = scmp.eq.s32.totalorder %s37, 7
      %p582 = por %p580, %p581
      %p583 = scmp.ne.s32.totalorder %s575, %s578
      %p584 = scmp.eq.s32.totalorder %s37, 0
      %p585 = por %p583, %p584
      %p586 = scmp.ne.s32.totalorder %s575, %s578
      %p587 = scmp.eq.s32.totalorder %s42, 7
      %p588 = por %p586, %p587
      %p589 = scmp.ne.s32.totalorder %s578, %s579
      %p590 = scmp.eq.s32.totalorder %s42, 0
      %p591 = por %p589, %p590
      %p592 = scmp.ne.s32.totalorder %s578, %s579
      %p593 = scmp.eq.s32.totalorder %s43, 7
      %p594 = por %p592, %p593
      %p596 = scmp.ne.s32.totalorder %s579, %s595
      %p597 = scmp.eq.s32.totalorder %s43, 0
      %p598 = por %p596, %p597
      %s600 = sadd.s32 %s599, 1
      %p603 = scmp.eq.s32.totalorder %s37, 7
      %p604 = scmp.ne.s32.totalorder %s599, %s601
      %p605 = scmp.eq.s32.totalorder %s37, 0
      %p606 = por %p604, %p605
      %p607 = scmp.ne.s32.totalorder %s599, %s601
      %p608 = scmp.eq.s32.totalorder %s42, 7
      %p609 = por %p607, %p608
      %p610 = scmp.ne.s32.totalorder %s601, %s602
      %p611 = scmp.eq.s32.totalorder %s42, 0
      %p612 = por %p610, %p611
      %p613 = scmp.ne.s32.totalorder %s601, %s602
      %p614 = scmp.eq.s32.totalorder %s43, 7
      %p615 = por %p613, %p614
      %p617 = scmp.ne.s32.totalorder %s602, %s616
      %p618 = scmp.eq.s32.totalorder %s43, 0
      %p619 = por %p617, %p618
      %s621 = sadd.s32 %s620, 1
      %p624 = scmp.eq.s32.totalorder %s37, 7
      %p625 = scmp.ne.s32.totalorder %s620, %s622
      %p626 = scmp.eq.s32.totalorder %s37, 0
      %p627 = por %p625, %p626
      %p628 = scmp.ne.s32.totalorder %s620, %s622
      %p629 = scmp.eq.s32.totalorder %s42, 7
      %p630 = por %p628, %p629
      %p631 = scmp.ne.s32.totalorder %s622, %s623
      %p632 = scmp.eq.s32.totalorder %s42, 0
      %p633 = por %p631, %p632
      %p634 = scmp.ne.s32.totalorder %s622, %s623
      %p635 = scmp.eq.s32.totalorder %s43, 7
      %p636 = por %p634, %p635
      %p638 = scmp.ne.s32.totalorder %s623, %s637
      %p639 = scmp.eq.s32.totalorder %s43, 0
      %p640 = por %p638, %p639
      %s642 = sadd.s32 %s641, 1
      %p645 = scmp.eq.s32.totalorder %s37, 7
      %p646 = scmp.ne.s32.totalorder %s641, %s643
      %p647 = scmp.eq.s32.totalorder %s37, 0
      %p648 = por %p646, %p647
      %p649 = scmp.ne.s32.totalorder %s641, %s643
      %p650 = scmp.eq.s32.totalorder %s42, 7
      %p651 = por %p649, %p650
      %p652 = scmp.ne.s32.totalorder %s643, %s644
      %p653 = scmp.eq.s32.totalorder %s42, 0
      %p654 = por %p652, %p653
      %p655 = scmp.ne.s32.totalorder %s643, %s644
      %p656 = scmp.eq.s32.totalorder %s43, 7
      %p657 = por %p655, %p656
      %p659 = scmp.ne.s32.totalorder %s644, %s658
      %p660 = scmp.eq.s32.totalorder %s43, 0
      %p661 = por %p659, %p660
      %s663 = sadd.s32 %s662, 1
      %p666 = scmp.eq.s32.totalorder %s37, 7
      %p667 = scmp.ne.s32.totalorder %s662, %s664
      %p668 = scmp.eq.s32.totalorder %s37, 0
      %p669 = por %p667, %p668
      %p670 = scmp.ne.s32.totalorder %s662, %s664
      %p671 = scmp.eq.s32.totalorder %s42, 7
      %p672 = por %p670, %p671
      %p673 = scmp.ne.s32.totalorder %s664, %s665
      %p674 = scmp.eq.s32.totalorder %s42, 0
      %p675 = por %p673, %p674
      %p676 = scmp.ne.s32.totalorder %s664, %s665
      %p677 = scmp.eq.s32.totalorder %s43, 7
      %p678 = por %p676, %p677
      %p680 = scmp.ne.s32.totalorder %s665, %s679
      %p681 = scmp.eq.s32.totalorder %s43, 0
      %p682 = por %p680, %p681
      %s683 = ssub.s32 %s44, %s56
      %p684 = scmp.eq.s32.totalorder %s683, 0
      %s686 = sadd.s32 %s685, 1
      %s687 = scalar_select %p684, %s685, %s686
      %p690 = pneg %p684
      %p691 = scmp.eq.s32.totalorder %s37, 7
      %p692 = por %p690, %p691
      %p693 = scmp.ne.s32.totalorder %s685, %s688
      %p694 = scmp.eq.s32.totalorder %s37, 0
      %p695 = por %p693, %p694
      %p696 = scmp.ne.s32.totalorder %s685, %s688
      %p697 = scmp.eq.s32.totalorder %s42, 7
      %p698 = por %p696, %p697
      %p699 = scmp.ne.s32.totalorder %s688, %s689
      %p700 = scmp.eq.s32.totalorder %s42, 0
      %p701 = por %p699, %p700
      %p702 = scmp.ne.s32.totalorder %s688, %s689
      %p703 = scmp.eq.s32.totalorder %s43, 7
      %p704 = por %p702, %p703
      %p706 = scmp.ne.s32.totalorder %s689, %s705
      %p707 = scmp.eq.s32.totalorder %s43, 0
      %p708 = por %p706, %p707
      %p709 = scmp.le.s32.totalorder 1, %s37
      %p710 = scmp.lt.s32.totalorder %s37, 9
      %p711 = pnand %p709, %p710
      %p712 = pneg %p711
      // Predicated region
      $region9: #{transformer_decoder_forward.1} parent=5 // pred_check
        _
      $region10: #{transformer_decoder_forward.1} parent=5 // pred_check_branch
        %714 = sbr.rel (%p711) target = $region12
      $region11: #{transformer_decoder_forward.1} parent=5 // pred_region
        %s715 = ssub.s32 %s37, 1
        // Predicated region
        $region13: #{transformer_decoder_forward.1} parent=11 // pred_check
          %p716 = pneg %p122
        $region14: #{transformer_decoder_forward.1} parent=11 // pred_check_branch
          %718 = sbr.rel (%p716) target = $region16
        $region15: #{transformer_decoder_forward.1} parent=11 // pred_region
          _
        $region16: #{transformer_decoder_forward.1} parent=11 // pred_fallthru
          _
        // Predicated region
        $region17: #{transformer_decoder_forward.1} parent=11 // pred_check
          %p719 = pneg %p143
        $region18: #{transformer_decoder_forward.1} parent=11 // pred_check_branch
          %721 = sbr.rel (%p719) target = $region20
        $region19: #{transformer_decoder_forward.1} parent=11 // pred_region
          _
        $region20: #{transformer_decoder_forward.1} parent=11 // pred_fallthru
          _
        // Predicated region
        $region21: #{transformer_decoder_forward.1} parent=11 // pred_check
          %p722 = pneg %p164
        $region22: #{transformer_decoder_forward.1} parent=11 // pred_check_branch
          %724 = sbr.rel (%p722) target = $region24
        $region23: #{transformer_decoder_forward.1} parent=11 // pred_region
          _
        $region24: #{transformer_decoder_forward.1} parent=11 // pred_fallthru
          _
        // Predicated region
        $region25: #{transformer_decoder_forward.1} parent=11 // pred_check
          %p725 = pneg %p185
        $region26: #{transformer_decoder_forward.1} parent=11 // pred_check_branch
          %727 = sbr.rel (%p725) target = $region28
        $region27: #{transformer_decoder_forward.1} parent=11 // pred_region
          _
        $region28: #{transformer_decoder_forward.1} parent=11 // pred_fallthru
          _
        // Predicated region
        $region29: #{transformer_decoder_forward.1} parent=11 // pred_check
          %p728 = pneg %p206
        $region30: #{transformer_decoder_forward.1} parent=11 // pred_check_branch
          %730 = sbr.rel (%p728) target = $region32
        $region31: #{transformer_decoder_forward.1} parent=11 // pred_region
          _
        $region32: #{transformer_decoder_forward.1} parent=11 // pred_fallthru
          _
        // Predicated region
        $region33: #{transformer_decoder_forward.1} parent=11 // pred_check
          %p731 = pneg %p227
        $region34: #{transformer_decoder_forward.1} parent=11 // pred_check_branch
          %733 = sbr.rel (%p731) target = $region36
        $region35: #{transformer_decoder_forward.1} parent=11 // pred_region
          _
        $region36: #{transformer_decoder_forward.1} parent=11 // pred_fallthru
          _
        // Predicated region
        $region37: #{transformer_decoder_forward.1} parent=11 // pred_check
          %p734 = pneg %p612
        $region38: #{transformer_decoder_forward.1} parent=11 // pred_check_branch
          %736 = sbr.rel (%p734) target = $region40
        $region39: #{transformer_decoder_forward.1} parent=11 // pred_region
          _
        $region40: #{transformer_decoder_forward.1} parent=11 // pred_fallthru
          _
        // Predicated region
        $region41: #{transformer_decoder_forward.1} parent=11 // pred_check
          %p737 = pneg %p633
        $region42: #{transformer_decoder_forward.1} parent=11 // pred_check_branch
          %739 = sbr.rel (%p737) target = $region44
        $region43: #{transformer_decoder_forward.1} parent=11 // pred_region
          _
        $region44: #{transformer_decoder_forward.1} parent=11 // pred_fallthru
          _
        // Predicated region
        $region45: #{transformer_decoder_forward.1} parent=11 // pred_check
          %p740 = pneg %p654
        $region46: #{transformer_decoder_forward.1} parent=11 // pred_check_branch
          %742 = sbr.rel (%p740) target = $region48
        $region47: #{transformer_decoder_forward.1} parent=11 // pred_region
          _
        $region48: #{transformer_decoder_forward.1} parent=11 // pred_fallthru
          _
        // Predicated region
        $region49: #{transformer_decoder_forward.1} parent=11 // pred_check
          %p743 = pneg %p675
        $region50: #{transformer_decoder_forward.1} parent=11 // pred_check_branch
          %745 = sbr.rel (%p743) target = $region52
        $region51: #{transformer_decoder_forward.1} parent=11 // pred_region
          _
        $region52: #{transformer_decoder_forward.1} parent=11 // pred_fallthru
          _
      $region12: #{transformer_decoder_forward.1} parent=5 // pred_fallthru
        _
      %p746 = scmp.lt.s32.totalorder %s37, 8
      // Predicated region
      $region53: #{transformer_decoder_forward.1} parent=5 // pred_check
        %p747 = pneg %p746
      $region54: #{transformer_decoder_forward.1} parent=5 // pred_check_branch
        %749 = sbr.rel (%p747) target = $region56
      $region55: #{transformer_decoder_forward.1} parent=5 // pred_region
        // Predicated region
        $region57: #{transformer_decoder_forward.1} parent=55 // pred_check
          %p750 = pneg %p69
        $region58: #{transformer_decoder_forward.1} parent=55 // pred_check_branch
          %752 = sbr.rel (%p750) target = $region60
        $region59: #{transformer_decoder_forward.1} parent=55 // pred_region
          %p753 = scmp.lt.s32.totalorder %s44, 1
          %s754 = scalar_select %p753, %s44, 1
          %s755 = smul.addr %s754, 8
          %s756 = scalar_lea.vmem %s0, %s755
        $region60: #{transformer_decoder_forward.1} parent=55 // pred_fallthru
          _
        // Predicated region
        $region61: #{transformer_decoder_forward.1} parent=55 // pred_check
          %p757 = pneg %p95
        $region62: #{transformer_decoder_forward.1} parent=55 // pred_check_branch
          %759 = sbr.rel (%p757) target = $region64
        $region63: #{transformer_decoder_forward.1} parent=55 // pred_region
          %p760 = scmp.lt.s32.totalorder %s44, 1
          %s761 = scalar_select %p760, %s44, 1
          %s762 = smul.addr %s761, 2
          %s763 = smul.addr %s762, 4
          %s764 = scalar_lea.vmem %s1, %s763
        $region64: #{transformer_decoder_forward.1} parent=55 // pred_fallthru
          _
        // Predicated region
        $region65: #{transformer_decoder_forward.1} parent=55 // pred_check
          %p765 = pneg %p247
        $region66: #{transformer_decoder_forward.1} parent=55 // pred_check_branch
          %767 = sbr.rel (%p765) target = $region68
        $region67: #{transformer_decoder_forward.1} parent=55 // pred_region
          %p768 = scmp.lt.s32.totalorder %s45, 3
          %s769 = scalar_select %p768, %s45, 3
          %s770 = smul.addr %s769, 768
          %s771 = smul.addr %s770, 4
          %s772 = scalar_lea.vmem %s8, %s771
        $region68: #{transformer_decoder_forward.1} parent=55 // pred_fallthru
          _
        // Predicated region
        $region69: #{transformer_decoder_forward.1} parent=55 // pred_check
          %p773 = pneg %p273
        $region70: #{transformer_decoder_forward.1} parent=55 // pred_check_branch
          %775 = sbr.rel (%p773) target = $region72
        $region71: #{transformer_decoder_forward.1} parent=55 // pred_region
          %p776 = scmp.lt.s32.totalorder %s45, 3
          %s777 = scalar_select %p776, %s45, 3
          %s778 = smul.addr %s777, 24
          %s779 = scalar_lea.vmem %s9, %s778
        $region72: #{transformer_decoder_forward.1} parent=55 // pred_fallthru
          _
        // Predicated region
        $region73: #{transformer_decoder_forward.1} parent=55 // pred_check
          %p780 = pneg %p299
        $region74: #{transformer_decoder_forward.1} parent=55 // pred_check_branch
          %782 = sbr.rel (%p780) target = $region76
        $region75: #{transformer_decoder_forward.1} parent=55 // pred_region
          %p783 = scmp.lt.s32.totalorder %s45, 3
          %s784 = scalar_select %p783, %s45, 3
          %s785 = smul.addr %s784, 64
          %s786 = smul.addr %s785, 4
          %s787 = scalar_lea.vmem %s10, %s786
        $region76: #{transformer_decoder_forward.1} parent=55 // pred_fallthru
          _
        // Predicated region
        $region77: #{transformer_decoder_forward.1} parent=55 // pred_check
          %p788 = pneg %p325
        $region78: #{transformer_decoder_forward.1} parent=55 // pred_check_branch
          %790 = sbr.rel (%p788) target = $region80
        $region79: #{transformer_decoder_forward.1} parent=55 // pred_region
          %p791 = scmp.lt.s32.totalorder %s45, 3
          %s792 = scalar_select %p791, %s45, 3
          %s793 = smul.addr %s792, 2
          %s794 = scalar_lea.vmem %s11, %s793
        $region80: #{transformer_decoder_forward.1} parent=55 // pred_fallthru
          _
        // Predicated region
        $region81: #{transformer_decoder_forward.1} parent=55 // pred_check
          %p795 = pneg %p351
        $region82: #{transformer_decoder_forward.1} parent=55 // pred_check_branch
          %797 = sbr.rel (%p795) target = $region84
        $region83: #{transformer_decoder_forward.1} parent=55 // pred_region
          %p798 = scmp.lt.s32.totalorder %s45, 3
          %s799 = scalar_select %p798, %s45, 3
          %s800 = smul.addr %s799, 768
          %s801 = smul.addr %s800, 4
          %s802 = scalar_lea.vmem %s12, %s801
        $region84: #{transformer_decoder_forward.1} parent=55 // pred_fallthru
          _
        // Predicated region
        $region85: #{transformer_decoder_forward.1} parent=55 // pred_check
          %p803 = pneg %p377
        $region86: #{transformer_decoder_forward.1} parent=55 // pred_check_branch
          %805 = sbr.rel (%p803) target = $region88
        $region87: #{transformer_decoder_forward.1} parent=55 // pred_region
          %p806 = scmp.lt.s32.totalorder %s45, 3
          %s807 = scalar_select %p806, %s45, 3
          %s808 = smul.addr %s807, 24
          %s809 = scalar_lea.vmem %s13, %s808
        $region88: #{transformer_decoder_forward.1} parent=55 // pred_fallthru
          _
        // Predicated region
        $region89: #{transformer_decoder_forward.1} parent=55 // pred_check
          %p810 = pneg %p403
        $region90: #{transformer_decoder_forward.1} parent=55 // pred_check_branch
          %812 = sbr.rel (%p810) target = $region92
        $region91: #{transformer_decoder_forward.1} parent=55 // pred_region
          %p813 = scmp.lt.s32.totalorder %s45, 3
          %s814 = scalar_select %p813, %s45, 3
          %s815 = smul.addr %s814, 64
          %s816 = smul.addr %s815, 4
          %s817 = scalar_lea.vmem %s14, %s816
        $region92: #{transformer_decoder_forward.1} parent=55 // pred_fallthru
          _
        // Predicated region
        $region93: #{transformer_decoder_forward.1} parent=55 // pred_check
          %p818 = pneg %p429
        $region94: #{transformer_decoder_forward.1} parent=55 // pred_check_branch
          %820 = sbr.rel (%p818) target = $region96
        $region95: #{transformer_decoder_forward.1} parent=55 // pred_region
          %p821 = scmp.lt.s32.totalorder %s45, 3
          %s822 = scalar_select %p821, %s45, 3
          %s823 = smul.addr %s822, 2
          %s824 = scalar_lea.vmem %s15, %s823
        $region96: #{transformer_decoder_forward.1} parent=55 // pred_fallthru
          _
        // Predicated region
        $region97: #{transformer_decoder_forward.1} parent=55 // pred_check
          %p825 = pneg %p455
        $region98: #{transformer_decoder_forward.1} parent=55 // pred_check_branch
          %827 = sbr.rel (%p825) target = $region100
        $region99: #{transformer_decoder_forward.1} parent=55 // pred_region
          %p828 = scmp.lt.s32.totalorder %s45, 3
          %s829 = scalar_select %p828, %s45, 3
          %s830 = smul.addr %s829, 128
          %s831 = smul.addr %s830, 4
          %s832 = scalar_lea.vmem %s16, %s831
        $region100: #{transformer_decoder_forward.1} parent=55 // pred_fallthru
          _
        // Predicated region
        $region101: #{transformer_decoder_forward.1} parent=55 // pred_check
          %p833 = pneg %p481
        $region102: #{transformer_decoder_forward.1} parent=55 // pred_check_branch
          %835 = sbr.rel (%p833) target = $region104
        $region103: #{transformer_decoder_forward.1} parent=55 // pred_region
          %p836 = scmp.lt.s32.totalorder %s45, 3
          %s837 = scalar_select %p836, %s45, 3
          %s838 = smul.addr %s837, 4
          %s839 = scalar_lea.vmem %s17, %s838
        $region104: #{transformer_decoder_forward.1} parent=55 // pred_fallthru
          _
        // Predicated region
        $region105: #{transformer_decoder_forward.1} parent=55 // pred_check
          %p840 = pneg %p507
        $region106: #{transformer_decoder_forward.1} parent=55 // pred_check_branch
          %842 = sbr.rel (%p840) target = $region108
        $region107: #{transformer_decoder_forward.1} parent=55 // pred_region
          %p843 = scmp.lt.s32.totalorder %s45, 3
          %s844 = scalar_select %p843, %s45, 3
          %s845 = smul.addr %s844, 128
          %s846 = smul.addr %s845, 4
          %s847 = scalar_lea.vmem %s18, %s846
        $region108: #{transformer_decoder_forward.1} parent=55 // pred_fallthru
          _
        // Predicated region
        $region109: #{transformer_decoder_forward.1} parent=55 // pred_check
          %p848 = pneg %p533
        $region110: #{transformer_decoder_forward.1} parent=55 // pred_check_branch
          %850 = sbr.rel (%p848) target = $region112
        $region111: #{transformer_decoder_forward.1} parent=55 // pred_region
          %p851 = scmp.lt.s32.totalorder %s45, 3
          %s852 = scalar_select %p851, %s45, 3
          %s853 = smul.addr %s852, 2
          %s854 = scalar_lea.vmem %s19, %s853
        $region112: #{transformer_decoder_forward.1} parent=55 // pred_fallthru
          _
        // Predicated region
        $region113: #{transformer_decoder_forward.1} parent=55 // pred_check
          %p855 = pneg %p559
        $region114: #{transformer_decoder_forward.1} parent=55 // pred_check_branch
          %857 = sbr.rel (%p855) target = $region116
        $region115: #{transformer_decoder_forward.1} parent=55 // pred_region
          %p858 = scmp.lt.s32.totalorder %s45, 3
          %s859 = scalar_select %p858, %s45, 3
          %s860 = smul.addr %s859, 2
          %s861 = smul.addr %s860, 4
          %s862 = scalar_lea.vmem %s20, %s861
        $region116: #{transformer_decoder_forward.1} parent=55 // pred_fallthru
          _
        // Predicated region
        $region117: #{transformer_decoder_forward.1} parent=55 // pred_check
          %p863 = pneg %p585
        $region118: #{transformer_decoder_forward.1} parent=55 // pred_check_branch
          %865 = sbr.rel (%p863) target = $region120
        $region119: #{transformer_decoder_forward.1} parent=55 // pred_region
          %p866 = scmp.lt.s32.totalorder %s45, 3
          %s867 = scalar_select %p866, %s45, 3
          %s868 = smul.addr %s867, 2
          %s869 = smul.addr %s868, 4
          %s870 = scalar_lea.vmem %s21, %s869
        $region120: #{transformer_decoder_forward.1} parent=55 // pred_fallthru
          _
      $region56: #{transformer_decoder_forward.1} parent=5 // pred_fallthru
        _
      %p871 = scmp.le.s32.totalorder 1, %s37
      %p872 = scmp.lt.s32.totalorder %s37, 9
      %p873 = pnand %p871, %p872
      %p874 = pneg %p873
      // Predicated region
      $region121: #{transformer_decoder_forward.1} parent=5 // pred_check
        _
      $region122: #{transformer_decoder_forward.1} parent=5 // pred_check_branch
        %876 = sbr.rel (%p873) target = $region124
      $region123: #{transformer_decoder_forward.1} parent=5 // pred_region
        %s877 = ssub.s32 %s37, 1
        %p878 = scmp.lt.s32.totalorder %s46, 1
        %s879 = scalar_select %p878, %s46, 1
        %s880 = smul.addr %s879, 8
        %s881 = scalar_lea.vmem %s0, %s880
        %p882 = pneg %p75
        %p883 = pneg %p72
        %p884 = scmp.lt.s32.totalorder %s46, 1
        %s885 = scalar_select %p884, %s46, 1
        %s886 = smul.addr %s885, 2
        %s887 = smul.addr %s886, 4
        %s888 = scalar_lea.vmem %s1, %s887
        %p889 = pneg %p101
        %p890 = pneg %p98
        %p891 = pneg %p122
        %p892 = pneg %p119
        %p893 = pneg %p143
        %p894 = pneg %p140
        %p895 = pneg %p164
        %p896 = pneg %p161
        %p897 = pneg %p185
        %p898 = pneg %p182
        %p899 = pneg %p206
        %p900 = pneg %p203
        %p901 = pneg %p227
        %p902 = pneg %p224
        %p903 = scmp.lt.s32.totalorder %s47, 3
        %s904 = scalar_select %p903, %s47, 3
        %s905 = smul.addr %s904, 768
        %s906 = smul.addr %s905, 4
        %s907 = scalar_lea.vmem %s8, %s906
        %p908 = pneg %p253
        %p909 = pneg %p250
        %p910 = scmp.lt.s32.totalorder %s47, 3
        %s911 = scalar_select %p910, %s47, 3
        %s912 = smul.addr %s911, 24
        %s913 = scalar_lea.vmem %s9, %s912
        %p914 = pneg %p279
        %p915 = pneg %p276
        %p916 = scmp.lt.s32.totalorder %s47, 3
        %s917 = scalar_select %p916, %s47, 3
        %s918 = smul.addr %s917, 64
        %s919 = smul.addr %s918, 4
        %s920 = scalar_lea.vmem %s10, %s919
        %p921 = pneg %p305
        %p922 = pneg %p302
        %p923 = scmp.lt.s32.totalorder %s47, 3
        %s924 = scalar_select %p923, %s47, 3
        %s925 = smul.addr %s924, 2
        %s926 = scalar_lea.vmem %s11, %s925
        %p927 = pneg %p331
        %p928 = pneg %p328
        %p929 = scmp.lt.s32.totalorder %s47, 3
        %s930 = scalar_select %p929, %s47, 3
        %s931 = smul.addr %s930, 768
        %s932 = smul.addr %s931, 4
        %s933 = scalar_lea.vmem %s12, %s932
        %p934 = pneg %p357
        %p935 = pneg %p354
        %p936 = scmp.lt.s32.totalorder %s47, 3
        %s937 = scalar_select %p936, %s47, 3
        %s938 = smul.addr %s937, 24
        %s939 = scalar_lea.vmem %s13, %s938
        %p940 = pneg %p383
        %p941 = pneg %p380
        %p942 = scmp.lt.s32.totalorder %s47, 3
        %s943 = scalar_select %p942, %s47, 3
        %s944 = smul.addr %s943, 64
        %s945 = smul.addr %s944, 4
        %s946 = scalar_lea.vmem %s14, %s945
        %p947 = pneg %p409
        %p948 = pneg %p406
        %p949 = scmp.lt.s32.totalorder %s47, 3
        %s950 = scalar_select %p949, %s47, 3
        %s951 = smul.addr %s950, 2
        %s952 = scalar_lea.vmem %s15, %s951
        %p953 = pneg %p435
        %p954 = pneg %p432
        %p955 = scmp.lt.s32.totalorder %s47, 3
        %s956 = scalar_select %p955, %s47, 3
        %s957 = smul.addr %s956, 128
        %s958 = smul.addr %s957, 4
        %s959 = scalar_lea.vmem %s16, %s958
        %p960 = pneg %p461
        %p961 = pneg %p458
        %p962 = scmp.lt.s32.totalorder %s47, 3
        %s963 = scalar_select %p962, %s47, 3
        %s964 = smul.addr %s963, 4
        %s965 = scalar_lea.vmem %s17, %s964
        %p966 = pneg %p487
        %p967 = pneg %p484
        %p968 = scmp.lt.s32.totalorder %s47, 3
        %s969 = scalar_select %p968, %s47, 3
        %s970 = smul.addr %s969, 128
        %s971 = smul.addr %s970, 4
        %s972 = scalar_lea.vmem %s18, %s971
        %p973 = pneg %p513
        %p974 = pneg %p510
        %p975 = scmp.lt.s32.totalorder %s47, 3
        %s976 = scalar_select %p975, %s47, 3
        %s977 = smul.addr %s976, 2
        %s978 = scalar_lea.vmem %s19, %s977
        %p979 = pneg %p539
        %p980 = pneg %p536
        %p981 = scmp.lt.s32.totalorder %s47, 3
        %s982 = scalar_select %p981, %s47, 3
        %s983 = smul.addr %s982, 2
        %s984 = smul.addr %s983, 4
        %s985 = scalar_lea.vmem %s20, %s984
        %p986 = pneg %p565
        %p987 = pneg %p562
        %p988 = scmp.lt.s32.totalorder %s47, 3
        %s989 = scalar_select %p988, %s47, 3
        %s990 = smul.addr %s989, 2
        %s991 = smul.addr %s990, 4
        %s992 = scalar_lea.vmem %s21, %s991
        %p993 = pneg %p591
        %p994 = pneg %p588
        %p995 = pneg %p612
        %p996 = pneg %p609
        %p997 = pneg %p633
        %p998 = pneg %p630
        %p999 = pneg %p654
        %p1000 = pneg %p651
        %p1001 = pneg %p675
        %p1002 = pneg %p672
        %p1003 = pneg %p701
        %p1004 = pneg %p698
        %s1005 = sand.u32 %s688, 1
        %s1006 = scalar_lea.sflag [#allocation5], %s1005
        %s1007 = sand.u32 %s688, 1
        %s1008 = scalar_lea.vmem [#allocation4], %s1007
        %p1009 = scmp.lt.s32.totalorder %s46, 1
        %s1010 = scalar_select %p1009, %s46, 1
        %s1011 = smul.addr %s1010, 8
        %s1012 = scalar_lea.vmem %s0, %s1011
        %p1013 = scmp.lt.s32.totalorder %s46, 1
        %s1014 = scalar_select %p1013, %s46, 1
        %s1015 = smul.addr %s1014, 2
        %s1016 = smul.addr %s1015, 4
        %s1017 = scalar_lea.vmem %s1, %s1016
        %p1018 = scmp.lt.s32.totalorder %s47, 3
        %s1019 = scalar_select %p1018, %s47, 3
        %s1020 = smul.addr %s1019, 768
        %s1021 = smul.addr %s1020, 4
        %s1022 = scalar_lea.vmem %s8, %s1021
        %p1023 = scmp.lt.s32.totalorder %s47, 3
        %s1024 = scalar_select %p1023, %s47, 3
        %s1025 = smul.addr %s1024, 24
        %s1026 = scalar_lea.vmem %s9, %s1025
        %p1027 = scmp.lt.s32.totalorder %s47, 3
        %s1028 = scalar_select %p1027, %s47, 3
        %s1029 = smul.addr %s1028, 64
        %s1030 = smul.addr %s1029, 4
        %s1031 = scalar_lea.vmem %s10, %s1030
        %p1032 = scmp.lt.s32.totalorder %s47, 3
        %s1033 = scalar_select %p1032, %s47, 3
        %s1034 = smul.addr %s1033, 2
        %s1035 = scalar_lea.vmem %s11, %s1034
        %p1036 = scmp.lt.s32.totalorder %s47, 3
        %s1037 = scalar_select %p1036, %s47, 3
        %s1038 = smul.addr %s1037, 768
        %s1039 = smul.addr %s1038, 4
        %s1040 = scalar_lea.vmem %s12, %s1039
        %p1041 = scmp.lt.s32.totalorder %s47, 3
        %s1042 = scalar_select %p1041, %s47, 3
        %s1043 = smul.addr %s1042, 24
        %s1044 = scalar_lea.vmem %s13, %s1043
        %p1045 = scmp.lt.s32.totalorder %s47, 3
        %s1046 = scalar_select %p1045, %s47, 3
        %s1047 = smul.addr %s1046, 64
        %s1048 = smul.addr %s1047, 4
        %s1049 = scalar_lea.vmem %s14, %s1048
        %p1050 = scmp.lt.s32.totalorder %s47, 3
        %s1051 = scalar_select %p1050, %s47, 3
        %s1052 = smul.addr %s1051, 2
        %s1053 = scalar_lea.vmem %s15, %s1052
        %p1054 = scmp.lt.s32.totalorder %s47, 3
        %s1055 = scalar_select %p1054, %s47, 3
        %s1056 = smul.addr %s1055, 128
        %s1057 = smul.addr %s1056, 4
        %s1058 = scalar_lea.vmem %s16, %s1057
        %p1059 = scmp.lt.s32.totalorder %s47, 3
        %s1060 = scalar_select %p1059, %s47, 3
        %s1061 = smul.addr %s1060, 4
        %s1062 = scalar_lea.vmem %s17, %s1061
        %p1063 = scmp.lt.s32.totalorder %s47, 3
        %s1064 = scalar_select %p1063, %s47, 3
        %s1065 = smul.addr %s1064, 128
        %s1066 = smul.addr %s1065, 4
        %s1067 = scalar_lea.vmem %s18, %s1066
        %p1068 = scmp.lt.s32.totalorder %s47, 3
        %s1069 = scalar_select %p1068, %s47, 3
        %s1070 = smul.addr %s1069, 2
        %s1071 = scalar_lea.vmem %s19, %s1070
        %p1072 = scmp.lt.s32.totalorder %s47, 3
        %s1073 = scalar_select %p1072, %s47, 3
        %s1074 = smul.addr %s1073, 2
        %s1075 = smul.addr %s1074, 4
        %s1076 = scalar_lea.vmem %s20, %s1075
        %p1077 = scmp.lt.s32.totalorder %s47, 3
        %s1078 = scalar_select %p1077, %s47, 3
        %s1079 = smul.addr %s1078, 2
        %s1080 = smul.addr %s1079, 4
        %s1081 = scalar_lea.vmem %s21, %s1080
        %p1083 = scmp.eq.s32.totalorder %s47, 0
        // Predicated region
        $region125: #{transformer_decoder_forward.1} parent=123 // pred_check
          %p1084 = pneg %p1083
        $region126: #{transformer_decoder_forward.1} parent=123 // pred_check_branch
          %1086 = sbr.rel (%p1084) target = $region128
        $region127: #{transformer_decoder_forward.1} parent=123 // pred_region
          %v1087 = vld [vmem:[%s1012] sm:$0xff]
          %v1088 = vld [vmem:[%s2] sm:$0x3]
          %1090 = vset.pattern.permute.xlu0 0
          %1091 = vperm.xlu0 %1090, %v1087
          %v1092 = vpop.permute.xlu0 %1091
          %v1095 = vperm.slane %v1088, 0
          %v1096 = vperm.slane %v1088, 1
          %v1099 = vmul.f32 %v1092, %v1095
          %v1100 = vmul.f32 %v1092, %v1096
          %v1101 = vld [vmem:[%s3] sm:$0x3]
          %v1103 = vperm.slane %v1101, 0
          %v1104 = vperm.slane %v1101, 1
          %v1107 = vadd.f32 %v1099, %v1103
          %v1108 = vadd.f32 %v1100, %v1104
          %v1109 = vtanh.pop %v1107
          %v1110 = vtanh.pop %v1108
          %v1111 = vld [vmem:[%s4] sm:$0xff]
          %v1112 = vld [vmem:[%s4 + $0x8] sm:$0xff]
          %v1113 = vld [vmem:[%s4 + $0x10] sm:$0xff]
          %v1114 = vld [vmem:[%s4 + $0x18] sm:$0xff]
          %v1115 = vld [vmem:[%s4 + $0x20] sm:$0xff]
          %v1116 = vld [vmem:[%s4 + $0x28] sm:$0xff]
          %v1117 = vld [vmem:[%s4 + $0x30] sm:$0xff]
          %v1118 = vld [vmem:[%s4 + $0x38] sm:$0xff]
          %v1119 = vld [vmem:[%s4 + $0x40] sm:$0xff]
          %v1120 = vld [vmem:[%s4 + $0x48] sm:$0xff]
          %v1121 = vld [vmem:[%s4 + $0x50] sm:$0xff]
          %v1122 = vld [vmem:[%s4 + $0x58] sm:$0xff]
          %v1123 = vld [vmem:[%s4 + $0x60] sm:$0xff]
          %v1124 = vld [vmem:[%s4 + $0x68] sm:$0xff]
          %v1125 = vld [vmem:[%s4 + $0x70] sm:$0xff]
          %v1126 = vld [vmem:[%s4 + $0x78] sm:$0xff]
          %v1127 = vld [vmem:[%s4 + $0x80] sm:$0xff]
          %v1128 = vld [vmem:[%s4 + $0x88] sm:$0xff]
          %v1129 = vld [vmem:[%s4 + $0x90] sm:$0xff]
          %v1130 = vld [vmem:[%s4 + $0x98] sm:$0xff]
          %v1131 = vld [vmem:[%s4 + $0xa0] sm:$0xff]
          %v1132 = vld [vmem:[%s4 + $0xa8] sm:$0xff]
          %v1133 = vld [vmem:[%s4 + $0xb0] sm:$0xff]
          %v1134 = vld [vmem:[%s4 + $0xb8] sm:$0xff]
          %v1135 = vld [vmem:[%s4 + $0xc0] sm:$0xff]
          %v1136 = vld [vmem:[%s4 + $0xc8] sm:$0xff]
          %v1137 = vld [vmem:[%s4 + $0xd0] sm:$0xff]
          %v1138 = vld [vmem:[%s4 + $0xd8] sm:$0xff]
          %v1139 = vld [vmem:[%s4 + $0xe0] sm:$0xff]
          %v1140 = vld [vmem:[%s4 + $0xe8] sm:$0xff]
          %v1141 = vld [vmem:[%s4 + $0xf0] sm:$0xff]
          %v1142 = vld [vmem:[%s4 + $0xf8] sm:$0xff]
          %v1143 = vld [vmem:[%s5] sm:$0x3]
          %v1144 = vpack.c.bf16 %v1109, %v1109
          %v1145 = vpack.c.bf16 %v1110, %v1110
          %v1147 = vperm.slane %v1143, 0
          %v1148 = vperm.slane %v1143, 1
          %v1183 = vunpack.c.l.b16 %v1111
          %v1184 = vunpack.c.h.b16 %v1111
          %v1185 = vunpack.c.l.b16 %v1112
          %v1186 = vunpack.c.h.b16 %v1112
          %v1187 = vunpack.c.l.b16 %v1113
          %v1188 = vunpack.c.h.b16 %v1113
          %v1189 = vunpack.c.l.b16 %v1114
          %v1190 = vunpack.c.h.b16 %v1114
          %v1191 = vunpack.c.l.b16 %v1115
          %v1192 = vunpack.c.h.b16 %v1115
          %v1193 = vunpack.c.l.b16 %v1116
          %v1194 = vunpack.c.h.b16 %v1116
          %v1195 = vunpack.c.l.b16 %v1117
          %v1196 = vunpack.c.h.b16 %v1117
          %v1197 = vunpack.c.l.b16 %v1118
          %v1198 = vunpack.c.h.b16 %v1118
          %v1199 = vunpack.c.l.b16 %v1119
          %v1200 = vunpack.c.h.b16 %v1119
          %v1201 = vunpack.c.l.b16 %v1120
          %v1202 = vunpack.c.h.b16 %v1120
          %v1203 = vunpack.c.l.b16 %v1121
          %v1204 = vunpack.c.h.b16 %v1121
          %v1205 = vunpack.c.l.b16 %v1122
          %v1206 = vunpack.c.h.b16 %v1122
          %v1207 = vunpack.c.l.b16 %v1123
          %v1208 = vunpack.c.h.b16 %v1123
          %v1209 = vunpack.c.l.b16 %v1124
          %v1210 = vunpack.c.h.b16 %v1124
          %v1211 = vunpack.c.l.b16 %v1125
          %v1212 = vunpack.c.h.b16 %v1125
          %v1213 = vunpack.c.l.b16 %v1126
          %v1214 = vunpack.c.h.b16 %v1126
          %v1215 = vunpack.c.l.b16 %v1127
          %v1216 = vunpack.c.h.b16 %v1127
          %v1217 = vunpack.c.l.b16 %v1128
          %v1218 = vunpack.c.h.b16 %v1128
          %v1219 = vunpack.c.l.b16 %v1129
          %v1220 = vunpack.c.h.b16 %v1129
          %v1221 = vunpack.c.l.b16 %v1130
          %v1222 = vunpack.c.h.b16 %v1130
          %v1223 = vunpack.c.l.b16 %v1131
          %v1224 = vunpack.c.h.b16 %v1131
          %v1225 = vunpack.c.l.b16 %v1132
          %v1226 = vunpack.c.h.b16 %v1132
          %v1227 = vunpack.c.l.b16 %v1133
          %v1228 = vunpack.c.h.b16 %v1133
          %v1229 = vunpack.c.l.b16 %v1134
          %v1230 = vunpack.c.h.b16 %v1134
          %v1231 = vunpack.c.l.b16 %v1135
          %v1232 = vunpack.c.h.b16 %v1135
          %v1233 = vunpack.c.l.b16 %v1136
          %v1234 = vunpack.c.h.b16 %v1136
          %v1235 = vunpack.c.l.b16 %v1137
          %v1236 = vunpack.c.h.b16 %v1137
          %v1237 = vunpack.c.l.b16 %v1138
          %v1238 = vunpack.c.h.b16 %v1138
          %v1239 = vunpack.c.l.b16 %v1139
          %v1240 = vunpack.c.h.b16 %v1139
          %v1241 = vunpack.c.l.b16 %v1140
          %v1242 = vunpack.c.h.b16 %v1140
          %v1243 = vunpack.c.l.b16 %v1141
          %v1244 = vunpack.c.h.b16 %v1141
          %v1245 = vunpack.c.l.b16 %v1142
          %v1246 = vunpack.c.h.b16 %v1142
          %v1247 = vpack.c.b16 %v1185, %v1183
          %v1248 = vpack.c.b16 %v1186, %v1184
          %v1249 = vpack.c.b16 %v1189, %v1187
          %v1250 = vpack.c.b16 %v1190, %v1188
          %v1251 = vpack.c.b16 %v1193, %v1191
          %v1252 = vpack.c.b16 %v1194, %v1192
          %v1253 = vpack.c.b16 %v1197, %v1195
          %v1254 = vpack.c.b16 %v1198, %v1196
          %v1255 = vpack.c.b16 %v1201, %v1199
          %v1256 = vpack.c.b16 %v1202, %v1200
          %v1257 = vpack.c.b16 %v1205, %v1203
          %v1258 = vpack.c.b16 %v1206, %v1204
          %v1259 = vpack.c.b16 %v1209, %v1207
          %v1260 = vpack.c.b16 %v1210, %v1208
          %v1261 = vpack.c.b16 %v1213, %v1211
          %v1262 = vpack.c.b16 %v1214, %v1212
          %v1263 = vpack.c.b16 %v1217, %v1215
          %v1264 = vpack.c.b16 %v1218, %v1216
          %v1265 = vpack.c.b16 %v1221, %v1219
          %v1266 = vpack.c.b16 %v1222, %v1220
          %v1267 = vpack.c.b16 %v1225, %v1223
          %v1268 = vpack.c.b16 %v1226, %v1224
          %v1269 = vpack.c.b16 %v1229, %v1227
          %v1270 = vpack.c.b16 %v1230, %v1228
          %v1271 = vpack.c.b16 %v1233, %v1231
          %v1272 = vpack.c.b16 %v1234, %v1232
          %v1273 = vpack.c.b16 %v1237, %v1235
          %v1274 = vpack.c.b16 %v1238, %v1236
          %v1275 = vpack.c.b16 %v1241, %v1239
          %v1276 = vpack.c.b16 %v1242, %v1240
          %v1277 = vpack.c.b16 %v1245, %v1243
          %v1278 = vpack.c.b16 %v1246, %v1244
          %1311 = vmatpush.bf16.msra.mxu0 %v1261
          %1312 = vmatpush.bf16.msra.mxu0 %v1259
          %1313 = vmatpush.bf16.msra.mxu0 %v1257
          %1314 = vmatpush.bf16.msra.mxu0 %v1255
          %1315 = vmatpush.bf16.msra.mxu0 %v1253
          %1316 = vmatpush.bf16.msra.mxu0 %v1251
          %1317 = vmatpush.bf16.msra.mxu0 %v1249
          %1318 = vmatpush.bf16.msra.mxu0 %v1247
          %1319 = vmatmul.bf16.gmra.mxu0 %v1144
          %v1320 = vpop.f32.mrf.mxu0
          %v1321 = vadd.f32 %v1147, %v1320
          %v1322 = vpop.f32.mrf.mxu0
          %1323 = vdwg.mxu0
          %1324 = vmatpush.bf16.msra.mxu0 %v1277
          %1325 = vmatpush.bf16.msra.mxu0 %v1275
          %1326 = vmatpush.bf16.msra.mxu0 %v1273
          %1327 = vmatpush.bf16.msra.mxu0 %v1271
          %1328 = vmatpush.bf16.msra.mxu0 %v1269
          %1329 = vmatpush.bf16.msra.mxu0 %v1267
          %1330 = vmatpush.bf16.msra.mxu0 %v1265
          %1331 = vmatpush.bf16.msra.mxu0 %v1263
          %1332 = vmatmul.bf16.gmra.mxu0 %v1145
          %v1333 = vpop.f32.mrf.mxu0
          %v1334 = vadd.f32 %v1321, %v1333
          %v1335 = vpop.f32.mrf.mxu0
          %1336 = vdwg.mxu0
          %1337 = vmatpush.bf16.msra.mxu0 %v1262
          %1338 = vmatpush.bf16.msra.mxu0 %v1260
          %1339 = vmatpush.bf16.msra.mxu0 %v1258
          %1340 = vmatpush.bf16.msra.mxu0 %v1256
          %1341 = vmatpush.bf16.msra.mxu0 %v1254
          %1342 = vmatpush.bf16.msra.mxu0 %v1252
          %1343 = vmatpush.bf16.msra.mxu0 %v1250
          %1344 = vmatpush.bf16.msra.mxu0 %v1248
          %1345 = vmatmul.bf16.gmra.mxu0 %v1144
          %v1346 = vpop.f32.mrf.mxu0
          %v1347 = vadd.f32 %v1148, %v1346
          %v1348 = vpop.f32.mrf.mxu0
          %1349 = vdwg.mxu0
          %1350 = vmatpush.bf16.msra.mxu0 %v1278
          %1351 = vmatpush.bf16.msra.mxu0 %v1276
          %1352 = vmatpush.bf16.msra.mxu0 %v1274
          %1353 = vmatpush.bf16.msra.mxu0 %v1272
          %1354 = vmatpush.bf16.msra.mxu0 %v1270
          %1355 = vmatpush.bf16.msra.mxu0 %v1268
          %1356 = vmatpush.bf16.msra.mxu0 %v1266
          %1357 = vmatpush.bf16.msra.mxu0 %v1264
          %1358 = vmatmul.bf16.gmra.mxu0 %v1145
          %v1359 = vpop.f32.mrf.mxu0
          %v1360 = vadd.f32 %v1347, %v1359
          %v1361 = vpop.f32.mrf.mxu0
          %1362 = vdwg.mxu0
          %v1363 = vld [vmem:[%s6] sm:$0x3]
          %v1364 = vld [vmem:[%s7] sm:$0x3]
          %v1365 = vadd.f32 %v1334, %v1360
          %1366 = vadd.xlane.f32.xlu0 %v1365
          %v1367 = vpop.xlane.xlu0 %1366
          %v1368 = vrcp.pop 256.0
          %v1369 = vmul.f32 256.0, %v1368
          %v1370 = vsub.f32 1.0, %v1369
          %v1371 = vmul.f32 %v1368, %v1370
          %v1372 = vadd.f32 %v1368, %v1371
          %vm1373 = vweird.f32 %v1368
          %v1374 = vsel %vm1373, %v1368, %v1372
          %v1375 = vmul.f32 %v1367, %v1374
          %v1376 = vsub.f32 %v1334, %v1375
          %v1377 = vsub.f32 %v1360, %v1375
          %v1378 = vmul.f32 %v1376, %v1376
          %v1379 = vmul.f32 %v1377, %v1377
          %v1380 = vadd.f32 %v1378, %v1379
          %1381 = vadd.xlane.f32.xlu0 %v1380
          %v1382 = vpop.xlane.xlu0 %1381
          %v1383 = vmul.f32 %v1382, %v1374
          %v1384 = vadd.f32 %v1383, 1e-05
          %v1385 = vrsqrt.pop %v1384
          %v1386 = vmul.f32 %v1385, %v1384
          %v1387 = vmul.f32 %v1386, %v1385
          %v1388 = vmul.f32 0.5, %v1387
          %v1389 = vsub.f32 1.5, %v1388
          %v1390 = vmul.f32 %v1385, %v1389
          %vm1391 = vweird.f32 %v1384
          %vm1392 = vweird.f32 %v1385
          %vm1393 = vmor %vm1391, %vm1392
          %v1394 = vsel %vm1393, %v1385, %v1390
          %v1395 = vmul.f32 %v1376, %v1394
          %v1396 = vmul.f32 %v1377, %v1394
          %v1398 = vperm.slane %v1363, 0
          %v1399 = vperm.slane %v1363, 1
          %v1402 = vmul.f32 %v1395, %v1398
          %v1403 = vmul.f32 %v1396, %v1399
          %v1405 = vperm.slane %v1364, 0
          %v1406 = vperm.slane %v1364, 1
          %v1409 = vadd.f32 %v1402, %v1405
          %v1410 = vadd.f32 %v1403, %v1406
          %1411 = vst [vmem:[#allocation2] sm:$0xff] %v1409
          %1412 = vst [vmem:[#allocation2 + $0x8] sm:$0xff] %v1410
        $region128: #{transformer_decoder_forward.1} parent=123 // pred_fallthru
          _
        %v1413 = vld [vmem:[#allocation2] sm:$0xff]
        %v1414 = vld [vmem:[#allocation2 + $0x8] sm:$0xff]
        %v1415 = vld [vmem:[%s1017] sm:$0xff]
        %v1416 = vld [vmem:[%s1076] sm:$0x77]
        %v1417 = vld [vmem:[%s1081] sm:$0x77]
        %v1418 = vld [vmem:[%s1022] sm:$0xf]
        %v1419 = vld [vmem:[%s1022 + $0x4] sm:$0xf]
        %v1420 = vld [vmem:[%s1022 + $0x8] sm:$0xf]
        %v1421 = vld [vmem:[%s1022 + $0xc] sm:$0xf]
        %v1422 = vld [vmem:[%s1022 + $0x10] sm:$0xf]
        %v1423 = vld [vmem:[%s1022 + $0x14] sm:$0xf]
        %v1424 = vld [vmem:[%s1022 + $0x18] sm:$0xf]
        %v1425 = vld [vmem:[%s1022 + $0x1c] sm:$0xf]
        %v1426 = vld [vmem:[%s1022 + $0x20] sm:$0xf]
        %v1427 = vld [vmem:[%s1022 + $0x24] sm:$0xf]
        %v1428 = vld [vmem:[%s1022 + $0x28] sm:$0xf]
        %v1429 = vld [vmem:[%s1022 + $0x2c] sm:$0xf]
        %v1430 = vld [vmem:[%s1022 + $0x30] sm:$0xf]
        %v1431 = vld [vmem:[%s1022 + $0x34] sm:$0xf]
        %v1432 = vld [vmem:[%s1022 + $0x38] sm:$0xf]
        %v1433 = vld [vmem:[%s1022 + $0x3c] sm:$0xf]
        %v1434 = vld [vmem:[%s1022 + $0x40] sm:$0xf]
        %v1435 = vld [vmem:[%s1022 + $0x44] sm:$0xf]
        %v1436 = vld [vmem:[%s1022 + $0x48] sm:$0xf]
        %v1437 = vld [vmem:[%s1022 + $0x4c] sm:$0xf]
        %v1438 = vld [vmem:[%s1022 + $0x50] sm:$0xf]
        %v1439 = vld [vmem:[%s1022 + $0x54] sm:$0xf]
        %v1440 = vld [vmem:[%s1022 + $0x58] sm:$0xf]
        %v1441 = vld [vmem:[%s1022 + $0x5c] sm:$0xf]
        %v1442 = vld [vmem:[%s1022 + $0x60] sm:$0xf]
        %v1443 = vld [vmem:[%s1022 + $0x64] sm:$0xf]
        %v1444 = vld [vmem:[%s1022 + $0x68] sm:$0xf]
        %v1445 = vld [vmem:[%s1022 + $0x6c] sm:$0xf]
        %v1446 = vld [vmem:[%s1022 + $0x70] sm:$0xf]
        %v1447 = vld [vmem:[%s1022 + $0x74] sm:$0xf]
        %v1448 = vld [vmem:[%s1022 + $0x78] sm:$0xf]
        %v1449 = vld [vmem:[%s1022 + $0x7c] sm:$0xf]
        %v1450 = vld [vmem:[%s1022 + $0x80] sm:$0xf]
        %v1451 = vld [vmem:[%s1022 + $0x84] sm:$0xf]
        %v1452 = vld [vmem:[%s1022 + $0x88] sm:$0xf]
        %v1453 = vld [vmem:[%s1022 + $0x8c] sm:$0xf]
        %v1454 = vld [vmem:[%s1022 + $0x90] sm:$0xf]
        %v1455 = vld [vmem:[%s1022 + $0x94] sm:$0xf]
        %v1456 = vld [vmem:[%s1022 + $0x98] sm:$0xf]
        %v1457 = vld [vmem:[%s1022 + $0x9c] sm:$0xf]
        %v1458 = vld [vmem:[%s1022 + $0xa0] sm:$0xf]
        %v1459 = vld [vmem:[%s1022 + $0xa4] sm:$0xf]
        %v1460 = vld [vmem:[%s1022 + $0xa8] sm:$0xf]
        %v1461 = vld [vmem:[%s1022 + $0xac] sm:$0xf]
        %v1462 = vld [vmem:[%s1022 + $0xb0] sm:$0xf]
        %v1463 = vld [vmem:[%s1022 + $0xb4] sm:$0xf]
        %v1464 = vld [vmem:[%s1022 + $0xb8] sm:$0xf]
        %v1465 = vld [vmem:[%s1022 + $0xbc] sm:$0xf]
        %v1466 = vld [vmem:[%s1022 + $0xc0] sm:$0xf]
        %v1467 = vld [vmem:[%s1022 + $0xc4] sm:$0xf]
        %v1468 = vld [vmem:[%s1022 + $0xc8] sm:$0xf]
        %v1469 = vld [vmem:[%s1022 + $0xcc] sm:$0xf]
        %v1470 = vld [vmem:[%s1022 + $0xd0] sm:$0xf]
        %v1471 = vld [vmem:[%s1022 + $0xd4] sm:$0xf]
        %v1472 = vld [vmem:[%s1022 + $0xd8] sm:$0xf]
        %v1473 = vld [vmem:[%s1022 + $0xdc] sm:$0xf]
        %v1474 = vld [vmem:[%s1022 + $0xe0] sm:$0xf]
        %v1475 = vld [vmem:[%s1022 + $0xe4] sm:$0xf]
        %v1476 = vld [vmem:[%s1022 + $0xe8] sm:$0xf]
        %v1477 = vld [vmem:[%s1022 + $0xec] sm:$0xf]
        %v1478 = vld [vmem:[%s1022 + $0xf0] sm:$0xf]
        %v1479 = vld [vmem:[%s1022 + $0xf4] sm:$0xf]
        %v1480 = vld [vmem:[%s1022 + $0xf8] sm:$0xf]
        %v1481 = vld [vmem:[%s1022 + $0xfc] sm:$0xf]
        %v1482 = vld [vmem:[%s1022 + $0x100] sm:$0xf]
        %v1483 = vld [vmem:[%s1022 + $0x104] sm:$0xf]
        %v1484 = vld [vmem:[%s1022 + $0x108] sm:$0xf]
        %v1485 = vld [vmem:[%s1022 + $0x10c] sm:$0xf]
        %v1486 = vld [vmem:[%s1022 + $0x110] sm:$0xf]
        %v1487 = vld [vmem:[%s1022 + $0x114] sm:$0xf]
        %v1488 = vld [vmem:[%s1022 + $0x118] sm:$0xf]
        %v1489 = vld [vmem:[%s1022 + $0x11c] sm:$0xf]
        %v1490 = vld [vmem:[%s1022 + $0x120] sm:$0xf]
        %v1491 = vld [vmem:[%s1022 + $0x124] sm:$0xf]
        %v1492 = vld [vmem:[%s1022 + $0x128] sm:$0xf]
        %v1493 = vld [vmem:[%s1022 + $0x12c] sm:$0xf]
        %v1494 = vld [vmem:[%s1022 + $0x130] sm:$0xf]
        %v1495 = vld [vmem:[%s1022 + $0x134] sm:$0xf]
        %v1496 = vld [vmem:[%s1022 + $0x138] sm:$0xf]
        %v1497 = vld [vmem:[%s1022 + $0x13c] sm:$0xf]
        %v1498 = vld [vmem:[%s1022 + $0x140] sm:$0xf]
        %v1499 = vld [vmem:[%s1022 + $0x144] sm:$0xf]
        %v1500 = vld [vmem:[%s1022 + $0x148] sm:$0xf]
        %v1501 = vld [vmem:[%s1022 + $0x14c] sm:$0xf]
        %v1502 = vld [vmem:[%s1022 + $0x150] sm:$0xf]
        %v1503 = vld [vmem:[%s1022 + $0x154] sm:$0xf]
        %v1504 = vld [vmem:[%s1022 + $0x158] sm:$0xf]
        %v1505 = vld [vmem:[%s1022 + $0x15c] sm:$0xf]
        %v1506 = vld [vmem:[%s1022 + $0x160] sm:$0xf]
        %v1507 = vld [vmem:[%s1022 + $0x164] sm:$0xf]
        %v1508 = vld [vmem:[%s1022 + $0x168] sm:$0xf]
        %v1509 = vld [vmem:[%s1022 + $0x16c] sm:$0xf]
        %v1510 = vld [vmem:[%s1022 + $0x170] sm:$0xf]
        %v1511 = vld [vmem:[%s1022 + $0x174] sm:$0xf]
        %v1512 = vld [vmem:[%s1022 + $0x178] sm:$0xf]
        %v1513 = vld [vmem:[%s1022 + $0x17c] sm:$0xf]
        %v1514 = vld [vmem:[%s1022 + $0x180] sm:$0xf]
        %v1515 = vld [vmem:[%s1022 + $0x184] sm:$0xf]
        %v1516 = vld [vmem:[%s1022 + $0x188] sm:$0xf]
        %v1517 = vld [vmem:[%s1022 + $0x18c] sm:$0xf]
        %v1518 = vld [vmem:[%s1022 + $0x190] sm:$0xf]
        %v1519 = vld [vmem:[%s1022 + $0x194] sm:$0xf]
        %v1520 = vld [vmem:[%s1022 + $0x198] sm:$0xf]
        %v1521 = vld [vmem:[%s1022 + $0x19c] sm:$0xf]
        %v1522 = vld [vmem:[%s1022 + $0x1a0] sm:$0xf]
        %v1523 = vld [vmem:[%s1022 + $0x1a4] sm:$0xf]
        %v1524 = vld [vmem:[%s1022 + $0x1a8] sm:$0xf]
        %v1525 = vld [vmem:[%s1022 + $0x1ac] sm:$0xf]
        %v1526 = vld [vmem:[%s1022 + $0x1b0] sm:$0xf]
        %v1527 = vld [vmem:[%s1022 + $0x1b4] sm:$0xf]
        %v1528 = vld [vmem:[%s1022 + $0x1b8] sm:$0xf]
        %v1529 = vld [vmem:[%s1022 + $0x1bc] sm:$0xf]
        %v1530 = vld [vmem:[%s1022 + $0x1c0] sm:$0xf]
        %v1531 = vld [vmem:[%s1022 + $0x1c4] sm:$0xf]
        %v1532 = vld [vmem:[%s1022 + $0x1c8] sm:$0xf]
        %v1533 = vld [vmem:[%s1022 + $0x1cc] sm:$0xf]
        %v1534 = vld [vmem:[%s1022 + $0x1d0] sm:$0xf]
        %v1535 = vld [vmem:[%s1022 + $0x1d4] sm:$0xf]
        %v1536 = vld [vmem:[%s1022 + $0x1d8] sm:$0xf]
        %v1537 = vld [vmem:[%s1022 + $0x1dc] sm:$0xf]
        %v1538 = vld [vmem:[%s1022 + $0x1e0] sm:$0xf]
        %v1539 = vld [vmem:[%s1022 + $0x1e4] sm:$0xf]
        %v1540 = vld [vmem:[%s1022 + $0x1e8] sm:$0xf]
        %v1541 = vld [vmem:[%s1022 + $0x1ec] sm:$0xf]
        %v1542 = vld [vmem:[%s1022 + $0x1f0] sm:$0xf]
        %v1543 = vld [vmem:[%s1022 + $0x1f4] sm:$0xf]
        %v1544 = vld [vmem:[%s1022 + $0x1f8] sm:$0xf]
        %v1545 = vld [vmem:[%s1022 + $0x1fc] sm:$0xf]
        %v1546 = vld [vmem:[%s1022 + $0x200] sm:$0xf]
        %v1547 = vld [vmem:[%s1022 + $0x204] sm:$0xf]
        %v1548 = vld [vmem:[%s1022 + $0x208] sm:$0xf]
        %v1549 = vld [vmem:[%s1022 + $0x20c] sm:$0xf]
        %v1550 = vld [vmem:[%s1022 + $0x210] sm:$0xf]
        %v1551 = vld [vmem:[%s1022 + $0x214] sm:$0xf]
        %v1552 = vld [vmem:[%s1022 + $0x218] sm:$0xf]
        %v1553 = vld [vmem:[%s1022 + $0x21c] sm:$0xf]
        %v1554 = vld [vmem:[%s1022 + $0x220] sm:$0xf]
        %v1555 = vld [vmem:[%s1022 + $0x224] sm:$0xf]
        %v1556 = vld [vmem:[%s1022 + $0x228] sm:$0xf]
        %v1557 = vld [vmem:[%s1022 + $0x22c] sm:$0xf]
        %v1558 = vld [vmem:[%s1022 + $0x230] sm:$0xf]
        %v1559 = vld [vmem:[%s1022 + $0x234] sm:$0xf]
        %v1560 = vld [vmem:[%s1022 + $0x238] sm:$0xf]
        %v1561 = vld [vmem:[%s1022 + $0x23c] sm:$0xf]
        %v1562 = vld [vmem:[%s1022 + $0x240] sm:$0xf]
        %v1563 = vld [vmem:[%s1022 + $0x244] sm:$0xf]
        %v1564 = vld [vmem:[%s1022 + $0x248] sm:$0xf]
        %v1565 = vld [vmem:[%s1022 + $0x24c] sm:$0xf]
        %v1566 = vld [vmem:[%s1022 + $0x250] sm:$0xf]
        %v1567 = vld [vmem:[%s1022 + $0x254] sm:$0xf]
        %v1568 = vld [vmem:[%s1022 + $0x258] sm:$0xf]
        %v1569 = vld [vmem:[%s1022 + $0x25c] sm:$0xf]
        %v1570 = vld [vmem:[%s1022 + $0x260] sm:$0xf]
        %v1571 = vld [vmem:[%s1022 + $0x264] sm:$0xf]
        %v1572 = vld [vmem:[%s1022 + $0x268] sm:$0xf]
        %v1573 = vld [vmem:[%s1022 + $0x26c] sm:$0xf]
        %v1574 = vld [vmem:[%s1022 + $0x270] sm:$0xf]
        %v1575 = vld [vmem:[%s1022 + $0x274] sm:$0xf]
        %v1576 = vld [vmem:[%s1022 + $0x278] sm:$0xf]
        %v1577 = vld [vmem:[%s1022 + $0x27c] sm:$0xf]
        %v1578 = vld [vmem:[%s1022 + $0x280] sm:$0xf]
        %v1579 = vld [vmem:[%s1022 + $0x284] sm:$0xf]
        %v1580 = vld [vmem:[%s1022 + $0x288] sm:$0xf]
        %v1581 = vld [vmem:[%s1022 + $0x28c] sm:$0xf]
        %v1582 = vld [vmem:[%s1022 + $0x290] sm:$0xf]
        %v1583 = vld [vmem:[%s1022 + $0x294] sm:$0xf]
        %v1584 = vld [vmem:[%s1022 + $0x298] sm:$0xf]
        %v1585 = vld [vmem:[%s1022 + $0x29c] sm:$0xf]
        %v1586 = vld [vmem:[%s1022 + $0x2a0] sm:$0xf]
        %v1587 = vld [vmem:[%s1022 + $0x2a4] sm:$0xf]
        %v1588 = vld [vmem:[%s1022 + $0x2a8] sm:$0xf]
        %v1589 = vld [vmem:[%s1022 + $0x2ac] sm:$0xf]
        %v1590 = vld [vmem:[%s1022 + $0x2b0] sm:$0xf]
        %v1591 = vld [vmem:[%s1022 + $0x2b4] sm:$0xf]
        %v1592 = vld [vmem:[%s1022 + $0x2b8] sm:$0xf]
        %v1593 = vld [vmem:[%s1022 + $0x2bc] sm:$0xf]
        %v1594 = vld [vmem:[%s1022 + $0x2c0] sm:$0xf]
        %v1595 = vld [vmem:[%s1022 + $0x2c4] sm:$0xf]
        %v1596 = vld [vmem:[%s1022 + $0x2c8] sm:$0xf]
        %v1597 = vld [vmem:[%s1022 + $0x2cc] sm:$0xf]
        %v1598 = vld [vmem:[%s1022 + $0x2d0] sm:$0xf]
        %v1599 = vld [vmem:[%s1022 + $0x2d4] sm:$0xf]
        %v1600 = vld [vmem:[%s1022 + $0x2d8] sm:$0xf]
        %v1601 = vld [vmem:[%s1022 + $0x2dc] sm:$0xf]
        %v1602 = vld [vmem:[%s1022 + $0x2e0] sm:$0xf]
        %v1603 = vld [vmem:[%s1022 + $0x2e4] sm:$0xf]
        %v1604 = vld [vmem:[%s1022 + $0x2e8] sm:$0xf]
        %v1605 = vld [vmem:[%s1022 + $0x2ec] sm:$0xf]
        %v1606 = vld [vmem:[%s1022 + $0x2f0] sm:$0xf]
        %v1607 = vld [vmem:[%s1022 + $0x2f4] sm:$0xf]
        %v1608 = vld [vmem:[%s1022 + $0x2f8] sm:$0xf]
        %v1609 = vld [vmem:[%s1022 + $0x2fc] sm:$0xf]
        %v1610 = vld [vmem:[%s1022 + $0x300] sm:$0xf]
        %v1611 = vld [vmem:[%s1022 + $0x304] sm:$0xf]
        %v1612 = vld [vmem:[%s1022 + $0x308] sm:$0xf]
        %v1613 = vld [vmem:[%s1022 + $0x30c] sm:$0xf]
        %v1614 = vld [vmem:[%s1022 + $0x310] sm:$0xf]
        %v1615 = vld [vmem:[%s1022 + $0x314] sm:$0xf]
        %v1616 = vld [vmem:[%s1022 + $0x318] sm:$0xf]
        %v1617 = vld [vmem:[%s1022 + $0x31c] sm:$0xf]
        %v1618 = vld [vmem:[%s1022 + $0x320] sm:$0xf]
        %v1619 = vld [vmem:[%s1022 + $0x324] sm:$0xf]
        %v1620 = vld [vmem:[%s1022 + $0x328] sm:$0xf]
        %v1621 = vld [vmem:[%s1022 + $0x32c] sm:$0xf]
        %v1622 = vld [vmem:[%s1022 + $0x330] sm:$0xf]
        %v1623 = vld [vmem:[%s1022 + $0x334] sm:$0xf]
        %v1624 = vld [vmem:[%s1022 + $0x338] sm:$0xf]
        %v1625 = vld [vmem:[%s1022 + $0x33c] sm:$0xf]
        %v1626 = vld [vmem:[%s1022 + $0x340] sm:$0xf]
        %v1627 = vld [vmem:[%s1022 + $0x344] sm:$0xf]
        %v1628 = vld [vmem:[%s1022 + $0x348] sm:$0xf]
        %v1629 = vld [vmem:[%s1022 + $0x34c] sm:$0xf]
        %v1630 = vld [vmem:[%s1022 + $0x350] sm:$0xf]
        %v1631 = vld [vmem:[%s1022 + $0x354] sm:$0xf]
        %v1632 = vld [vmem:[%s1022 + $0x358] sm:$0xf]
        %v1633 = vld [vmem:[%s1022 + $0x35c] sm:$0xf]
        %v1634 = vld [vmem:[%s1022 + $0x360] sm:$0xf]
        %v1635 = vld [vmem:[%s1022 + $0x364] sm:$0xf]
        %v1636 = vld [vmem:[%s1022 + $0x368] sm:$0xf]
        %v1637 = vld [vmem:[%s1022 + $0x36c] sm:$0xf]
        %v1638 = vld [vmem:[%s1022 + $0x370] sm:$0xf]
        %v1639 = vld [vmem:[%s1022 + $0x374] sm:$0xf]
        %v1640 = vld [vmem:[%s1022 + $0x378] sm:$0xf]
        %v1641 = vld [vmem:[%s1022 + $0x37c] sm:$0xf]
        %v1642 = vld [vmem:[%s1022 + $0x380] sm:$0xf]
        %v1643 = vld [vmem:[%s1022 + $0x384] sm:$0xf]
        %v1644 = vld [vmem:[%s1022 + $0x388] sm:$0xf]
        %v1645 = vld [vmem:[%s1022 + $0x38c] sm:$0xf]
        %v1646 = vld [vmem:[%s1022 + $0x390] sm:$0xf]
        %v1647 = vld [vmem:[%s1022 + $0x394] sm:$0xf]
        %v1648 = vld [vmem:[%s1022 + $0x398] sm:$0xf]
        %v1649 = vld [vmem:[%s1022 + $0x39c] sm:$0xf]
        %v1650 = vld [vmem:[%s1022 + $0x3a0] sm:$0xf]
        %v1651 = vld [vmem:[%s1022 + $0x3a4] sm:$0xf]
        %v1652 = vld [vmem:[%s1022 + $0x3a8] sm:$0xf]
        %v1653 = vld [vmem:[%s1022 + $0x3ac] sm:$0xf]
        %v1654 = vld [vmem:[%s1022 + $0x3b0] sm:$0xf]
        %v1655 = vld [vmem:[%s1022 + $0x3b4] sm:$0xf]
        %v1656 = vld [vmem:[%s1022 + $0x3b8] sm:$0xf]
        %v1657 = vld [vmem:[%s1022 + $0x3bc] sm:$0xf]
        %v1658 = vld [vmem:[%s1022 + $0x3c0] sm:$0xf]
        %v1659 = vld [vmem:[%s1022 + $0x3c4] sm:$0xf]
        %v1660 = vld [vmem:[%s1022 + $0x3c8] sm:$0xf]
        %v1661 = vld [vmem:[%s1022 + $0x3cc] sm:$0xf]
        %v1662 = vld [vmem:[%s1022 + $0x3d0] sm:$0xf]
        %v1663 = vld [vmem:[%s1022 + $0x3d4] sm:$0xf]
        %v1664 = vld [vmem:[%s1022 + $0x3d8] sm:$0xf]
        %v1665 = vld [vmem:[%s1022 + $0x3dc] sm:$0xf]
        %v1666 = vld [vmem:[%s1022 + $0x3e0] sm:$0xf]
        %v1667 = vld [vmem:[%s1022 + $0x3e4] sm:$0xf]
        %v1668 = vld [vmem:[%s1022 + $0x3e8] sm:$0xf]
        %v1669 = vld [vmem:[%s1022 + $0x3ec] sm:$0xf]
        %v1670 = vld [vmem:[%s1022 + $0x3f0] sm:$0xf]
        %v1671 = vld [vmem:[%s1022 + $0x3f4] sm:$0xf]
        %v1672 = vld [vmem:[%s1022 + $0x3f8] sm:$0xf]
        %v1673 = vld [vmem:[%s1022 + $0x3fc] sm:$0xf]
        %v1674 = vld [vmem:[%s1022 + $0x400] sm:$0xf]
        %v1675 = vld [vmem:[%s1022 + $0x404] sm:$0xf]
        %v1676 = vld [vmem:[%s1022 + $0x408] sm:$0xf]
        %v1677 = vld [vmem:[%s1022 + $0x40c] sm:$0xf]
        %v1678 = vld [vmem:[%s1022 + $0x410] sm:$0xf]
        %v1679 = vld [vmem:[%s1022 + $0x414] sm:$0xf]
        %v1680 = vld [vmem:[%s1022 + $0x418] sm:$0xf]
        %v1681 = vld [vmem:[%s1022 + $0x41c] sm:$0xf]
        %v1682 = vld [vmem:[%s1022 + $0x420] sm:$0xf]
        %v1683 = vld [vmem:[%s1022 + $0x424] sm:$0xf]
        %v1684 = vld [vmem:[%s1022 + $0x428] sm:$0xf]
        %v1685 = vld [vmem:[%s1022 + $0x42c] sm:$0xf]
        %v1686 = vld [vmem:[%s1022 + $0x430] sm:$0xf]
        %v1687 = vld [vmem:[%s1022 + $0x434] sm:$0xf]
        %v1688 = vld [vmem:[%s1022 + $0x438] sm:$0xf]
        %v1689 = vld [vmem:[%s1022 + $0x43c] sm:$0xf]
        %v1690 = vld [vmem:[%s1022 + $0x440] sm:$0xf]
        %v1691 = vld [vmem:[%s1022 + $0x444] sm:$0xf]
        %v1692 = vld [vmem:[%s1022 + $0x448] sm:$0xf]
        %v1693 = vld [vmem:[%s1022 + $0x44c] sm:$0xf]
        %v1694 = vld [vmem:[%s1022 + $0x450] sm:$0xf]
        %v1695 = vld [vmem:[%s1022 + $0x454] sm:$0xf]
        %v1696 = vld [vmem:[%s1022 + $0x458] sm:$0xf]
        %v1697 = vld [vmem:[%s1022 + $0x45c] sm:$0xf]
        %v1698 = vld [vmem:[%s1022 + $0x460] sm:$0xf]
        %v1699 = vld [vmem:[%s1022 + $0x464] sm:$0xf]
        %v1700 = vld [vmem:[%s1022 + $0x468] sm:$0xf]
        %v1701 = vld [vmem:[%s1022 + $0x46c] sm:$0xf]
        %v1702 = vld [vmem:[%s1022 + $0x470] sm:$0xf]
        %v1703 = vld [vmem:[%s1022 + $0x474] sm:$0xf]
        %v1704 = vld [vmem:[%s1022 + $0x478] sm:$0xf]
        %v1705 = vld [vmem:[%s1022 + $0x47c] sm:$0xf]
        %v1706 = vld [vmem:[%s1022 + $0x480] sm:$0xf]
        %v1707 = vld [vmem:[%s1022 + $0x484] sm:$0xf]
        %v1708 = vld [vmem:[%s1022 + $0x488] sm:$0xf]
        %v1709 = vld [vmem:[%s1022 + $0x48c] sm:$0xf]
        %v1710 = vld [vmem:[%s1022 + $0x490] sm:$0xf]
        %v1711 = vld [vmem:[%s1022 + $0x494] sm:$0xf]
        %v1712 = vld [vmem:[%s1022 + $0x498] sm:$0xf]
        %v1713 = vld [vmem:[%s1022 + $0x49c] sm:$0xf]
        %v1714 = vld [vmem:[%s1022 + $0x4a0] sm:$0xf]
        %v1715 = vld [vmem:[%s1022 + $0x4a4] sm:$0xf]
        %v1716 = vld [vmem:[%s1022 + $0x4a8] sm:$0xf]
        %v1717 = vld [vmem:[%s1022 + $0x4ac] sm:$0xf]
        %v1718 = vld [vmem:[%s1022 + $0x4b0] sm:$0xf]
        %v1719 = vld [vmem:[%s1022 + $0x4b4] sm:$0xf]
        %v1720 = vld [vmem:[%s1022 + $0x4b8] sm:$0xf]
        %v1721 = vld [vmem:[%s1022 + $0x4bc] sm:$0xf]
        %v1722 = vld [vmem:[%s1022 + $0x4c0] sm:$0xf]
        %v1723 = vld [vmem:[%s1022 + $0x4c4] sm:$0xf]
        %v1724 = vld [vmem:[%s1022 + $0x4c8] sm:$0xf]
        %v1725 = vld [vmem:[%s1022 + $0x4cc] sm:$0xf]
        %v1726 = vld [vmem:[%s1022 + $0x4d0] sm:$0xf]
        %v1727 = vld [vmem:[%s1022 + $0x4d4] sm:$0xf]
        %v1728 = vld [vmem:[%s1022 + $0x4d8] sm:$0xf]
        %v1729 = vld [vmem:[%s1022 + $0x4dc] sm:$0xf]
        %v1730 = vld [vmem:[%s1022 + $0x4e0] sm:$0xf]
        %v1731 = vld [vmem:[%s1022 + $0x4e4] sm:$0xf]
        %v1732 = vld [vmem:[%s1022 + $0x4e8] sm:$0xf]
        %v1733 = vld [vmem:[%s1022 + $0x4ec] sm:$0xf]
        %v1734 = vld [vmem:[%s1022 + $0x4f0] sm:$0xf]
        %v1735 = vld [vmem:[%s1022 + $0x4f4] sm:$0xf]
        %v1736 = vld [vmem:[%s1022 + $0x4f8] sm:$0xf]
        %v1737 = vld [vmem:[%s1022 + $0x4fc] sm:$0xf]
        %v1738 = vld [vmem:[%s1022 + $0x500] sm:$0xf]
        %v1739 = vld [vmem:[%s1022 + $0x504] sm:$0xf]
        %v1740 = vld [vmem:[%s1022 + $0x508] sm:$0xf]
        %v1741 = vld [vmem:[%s1022 + $0x50c] sm:$0xf]
        %v1742 = vld [vmem:[%s1022 + $0x510] sm:$0xf]
        %v1743 = vld [vmem:[%s1022 + $0x514] sm:$0xf]
        %v1744 = vld [vmem:[%s1022 + $0x518] sm:$0xf]
        %v1745 = vld [vmem:[%s1022 + $0x51c] sm:$0xf]
        %v1746 = vld [vmem:[%s1022 + $0x520] sm:$0xf]
        %v1747 = vld [vmem:[%s1022 + $0x524] sm:$0xf]
        %v1748 = vld [vmem:[%s1022 + $0x528] sm:$0xf]
        %v1749 = vld [vmem:[%s1022 + $0x52c] sm:$0xf]
        %v1750 = vld [vmem:[%s1022 + $0x530] sm:$0xf]
        %v1751 = vld [vmem:[%s1022 + $0x534] sm:$0xf]
        %v1752 = vld [vmem:[%s1022 + $0x538] sm:$0xf]
        %v1753 = vld [vmem:[%s1022 + $0x53c] sm:$0xf]
        %v1754 = vld [vmem:[%s1022 + $0x540] sm:$0xf]
        %v1755 = vld [vmem:[%s1022 + $0x544] sm:$0xf]
        %v1756 = vld [vmem:[%s1022 + $0x548] sm:$0xf]
        %v1757 = vld [vmem:[%s1022 + $0x54c] sm:$0xf]
        %v1758 = vld [vmem:[%s1022 + $0x550] sm:$0xf]
        %v1759 = vld [vmem:[%s1022 + $0x554] sm:$0xf]
        %v1760 = vld [vmem:[%s1022 + $0x558] sm:$0xf]
        %v1761 = vld [vmem:[%s1022 + $0x55c] sm:$0xf]
        %v1762 = vld [vmem:[%s1022 + $0x560] sm:$0xf]
        %v1763 = vld [vmem:[%s1022 + $0x564] sm:$0xf]
        %v1764 = vld [vmem:[%s1022 + $0x568] sm:$0xf]
        %v1765 = vld [vmem:[%s1022 + $0x56c] sm:$0xf]
        %v1766 = vld [vmem:[%s1022 + $0x570] sm:$0xf]
        %v1767 = vld [vmem:[%s1022 + $0x574] sm:$0xf]
        %v1768 = vld [vmem:[%s1022 + $0x578] sm:$0xf]
        %v1769 = vld [vmem:[%s1022 + $0x57c] sm:$0xf]
        %v1770 = vld [vmem:[%s1022 + $0x580] sm:$0xf]
        %v1771 = vld [vmem:[%s1022 + $0x584] sm:$0xf]
        %v1772 = vld [vmem:[%s1022 + $0x588] sm:$0xf]
        %v1773 = vld [vmem:[%s1022 + $0x58c] sm:$0xf]
        %v1774 = vld [vmem:[%s1022 + $0x590] sm:$0xf]
        %v1775 = vld [vmem:[%s1022 + $0x594] sm:$0xf]
        %v1776 = vld [vmem:[%s1022 + $0x598] sm:$0xf]
        %v1777 = vld [vmem:[%s1022 + $0x59c] sm:$0xf]
        %v1778 = vld [vmem:[%s1022 + $0x5a0] sm:$0xf]
        %v1779 = vld [vmem:[%s1022 + $0x5a4] sm:$0xf]
        %v1780 = vld [vmem:[%s1022 + $0x5a8] sm:$0xf]
        %v1781 = vld [vmem:[%s1022 + $0x5ac] sm:$0xf]
        %v1782 = vld [vmem:[%s1022 + $0x5b0] sm:$0xf]
        %v1783 = vld [vmem:[%s1022 + $0x5b4] sm:$0xf]
        %v1784 = vld [vmem:[%s1022 + $0x5b8] sm:$0xf]
        %v1785 = vld [vmem:[%s1022 + $0x5bc] sm:$0xf]
        %v1786 = vld [vmem:[%s1022 + $0x5c0] sm:$0xf]
        %v1787 = vld [vmem:[%s1022 + $0x5c4] sm:$0xf]
        %v1788 = vld [vmem:[%s1022 + $0x5c8] sm:$0xf]
        %v1789 = vld [vmem:[%s1022 + $0x5cc] sm:$0xf]
        %v1790 = vld [vmem:[%s1022 + $0x5d0] sm:$0xf]
        %v1791 = vld [vmem:[%s1022 + $0x5d4] sm:$0xf]
        %v1792 = vld [vmem:[%s1022 + $0x5d8] sm:$0xf]
        %v1793 = vld [vmem:[%s1022 + $0x5dc] sm:$0xf]
        %v1794 = vld [vmem:[%s1022 + $0x5e0] sm:$0xf]
        %v1795 = vld [vmem:[%s1022 + $0x5e4] sm:$0xf]
        %v1796 = vld [vmem:[%s1022 + $0x5e8] sm:$0xf]
        %v1797 = vld [vmem:[%s1022 + $0x5ec] sm:$0xf]
        %v1798 = vld [vmem:[%s1022 + $0x5f0] sm:$0xf]
        %v1799 = vld [vmem:[%s1022 + $0x5f4] sm:$0xf]
        %v1800 = vld [vmem:[%s1022 + $0x5f8] sm:$0xf]
        %v1801 = vld [vmem:[%s1022 + $0x5fc] sm:$0xf]
        %v1802 = vld [vmem:[%s1022 + $0x600] sm:$0xf]
        %v1803 = vld [vmem:[%s1022 + $0x604] sm:$0xf]
        %v1804 = vld [vmem:[%s1022 + $0x608] sm:$0xf]
        %v1805 = vld [vmem:[%s1022 + $0x60c] sm:$0xf]
        %v1806 = vld [vmem:[%s1022 + $0x610] sm:$0xf]
        %v1807 = vld [vmem:[%s1022 + $0x614] sm:$0xf]
        %v1808 = vld [vmem:[%s1022 + $0x618] sm:$0xf]
        %v1809 = vld [vmem:[%s1022 + $0x61c] sm:$0xf]
        %v1810 = vld [vmem:[%s1022 + $0x620] sm:$0xf]
        %v1811 = vld [vmem:[%s1022 + $0x624] sm:$0xf]
        %v1812 = vld [vmem:[%s1022 + $0x628] sm:$0xf]
        %v1813 = vld [vmem:[%s1022 + $0x62c] sm:$0xf]
        %v1814 = vld [vmem:[%s1022 + $0x630] sm:$0xf]
        %v1815 = vld [vmem:[%s1022 + $0x634] sm:$0xf]
        %v1816 = vld [vmem:[%s1022 + $0x638] sm:$0xf]
        %v1817 = vld [vmem:[%s1022 + $0x63c] sm:$0xf]
        %v1818 = vld [vmem:[%s1022 + $0x640] sm:$0xf]
        %v1819 = vld [vmem:[%s1022 + $0x644] sm:$0xf]
        %v1820 = vld [vmem:[%s1022 + $0x648] sm:$0xf]
        %v1821 = vld [vmem:[%s1022 + $0x64c] sm:$0xf]
        %v1822 = vld [vmem:[%s1022 + $0x650] sm:$0xf]
        %v1823 = vld [vmem:[%s1022 + $0x654] sm:$0xf]
        %v1824 = vld [vmem:[%s1022 + $0x658] sm:$0xf]
        %v1825 = vld [vmem:[%s1022 + $0x65c] sm:$0xf]
        %v1826 = vld [vmem:[%s1022 + $0x660] sm:$0xf]
        %v1827 = vld [vmem:[%s1022 + $0x664] sm:$0xf]
        %v1828 = vld [vmem:[%s1022 + $0x668] sm:$0xf]
        %v1829 = vld [vmem:[%s1022 + $0x66c] sm:$0xf]
        %v1830 = vld [vmem:[%s1022 + $0x670] sm:$0xf]
        %v1831 = vld [vmem:[%s1022 + $0x674] sm:$0xf]
        %v1832 = vld [vmem:[%s1022 + $0x678] sm:$0xf]
        %v1833 = vld [vmem:[%s1022 + $0x67c] sm:$0xf]
        %v1834 = vld [vmem:[%s1022 + $0x680] sm:$0xf]
        %v1835 = vld [vmem:[%s1022 + $0x684] sm:$0xf]
        %v1836 = vld [vmem:[%s1022 + $0x688] sm:$0xf]
        %v1837 = vld [vmem:[%s1022 + $0x68c] sm:$0xf]
        %v1838 = vld [vmem:[%s1022 + $0x690] sm:$0xf]
        %v1839 = vld [vmem:[%s1022 + $0x694] sm:$0xf]
        %v1840 = vld [vmem:[%s1022 + $0x698] sm:$0xf]
        %v1841 = vld [vmem:[%s1022 + $0x69c] sm:$0xf]
        %v1842 = vld [vmem:[%s1022 + $0x6a0] sm:$0xf]
        %v1843 = vld [vmem:[%s1022 + $0x6a4] sm:$0xf]
        %v1844 = vld [vmem:[%s1022 + $0x6a8] sm:$0xf]
        %v1845 = vld [vmem:[%s1022 + $0x6ac] sm:$0xf]
        %v1846 = vld [vmem:[%s1022 + $0x6b0] sm:$0xf]
        %v1847 = vld [vmem:[%s1022 + $0x6b4] sm:$0xf]
        %v1848 = vld [vmem:[%s1022 + $0x6b8] sm:$0xf]
        %v1849 = vld [vmem:[%s1022 + $0x6bc] sm:$0xf]
        %v1850 = vld [vmem:[%s1022 + $0x6c0] sm:$0xf]
        %v1851 = vld [vmem:[%s1022 + $0x6c4] sm:$0xf]
        %v1852 = vld [vmem:[%s1022 + $0x6c8] sm:$0xf]
        %v1853 = vld [vmem:[%s1022 + $0x6cc] sm:$0xf]
        %v1854 = vld [vmem:[%s1022 + $0x6d0] sm:$0xf]
        %v1855 = vld [vmem:[%s1022 + $0x6d4] sm:$0xf]
        %v1856 = vld [vmem:[%s1022 + $0x6d8] sm:$0xf]
        %v1857 = vld [vmem:[%s1022 + $0x6dc] sm:$0xf]
        %v1858 = vld [vmem:[%s1022 + $0x6e0] sm:$0xf]
        %v1859 = vld [vmem:[%s1022 + $0x6e4] sm:$0xf]
        %v1860 = vld [vmem:[%s1022 + $0x6e8] sm:$0xf]
        %v1861 = vld [vmem:[%s1022 + $0x6ec] sm:$0xf]
        %v1862 = vld [vmem:[%s1022 + $0x6f0] sm:$0xf]
        %v1863 = vld [vmem:[%s1022 + $0x6f4] sm:$0xf]
        %v1864 = vld [vmem:[%s1022 + $0x6f8] sm:$0xf]
        %v1865 = vld [vmem:[%s1022 + $0x6fc] sm:$0xf]
        %v1866 = vld [vmem:[%s1022 + $0x700] sm:$0xf]
        %v1867 = vld [vmem:[%s1022 + $0x704] sm:$0xf]
        %v1868 = vld [vmem:[%s1022 + $0x708] sm:$0xf]
        %v1869 = vld [vmem:[%s1022 + $0x70c] sm:$0xf]
        %v1870 = vld [vmem:[%s1022 + $0x710] sm:$0xf]
        %v1871 = vld [vmem:[%s1022 + $0x714] sm:$0xf]
        %v1872 = vld [vmem:[%s1022 + $0x718] sm:$0xf]
        %v1873 = vld [vmem:[%s1022 + $0x71c] sm:$0xf]
        %v1874 = vld [vmem:[%s1022 + $0x720] sm:$0xf]
        %v1875 = vld [vmem:[%s1022 + $0x724] sm:$0xf]
        %v1876 = vld [vmem:[%s1022 + $0x728] sm:$0xf]
        %v1877 = vld [vmem:[%s1022 + $0x72c] sm:$0xf]
        %v1878 = vld [vmem:[%s1022 + $0x730] sm:$0xf]
        %v1879 = vld [vmem:[%s1022 + $0x734] sm:$0xf]
        %v1880 = vld [vmem:[%s1022 + $0x738] sm:$0xf]
        %v1881 = vld [vmem:[%s1022 + $0x73c] sm:$0xf]
        %v1882 = vld [vmem:[%s1022 + $0x740] sm:$0xf]
        %v1883 = vld [vmem:[%s1022 + $0x744] sm:$0xf]
        %v1884 = vld [vmem:[%s1022 + $0x748] sm:$0xf]
        %v1885 = vld [vmem:[%s1022 + $0x74c] sm:$0xf]
        %v1886 = vld [vmem:[%s1022 + $0x750] sm:$0xf]
        %v1887 = vld [vmem:[%s1022 + $0x754] sm:$0xf]
        %v1888 = vld [vmem:[%s1022 + $0x758] sm:$0xf]
        %v1889 = vld [vmem:[%s1022 + $0x75c] sm:$0xf]
        %v1890 = vld [vmem:[%s1022 + $0x760] sm:$0xf]
        %v1891 = vld [vmem:[%s1022 + $0x764] sm:$0xf]
        %v1892 = vld [vmem:[%s1022 + $0x768] sm:$0xf]
        %v1893 = vld [vmem:[%s1022 + $0x76c] sm:$0xf]
        %v1894 = vld [vmem:[%s1022 + $0x770] sm:$0xf]
        %v1895 = vld [vmem:[%s1022 + $0x774] sm:$0xf]
        %v1896 = vld [vmem:[%s1022 + $0x778] sm:$0xf]
        %v1897 = vld [vmem:[%s1022 + $0x77c] sm:$0xf]
        %v1898 = vld [vmem:[%s1022 + $0x780] sm:$0xf]
        %v1899 = vld [vmem:[%s1022 + $0x784] sm:$0xf]
        %v1900 = vld [vmem:[%s1022 + $0x788] sm:$0xf]
        %v1901 = vld [vmem:[%s1022 + $0x78c] sm:$0xf]
        %v1902 = vld [vmem:[%s1022 + $0x790] sm:$0xf]
        %v1903 = vld [vmem:[%s1022 + $0x794] sm:$0xf]
        %v1904 = vld [vmem:[%s1022 + $0x798] sm:$0xf]
        %v1905 = vld [vmem:[%s1022 + $0x79c] sm:$0xf]
        %v1906 = vld [vmem:[%s1022 + $0x7a0] sm:$0xf]
        %v1907 = vld [vmem:[%s1022 + $0x7a4] sm:$0xf]
        %v1908 = vld [vmem:[%s1022 + $0x7a8] sm:$0xf]
        %v1909 = vld [vmem:[%s1022 + $0x7ac] sm:$0xf]
        %v1910 = vld [vmem:[%s1022 + $0x7b0] sm:$0xf]
        %v1911 = vld [vmem:[%s1022 + $0x7b4] sm:$0xf]
        %v1912 = vld [vmem:[%s1022 + $0x7b8] sm:$0xf]
        %v1913 = vld [vmem:[%s1022 + $0x7bc] sm:$0xf]
        %v1914 = vld [vmem:[%s1022 + $0x7c0] sm:$0xf]
        %v1915 = vld [vmem:[%s1022 + $0x7c4] sm:$0xf]
        %v1916 = vld [vmem:[%s1022 + $0x7c8] sm:$0xf]
        %v1917 = vld [vmem:[%s1022 + $0x7cc] sm:$0xf]
        %v1918 = vld [vmem:[%s1022 + $0x7d0] sm:$0xf]
        %v1919 = vld [vmem:[%s1022 + $0x7d4] sm:$0xf]
        %v1920 = vld [vmem:[%s1022 + $0x7d8] sm:$0xf]
        %v1921 = vld [vmem:[%s1022 + $0x7dc] sm:$0xf]
        %v1922 = vld [vmem:[%s1022 + $0x7e0] sm:$0xf]
        %v1923 = vld [vmem:[%s1022 + $0x7e4] sm:$0xf]
        %v1924 = vld [vmem:[%s1022 + $0x7e8] sm:$0xf]
        %v1925 = vld [vmem:[%s1022 + $0x7ec] sm:$0xf]
        %v1926 = vld [vmem:[%s1022 + $0x7f0] sm:$0xf]
        %v1927 = vld [vmem:[%s1022 + $0x7f4] sm:$0xf]
        %v1928 = vld [vmem:[%s1022 + $0x7f8] sm:$0xf]
        %v1929 = vld [vmem:[%s1022 + $0x7fc] sm:$0xf]
        %v1930 = vld [vmem:[%s1022 + $0x800] sm:$0xf]
        %v1931 = vld [vmem:[%s1022 + $0x804] sm:$0xf]
        %v1932 = vld [vmem:[%s1022 + $0x808] sm:$0xf]
        %v1933 = vld [vmem:[%s1022 + $0x80c] sm:$0xf]
        %v1934 = vld [vmem:[%s1022 + $0x810] sm:$0xf]
        %v1935 = vld [vmem:[%s1022 + $0x814] sm:$0xf]
        %v1936 = vld [vmem:[%s1022 + $0x818] sm:$0xf]
        %v1937 = vld [vmem:[%s1022 + $0x81c] sm:$0xf]
        %v1938 = vld [vmem:[%s1022 + $0x820] sm:$0xf]
        %v1939 = vld [vmem:[%s1022 + $0x824] sm:$0xf]
        %v1940 = vld [vmem:[%s1022 + $0x828] sm:$0xf]
        %v1941 = vld [vmem:[%s1022 + $0x82c] sm:$0xf]
        %v1942 = vld [vmem:[%s1022 + $0x830] sm:$0xf]
        %v1943 = vld [vmem:[%s1022 + $0x834] sm:$0xf]
        %v1944 = vld [vmem:[%s1022 + $0x838] sm:$0xf]
        %v1945 = vld [vmem:[%s1022 + $0x83c] sm:$0xf]
        %v1946 = vld [vmem:[%s1022 + $0x840] sm:$0xf]
        %v1947 = vld [vmem:[%s1022 + $0x844] sm:$0xf]
        %v1948 = vld [vmem:[%s1022 + $0x848] sm:$0xf]
        %v1949 = vld [vmem:[%s1022 + $0x84c] sm:$0xf]
        %v1950 = vld [vmem:[%s1022 + $0x850] sm:$0xf]
        %v1951 = vld [vmem:[%s1022 + $0x854] sm:$0xf]
        %v1952 = vld [vmem:[%s1022 + $0x858] sm:$0xf]
        %v1953 = vld [vmem:[%s1022 + $0x85c] sm:$0xf]
        %v1954 = vld [vmem:[%s1022 + $0x860] sm:$0xf]
        %v1955 = vld [vmem:[%s1022 + $0x864] sm:$0xf]
        %v1956 = vld [vmem:[%s1022 + $0x868] sm:$0xf]
        %v1957 = vld [vmem:[%s1022 + $0x86c] sm:$0xf]
        %v1958 = vld [vmem:[%s1022 + $0x870] sm:$0xf]
        %v1959 = vld [vmem:[%s1022 + $0x874] sm:$0xf]
        %v1960 = vld [vmem:[%s1022 + $0x878] sm:$0xf]
        %v1961 = vld [vmem:[%s1022 + $0x87c] sm:$0xf]
        %v1962 = vld [vmem:[%s1022 + $0x880] sm:$0xf]
        %v1963 = vld [vmem:[%s1022 + $0x884] sm:$0xf]
        %v1964 = vld [vmem:[%s1022 + $0x888] sm:$0xf]
        %v1965 = vld [vmem:[%s1022 + $0x88c] sm:$0xf]
        %v1966 = vld [vmem:[%s1022 + $0x890] sm:$0xf]
        %v1967 = vld [vmem:[%s1022 + $0x894] sm:$0xf]
        %v1968 = vld [vmem:[%s1022 + $0x898] sm:$0xf]
        %v1969 = vld [vmem:[%s1022 + $0x89c] sm:$0xf]
        %v1970 = vld [vmem:[%s1022 + $0x8a0] sm:$0xf]
        %v1971 = vld [vmem:[%s1022 + $0x8a4] sm:$0xf]
        %v1972 = vld [vmem:[%s1022 + $0x8a8] sm:$0xf]
        %v1973 = vld [vmem:[%s1022 + $0x8ac] sm:$0xf]
        %v1974 = vld [vmem:[%s1022 + $0x8b0] sm:$0xf]
        %v1975 = vld [vmem:[%s1022 + $0x8b4] sm:$0xf]
        %v1976 = vld [vmem:[%s1022 + $0x8b8] sm:$0xf]
        %v1977 = vld [vmem:[%s1022 + $0x8bc] sm:$0xf]
        %v1978 = vld [vmem:[%s1022 + $0x8c0] sm:$0xf]
        %v1979 = vld [vmem:[%s1022 + $0x8c4] sm:$0xf]
        %v1980 = vld [vmem:[%s1022 + $0x8c8] sm:$0xf]
        %v1981 = vld [vmem:[%s1022 + $0x8cc] sm:$0xf]
        %v1982 = vld [vmem:[%s1022 + $0x8d0] sm:$0xf]
        %v1983 = vld [vmem:[%s1022 + $0x8d4] sm:$0xf]
        %v1984 = vld [vmem:[%s1022 + $0x8d8] sm:$0xf]
        %v1985 = vld [vmem:[%s1022 + $0x8dc] sm:$0xf]
        %v1986 = vld [vmem:[%s1022 + $0x8e0] sm:$0xf]
        %v1987 = vld [vmem:[%s1022 + $0x8e4] sm:$0xf]
        %v1988 = vld [vmem:[%s1022 + $0x8e8] sm:$0xf]
        %v1989 = vld [vmem:[%s1022 + $0x8ec] sm:$0xf]
        %v1990 = vld [vmem:[%s1022 + $0x8f0] sm:$0xf]
        %v1991 = vld [vmem:[%s1022 + $0x8f4] sm:$0xf]
        %v1992 = vld [vmem:[%s1022 + $0x8f8] sm:$0xf]
        %v1993 = vld [vmem:[%s1022 + $0x8fc] sm:$0xf]
        %v1994 = vld [vmem:[%s1022 + $0x900] sm:$0xf]
        %v1995 = vld [vmem:[%s1022 + $0x904] sm:$0xf]
        %v1996 = vld [vmem:[%s1022 + $0x908] sm:$0xf]
        %v1997 = vld [vmem:[%s1022 + $0x90c] sm:$0xf]
        %v1998 = vld [vmem:[%s1022 + $0x910] sm:$0xf]
        %v1999 = vld [vmem:[%s1022 + $0x914] sm:$0xf]
        %v2000 = vld [vmem:[%s1022 + $0x918] sm:$0xf]
        %v2001 = vld [vmem:[%s1022 + $0x91c] sm:$0xf]
        %v2002 = vld [vmem:[%s1022 + $0x920] sm:$0xf]
        %v2003 = vld [vmem:[%s1022 + $0x924] sm:$0xf]
        %v2004 = vld [vmem:[%s1022 + $0x928] sm:$0xf]
        %v2005 = vld [vmem:[%s1022 + $0x92c] sm:$0xf]
        %v2006 = vld [vmem:[%s1022 + $0x930] sm:$0xf]
        %v2007 = vld [vmem:[%s1022 + $0x934] sm:$0xf]
        %v2008 = vld [vmem:[%s1022 + $0x938] sm:$0xf]
        %v2009 = vld [vmem:[%s1022 + $0x93c] sm:$0xf]
        %v2010 = vld [vmem:[%s1022 + $0x940] sm:$0xf]
        %v2011 = vld [vmem:[%s1022 + $0x944] sm:$0xf]
        %v2012 = vld [vmem:[%s1022 + $0x948] sm:$0xf]
        %v2013 = vld [vmem:[%s1022 + $0x94c] sm:$0xf]
        %v2014 = vld [vmem:[%s1022 + $0x950] sm:$0xf]
        %v2015 = vld [vmem:[%s1022 + $0x954] sm:$0xf]
        %v2016 = vld [vmem:[%s1022 + $0x958] sm:$0xf]
        %v2017 = vld [vmem:[%s1022 + $0x95c] sm:$0xf]
        %v2018 = vld [vmem:[%s1022 + $0x960] sm:$0xf]
        %v2019 = vld [vmem:[%s1022 + $0x964] sm:$0xf]
        %v2020 = vld [vmem:[%s1022 + $0x968] sm:$0xf]
        %v2021 = vld [vmem:[%s1022 + $0x96c] sm:$0xf]
        %v2022 = vld [vmem:[%s1022 + $0x970] sm:$0xf]
        %v2023 = vld [vmem:[%s1022 + $0x974] sm:$0xf]
        %v2024 = vld [vmem:[%s1022 + $0x978] sm:$0xf]
        %v2025 = vld [vmem:[%s1022 + $0x97c] sm:$0xf]
        %v2026 = vld [vmem:[%s1022 + $0x980] sm:$0xf]
        %v2027 = vld [vmem:[%s1022 + $0x984] sm:$0xf]
        %v2028 = vld [vmem:[%s1022 + $0x988] sm:$0xf]
        %v2029 = vld [vmem:[%s1022 + $0x98c] sm:$0xf]
        %v2030 = vld [vmem:[%s1022 + $0x990] sm:$0xf]
        %v2031 = vld [vmem:[%s1022 + $0x994] sm:$0xf]
        %v2032 = vld [vmem:[%s1022 + $0x998] sm:$0xf]
        %v2033 = vld [vmem:[%s1022 + $0x99c] sm:$0xf]
        %v2034 = vld [vmem:[%s1022 + $0x9a0] sm:$0xf]
        %v2035 = vld [vmem:[%s1022 + $0x9a4] sm:$0xf]
        %v2036 = vld [vmem:[%s1022 + $0x9a8] sm:$0xf]
        %v2037 = vld [vmem:[%s1022 + $0x9ac] sm:$0xf]
        %v2038 = vld [vmem:[%s1022 + $0x9b0] sm:$0xf]
        %v2039 = vld [vmem:[%s1022 + $0x9b4] sm:$0xf]
        %v2040 = vld [vmem:[%s1022 + $0x9b8] sm:$0xf]
        %v2041 = vld [vmem:[%s1022 + $0x9bc] sm:$0xf]
        %v2042 = vld [vmem:[%s1022 + $0x9c0] sm:$0xf]
        %v2043 = vld [vmem:[%s1022 + $0x9c4] sm:$0xf]
        %v2044 = vld [vmem:[%s1022 + $0x9c8] sm:$0xf]
        %v2045 = vld [vmem:[%s1022 + $0x9cc] sm:$0xf]
        %v2046 = vld [vmem:[%s1022 + $0x9d0] sm:$0xf]
        %v2047 = vld [vmem:[%s1022 + $0x9d4] sm:$0xf]
        %v2048 = vld [vmem:[%s1022 + $0x9d8] sm:$0xf]
        %v2049 = vld [vmem:[%s1022 + $0x9dc] sm:$0xf]
        %v2050 = vld [vmem:[%s1022 + $0x9e0] sm:$0xf]
        %v2051 = vld [vmem:[%s1022 + $0x9e4] sm:$0xf]
        %v2052 = vld [vmem:[%s1022 + $0x9e8] sm:$0xf]
        %v2053 = vld [vmem:[%s1022 + $0x9ec] sm:$0xf]
        %v2054 = vld [vmem:[%s1022 + $0x9f0] sm:$0xf]
        %v2055 = vld [vmem:[%s1022 + $0x9f4] sm:$0xf]
        %v2056 = vld [vmem:[%s1022 + $0x9f8] sm:$0xf]
        %v2057 = vld [vmem:[%s1022 + $0x9fc] sm:$0xf]
        %v2058 = vld [vmem:[%s1022 + $0xa00] sm:$0xf]
        %v2059 = vld [vmem:[%s1022 + $0xa04] sm:$0xf]
        %v2060 = vld [vmem:[%s1022 + $0xa08] sm:$0xf]
        %v2061 = vld [vmem:[%s1022 + $0xa0c] sm:$0xf]
        %v2062 = vld [vmem:[%s1022 + $0xa10] sm:$0xf]
        %v2063 = vld [vmem:[%s1022 + $0xa14] sm:$0xf]
        %v2064 = vld [vmem:[%s1022 + $0xa18] sm:$0xf]
        %v2065 = vld [vmem:[%s1022 + $0xa1c] sm:$0xf]
        %v2066 = vld [vmem:[%s1022 + $0xa20] sm:$0xf]
        %v2067 = vld [vmem:[%s1022 + $0xa24] sm:$0xf]
        %v2068 = vld [vmem:[%s1022 + $0xa28] sm:$0xf]
        %v2069 = vld [vmem:[%s1022 + $0xa2c] sm:$0xf]
        %v2070 = vld [vmem:[%s1022 + $0xa30] sm:$0xf]
        %v2071 = vld [vmem:[%s1022 + $0xa34] sm:$0xf]
        %v2072 = vld [vmem:[%s1022 + $0xa38] sm:$0xf]
        %v2073 = vld [vmem:[%s1022 + $0xa3c] sm:$0xf]
        %v2074 = vld [vmem:[%s1022 + $0xa40] sm:$0xf]
        %v2075 = vld [vmem:[%s1022 + $0xa44] sm:$0xf]
        %v2076 = vld [vmem:[%s1022 + $0xa48] sm:$0xf]
        %v2077 = vld [vmem:[%s1022 + $0xa4c] sm:$0xf]
        %v2078 = vld [vmem:[%s1022 + $0xa50] sm:$0xf]
        %v2079 = vld [vmem:[%s1022 + $0xa54] sm:$0xf]
        %v2080 = vld [vmem:[%s1022 + $0xa58] sm:$0xf]
        %v2081 = vld [vmem:[%s1022 + $0xa5c] sm:$0xf]
        %v2082 = vld [vmem:[%s1022 + $0xa60] sm:$0xf]
        %v2083 = vld [vmem:[%s1022 + $0xa64] sm:$0xf]
        %v2084 = vld [vmem:[%s1022 + $0xa68] sm:$0xf]
        %v2085 = vld [vmem:[%s1022 + $0xa6c] sm:$0xf]
        %v2086 = vld [vmem:[%s1022 + $0xa70] sm:$0xf]
        %v2087 = vld [vmem:[%s1022 + $0xa74] sm:$0xf]
        %v2088 = vld [vmem:[%s1022 + $0xa78] sm:$0xf]
        %v2089 = vld [vmem:[%s1022 + $0xa7c] sm:$0xf]
        %v2090 = vld [vmem:[%s1022 + $0xa80] sm:$0xf]
        %v2091 = vld [vmem:[%s1022 + $0xa84] sm:$0xf]
        %v2092 = vld [vmem:[%s1022 + $0xa88] sm:$0xf]
        %v2093 = vld [vmem:[%s1022 + $0xa8c] sm:$0xf]
        %v2094 = vld [vmem:[%s1022 + $0xa90] sm:$0xf]
        %v2095 = vld [vmem:[%s1022 + $0xa94] sm:$0xf]
        %v2096 = vld [vmem:[%s1022 + $0xa98] sm:$0xf]
        %v2097 = vld [vmem:[%s1022 + $0xa9c] sm:$0xf]
        %v2098 = vld [vmem:[%s1022 + $0xaa0] sm:$0xf]
        %v2099 = vld [vmem:[%s1022 + $0xaa4] sm:$0xf]
        %v2100 = vld [vmem:[%s1022 + $0xaa8] sm:$0xf]
        %v2101 = vld [vmem:[%s1022 + $0xaac] sm:$0xf]
        %v2102 = vld [vmem:[%s1022 + $0xab0] sm:$0xf]
        %v2103 = vld [vmem:[%s1022 + $0xab4] sm:$0xf]
        %v2104 = vld [vmem:[%s1022 + $0xab8] sm:$0xf]
        %v2105 = vld [vmem:[%s1022 + $0xabc] sm:$0xf]
        %v2106 = vld [vmem:[%s1022 + $0xac0] sm:$0xf]
        %v2107 = vld [vmem:[%s1022 + $0xac4] sm:$0xf]
        %v2108 = vld [vmem:[%s1022 + $0xac8] sm:$0xf]
        %v2109 = vld [vmem:[%s1022 + $0xacc] sm:$0xf]
        %v2110 = vld [vmem:[%s1022 + $0xad0] sm:$0xf]
        %v2111 = vld [vmem:[%s1022 + $0xad4] sm:$0xf]
        %v2112 = vld [vmem:[%s1022 + $0xad8] sm:$0xf]
        %v2113 = vld [vmem:[%s1022 + $0xadc] sm:$0xf]
        %v2114 = vld [vmem:[%s1022 + $0xae0] sm:$0xf]
        %v2115 = vld [vmem:[%s1022 + $0xae4] sm:$0xf]
        %v2116 = vld [vmem:[%s1022 + $0xae8] sm:$0xf]
        %v2117 = vld [vmem:[%s1022 + $0xaec] sm:$0xf]
        %v2118 = vld [vmem:[%s1022 + $0xaf0] sm:$0xf]
        %v2119 = vld [vmem:[%s1022 + $0xaf4] sm:$0xf]
        %v2120 = vld [vmem:[%s1022 + $0xaf8] sm:$0xf]
        %v2121 = vld [vmem:[%s1022 + $0xafc] sm:$0xf]
        %v2122 = vld [vmem:[%s1022 + $0xb00] sm:$0xf]
        %v2123 = vld [vmem:[%s1022 + $0xb04] sm:$0xf]
        %v2124 = vld [vmem:[%s1022 + $0xb08] sm:$0xf]
        %v2125 = vld [vmem:[%s1022 + $0xb0c] sm:$0xf]
        %v2126 = vld [vmem:[%s1022 + $0xb10] sm:$0xf]
        %v2127 = vld [vmem:[%s1022 + $0xb14] sm:$0xf]
        %v2128 = vld [vmem:[%s1022 + $0xb18] sm:$0xf]
        %v2129 = vld [vmem:[%s1022 + $0xb1c] sm:$0xf]
        %v2130 = vld [vmem:[%s1022 + $0xb20] sm:$0xf]
        %v2131 = vld [vmem:[%s1022 + $0xb24] sm:$0xf]
        %v2132 = vld [vmem:[%s1022 + $0xb28] sm:$0xf]
        %v2133 = vld [vmem:[%s1022 + $0xb2c] sm:$0xf]
        %v2134 = vld [vmem:[%s1022 + $0xb30] sm:$0xf]
        %v2135 = vld [vmem:[%s1022 + $0xb34] sm:$0xf]
        %v2136 = vld [vmem:[%s1022 + $0xb38] sm:$0xf]
        %v2137 = vld [vmem:[%s1022 + $0xb3c] sm:$0xf]
        %v2138 = vld [vmem:[%s1022 + $0xb40] sm:$0xf]
        %v2139 = vld [vmem:[%s1022 + $0xb44] sm:$0xf]
        %v2140 = vld [vmem:[%s1022 + $0xb48] sm:$0xf]
        %v2141 = vld [vmem:[%s1022 + $0xb4c] sm:$0xf]
        %v2142 = vld [vmem:[%s1022 + $0xb50] sm:$0xf]
        %v2143 = vld [vmem:[%s1022 + $0xb54] sm:$0xf]
        %v2144 = vld [vmem:[%s1022 + $0xb58] sm:$0xf]
        %v2145 = vld [vmem:[%s1022 + $0xb5c] sm:$0xf]
        %v2146 = vld [vmem:[%s1022 + $0xb60] sm:$0xf]
        %v2147 = vld [vmem:[%s1022 + $0xb64] sm:$0xf]
        %v2148 = vld [vmem:[%s1022 + $0xb68] sm:$0xf]
        %v2149 = vld [vmem:[%s1022 + $0xb6c] sm:$0xf]
        %v2150 = vld [vmem:[%s1022 + $0xb70] sm:$0xf]
        %v2151 = vld [vmem:[%s1022 + $0xb74] sm:$0xf]
        %v2152 = vld [vmem:[%s1022 + $0xb78] sm:$0xf]
        %v2153 = vld [vmem:[%s1022 + $0xb7c] sm:$0xf]
        %v2154 = vld [vmem:[%s1022 + $0xb80] sm:$0xf]
        %v2155 = vld [vmem:[%s1022 + $0xb84] sm:$0xf]
        %v2156 = vld [vmem:[%s1022 + $0xb88] sm:$0xf]
        %v2157 = vld [vmem:[%s1022 + $0xb8c] sm:$0xf]
        %v2158 = vld [vmem:[%s1022 + $0xb90] sm:$0xf]
        %v2159 = vld [vmem:[%s1022 + $0xb94] sm:$0xf]
        %v2160 = vld [vmem:[%s1022 + $0xb98] sm:$0xf]
        %v2161 = vld [vmem:[%s1022 + $0xb9c] sm:$0xf]
        %v2162 = vld [vmem:[%s1022 + $0xba0] sm:$0xf]
        %v2163 = vld [vmem:[%s1022 + $0xba4] sm:$0xf]
        %v2164 = vld [vmem:[%s1022 + $0xba8] sm:$0xf]
        %v2165 = vld [vmem:[%s1022 + $0xbac] sm:$0xf]
        %v2166 = vld [vmem:[%s1022 + $0xbb0] sm:$0xf]
        %v2167 = vld [vmem:[%s1022 + $0xbb4] sm:$0xf]
        %v2168 = vld [vmem:[%s1022 + $0xbb8] sm:$0xf]
        %v2169 = vld [vmem:[%s1022 + $0xbbc] sm:$0xf]
        %v2170 = vld [vmem:[%s1022 + $0xbc0] sm:$0xf]
        %v2171 = vld [vmem:[%s1022 + $0xbc4] sm:$0xf]
        %v2172 = vld [vmem:[%s1022 + $0xbc8] sm:$0xf]
        %v2173 = vld [vmem:[%s1022 + $0xbcc] sm:$0xf]
        %v2174 = vld [vmem:[%s1022 + $0xbd0] sm:$0xf]
        %v2175 = vld [vmem:[%s1022 + $0xbd4] sm:$0xf]
        %v2176 = vld [vmem:[%s1022 + $0xbd8] sm:$0xf]
        %v2177 = vld [vmem:[%s1022 + $0xbdc] sm:$0xf]
        %v2178 = vld [vmem:[%s1022 + $0xbe0] sm:$0xf]
        %v2179 = vld [vmem:[%s1022 + $0xbe4] sm:$0xf]
        %v2180 = vld [vmem:[%s1022 + $0xbe8] sm:$0xf]
        %v2181 = vld [vmem:[%s1022 + $0xbec] sm:$0xf]
        %v2182 = vld [vmem:[%s1022 + $0xbf0] sm:$0xf]
        %v2183 = vld [vmem:[%s1022 + $0xbf4] sm:$0xf]
        %v2184 = vld [vmem:[%s1022 + $0xbf8] sm:$0xf]
        %v2185 = vld [vmem:[%s1022 + $0xbfc] sm:$0xf]
        %v2186 = vld [vmem:[%s1026] sm:$0x1]
        %v2187 = vld [vmem:[%s1026 + $0x1] sm:$0x1]
        %v2188 = vld [vmem:[%s1026 + $0x2] sm:$0x1]
        %v2189 = vld [vmem:[%s1026 + $0x3] sm:$0x1]
        %v2190 = vld [vmem:[%s1026 + $0x4] sm:$0x1]
        %v2191 = vld [vmem:[%s1026 + $0x5] sm:$0x1]
        %v2192 = vld [vmem:[%s1026 + $0x6] sm:$0x1]
        %v2193 = vld [vmem:[%s1026 + $0x7] sm:$0x1]
        %v2194 = vld [vmem:[%s1026 + $0x8] sm:$0x1]
        %v2195 = vld [vmem:[%s1026 + $0x9] sm:$0x1]
        %v2196 = vld [vmem:[%s1026 + $0xa] sm:$0x1]
        %v2197 = vld [vmem:[%s1026 + $0xb] sm:$0x1]
        %v2198 = vld [vmem:[%s1026 + $0xc] sm:$0x1]
        %v2199 = vld [vmem:[%s1026 + $0xd] sm:$0x1]
        %v2200 = vld [vmem:[%s1026 + $0xe] sm:$0x1]
        %v2201 = vld [vmem:[%s1026 + $0xf] sm:$0x1]
        %v2202 = vld [vmem:[%s1026 + $0x10] sm:$0x1]
        %v2203 = vld [vmem:[%s1026 + $0x11] sm:$0x1]
        %v2204 = vld [vmem:[%s1026 + $0x12] sm:$0x1]
        %v2205 = vld [vmem:[%s1026 + $0x13] sm:$0x1]
        %v2206 = vld [vmem:[%s1026 + $0x14] sm:$0x1]
        %v2207 = vld [vmem:[%s1026 + $0x15] sm:$0x1]
        %v2208 = vld [vmem:[%s1026 + $0x16] sm:$0x1]
        %v2209 = vld [vmem:[%s1026 + $0x17] sm:$0x1]
        %v2210 = vld [vmem:[%s1031] sm:$0xff]
        %v2211 = vld [vmem:[%s1031 + $0x8] sm:$0xff]
        %v2212 = vld [vmem:[%s1031 + $0x10] sm:$0xff]
        %v2213 = vld [vmem:[%s1031 + $0x18] sm:$0xff]
        %v2214 = vld [vmem:[%s1031 + $0x20] sm:$0xff]
        %v2215 = vld [vmem:[%s1031 + $0x28] sm:$0xff]
        %v2216 = vld [vmem:[%s1031 + $0x30] sm:$0xff]
        %v2217 = vld [vmem:[%s1031 + $0x38] sm:$0xff]
        %v2218 = vld [vmem:[%s1031 + $0x40] sm:$0xff]
        %v2219 = vld [vmem:[%s1031 + $0x48] sm:$0xff]
        %v2220 = vld [vmem:[%s1031 + $0x50] sm:$0xff]
        %v2221 = vld [vmem:[%s1031 + $0x58] sm:$0xff]
        %v2222 = vld [vmem:[%s1031 + $0x60] sm:$0xff]
        %v2223 = vld [vmem:[%s1031 + $0x68] sm:$0xff]
        %v2224 = vld [vmem:[%s1031 + $0x70] sm:$0xff]
        %v2225 = vld [vmem:[%s1031 + $0x78] sm:$0xff]
        %v2226 = vld [vmem:[%s1031 + $0x80] sm:$0xff]
        %v2227 = vld [vmem:[%s1031 + $0x88] sm:$0xff]
        %v2228 = vld [vmem:[%s1031 + $0x90] sm:$0xff]
        %v2229 = vld [vmem:[%s1031 + $0x98] sm:$0xff]
        %v2230 = vld [vmem:[%s1031 + $0xa0] sm:$0xff]
        %v2231 = vld [vmem:[%s1031 + $0xa8] sm:$0xff]
        %v2232 = vld [vmem:[%s1031 + $0xb0] sm:$0xff]
        %v2233 = vld [vmem:[%s1031 + $0xb8] sm:$0xff]
        %v2234 = vld [vmem:[%s1031 + $0xc0] sm:$0xff]
        %v2235 = vld [vmem:[%s1031 + $0xc8] sm:$0xff]
        %v2236 = vld [vmem:[%s1031 + $0xd0] sm:$0xff]
        %v2237 = vld [vmem:[%s1031 + $0xd8] sm:$0xff]
        %v2238 = vld [vmem:[%s1031 + $0xe0] sm:$0xff]
        %v2239 = vld [vmem:[%s1031 + $0xe8] sm:$0xff]
        %v2240 = vld [vmem:[%s1031 + $0xf0] sm:$0xff]
        %v2241 = vld [vmem:[%s1031 + $0xf8] sm:$0xff]
        %v2242 = vpack.c.bf16 %v1414, %v1413
        %v2251 = vperm.slane %v2186, 0
        %v2252 = vperm.slane %v2187, 0
        %v2253 = vperm.slane %v2188, 0
        %v2254 = vperm.slane %v2189, 0
        %v2255 = vperm.slane %v2190, 0
        %v2256 = vperm.slane %v2191, 0
        %v2257 = vperm.slane %v2192, 0
        %v2258 = vperm.slane %v2193, 0
        %v2268 = vunpack.c.l.b16 %v2242
        %v2269 = vunpack.c.h.b16 %v2242
        %v2270 = vpack.c.b16 %v2268, %v2268
        %v2271 = vpack.c.b16 %v2269, %v2269
        %v2306 = vunpack.c.l.b16 %v1418
        %v2307 = vunpack.c.l.b16 %v1419
        %v2308 = vunpack.c.l.b16 %v1420
        %v2309 = vunpack.c.l.b16 %v1421
        %v2310 = vunpack.c.l.b16 %v1422
        %v2311 = vunpack.c.l.b16 %v1423
        %v2312 = vunpack.c.l.b16 %v1424
        %v2313 = vunpack.c.l.b16 %v1425
        %v2314 = vunpack.c.l.b16 %v1426
        %v2315 = vunpack.c.l.b16 %v1427
        %v2316 = vunpack.c.l.b16 %v1428
        %v2317 = vunpack.c.l.b16 %v1429
        %v2318 = vunpack.c.l.b16 %v1430
        %v2319 = vunpack.c.l.b16 %v1431
        %v2320 = vunpack.c.l.b16 %v1432
        %v2321 = vunpack.c.l.b16 %v1433
        %v2322 = vunpack.c.l.b16 %v1434
        %v2323 = vunpack.c.l.b16 %v1435
        %v2324 = vunpack.c.l.b16 %v1436
        %v2325 = vunpack.c.l.b16 %v1437
        %v2326 = vunpack.c.l.b16 %v1438
        %v2327 = vunpack.c.l.b16 %v1439
        %v2328 = vunpack.c.l.b16 %v1440
        %v2329 = vunpack.c.l.b16 %v1441
        %v2330 = vunpack.c.l.b16 %v1442
        %v2331 = vunpack.c.l.b16 %v1443
        %v2332 = vunpack.c.l.b16 %v1444
        %v2333 = vunpack.c.l.b16 %v1445
        %v2334 = vunpack.c.l.b16 %v1446
        %v2335 = vunpack.c.l.b16 %v1447
        %v2336 = vunpack.c.l.b16 %v1448
        %v2337 = vunpack.c.l.b16 %v1449
        %v2338 = vpack.c.b16 %v2307, %v2306
        %v2339 = vpack.c.b16 %v2309, %v2308
        %v2340 = vpack.c.b16 %v2311, %v2310
        %v2341 = vpack.c.b16 %v2313, %v2312
        %v2342 = vpack.c.b16 %v2315, %v2314
        %v2343 = vpack.c.b16 %v2317, %v2316
        %v2344 = vpack.c.b16 %v2319, %v2318
        %v2345 = vpack.c.b16 %v2321, %v2320
        %v2346 = vpack.c.b16 %v2323, %v2322
        %v2347 = vpack.c.b16 %v2325, %v2324
        %v2348 = vpack.c.b16 %v2327, %v2326
        %v2349 = vpack.c.b16 %v2329, %v2328
        %v2350 = vpack.c.b16 %v2331, %v2330
        %v2351 = vpack.c.b16 %v2333, %v2332
        %v2352 = vpack.c.b16 %v2335, %v2334
        %v2353 = vpack.c.b16 %v2337, %v2336
        %2370 = vmatpush.bf16.msra.mxu0 %v2345
        %2371 = vmatpush.bf16.msra.mxu0 %v2344
        %2372 = vmatpush.bf16.msra.mxu0 %v2343
        %2373 = vmatpush.bf16.msra.mxu0 %v2342
        %2374 = vmatpush.bf16.msra.mxu0 %v2341
        %2375 = vmatpush.bf16.msra.mxu0 %v2340
        %2376 = vmatpush.bf16.msra.mxu0 %v2339
        %2377 = vmatpush.bf16.msra.mxu0 %v2338
        %2378 = vmatmul.bf16.gmra.mxu0 %v2270
        %v2379 = vpop.f32.mrf.mxu0
        %v2380 = vadd.f32 %v2251, %v2379
        %v2381 = vpop.f32.mrf.mxu0
        %2382 = vdwg.mxu0
        %2383 = vmatpush.bf16.msra.mxu0 %v2353
        %2384 = vmatpush.bf16.msra.mxu0 %v2352
        %2385 = vmatpush.bf16.msra.mxu0 %v2351
        %2386 = vmatpush.bf16.msra.mxu0 %v2350
        %2387 = vmatpush.bf16.msra.mxu0 %v2349
        %2388 = vmatpush.bf16.msra.mxu0 %v2348
        %2389 = vmatpush.bf16.msra.mxu0 %v2347
        %2390 = vmatpush.bf16.msra.mxu0 %v2346
        %2391 = vmatmul.bf16.gmra.mxu0 %v2271
        %v2392 = vpop.f32.mrf.mxu0
        %v2393 = vadd.f32 %v2380, %v2392
        %v2394 = vpop.f32.mrf.mxu0
        %2395 = vdwg.mxu0
        %v2428 = vunpack.c.l.b16 %v1450
        %v2429 = vunpack.c.l.b16 %v1451
        %v2430 = vunpack.c.l.b16 %v1452
        %v2431 = vunpack.c.l.b16 %v1453
        %v2432 = vunpack.c.l.b16 %v1454
        %v2433 = vunpack.c.l.b16 %v1455
        %v2434 = vunpack.c.l.b16 %v1456
        %v2435 = vunpack.c.l.b16 %v1457
        %v2436 = vunpack.c.l.b16 %v1458
        %v2437 = vunpack.c.l.b16 %v1459
        %v2438 = vunpack.c.l.b16 %v1460
        %v2439 = vunpack.c.l.b16 %v1461
        %v2440 = vunpack.c.l.b16 %v1462
        %v2441 = vunpack.c.l.b16 %v1463
        %v2442 = vunpack.c.l.b16 %v1464
        %v2443 = vunpack.c.l.b16 %v1465
        %v2444 = vunpack.c.l.b16 %v1466
        %v2445 = vunpack.c.l.b16 %v1467
        %v2446 = vunpack.c.l.b16 %v1468
        %v2447 = vunpack.c.l.b16 %v1469
        %v2448 = vunpack.c.l.b16 %v1470
        %v2449 = vunpack.c.l.b16 %v1471
        %v2450 = vunpack.c.l.b16 %v1472
        %v2451 = vunpack.c.l.b16 %v1473
        %v2452 = vunpack.c.l.b16 %v1474
        %v2453 = vunpack.c.l.b16 %v1475
        %v2454 = vunpack.c.l.b16 %v1476
        %v2455 = vunpack.c.l.b16 %v1477
        %v2456 = vunpack.c.l.b16 %v1478
        %v2457 = vunpack.c.l.b16 %v1479
        %v2458 = vunpack.c.l.b16 %v1480
        %v2459 = vunpack.c.l.b16 %v1481
        %v2460 = vpack.c.b16 %v2429, %v2428
        %v2461 = vpack.c.b16 %v2431, %v2430
        %v2462 = vpack.c.b16 %v2433, %v2432
        %v2463 = vpack.c.b16 %v2435, %v2434
        %v2464 = vpack.c.b16 %v2437, %v2436
        %v2465 = vpack.c.b16 %v2439, %v2438
        %v2466 = vpack.c.b16 %v2441, %v2440
        %v2467 = vpack.c.b16 %v2443, %v2442
        %v2468 = vpack.c.b16 %v2445, %v2444
        %v2469 = vpack.c.b16 %v2447, %v2446
        %v2470 = vpack.c.b16 %v2449, %v2448
        %v2471 = vpack.c.b16 %v2451, %v2450
        %v2472 = vpack.c.b16 %v2453, %v2452
        %v2473 = vpack.c.b16 %v2455, %v2454
        %v2474 = vpack.c.b16 %v2457, %v2456
        %v2475 = vpack.c.b16 %v2459, %v2458
        %2492 = vmatpush.bf16.msra.mxu0 %v2467
        %2493 = vmatpush.bf16.msra.mxu0 %v2466
        %2494 = vmatpush.bf16.msra.mxu0 %v2465
        %2495 = vmatpush.bf16.msra.mxu0 %v2464
        %2496 = vmatpush.bf16.msra.mxu0 %v2463
        %2497 = vmatpush.bf16.msra.mxu0 %v2462
        %2498 = vmatpush.bf16.msra.mxu0 %v2461
        %2499 = vmatpush.bf16.msra.mxu0 %v2460
        %2500 = vmatmul.bf16.gmra.mxu0 %v2270
        %v2501 = vpop.f32.mrf.mxu0
        %v2502 = vadd.f32 %v2252, %v2501
        %v2503 = vpop.f32.mrf.mxu0
        %2504 = vdwg.mxu0
        %2505 = vmatpush.bf16.msra.mxu0 %v2475
        %2506 = vmatpush.bf16.msra.mxu0 %v2474
        %2507 = vmatpush.bf16.msra.mxu0 %v2473
        %2508 = vmatpush.bf16.msra.mxu0 %v2472
        %2509 = vmatpush.bf16.msra.mxu0 %v2471
        %2510 = vmatpush.bf16.msra.mxu0 %v2470
        %2511 = vmatpush.bf16.msra.mxu0 %v2469
        %2512 = vmatpush.bf16.msra.mxu0 %v2468
        %2513 = vmatmul.bf16.gmra.mxu0 %v2271
        %v2514 = vpop.f32.mrf.mxu0
        %v2515 = vadd.f32 %v2502, %v2514
        %v2516 = vpop.f32.mrf.mxu0
        %2517 = vdwg.mxu0
        %v2550 = vunpack.c.l.b16 %v1482
        %v2551 = vunpack.c.l.b16 %v1483
        %v2552 = vunpack.c.l.b16 %v1484
        %v2553 = vunpack.c.l.b16 %v1485
        %v2554 = vunpack.c.l.b16 %v1486
        %v2555 = vunpack.c.l.b16 %v1487
        %v2556 = vunpack.c.l.b16 %v1488
        %v2557 = vunpack.c.l.b16 %v1489
        %v2558 = vunpack.c.l.b16 %v1490
        %v2559 = vunpack.c.l.b16 %v1491
        %v2560 = vunpack.c.l.b16 %v1492
        %v2561 = vunpack.c.l.b16 %v1493
        %v2562 = vunpack.c.l.b16 %v1494
        %v2563 = vunpack.c.l.b16 %v1495
        %v2564 = vunpack.c.l.b16 %v1496
        %v2565 = vunpack.c.l.b16 %v1497
        %v2566 = vunpack.c.l.b16 %v1498
        %v2567 = vunpack.c.l.b16 %v1499
        %v2568 = vunpack.c.l.b16 %v1500
        %v2569 = vunpack.c.l.b16 %v1501
        %v2570 = vunpack.c.l.b16 %v1502
        %v2571 = vunpack.c.l.b16 %v1503
        %v2572 = vunpack.c.l.b16 %v1504
        %v2573 = vunpack.c.l.b16 %v1505
        %v2574 = vunpack.c.l.b16 %v1506
        %v2575 = vunpack.c.l.b16 %v1507
        %v2576 = vunpack.c.l.b16 %v1508
        %v2577 = vunpack.c.l.b16 %v1509
        %v2578 = vunpack.c.l.b16 %v1510
        %v2579 = vunpack.c.l.b16 %v1511
        %v2580 = vunpack.c.l.b16 %v1512
        %v2581 = vunpack.c.l.b16 %v1513
        %v2582 = vpack.c.b16 %v2551, %v2550
        %v2583 = vpack.c.b16 %v2553, %v2552
        %v2584 = vpack.c.b16 %v2555, %v2554
        %v2585 = vpack.c.b16 %v2557, %v2556
        %v2586 = vpack.c.b16 %v2559, %v2558
        %v2587 = vpack.c.b16 %v2561, %v2560
        %v2588 = vpack.c.b16 %v2563, %v2562
        %v2589 = vpack.c.b16 %v2565, %v2564
        %v2590 = vpack.c.b16 %v2567, %v2566
        %v2591 = vpack.c.b16 %v2569, %v2568
        %v2592 = vpack.c.b16 %v2571, %v2570
        %v2593 = vpack.c.b16 %v2573, %v2572
        %v2594 = vpack.c.b16 %v2575, %v2574
        %v2595 = vpack.c.b16 %v2577, %v2576
        %v2596 = vpack.c.b16 %v2579, %v2578
        %v2597 = vpack.c.b16 %v2581, %v2580
        %2614 = vmatpush.bf16.msra.mxu0 %v2589
        %2615 = vmatpush.bf16.msra.mxu0 %v2588
        %2616 = vmatpush.bf16.msra.mxu0 %v2587
        %2617 = vmatpush.bf16.msra.mxu0 %v2586
        %2618 = vmatpush.bf16.msra.mxu0 %v2585
        %2619 = vmatpush.bf16.msra.mxu0 %v2584
        %2620 = vmatpush.bf16.msra.mxu0 %v2583
        %2621 = vmatpush.bf16.msra.mxu0 %v2582
        %2622 = vmatmul.bf16.gmra.mxu0 %v2270
        %v2623 = vpop.f32.mrf.mxu0
        %v2624 = vadd.f32 %v2253, %v2623
        %v2625 = vpop.f32.mrf.mxu0
        %2626 = vdwg.mxu0
        %2627 = vmatpush.bf16.msra.mxu0 %v2597
        %2628 = vmatpush.bf16.msra.mxu0 %v2596
        %2629 = vmatpush.bf16.msra.mxu0 %v2595
        %2630 = vmatpush.bf16.msra.mxu0 %v2594
        %2631 = vmatpush.bf16.msra.mxu0 %v2593
        %2632 = vmatpush.bf16.msra.mxu0 %v2592
        %2633 = vmatpush.bf16.msra.mxu0 %v2591
        %2634 = vmatpush.bf16.msra.mxu0 %v2590
        %2635 = vmatmul.bf16.gmra.mxu0 %v2271
        %v2636 = vpop.f32.mrf.mxu0
        %v2637 = vadd.f32 %v2624, %v2636
        %v2638 = vpop.f32.mrf.mxu0
        %2639 = vdwg.mxu0
        %v2672 = vunpack.c.l.b16 %v1514
        %v2673 = vunpack.c.l.b16 %v1515
        %v2674 = vunpack.c.l.b16 %v1516
        %v2675 = vunpack.c.l.b16 %v1517
        %v2676 = vunpack.c.l.b16 %v1518
        %v2677 = vunpack.c.l.b16 %v1519
        %v2678 = vunpack.c.l.b16 %v1520
        %v2679 = vunpack.c.l.b16 %v1521
        %v2680 = vunpack.c.l.b16 %v1522
        %v2681 = vunpack.c.l.b16 %v1523
        %v2682 = vunpack.c.l.b16 %v1524
        %v2683 = vunpack.c.l.b16 %v1525
        %v2684 = vunpack.c.l.b16 %v1526
        %v2685 = vunpack.c.l.b16 %v1527
        %v2686 = vunpack.c.l.b16 %v1528
        %v2687 = vunpack.c.l.b16 %v1529
        %v2688 = vunpack.c.l.b16 %v1530
        %v2689 = vunpack.c.l.b16 %v1531
        %v2690 = vunpack.c.l.b16 %v1532
        %v2691 = vunpack.c.l.b16 %v1533
        %v2692 = vunpack.c.l.b16 %v1534
        %v2693 = vunpack.c.l.b16 %v1535
        %v2694 = vunpack.c.l.b16 %v1536
        %v2695 = vunpack.c.l.b16 %v1537
        %v2696 = vunpack.c.l.b16 %v1538
        %v2697 = vunpack.c.l.b16 %v1539
        %v2698 = vunpack.c.l.b16 %v1540
        %v2699 = vunpack.c.l.b16 %v1541
        %v2700 = vunpack.c.l.b16 %v1542
        %v2701 = vunpack.c.l.b16 %v1543
        %v2702 = vunpack.c.l.b16 %v1544
        %v2703 = vunpack.c.l.b16 %v1545
        %v2704 = vpack.c.b16 %v2673, %v2672
        %v2705 = vpack.c.b16 %v2675, %v2674
        %v2706 = vpack.c.b16 %v2677, %v2676
        %v2707 = vpack.c.b16 %v2679, %v2678
        %v2708 = vpack.c.b16 %v2681, %v2680
        %v2709 = vpack.c.b16 %v2683, %v2682
        %v2710 = vpack.c.b16 %v2685, %v2684
        %v2711 = vpack.c.b16 %v2687, %v2686
        %v2712 = vpack.c.b16 %v2689, %v2688
        %v2713 = vpack.c.b16 %v2691, %v2690
        %v2714 = vpack.c.b16 %v2693, %v2692
        %v2715 = vpack.c.b16 %v2695, %v2694
        %v2716 = vpack.c.b16 %v2697, %v2696
        %v2717 = vpack.c.b16 %v2699, %v2698
        %v2718 = vpack.c.b16 %v2701, %v2700
        %v2719 = vpack.c.b16 %v2703, %v2702
        %2736 = vmatpush.bf16.msra.mxu0 %v2711
        %2737 = vmatpush.bf16.msra.mxu0 %v2710
        %2738 = vmatpush.bf16.msra.mxu0 %v2709
        %2739 = vmatpush.bf16.msra.mxu0 %v2708
        %2740 = vmatpush.bf16.msra.mxu0 %v2707
        %2741 = vmatpush.bf16.msra.mxu0 %v2706
        %2742 = vmatpush.bf16.msra.mxu0 %v2705
        %2743 = vmatpush.bf16.msra.mxu0 %v2704
        %2744 = vmatmul.bf16.gmra.mxu0 %v2270
        %v2745 = vpop.f32.mrf.mxu0
        %v2746 = vadd.f32 %v2254, %v2745
        %v2747 = vpop.f32.mrf.mxu0
        %2748 = vdwg.mxu0
        %2749 = vmatpush.bf16.msra.mxu0 %v2719
        %2750 = vmatpush.bf16.msra.mxu0 %v2718
        %2751 = vmatpush.bf16.msra.mxu0 %v2717
        %2752 = vmatpush.bf16.msra.mxu0 %v2716
        %2753 = vmatpush.bf16.msra.mxu0 %v2715
        %2754 = vmatpush.bf16.msra.mxu0 %v2714
        %2755 = vmatpush.bf16.msra.mxu0 %v2713
        %2756 = vmatpush.bf16.msra.mxu0 %v2712
        %2757 = vmatmul.bf16.gmra.mxu0 %v2271
        %v2758 = vpop.f32.mrf.mxu0
        %v2759 = vadd.f32 %v2746, %v2758
        %v2760 = vpop.f32.mrf.mxu0
        %2761 = vdwg.mxu0
        %v2794 = vunpack.c.l.b16 %v1546
        %v2795 = vunpack.c.l.b16 %v1547
        %v2796 = vunpack.c.l.b16 %v1548
        %v2797 = vunpack.c.l.b16 %v1549
        %v2798 = vunpack.c.l.b16 %v1550
        %v2799 = vunpack.c.l.b16 %v1551
        %v2800 = vunpack.c.l.b16 %v1552
        %v2801 = vunpack.c.l.b16 %v1553
        %v2802 = vunpack.c.l.b16 %v1554
        %v2803 = vunpack.c.l.b16 %v1555
        %v2804 = vunpack.c.l.b16 %v1556
        %v2805 = vunpack.c.l.b16 %v1557
        %v2806 = vunpack.c.l.b16 %v1558
        %v2807 = vunpack.c.l.b16 %v1559
        %v2808 = vunpack.c.l.b16 %v1560
        %v2809 = vunpack.c.l.b16 %v1561
        %v2810 = vunpack.c.l.b16 %v1562
        %v2811 = vunpack.c.l.b16 %v1563
        %v2812 = vunpack.c.l.b16 %v1564
        %v2813 = vunpack.c.l.b16 %v1565
        %v2814 = vunpack.c.l.b16 %v1566
        %v2815 = vunpack.c.l.b16 %v1567
        %v2816 = vunpack.c.l.b16 %v1568
        %v2817 = vunpack.c.l.b16 %v1569
        %v2818 = vunpack.c.l.b16 %v1570
        %v2819 = vunpack.c.l.b16 %v1571
        %v2820 = vunpack.c.l.b16 %v1572
        %v2821 = vunpack.c.l.b16 %v1573
        %v2822 = vunpack.c.l.b16 %v1574
        %v2823 = vunpack.c.l.b16 %v1575
        %v2824 = vunpack.c.l.b16 %v1576
        %v2825 = vunpack.c.l.b16 %v1577
        %v2826 = vpack.c.b16 %v2795, %v2794
        %v2827 = vpack.c.b16 %v2797, %v2796
        %v2828 = vpack.c.b16 %v2799, %v2798
        %v2829 = vpack.c.b16 %v2801, %v2800
        %v2830 = vpack.c.b16 %v2803, %v2802
        %v2831 = vpack.c.b16 %v2805, %v2804
        %v2832 = vpack.c.b16 %v2807, %v2806
        %v2833 = vpack.c.b16 %v2809, %v2808
        %v2834 = vpack.c.b16 %v2811, %v2810
        %v2835 = vpack.c.b16 %v2813, %v2812
        %v2836 = vpack.c.b16 %v2815, %v2814
        %v2837 = vpack.c.b16 %v2817, %v2816
        %v2838 = vpack.c.b16 %v2819, %v2818
        %v2839 = vpack.c.b16 %v2821, %v2820
        %v2840 = vpack.c.b16 %v2823, %v2822
        %v2841 = vpack.c.b16 %v2825, %v2824
        %2858 = vmatpush.bf16.msra.mxu0 %v2833
        %2859 = vmatpush.bf16.msra.mxu0 %v2832
        %2860 = vmatpush.bf16.msra.mxu0 %v2831
        %2861 = vmatpush.bf16.msra.mxu0 %v2830
        %2862 = vmatpush.bf16.msra.mxu0 %v2829
        %2863 = vmatpush.bf16.msra.mxu0 %v2828
        %2864 = vmatpush.bf16.msra.mxu0 %v2827
        %2865 = vmatpush.bf16.msra.mxu0 %v2826
        %2866 = vmatmul.bf16.gmra.mxu0 %v2270
        %v2867 = vpop.f32.mrf.mxu0
        %v2868 = vadd.f32 %v2255, %v2867
        %v2869 = vpop.f32.mrf.mxu0
        %2870 = vdwg.mxu0
        %2871 = vmatpush.bf16.msra.mxu0 %v2841
        %2872 = vmatpush.bf16.msra.mxu0 %v2840
        %2873 = vmatpush.bf16.msra.mxu0 %v2839
        %2874 = vmatpush.bf16.msra.mxu0 %v2838
        %2875 = vmatpush.bf16.msra.mxu0 %v2837
        %2876 = vmatpush.bf16.msra.mxu0 %v2836
        %2877 = vmatpush.bf16.msra.mxu0 %v2835
        %2878 = vmatpush.bf16.msra.mxu0 %v2834
        %2879 = vmatmul.bf16.gmra.mxu0 %v2271
        %v2880 = vpop.f32.mrf.mxu0
        %v2881 = vadd.f32 %v2868, %v2880
        %v2882 = vpop.f32.mrf.mxu0
        %2883 = vdwg.mxu0
        %v2916 = vunpack.c.l.b16 %v1578
        %v2917 = vunpack.c.l.b16 %v1579
        %v2918 = vunpack.c.l.b16 %v1580
        %v2919 = vunpack.c.l.b16 %v1581
        %v2920 = vunpack.c.l.b16 %v1582
        %v2921 = vunpack.c.l.b16 %v1583
        %v2922 = vunpack.c.l.b16 %v1584
        %v2923 = vunpack.c.l.b16 %v1585
        %v2924 = vunpack.c.l.b16 %v1586
        %v2925 = vunpack.c.l.b16 %v1587
        %v2926 = vunpack.c.l.b16 %v1588
        %v2927 = vunpack.c.l.b16 %v1589
        %v2928 = vunpack.c.l.b16 %v1590
        %v2929 = vunpack.c.l.b16 %v1591
        %v2930 = vunpack.c.l.b16 %v1592
        %v2931 = vunpack.c.l.b16 %v1593
        %v2932 = vunpack.c.l.b16 %v1594
        %v2933 = vunpack.c.l.b16 %v1595
        %v2934 = vunpack.c.l.b16 %v1596
        %v2935 = vunpack.c.l.b16 %v1597
        %v2936 = vunpack.c.l.b16 %v1598
        %v2937 = vunpack.c.l.b16 %v1599
        %v2938 = vunpack.c.l.b16 %v1600
        %v2939 = vunpack.c.l.b16 %v1601
        %v2940 = vunpack.c.l.b16 %v1602
        %v2941 = vunpack.c.l.b16 %v1603
        %v2942 = vunpack.c.l.b16 %v1604
        %v2943 = vunpack.c.l.b16 %v1605
        %v2944 = vunpack.c.l.b16 %v1606
        %v2945 = vunpack.c.l.b16 %v1607
        %v2946 = vunpack.c.l.b16 %v1608
        %v2947 = vunpack.c.l.b16 %v1609
        %v2948 = vpack.c.b16 %v2917, %v2916
        %v2949 = vpack.c.b16 %v2919, %v2918
        %v2950 = vpack.c.b16 %v2921, %v2920
        %v2951 = vpack.c.b16 %v2923, %v2922
        %v2952 = vpack.c.b16 %v2925, %v2924
        %v2953 = vpack.c.b16 %v2927, %v2926
        %v2954 = vpack.c.b16 %v2929, %v2928
        %v2955 = vpack.c.b16 %v2931, %v2930
        %v2956 = vpack.c.b16 %v2933, %v2932
        %v2957 = vpack.c.b16 %v2935, %v2934
        %v2958 = vpack.c.b16 %v2937, %v2936
        %v2959 = vpack.c.b16 %v2939, %v2938
        %v2960 = vpack.c.b16 %v2941, %v2940
        %v2961 = vpack.c.b16 %v2943, %v2942
        %v2962 = vpack.c.b16 %v2945, %v2944
        %v2963 = vpack.c.b16 %v2947, %v2946
        %2980 = vmatpush.bf16.msra.mxu0 %v2955
        %2981 = vmatpush.bf16.msra.mxu0 %v2954
        %2982 = vmatpush.bf16.msra.mxu0 %v2953
        %2983 = vmatpush.bf16.msra.mxu0 %v2952
        %2984 = vmatpush.bf16.msra.mxu0 %v2951
        %2985 = vmatpush.bf16.msra.mxu0 %v2950
        %2986 = vmatpush.bf16.msra.mxu0 %v2949
        %2987 = vmatpush.bf16.msra.mxu0 %v2948
        %2988 = vmatmul.bf16.gmra.mxu0 %v2270
        %v2989 = vpop.f32.mrf.mxu0
        %v2990 = vadd.f32 %v2256, %v2989
        %v2991 = vpop.f32.mrf.mxu0
        %2992 = vdwg.mxu0
        %2993 = vmatpush.bf16.msra.mxu0 %v2963
        %2994 = vmatpush.bf16.msra.mxu0 %v2962
        %2995 = vmatpush.bf16.msra.mxu0 %v2961
        %2996 = vmatpush.bf16.msra.mxu0 %v2960
        %2997 = vmatpush.bf16.msra.mxu0 %v2959
        %2998 = vmatpush.bf16.msra.mxu0 %v2958
        %2999 = vmatpush.bf16.msra.mxu0 %v2957
        %3000 = vmatpush.bf16.msra.mxu0 %v2956
        %3001 = vmatmul.bf16.gmra.mxu0 %v2271
        %v3002 = vpop.f32.mrf.mxu0
        %v3003 = vadd.f32 %v2990, %v3002
        %v3004 = vpop.f32.mrf.mxu0
        %3005 = vdwg.mxu0
        %v3038 = vunpack.c.l.b16 %v1610
        %v3039 = vunpack.c.l.b16 %v1611
        %v3040 = vunpack.c.l.b16 %v1612
        %v3041 = vunpack.c.l.b16 %v1613
        %v3042 = vunpack.c.l.b16 %v1614
        %v3043 = vunpack.c.l.b16 %v1615
        %v3044 = vunpack.c.l.b16 %v1616
        %v3045 = vunpack.c.l.b16 %v1617
        %v3046 = vunpack.c.l.b16 %v1618
        %v3047 = vunpack.c.l.b16 %v1619
        %v3048 = vunpack.c.l.b16 %v1620
        %v3049 = vunpack.c.l.b16 %v1621
        %v3050 = vunpack.c.l.b16 %v1622
        %v3051 = vunpack.c.l.b16 %v1623
        %v3052 = vunpack.c.l.b16 %v1624
        %v3053 = vunpack.c.l.b16 %v1625
        %v3054 = vunpack.c.l.b16 %v1626
        %v3055 = vunpack.c.l.b16 %v1627
        %v3056 = vunpack.c.l.b16 %v1628
        %v3057 = vunpack.c.l.b16 %v1629
        %v3058 = vunpack.c.l.b16 %v1630
        %v3059 = vunpack.c.l.b16 %v1631
        %v3060 = vunpack.c.l.b16 %v1632
        %v3061 = vunpack.c.l.b16 %v1633
        %v3062 = vunpack.c.l.b16 %v1634
        %v3063 = vunpack.c.l.b16 %v1635
        %v3064 = vunpack.c.l.b16 %v1636
        %v3065 = vunpack.c.l.b16 %v1637
        %v3066 = vunpack.c.l.b16 %v1638
        %v3067 = vunpack.c.l.b16 %v1639
        %v3068 = vunpack.c.l.b16 %v1640
        %v3069 = vunpack.c.l.b16 %v1641
        %v3070 = vpack.c.b16 %v3039, %v3038
        %v3071 = vpack.c.b16 %v3041, %v3040
        %v3072 = vpack.c.b16 %v3043, %v3042
        %v3073 = vpack.c.b16 %v3045, %v3044
        %v3074 = vpack.c.b16 %v3047, %v3046
        %v3075 = vpack.c.b16 %v3049, %v3048
        %v3076 = vpack.c.b16 %v3051, %v3050
        %v3077 = vpack.c.b16 %v3053, %v3052
        %v3078 = vpack.c.b16 %v3055, %v3054
        %v3079 = vpack.c.b16 %v3057, %v3056
        %v3080 = vpack.c.b16 %v3059, %v3058
        %v3081 = vpack.c.b16 %v3061, %v3060
        %v3082 = vpack.c.b16 %v3063, %v3062
        %v3083 = vpack.c.b16 %v3065, %v3064
        %v3084 = vpack.c.b16 %v3067, %v3066
        %v3085 = vpack.c.b16 %v3069, %v3068
        %3102 = vmatpush.bf16.msra.mxu0 %v3077
        %3103 = vmatpush.bf16.msra.mxu0 %v3076
        %3104 = vmatpush.bf16.msra.mxu0 %v3075
        %3105 = vmatpush.bf16.msra.mxu0 %v3074
        %3106 = vmatpush.bf16.msra.mxu0 %v3073
        %3107 = vmatpush.bf16.msra.mxu0 %v3072
        %3108 = vmatpush.bf16.msra.mxu0 %v3071
        %3109 = vmatpush.bf16.msra.mxu0 %v3070
        %3110 = vmatmul.bf16.gmra.mxu0 %v2270
        %v3111 = vpop.f32.mrf.mxu0
        %v3112 = vadd.f32 %v2257, %v3111
        %v3113 = vpop.f32.mrf.mxu0
        %3114 = vdwg.mxu0
        %3115 = vmatpush.bf16.msra.mxu0 %v3085
        %3116 = vmatpush.bf16.msra.mxu0 %v3084
        %3117 = vmatpush.bf16.msra.mxu0 %v3083
        %3118 = vmatpush.bf16.msra.mxu0 %v3082
        %3119 = vmatpush.bf16.msra.mxu0 %v3081
        %3120 = vmatpush.bf16.msra.mxu0 %v3080
        %3121 = vmatpush.bf16.msra.mxu0 %v3079
        %3122 = vmatpush.bf16.msra.mxu0 %v3078
        %3123 = vmatmul.bf16.gmra.mxu0 %v2271
        %v3124 = vpop.f32.mrf.mxu0
        %v3125 = vadd.f32 %v3112, %v3124
        %v3126 = vpop.f32.mrf.mxu0
        %3127 = vdwg.mxu0
        %v3160 = vunpack.c.l.b16 %v1642
        %v3161 = vunpack.c.l.b16 %v1643
        %v3162 = vunpack.c.l.b16 %v1644
        %v3163 = vunpack.c.l.b16 %v1645
        %v3164 = vunpack.c.l.b16 %v1646
        %v3165 = vunpack.c.l.b16 %v1647
        %v3166 = vunpack.c.l.b16 %v1648
        %v3167 = vunpack.c.l.b16 %v1649
        %v3168 = vunpack.c.l.b16 %v1650
        %v3169 = vunpack.c.l.b16 %v1651
        %v3170 = vunpack.c.l.b16 %v1652
        %v3171 = vunpack.c.l.b16 %v1653
        %v3172 = vunpack.c.l.b16 %v1654
        %v3173 = vunpack.c.l.b16 %v1655
        %v3174 = vunpack.c.l.b16 %v1656
        %v3175 = vunpack.c.l.b16 %v1657
        %v3176 = vunpack.c.l.b16 %v1658
        %v3177 = vunpack.c.l.b16 %v1659
        %v3178 = vunpack.c.l.b16 %v1660
        %v3179 = vunpack.c.l.b16 %v1661
        %v3180 = vunpack.c.l.b16 %v1662
        %v3181 = vunpack.c.l.b16 %v1663
        %v3182 = vunpack.c.l.b16 %v1664
        %v3183 = vunpack.c.l.b16 %v1665
        %v3184 = vunpack.c.l.b16 %v1666
        %v3185 = vunpack.c.l.b16 %v1667
        %v3186 = vunpack.c.l.b16 %v1668
        %v3187 = vunpack.c.l.b16 %v1669
        %v3188 = vunpack.c.l.b16 %v1670
        %v3189 = vunpack.c.l.b16 %v1671
        %v3190 = vunpack.c.l.b16 %v1672
        %v3191 = vunpack.c.l.b16 %v1673
        %v3192 = vpack.c.b16 %v3161, %v3160
        %v3193 = vpack.c.b16 %v3163, %v3162
        %v3194 = vpack.c.b16 %v3165, %v3164
        %v3195 = vpack.c.b16 %v3167, %v3166
        %v3196 = vpack.c.b16 %v3169, %v3168
        %v3197 = vpack.c.b16 %v3171, %v3170
        %v3198 = vpack.c.b16 %v3173, %v3172
        %v3199 = vpack.c.b16 %v3175, %v3174
        %v3200 = vpack.c.b16 %v3177, %v3176
        %v3201 = vpack.c.b16 %v3179, %v3178
        %v3202 = vpack.c.b16 %v3181, %v3180
        %v3203 = vpack.c.b16 %v3183, %v3182
        %v3204 = vpack.c.b16 %v3185, %v3184
        %v3205 = vpack.c.b16 %v3187, %v3186
        %v3206 = vpack.c.b16 %v3189, %v3188
        %v3207 = vpack.c.b16 %v3191, %v3190
        %3224 = vmatpush.bf16.msra.mxu0 %v3199
        %3225 = vmatpush.bf16.msra.mxu0 %v3198
        %3226 = vmatpush.bf16.msra.mxu0 %v3197
        %3227 = vmatpush.bf16.msra.mxu0 %v3196
        %3228 = vmatpush.bf16.msra.mxu0 %v3195
        %3229 = vmatpush.bf16.msra.mxu0 %v3194
        %3230 = vmatpush.bf16.msra.mxu0 %v3193
        %3231 = vmatpush.bf16.msra.mxu0 %v3192
        %3232 = vmatmul.bf16.gmra.mxu0 %v2270
        %v3233 = vpop.f32.mrf.mxu0
        %v3234 = vadd.f32 %v2258, %v3233
        %v3235 = vpop.f32.mrf.mxu0
        %3236 = vdwg.mxu0
        %3237 = vmatpush.bf16.msra.mxu0 %v3207
        %3238 = vmatpush.bf16.msra.mxu0 %v3206
        %3239 = vmatpush.bf16.msra.mxu0 %v3205
        %3240 = vmatpush.bf16.msra.mxu0 %v3204
        %3241 = vmatpush.bf16.msra.mxu0 %v3203
        %3242 = vmatpush.bf16.msra.mxu0 %v3202
        %3243 = vmatpush.bf16.msra.mxu0 %v3201
        %3244 = vmatpush.bf16.msra.mxu0 %v3200
        %3245 = vmatmul.bf16.gmra.mxu0 %v2271
        %v3246 = vpop.f32.mrf.mxu0
        %v3247 = vadd.f32 %v3234, %v3246
        %v3248 = vpop.f32.mrf.mxu0
        %3249 = vdwg.mxu0
        %v3266 = vperm.slane %v2194, 0
        %v3267 = vperm.slane %v2195, 0
        %v3268 = vperm.slane %v2196, 0
        %v3269 = vperm.slane %v2197, 0
        %v3270 = vperm.slane %v2198, 0
        %v3271 = vperm.slane %v2199, 0
        %v3272 = vperm.slane %v2200, 0
        %v3273 = vperm.slane %v2201, 0
        %v3274 = vperm.slane %v2202, 0
        %v3275 = vperm.slane %v2203, 0
        %v3276 = vperm.slane %v2204, 0
        %v3277 = vperm.slane %v2205, 0
        %v3278 = vperm.slane %v2206, 0
        %v3279 = vperm.slane %v2207, 0
        %v3280 = vperm.slane %v2208, 0
        %v3281 = vperm.slane %v2209, 0
        %v3330 = vunpack.c.l.b16 %v1674
        %v3331 = vunpack.c.l.b16 %v1675
        %v3332 = vunpack.c.l.b16 %v1676
        %v3333 = vunpack.c.l.b16 %v1677
        %v3334 = vunpack.c.l.b16 %v1678
        %v3335 = vunpack.c.l.b16 %v1679
        %v3336 = vunpack.c.l.b16 %v1680
        %v3337 = vunpack.c.l.b16 %v1681
        %v3338 = vunpack.c.l.b16 %v1682
        %v3339 = vunpack.c.l.b16 %v1683
        %v3340 = vunpack.c.l.b16 %v1684
        %v3341 = vunpack.c.l.b16 %v1685
        %v3342 = vunpack.c.l.b16 %v1686
        %v3343 = vunpack.c.l.b16 %v1687
        %v3344 = vunpack.c.l.b16 %v1688
        %v3345 = vunpack.c.l.b16 %v1689
        %v3346 = vunpack.c.l.b16 %v1690
        %v3347 = vunpack.c.l.b16 %v1691
        %v3348 = vunpack.c.l.b16 %v1692
        %v3349 = vunpack.c.l.b16 %v1693
        %v3350 = vunpack.c.l.b16 %v1694
        %v3351 = vunpack.c.l.b16 %v1695
        %v3352 = vunpack.c.l.b16 %v1696
        %v3353 = vunpack.c.l.b16 %v1697
        %v3354 = vunpack.c.l.b16 %v1698
        %v3355 = vunpack.c.l.b16 %v1699
        %v3356 = vunpack.c.l.b16 %v1700
        %v3357 = vunpack.c.l.b16 %v1701
        %v3358 = vunpack.c.l.b16 %v1702
        %v3359 = vunpack.c.l.b16 %v1703
        %v3360 = vunpack.c.l.b16 %v1704
        %v3361 = vunpack.c.l.b16 %v1705
        %v3362 = vpack.c.b16 %v3331, %v3330
        %v3363 = vpack.c.b16 %v3333, %v3332
        %v3364 = vpack.c.b16 %v3335, %v3334
        %v3365 = vpack.c.b16 %v3337, %v3336
        %v3366 = vpack.c.b16 %v3339, %v3338
        %v3367 = vpack.c.b16 %v3341, %v3340
        %v3368 = vpack.c.b16 %v3343, %v3342
        %v3369 = vpack.c.b16 %v3345, %v3344
        %v3370 = vpack.c.b16 %v3347, %v3346
        %v3371 = vpack.c.b16 %v3349, %v3348
        %v3372 = vpack.c.b16 %v3351, %v3350
        %v3373 = vpack.c.b16 %v3353, %v3352
        %v3374 = vpack.c.b16 %v3355, %v3354
        %v3375 = vpack.c.b16 %v3357, %v3356
        %v3376 = vpack.c.b16 %v3359, %v3358
        %v3377 = vpack.c.b16 %v3361, %v3360
        %3394 = vmatpush.bf16.msra.mxu0 %v3369
        %3395 = vmatpush.bf16.msra.mxu0 %v3368
        %3396 = vmatpush.bf16.msra.mxu0 %v3367
        %3397 = vmatpush.bf16.msra.mxu0 %v3366
        %3398 = vmatpush.bf16.msra.mxu0 %v3365
        %3399 = vmatpush.bf16.msra.mxu0 %v3364
        %3400 = vmatpush.bf16.msra.mxu0 %v3363
        %3401 = vmatpush.bf16.msra.mxu0 %v3362
        %3402 = vmatmul.bf16.gmra.mxu0 %v2270
        %v3403 = vpop.f32.mrf.mxu0
        %v3404 = vadd.f32 %v3266, %v3403
        %v3405 = vpop.f32.mrf.mxu0
        %3406 = vdwg.mxu0
        %3407 = vmatpush.bf16.msra.mxu0 %v3377
        %3408 = vmatpush.bf16.msra.mxu0 %v3376
        %3409 = vmatpush.bf16.msra.mxu0 %v3375
        %3410 = vmatpush.bf16.msra.mxu0 %v3374
        %3411 = vmatpush.bf16.msra.mxu0 %v3373
        %3412 = vmatpush.bf16.msra.mxu0 %v3372
        %3413 = vmatpush.bf16.msra.mxu0 %v3371
        %3414 = vmatpush.bf16.msra.mxu0 %v3370
        %3415 = vmatmul.bf16.gmra.mxu0 %v2271
        %v3416 = vpop.f32.mrf.mxu0
        %v3417 = vadd.f32 %v3404, %v3416
        %v3418 = vpop.f32.mrf.mxu0
        %3419 = vdwg.mxu0
        %v3452 = vunpack.c.l.b16 %v1706
        %v3453 = vunpack.c.l.b16 %v1707
        %v3454 = vunpack.c.l.b16 %v1708
        %v3455 = vunpack.c.l.b16 %v1709
        %v3456 = vunpack.c.l.b16 %v1710
        %v3457 = vunpack.c.l.b16 %v1711
        %v3458 = vunpack.c.l.b16 %v1712
        %v3459 = vunpack.c.l.b16 %v1713
        %v3460 = vunpack.c.l.b16 %v1714
        %v3461 = vunpack.c.l.b16 %v1715
        %v3462 = vunpack.c.l.b16 %v1716
        %v3463 = vunpack.c.l.b16 %v1717
        %v3464 = vunpack.c.l.b16 %v1718
        %v3465 = vunpack.c.l.b16 %v1719
        %v3466 = vunpack.c.l.b16 %v1720
        %v3467 = vunpack.c.l.b16 %v1721
        %v3468 = vunpack.c.l.b16 %v1722
        %v3469 = vunpack.c.l.b16 %v1723
        %v3470 = vunpack.c.l.b16 %v1724
        %v3471 = vunpack.c.l.b16 %v1725
        %v3472 = vunpack.c.l.b16 %v1726
        %v3473 = vunpack.c.l.b16 %v1727
        %v3474 = vunpack.c.l.b16 %v1728
        %v3475 = vunpack.c.l.b16 %v1729
        %v3476 = vunpack.c.l.b16 %v1730
        %v3477 = vunpack.c.l.b16 %v1731
        %v3478 = vunpack.c.l.b16 %v1732
        %v3479 = vunpack.c.l.b16 %v1733
        %v3480 = vunpack.c.l.b16 %v1734
        %v3481 = vunpack.c.l.b16 %v1735
        %v3482 = vunpack.c.l.b16 %v1736
        %v3483 = vunpack.c.l.b16 %v1737
        %v3484 = vpack.c.b16 %v3453, %v3452
        %v3485 = vpack.c.b16 %v3455, %v3454
        %v3486 = vpack.c.b16 %v3457, %v3456
        %v3487 = vpack.c.b16 %v3459, %v3458
        %v3488 = vpack.c.b16 %v3461, %v3460
        %v3489 = vpack.c.b16 %v3463, %v3462
        %v3490 = vpack.c.b16 %v3465, %v3464
        %v3491 = vpack.c.b16 %v3467, %v3466
        %v3492 = vpack.c.b16 %v3469, %v3468
        %v3493 = vpack.c.b16 %v3471, %v3470
        %v3494 = vpack.c.b16 %v3473, %v3472
        %v3495 = vpack.c.b16 %v3475, %v3474
        %v3496 = vpack.c.b16 %v3477, %v3476
        %v3497 = vpack.c.b16 %v3479, %v3478
        %v3498 = vpack.c.b16 %v3481, %v3480
        %v3499 = vpack.c.b16 %v3483, %v3482
        %3516 = vmatpush.bf16.msra.mxu0 %v3491
        %3517 = vmatpush.bf16.msra.mxu0 %v3490
        %3518 = vmatpush.bf16.msra.mxu0 %v3489
        %3519 = vmatpush.bf16.msra.mxu0 %v3488
        %3520 = vmatpush.bf16.msra.mxu0 %v3487
        %3521 = vmatpush.bf16.msra.mxu0 %v3486
        %3522 = vmatpush.bf16.msra.mxu0 %v3485
        %3523 = vmatpush.bf16.msra.mxu0 %v3484
        %3524 = vmatmul.bf16.gmra.mxu0 %v2270
        %v3525 = vpop.f32.mrf.mxu0
        %v3526 = vadd.f32 %v3267, %v3525
        %v3527 = vpop.f32.mrf.mxu0
        %3528 = vdwg.mxu0
        %3529 = vmatpush.bf16.msra.mxu0 %v3499
        %3530 = vmatpush.bf16.msra.mxu0 %v3498
        %3531 = vmatpush.bf16.msra.mxu0 %v3497
        %3532 = vmatpush.bf16.msra.mxu0 %v3496
        %3533 = vmatpush.bf16.msra.mxu0 %v3495
        %3534 = vmatpush.bf16.msra.mxu0 %v3494
        %3535 = vmatpush.bf16.msra.mxu0 %v3493
        %3536 = vmatpush.bf16.msra.mxu0 %v3492
        %3537 = vmatmul.bf16.gmra.mxu0 %v2271
        %v3538 = vpop.f32.mrf.mxu0
        %v3539 = vadd.f32 %v3526, %v3538
        %v3540 = vpop.f32.mrf.mxu0
        %3541 = vdwg.mxu0
        %v3574 = vunpack.c.l.b16 %v1738
        %v3575 = vunpack.c.l.b16 %v1739
        %v3576 = vunpack.c.l.b16 %v1740
        %v3577 = vunpack.c.l.b16 %v1741
        %v3578 = vunpack.c.l.b16 %v1742
        %v3579 = vunpack.c.l.b16 %v1743
        %v3580 = vunpack.c.l.b16 %v1744
        %v3581 = vunpack.c.l.b16 %v1745
        %v3582 = vunpack.c.l.b16 %v1746
        %v3583 = vunpack.c.l.b16 %v1747
        %v3584 = vunpack.c.l.b16 %v1748
        %v3585 = vunpack.c.l.b16 %v1749
        %v3586 = vunpack.c.l.b16 %v1750
        %v3587 = vunpack.c.l.b16 %v1751
        %v3588 = vunpack.c.l.b16 %v1752
        %v3589 = vunpack.c.l.b16 %v1753
        %v3590 = vunpack.c.l.b16 %v1754
        %v3591 = vunpack.c.l.b16 %v1755
        %v3592 = vunpack.c.l.b16 %v1756
        %v3593 = vunpack.c.l.b16 %v1757
        %v3594 = vunpack.c.l.b16 %v1758
        %v3595 = vunpack.c.l.b16 %v1759
        %v3596 = vunpack.c.l.b16 %v1760
        %v3597 = vunpack.c.l.b16 %v1761
        %v3598 = vunpack.c.l.b16 %v1762
        %v3599 = vunpack.c.l.b16 %v1763
        %v3600 = vunpack.c.l.b16 %v1764
        %v3601 = vunpack.c.l.b16 %v1765
        %v3602 = vunpack.c.l.b16 %v1766
        %v3603 = vunpack.c.l.b16 %v1767
        %v3604 = vunpack.c.l.b16 %v1768
        %v3605 = vunpack.c.l.b16 %v1769
        %v3606 = vpack.c.b16 %v3575, %v3574
        %v3607 = vpack.c.b16 %v3577, %v3576
        %v3608 = vpack.c.b16 %v3579, %v3578
        %v3609 = vpack.c.b16 %v3581, %v3580
        %v3610 = vpack.c.b16 %v3583, %v3582
        %v3611 = vpack.c.b16 %v3585, %v3584
        %v3612 = vpack.c.b16 %v3587, %v3586
        %v3613 = vpack.c.b16 %v3589, %v3588
        %v3614 = vpack.c.b16 %v3591, %v3590
        %v3615 = vpack.c.b16 %v3593, %v3592
        %v3616 = vpack.c.b16 %v3595, %v3594
        %v3617 = vpack.c.b16 %v3597, %v3596
        %v3618 = vpack.c.b16 %v3599, %v3598
        %v3619 = vpack.c.b16 %v3601, %v3600
        %v3620 = vpack.c.b16 %v3603, %v3602
        %v3621 = vpack.c.b16 %v3605, %v3604
        %3638 = vmatpush.bf16.msra.mxu0 %v3613
        %3639 = vmatpush.bf16.msra.mxu0 %v3612
        %3640 = vmatpush.bf16.msra.mxu0 %v3611
        %3641 = vmatpush.bf16.msra.mxu0 %v3610
        %3642 = vmatpush.bf16.msra.mxu0 %v3609
        %3643 = vmatpush.bf16.msra.mxu0 %v3608
        %3644 = vmatpush.bf16.msra.mxu0 %v3607
        %3645 = vmatpush.bf16.msra.mxu0 %v3606
        %3646 = vmatmul.bf16.gmra.mxu0 %v2270
        %v3647 = vpop.f32.mrf.mxu0
        %v3648 = vadd.f32 %v3268, %v3647
        %v3649 = vpop.f32.mrf.mxu0
        %3650 = vdwg.mxu0
        %3651 = vmatpush.bf16.msra.mxu0 %v3621
        %3652 = vmatpush.bf16.msra.mxu0 %v3620
        %3653 = vmatpush.bf16.msra.mxu0 %v3619
        %3654 = vmatpush.bf16.msra.mxu0 %v3618
        %3655 = vmatpush.bf16.msra.mxu0 %v3617
        %3656 = vmatpush.bf16.msra.mxu0 %v3616
        %3657 = vmatpush.bf16.msra.mxu0 %v3615
        %3658 = vmatpush.bf16.msra.mxu0 %v3614
        %3659 = vmatmul.bf16.gmra.mxu0 %v2271
        %v3660 = vpop.f32.mrf.mxu0
        %v3661 = vadd.f32 %v3648, %v3660
        %v3662 = vpop.f32.mrf.mxu0
        %3663 = vdwg.mxu0
        %v3696 = vunpack.c.l.b16 %v1770
        %v3697 = vunpack.c.l.b16 %v1771
        %v3698 = vunpack.c.l.b16 %v1772
        %v3699 = vunpack.c.l.b16 %v1773
        %v3700 = vunpack.c.l.b16 %v1774
        %v3701 = vunpack.c.l.b16 %v1775
        %v3702 = vunpack.c.l.b16 %v1776
        %v3703 = vunpack.c.l.b16 %v1777
        %v3704 = vunpack.c.l.b16 %v1778
        %v3705 = vunpack.c.l.b16 %v1779
        %v3706 = vunpack.c.l.b16 %v1780
        %v3707 = vunpack.c.l.b16 %v1781
        %v3708 = vunpack.c.l.b16 %v1782
        %v3709 = vunpack.c.l.b16 %v1783
        %v3710 = vunpack.c.l.b16 %v1784
        %v3711 = vunpack.c.l.b16 %v1785
        %v3712 = vunpack.c.l.b16 %v1786
        %v3713 = vunpack.c.l.b16 %v1787
        %v3714 = vunpack.c.l.b16 %v1788
        %v3715 = vunpack.c.l.b16 %v1789
        %v3716 = vunpack.c.l.b16 %v1790
        %v3717 = vunpack.c.l.b16 %v1791
        %v3718 = vunpack.c.l.b16 %v1792
        %v3719 = vunpack.c.l.b16 %v1793
        %v3720 = vunpack.c.l.b16 %v1794
        %v3721 = vunpack.c.l.b16 %v1795
        %v3722 = vunpack.c.l.b16 %v1796
        %v3723 = vunpack.c.l.b16 %v1797
        %v3724 = vunpack.c.l.b16 %v1798
        %v3725 = vunpack.c.l.b16 %v1799
        %v3726 = vunpack.c.l.b16 %v1800
        %v3727 = vunpack.c.l.b16 %v1801
        %v3728 = vpack.c.b16 %v3697, %v3696
        %v3729 = vpack.c.b16 %v3699, %v3698
        %v3730 = vpack.c.b16 %v3701, %v3700
        %v3731 = vpack.c.b16 %v3703, %v3702
        %v3732 = vpack.c.b16 %v3705, %v3704
        %v3733 = vpack.c.b16 %v3707, %v3706
        %v3734 = vpack.c.b16 %v3709, %v3708
        %v3735 = vpack.c.b16 %v3711, %v3710
        %v3736 = vpack.c.b16 %v3713, %v3712
        %v3737 = vpack.c.b16 %v3715, %v3714
        %v3738 = vpack.c.b16 %v3717, %v3716
        %v3739 = vpack.c.b16 %v3719, %v3718
        %v3740 = vpack.c.b16 %v3721, %v3720
        %v3741 = vpack.c.b16 %v3723, %v3722
        %v3742 = vpack.c.b16 %v3725, %v3724
        %v3743 = vpack.c.b16 %v3727, %v3726
        %3760 = vmatpush.bf16.msra.mxu0 %v3735
        %3761 = vmatpush.bf16.msra.mxu0 %v3734
        %3762 = vmatpush.bf16.msra.mxu0 %v3733
        %3763 = vmatpush.bf16.msra.mxu0 %v3732
        %3764 = vmatpush.bf16.msra.mxu0 %v3731
        %3765 = vmatpush.bf16.msra.mxu0 %v3730
        %3766 = vmatpush.bf16.msra.mxu0 %v3729
        %3767 = vmatpush.bf16.msra.mxu0 %v3728
        %3768 = vmatmul.bf16.gmra.mxu0 %v2270
        %v3769 = vpop.f32.mrf.mxu0
        %v3770 = vadd.f32 %v3269, %v3769
        %v3771 = vpop.f32.mrf.mxu0
        %3772 = vdwg.mxu0
        %3773 = vmatpush.bf16.msra.mxu0 %v3743
        %3774 = vmatpush.bf16.msra.mxu0 %v3742
        %3775 = vmatpush.bf16.msra.mxu0 %v3741
        %3776 = vmatpush.bf16.msra.mxu0 %v3740
        %3777 = vmatpush.bf16.msra.mxu0 %v3739
        %3778 = vmatpush.bf16.msra.mxu0 %v3738
        %3779 = vmatpush.bf16.msra.mxu0 %v3737
        %3780 = vmatpush.bf16.msra.mxu0 %v3736
        %3781 = vmatmul.bf16.gmra.mxu0 %v2271
        %v3782 = vpop.f32.mrf.mxu0
        %v3783 = vadd.f32 %v3770, %v3782
        %v3784 = vpop.f32.mrf.mxu0
        %3785 = vdwg.mxu0
        %v3818 = vunpack.c.l.b16 %v1802
        %v3819 = vunpack.c.l.b16 %v1803
        %v3820 = vunpack.c.l.b16 %v1804
        %v3821 = vunpack.c.l.b16 %v1805
        %v3822 = vunpack.c.l.b16 %v1806
        %v3823 = vunpack.c.l.b16 %v1807
        %v3824 = vunpack.c.l.b16 %v1808
        %v3825 = vunpack.c.l.b16 %v1809
        %v3826 = vunpack.c.l.b16 %v1810
        %v3827 = vunpack.c.l.b16 %v1811
        %v3828 = vunpack.c.l.b16 %v1812
        %v3829 = vunpack.c.l.b16 %v1813
        %v3830 = vunpack.c.l.b16 %v1814
        %v3831 = vunpack.c.l.b16 %v1815
        %v3832 = vunpack.c.l.b16 %v1816
        %v3833 = vunpack.c.l.b16 %v1817
        %v3834 = vunpack.c.l.b16 %v1818
        %v3835 = vunpack.c.l.b16 %v1819
        %v3836 = vunpack.c.l.b16 %v1820
        %v3837 = vunpack.c.l.b16 %v1821
        %v3838 = vunpack.c.l.b16 %v1822
        %v3839 = vunpack.c.l.b16 %v1823
        %v3840 = vunpack.c.l.b16 %v1824
        %v3841 = vunpack.c.l.b16 %v1825
        %v3842 = vunpack.c.l.b16 %v1826
        %v3843 = vunpack.c.l.b16 %v1827
        %v3844 = vunpack.c.l.b16 %v1828
        %v3845 = vunpack.c.l.b16 %v1829
        %v3846 = vunpack.c.l.b16 %v1830
        %v3847 = vunpack.c.l.b16 %v1831
        %v3848 = vunpack.c.l.b16 %v1832
        %v3849 = vunpack.c.l.b16 %v1833
        %v3850 = vpack.c.b16 %v3819, %v3818
        %v3851 = vpack.c.b16 %v3821, %v3820
        %v3852 = vpack.c.b16 %v3823, %v3822
        %v3853 = vpack.c.b16 %v3825, %v3824
        %v3854 = vpack.c.b16 %v3827, %v3826
        %v3855 = vpack.c.b16 %v3829, %v3828
        %v3856 = vpack.c.b16 %v3831, %v3830
        %v3857 = vpack.c.b16 %v3833, %v3832
        %v3858 = vpack.c.b16 %v3835, %v3834
        %v3859 = vpack.c.b16 %v3837, %v3836
        %v3860 = vpack.c.b16 %v3839, %v3838
        %v3861 = vpack.c.b16 %v3841, %v3840
        %v3862 = vpack.c.b16 %v3843, %v3842
        %v3863 = vpack.c.b16 %v3845, %v3844
        %v3864 = vpack.c.b16 %v3847, %v3846
        %v3865 = vpack.c.b16 %v3849, %v3848
        %3882 = vmatpush.bf16.msra.mxu0 %v3857
        %3883 = vmatpush.bf16.msra.mxu0 %v3856
        %3884 = vmatpush.bf16.msra.mxu0 %v3855
        %3885 = vmatpush.bf16.msra.mxu0 %v3854
        %3886 = vmatpush.bf16.msra.mxu0 %v3853
        %3887 = vmatpush.bf16.msra.mxu0 %v3852
        %3888 = vmatpush.bf16.msra.mxu0 %v3851
        %3889 = vmatpush.bf16.msra.mxu0 %v3850
        %3890 = vmatmul.bf16.gmra.mxu0 %v2270
        %v3891 = vpop.f32.mrf.mxu0
        %v3892 = vadd.f32 %v3270, %v3891
        %v3893 = vpop.f32.mrf.mxu0
        %3894 = vdwg.mxu0
        %3895 = vmatpush.bf16.msra.mxu0 %v3865
        %3896 = vmatpush.bf16.msra.mxu0 %v3864
        %3897 = vmatpush.bf16.msra.mxu0 %v3863
        %3898 = vmatpush.bf16.msra.mxu0 %v3862
        %3899 = vmatpush.bf16.msra.mxu0 %v3861
        %3900 = vmatpush.bf16.msra.mxu0 %v3860
        %3901 = vmatpush.bf16.msra.mxu0 %v3859
        %3902 = vmatpush.bf16.msra.mxu0 %v3858
        %3903 = vmatmul.bf16.gmra.mxu0 %v2271
        %v3904 = vpop.f32.mrf.mxu0
        %v3905 = vadd.f32 %v3892, %v3904
        %v3906 = vpop.f32.mrf.mxu0
        %3907 = vdwg.mxu0
        %v3940 = vunpack.c.l.b16 %v1834
        %v3941 = vunpack.c.l.b16 %v1835
        %v3942 = vunpack.c.l.b16 %v1836
        %v3943 = vunpack.c.l.b16 %v1837
        %v3944 = vunpack.c.l.b16 %v1838
        %v3945 = vunpack.c.l.b16 %v1839
        %v3946 = vunpack.c.l.b16 %v1840
        %v3947 = vunpack.c.l.b16 %v1841
        %v3948 = vunpack.c.l.b16 %v1842
        %v3949 = vunpack.c.l.b16 %v1843
        %v3950 = vunpack.c.l.b16 %v1844
        %v3951 = vunpack.c.l.b16 %v1845
        %v3952 = vunpack.c.l.b16 %v1846
        %v3953 = vunpack.c.l.b16 %v1847
        %v3954 = vunpack.c.l.b16 %v1848
        %v3955 = vunpack.c.l.b16 %v1849
        %v3956 = vunpack.c.l.b16 %v1850
        %v3957 = vunpack.c.l.b16 %v1851
        %v3958 = vunpack.c.l.b16 %v1852
        %v3959 = vunpack.c.l.b16 %v1853
        %v3960 = vunpack.c.l.b16 %v1854
        %v3961 = vunpack.c.l.b16 %v1855
        %v3962 = vunpack.c.l.b16 %v1856
        %v3963 = vunpack.c.l.b16 %v1857
        %v3964 = vunpack.c.l.b16 %v1858
        %v3965 = vunpack.c.l.b16 %v1859
        %v3966 = vunpack.c.l.b16 %v1860
        %v3967 = vunpack.c.l.b16 %v1861
        %v3968 = vunpack.c.l.b16 %v1862
        %v3969 = vunpack.c.l.b16 %v1863
        %v3970 = vunpack.c.l.b16 %v1864
        %v3971 = vunpack.c.l.b16 %v1865
        %v3972 = vpack.c.b16 %v3941, %v3940
        %v3973 = vpack.c.b16 %v3943, %v3942
        %v3974 = vpack.c.b16 %v3945, %v3944
        %v3975 = vpack.c.b16 %v3947, %v3946
        %v3976 = vpack.c.b16 %v3949, %v3948
        %v3977 = vpack.c.b16 %v3951, %v3950
        %v3978 = vpack.c.b16 %v3953, %v3952
        %v3979 = vpack.c.b16 %v3955, %v3954
        %v3980 = vpack.c.b16 %v3957, %v3956
        %v3981 = vpack.c.b16 %v3959, %v3958
        %v3982 = vpack.c.b16 %v3961, %v3960
        %v3983 = vpack.c.b16 %v3963, %v3962
        %v3984 = vpack.c.b16 %v3965, %v3964
        %v3985 = vpack.c.b16 %v3967, %v3966
        %v3986 = vpack.c.b16 %v3969, %v3968
        %v3987 = vpack.c.b16 %v3971, %v3970
        %4004 = vmatpush.bf16.msra.mxu0 %v3979
        %4005 = vmatpush.bf16.msra.mxu0 %v3978
        %4006 = vmatpush.bf16.msra.mxu0 %v3977
        %4007 = vmatpush.bf16.msra.mxu0 %v3976
        %4008 = vmatpush.bf16.msra.mxu0 %v3975
        %4009 = vmatpush.bf16.msra.mxu0 %v3974
        %4010 = vmatpush.bf16.msra.mxu0 %v3973
        %4011 = vmatpush.bf16.msra.mxu0 %v3972
        %4012 = vmatmul.bf16.gmra.mxu0 %v2270
        %v4013 = vpop.f32.mrf.mxu0
        %v4014 = vadd.f32 %v3271, %v4013
        %v4015 = vpop.f32.mrf.mxu0
        %4016 = vdwg.mxu0
        %4017 = vmatpush.bf16.msra.mxu0 %v3987
        %4018 = vmatpush.bf16.msra.mxu0 %v3986
        %4019 = vmatpush.bf16.msra.mxu0 %v3985
        %4020 = vmatpush.bf16.msra.mxu0 %v3984
        %4021 = vmatpush.bf16.msra.mxu0 %v3983
        %4022 = vmatpush.bf16.msra.mxu0 %v3982
        %4023 = vmatpush.bf16.msra.mxu0 %v3981
        %4024 = vmatpush.bf16.msra.mxu0 %v3980
        %4025 = vmatmul.bf16.gmra.mxu0 %v2271
        %v4026 = vpop.f32.mrf.mxu0
        %v4027 = vadd.f32 %v4014, %v4026
        %v4028 = vpop.f32.mrf.mxu0
        %4029 = vdwg.mxu0
        %v4062 = vunpack.c.l.b16 %v1866
        %v4063 = vunpack.c.l.b16 %v1867
        %v4064 = vunpack.c.l.b16 %v1868
        %v4065 = vunpack.c.l.b16 %v1869
        %v4066 = vunpack.c.l.b16 %v1870
        %v4067 = vunpack.c.l.b16 %v1871
        %v4068 = vunpack.c.l.b16 %v1872
        %v4069 = vunpack.c.l.b16 %v1873
        %v4070 = vunpack.c.l.b16 %v1874
        %v4071 = vunpack.c.l.b16 %v1875
        %v4072 = vunpack.c.l.b16 %v1876
        %v4073 = vunpack.c.l.b16 %v1877
        %v4074 = vunpack.c.l.b16 %v1878
        %v4075 = vunpack.c.l.b16 %v1879
        %v4076 = vunpack.c.l.b16 %v1880
        %v4077 = vunpack.c.l.b16 %v1881
        %v4078 = vunpack.c.l.b16 %v1882
        %v4079 = vunpack.c.l.b16 %v1883
        %v4080 = vunpack.c.l.b16 %v1884
        %v4081 = vunpack.c.l.b16 %v1885
        %v4082 = vunpack.c.l.b16 %v1886
        %v4083 = vunpack.c.l.b16 %v1887
        %v4084 = vunpack.c.l.b16 %v1888
        %v4085 = vunpack.c.l.b16 %v1889
        %v4086 = vunpack.c.l.b16 %v1890
        %v4087 = vunpack.c.l.b16 %v1891
        %v4088 = vunpack.c.l.b16 %v1892
        %v4089 = vunpack.c.l.b16 %v1893
        %v4090 = vunpack.c.l.b16 %v1894
        %v4091 = vunpack.c.l.b16 %v1895
        %v4092 = vunpack.c.l.b16 %v1896
        %v4093 = vunpack.c.l.b16 %v1897
        %v4094 = vpack.c.b16 %v4063, %v4062
        %v4095 = vpack.c.b16 %v4065, %v4064
        %v4096 = vpack.c.b16 %v4067, %v4066
        %v4097 = vpack.c.b16 %v4069, %v4068
        %v4098 = vpack.c.b16 %v4071, %v4070
        %v4099 = vpack.c.b16 %v4073, %v4072
        %v4100 = vpack.c.b16 %v4075, %v4074
        %v4101 = vpack.c.b16 %v4077, %v4076
        %v4102 = vpack.c.b16 %v4079, %v4078
        %v4103 = vpack.c.b16 %v4081, %v4080
        %v4104 = vpack.c.b16 %v4083, %v4082
        %v4105 = vpack.c.b16 %v4085, %v4084
        %v4106 = vpack.c.b16 %v4087, %v4086
        %v4107 = vpack.c.b16 %v4089, %v4088
        %v4108 = vpack.c.b16 %v4091, %v4090
        %v4109 = vpack.c.b16 %v4093, %v4092
        %4126 = vmatpush.bf16.msra.mxu0 %v4101
        %4127 = vmatpush.bf16.msra.mxu0 %v4100
        %4128 = vmatpush.bf16.msra.mxu0 %v4099
        %4129 = vmatpush.bf16.msra.mxu0 %v4098
        %4130 = vmatpush.bf16.msra.mxu0 %v4097
        %4131 = vmatpush.bf16.msra.mxu0 %v4096
        %4132 = vmatpush.bf16.msra.mxu0 %v4095
        %4133 = vmatpush.bf16.msra.mxu0 %v4094
        %4134 = vmatmul.bf16.gmra.mxu0 %v2270
        %v4135 = vpop.f32.mrf.mxu0
        %v4136 = vadd.f32 %v3272, %v4135
        %v4137 = vpop.f32.mrf.mxu0
        %4138 = vdwg.mxu0
        %4139 = vmatpush.bf16.msra.mxu0 %v4109
        %4140 = vmatpush.bf16.msra.mxu0 %v4108
        %4141 = vmatpush.bf16.msra.mxu0 %v4107
        %4142 = vmatpush.bf16.msra.mxu0 %v4106
        %4143 = vmatpush.bf16.msra.mxu0 %v4105
        %4144 = vmatpush.bf16.msra.mxu0 %v4104
        %4145 = vmatpush.bf16.msra.mxu0 %v4103
        %4146 = vmatpush.bf16.msra.mxu0 %v4102
        %4147 = vmatmul.bf16.gmra.mxu0 %v2271
        %v4148 = vpop.f32.mrf.mxu0
        %v4149 = vadd.f32 %v4136, %v4148
        %v4150 = vpop.f32.mrf.mxu0
        %4151 = vdwg.mxu0
        %v4184 = vunpack.c.l.b16 %v1898
        %v4185 = vunpack.c.l.b16 %v1899
        %v4186 = vunpack.c.l.b16 %v1900
        %v4187 = vunpack.c.l.b16 %v1901
        %v4188 = vunpack.c.l.b16 %v1902
        %v4189 = vunpack.c.l.b16 %v1903
        %v4190 = vunpack.c.l.b16 %v1904
        %v4191 = vunpack.c.l.b16 %v1905
        %v4192 = vunpack.c.l.b16 %v1906
        %v4193 = vunpack.c.l.b16 %v1907
        %v4194 = vunpack.c.l.b16 %v1908
        %v4195 = vunpack.c.l.b16 %v1909
        %v4196 = vunpack.c.l.b16 %v1910
        %v4197 = vunpack.c.l.b16 %v1911
        %v4198 = vunpack.c.l.b16 %v1912
        %v4199 = vunpack.c.l.b16 %v1913
        %v4200 = vunpack.c.l.b16 %v1914
        %v4201 = vunpack.c.l.b16 %v1915
        %v4202 = vunpack.c.l.b16 %v1916
        %v4203 = vunpack.c.l.b16 %v1917
        %v4204 = vunpack.c.l.b16 %v1918
        %v4205 = vunpack.c.l.b16 %v1919
        %v4206 = vunpack.c.l.b16 %v1920
        %v4207 = vunpack.c.l.b16 %v1921
        %v4208 = vunpack.c.l.b16 %v1922
        %v4209 = vunpack.c.l.b16 %v1923
        %v4210 = vunpack.c.l.b16 %v1924
        %v4211 = vunpack.c.l.b16 %v1925
        %v4212 = vunpack.c.l.b16 %v1926
        %v4213 = vunpack.c.l.b16 %v1927
        %v4214 = vunpack.c.l.b16 %v1928
        %v4215 = vunpack.c.l.b16 %v1929
        %v4216 = vpack.c.b16 %v4185, %v4184
        %v4217 = vpack.c.b16 %v4187, %v4186
        %v4218 = vpack.c.b16 %v4189, %v4188
        %v4219 = vpack.c.b16 %v4191, %v4190
        %v4220 = vpack.c.b16 %v4193, %v4192
        %v4221 = vpack.c.b16 %v4195, %v4194
        %v4222 = vpack.c.b16 %v4197, %v4196
        %v4223 = vpack.c.b16 %v4199, %v4198
        %v4224 = vpack.c.b16 %v4201, %v4200
        %v4225 = vpack.c.b16 %v4203, %v4202
        %v4226 = vpack.c.b16 %v4205, %v4204
        %v4227 = vpack.c.b16 %v4207, %v4206
        %v4228 = vpack.c.b16 %v4209, %v4208
        %v4229 = vpack.c.b16 %v4211, %v4210
        %v4230 = vpack.c.b16 %v4213, %v4212
        %v4231 = vpack.c.b16 %v4215, %v4214
        %4248 = vmatpush.bf16.msra.mxu0 %v4223
        %4249 = vmatpush.bf16.msra.mxu0 %v4222
        %4250 = vmatpush.bf16.msra.mxu0 %v4221
        %4251 = vmatpush.bf16.msra.mxu0 %v4220
        %4252 = vmatpush.bf16.msra.mxu0 %v4219
        %4253 = vmatpush.bf16.msra.mxu0 %v4218
        %4254 = vmatpush.bf16.msra.mxu0 %v4217
        %4255 = vmatpush.bf16.msra.mxu0 %v4216
        %4256 = vmatmul.bf16.gmra.mxu0 %v2270
        %v4257 = vpop.f32.mrf.mxu0
        %v4258 = vadd.f32 %v3273, %v4257
        %v4259 = vpop.f32.mrf.mxu0
        %4260 = vdwg.mxu0
        %4261 = vmatpush.bf16.msra.mxu0 %v4231
        %4262 = vmatpush.bf16.msra.mxu0 %v4230
        %4263 = vmatpush.bf16.msra.mxu0 %v4229
        %4264 = vmatpush.bf16.msra.mxu0 %v4228
        %4265 = vmatpush.bf16.msra.mxu0 %v4227
        %4266 = vmatpush.bf16.msra.mxu0 %v4226
        %4267 = vmatpush.bf16.msra.mxu0 %v4225
        %4268 = vmatpush.bf16.msra.mxu0 %v4224
        %4269 = vmatmul.bf16.gmra.mxu0 %v2271
        %v4270 = vpop.f32.mrf.mxu0
        %v4271 = vadd.f32 %v4258, %v4270
        %v4272 = vpop.f32.mrf.mxu0
        %4273 = vdwg.mxu0
        %v4306 = vunpack.c.l.b16 %v1930
        %v4307 = vunpack.c.l.b16 %v1931
        %v4308 = vunpack.c.l.b16 %v1932
        %v4309 = vunpack.c.l.b16 %v1933
        %v4310 = vunpack.c.l.b16 %v1934
        %v4311 = vunpack.c.l.b16 %v1935
        %v4312 = vunpack.c.l.b16 %v1936
        %v4313 = vunpack.c.l.b16 %v1937
        %v4314 = vunpack.c.l.b16 %v1938
        %v4315 = vunpack.c.l.b16 %v1939
        %v4316 = vunpack.c.l.b16 %v1940
        %v4317 = vunpack.c.l.b16 %v1941
        %v4318 = vunpack.c.l.b16 %v1942
        %v4319 = vunpack.c.l.b16 %v1943
        %v4320 = vunpack.c.l.b16 %v1944
        %v4321 = vunpack.c.l.b16 %v1945
        %v4322 = vunpack.c.l.b16 %v1946
        %v4323 = vunpack.c.l.b16 %v1947
        %v4324 = vunpack.c.l.b16 %v1948
        %v4325 = vunpack.c.l.b16 %v1949
        %v4326 = vunpack.c.l.b16 %v1950
        %v4327 = vunpack.c.l.b16 %v1951
        %v4328 = vunpack.c.l.b16 %v1952
        %v4329 = vunpack.c.l.b16 %v1953
        %v4330 = vunpack.c.l.b16 %v1954
        %v4331 = vunpack.c.l.b16 %v1955
        %v4332 = vunpack.c.l.b16 %v1956
        %v4333 = vunpack.c.l.b16 %v1957
        %v4334 = vunpack.c.l.b16 %v1958
        %v4335 = vunpack.c.l.b16 %v1959
        %v4336 = vunpack.c.l.b16 %v1960
        %v4337 = vunpack.c.l.b16 %v1961
        %v4338 = vpack.c.b16 %v4307, %v4306
        %v4339 = vpack.c.b16 %v4309, %v4308
        %v4340 = vpack.c.b16 %v4311, %v4310
        %v4341 = vpack.c.b16 %v4313, %v4312
        %v4342 = vpack.c.b16 %v4315, %v4314
        %v4343 = vpack.c.b16 %v4317, %v4316
        %v4344 = vpack.c.b16 %v4319, %v4318
        %v4345 = vpack.c.b16 %v4321, %v4320
        %v4346 = vpack.c.b16 %v4323, %v4322
        %v4347 = vpack.c.b16 %v4325, %v4324
        %v4348 = vpack.c.b16 %v4327, %v4326
        %v4349 = vpack.c.b16 %v4329, %v4328
        %v4350 = vpack.c.b16 %v4331, %v4330
        %v4351 = vpack.c.b16 %v4333, %v4332
        %v4352 = vpack.c.b16 %v4335, %v4334
        %v4353 = vpack.c.b16 %v4337, %v4336
        %4370 = vmatpush.bf16.msra.mxu0 %v4345
        %4371 = vmatpush.bf16.msra.mxu0 %v4344
        %4372 = vmatpush.bf16.msra.mxu0 %v4343
        %4373 = vmatpush.bf16.msra.mxu0 %v4342
        %4374 = vmatpush.bf16.msra.mxu0 %v4341
        %4375 = vmatpush.bf16.msra.mxu0 %v4340
        %4376 = vmatpush.bf16.msra.mxu0 %v4339
        %4377 = vmatpush.bf16.msra.mxu0 %v4338
        %4378 = vmatmul.bf16.gmra.mxu0 %v2270
        %v4379 = vpop.f32.mrf.mxu0
        %v4380 = vadd.f32 %v3274, %v4379
        %v4381 = vpop.f32.mrf.mxu0
        %4382 = vdwg.mxu0
        %4383 = vmatpush.bf16.msra.mxu0 %v4353
        %4384 = vmatpush.bf16.msra.mxu0 %v4352
        %4385 = vmatpush.bf16.msra.mxu0 %v4351
        %4386 = vmatpush.bf16.msra.mxu0 %v4350
        %4387 = vmatpush.bf16.msra.mxu0 %v4349
        %4388 = vmatpush.bf16.msra.mxu0 %v4348
        %4389 = vmatpush.bf16.msra.mxu0 %v4347
        %4390 = vmatpush.bf16.msra.mxu0 %v4346
        %4391 = vmatmul.bf16.gmra.mxu0 %v2271
        %v4392 = vpop.f32.mrf.mxu0
        %v4393 = vadd.f32 %v4380, %v4392
        %v4394 = vpop.f32.mrf.mxu0
        %4395 = vdwg.mxu0
        %v4428 = vunpack.c.l.b16 %v1962
        %v4429 = vunpack.c.l.b16 %v1963
        %v4430 = vunpack.c.l.b16 %v1964
        %v4431 = vunpack.c.l.b16 %v1965
        %v4432 = vunpack.c.l.b16 %v1966
        %v4433 = vunpack.c.l.b16 %v1967
        %v4434 = vunpack.c.l.b16 %v1968
        %v4435 = vunpack.c.l.b16 %v1969
        %v4436 = vunpack.c.l.b16 %v1970
        %v4437 = vunpack.c.l.b16 %v1971
        %v4438 = vunpack.c.l.b16 %v1972
        %v4439 = vunpack.c.l.b16 %v1973
        %v4440 = vunpack.c.l.b16 %v1974
        %v4441 = vunpack.c.l.b16 %v1975
        %v4442 = vunpack.c.l.b16 %v1976
        %v4443 = vunpack.c.l.b16 %v1977
        %v4444 = vunpack.c.l.b16 %v1978
        %v4445 = vunpack.c.l.b16 %v1979
        %v4446 = vunpack.c.l.b16 %v1980
        %v4447 = vunpack.c.l.b16 %v1981
        %v4448 = vunpack.c.l.b16 %v1982
        %v4449 = vunpack.c.l.b16 %v1983
        %v4450 = vunpack.c.l.b16 %v1984
        %v4451 = vunpack.c.l.b16 %v1985
        %v4452 = vunpack.c.l.b16 %v1986
        %v4453 = vunpack.c.l.b16 %v1987
        %v4454 = vunpack.c.l.b16 %v1988
        %v4455 = vunpack.c.l.b16 %v1989
        %v4456 = vunpack.c.l.b16 %v1990
        %v4457 = vunpack.c.l.b16 %v1991
        %v4458 = vunpack.c.l.b16 %v1992
        %v4459 = vunpack.c.l.b16 %v1993
        %v4460 = vpack.c.b16 %v4429, %v4428
        %v4461 = vpack.c.b16 %v4431, %v4430
        %v4462 = vpack.c.b16 %v4433, %v4432
        %v4463 = vpack.c.b16 %v4435, %v4434
        %v4464 = vpack.c.b16 %v4437, %v4436
        %v4465 = vpack.c.b16 %v4439, %v4438
        %v4466 = vpack.c.b16 %v4441, %v4440
        %v4467 = vpack.c.b16 %v4443, %v4442
        %v4468 = vpack.c.b16 %v4445, %v4444
        %v4469 = vpack.c.b16 %v4447, %v4446
        %v4470 = vpack.c.b16 %v4449, %v4448
        %v4471 = vpack.c.b16 %v4451, %v4450
        %v4472 = vpack.c.b16 %v4453, %v4452
        %v4473 = vpack.c.b16 %v4455, %v4454
        %v4474 = vpack.c.b16 %v4457, %v4456
        %v4475 = vpack.c.b16 %v4459, %v4458
        %4492 = vmatpush.bf16.msra.mxu0 %v4467
        %4493 = vmatpush.bf16.msra.mxu0 %v4466
        %4494 = vmatpush.bf16.msra.mxu0 %v4465
        %4495 = vmatpush.bf16.msra.mxu0 %v4464
        %4496 = vmatpush.bf16.msra.mxu0 %v4463
        %4497 = vmatpush.bf16.msra.mxu0 %v4462
        %4498 = vmatpush.bf16.msra.mxu0 %v4461
        %4499 = vmatpush.bf16.msra.mxu0 %v4460
        %4500 = vmatmul.bf16.gmra.mxu0 %v2270
        %v4501 = vpop.f32.mrf.mxu0
        %v4502 = vadd.f32 %v3275, %v4501
        %v4503 = vpop.f32.mrf.mxu0
        %4504 = vdwg.mxu0
        %4505 = vmatpush.bf16.msra.mxu0 %v4475
        %4506 = vmatpush.bf16.msra.mxu0 %v4474
        %4507 = vmatpush.bf16.msra.mxu0 %v4473
        %4508 = vmatpush.bf16.msra.mxu0 %v4472
        %4509 = vmatpush.bf16.msra.mxu0 %v4471
        %4510 = vmatpush.bf16.msra.mxu0 %v4470
        %4511 = vmatpush.bf16.msra.mxu0 %v4469
        %4512 = vmatpush.bf16.msra.mxu0 %v4468
        %4513 = vmatmul.bf16.gmra.mxu0 %v2271
        %v4514 = vpop.f32.mrf.mxu0
        %v4515 = vadd.f32 %v4502, %v4514
        %v4516 = vpop.f32.mrf.mxu0
        %4517 = vdwg.mxu0
        %v4550 = vunpack.c.l.b16 %v1994
        %v4551 = vunpack.c.l.b16 %v1995
        %v4552 = vunpack.c.l.b16 %v1996
        %v4553 = vunpack.c.l.b16 %v1997
        %v4554 = vunpack.c.l.b16 %v1998
        %v4555 = vunpack.c.l.b16 %v1999
        %v4556 = vunpack.c.l.b16 %v2000
        %v4557 = vunpack.c.l.b16 %v2001
        %v4558 = vunpack.c.l.b16 %v2002
        %v4559 = vunpack.c.l.b16 %v2003
        %v4560 = vunpack.c.l.b16 %v2004
        %v4561 = vunpack.c.l.b16 %v2005
        %v4562 = vunpack.c.l.b16 %v2006
        %v4563 = vunpack.c.l.b16 %v2007
        %v4564 = vunpack.c.l.b16 %v2008
        %v4565 = vunpack.c.l.b16 %v2009
        %v4566 = vunpack.c.l.b16 %v2010
        %v4567 = vunpack.c.l.b16 %v2011
        %v4568 = vunpack.c.l.b16 %v2012
        %v4569 = vunpack.c.l.b16 %v2013
        %v4570 = vunpack.c.l.b16 %v2014
        %v4571 = vunpack.c.l.b16 %v2015
        %v4572 = vunpack.c.l.b16 %v2016
        %v4573 = vunpack.c.l.b16 %v2017
        %v4574 = vunpack.c.l.b16 %v2018
        %v4575 = vunpack.c.l.b16 %v2019
        %v4576 = vunpack.c.l.b16 %v2020
        %v4577 = vunpack.c.l.b16 %v2021
        %v4578 = vunpack.c.l.b16 %v2022
        %v4579 = vunpack.c.l.b16 %v2023
        %v4580 = vunpack.c.l.b16 %v2024
        %v4581 = vunpack.c.l.b16 %v2025
        %v4582 = vpack.c.b16 %v4551, %v4550
        %v4583 = vpack.c.b16 %v4553, %v4552
        %v4584 = vpack.c.b16 %v4555, %v4554
        %v4585 = vpack.c.b16 %v4557, %v4556
        %v4586 = vpack.c.b16 %v4559, %v4558
        %v4587 = vpack.c.b16 %v4561, %v4560
        %v4588 = vpack.c.b16 %v4563, %v4562
        %v4589 = vpack.c.b16 %v4565, %v4564
        %v4590 = vpack.c.b16 %v4567, %v4566
        %v4591 = vpack.c.b16 %v4569, %v4568
        %v4592 = vpack.c.b16 %v4571, %v4570
        %v4593 = vpack.c.b16 %v4573, %v4572
        %v4594 = vpack.c.b16 %v4575, %v4574
        %v4595 = vpack.c.b16 %v4577, %v4576
        %v4596 = vpack.c.b16 %v4579, %v4578
        %v4597 = vpack.c.b16 %v4581, %v4580
        %4614 = vmatpush.bf16.msra.mxu0 %v4589
        %4615 = vmatpush.bf16.msra.mxu0 %v4588
        %4616 = vmatpush.bf16.msra.mxu0 %v4587
        %4617 = vmatpush.bf16.msra.mxu0 %v4586
        %4618 = vmatpush.bf16.msra.mxu0 %v4585
        %4619 = vmatpush.bf16.msra.mxu0 %v4584
        %4620 = vmatpush.bf16.msra.mxu0 %v4583
        %4621 = vmatpush.bf16.msra.mxu0 %v4582
        %4622 = vmatmul.bf16.gmra.mxu0 %v2270
        %v4623 = vpop.f32.mrf.mxu0
        %v4624 = vadd.f32 %v3276, %v4623
        %v4625 = vpop.f32.mrf.mxu0
        %4626 = vdwg.mxu0
        %4627 = vmatpush.bf16.msra.mxu0 %v4597
        %4628 = vmatpush.bf16.msra.mxu0 %v4596
        %4629 = vmatpush.bf16.msra.mxu0 %v4595
        %4630 = vmatpush.bf16.msra.mxu0 %v4594
        %4631 = vmatpush.bf16.msra.mxu0 %v4593
        %4632 = vmatpush.bf16.msra.mxu0 %v4592
        %4633 = vmatpush.bf16.msra.mxu0 %v4591
        %4634 = vmatpush.bf16.msra.mxu0 %v4590
        %4635 = vmatmul.bf16.gmra.mxu0 %v2271
        %v4636 = vpop.f32.mrf.mxu0
        %v4637 = vadd.f32 %v4624, %v4636
        %v4638 = vpop.f32.mrf.mxu0
        %4639 = vdwg.mxu0
        %v4672 = vunpack.c.l.b16 %v2026
        %v4673 = vunpack.c.l.b16 %v2027
        %v4674 = vunpack.c.l.b16 %v2028
        %v4675 = vunpack.c.l.b16 %v2029
        %v4676 = vunpack.c.l.b16 %v2030
        %v4677 = vunpack.c.l.b16 %v2031
        %v4678 = vunpack.c.l.b16 %v2032
        %v4679 = vunpack.c.l.b16 %v2033
        %v4680 = vunpack.c.l.b16 %v2034
        %v4681 = vunpack.c.l.b16 %v2035
        %v4682 = vunpack.c.l.b16 %v2036
        %v4683 = vunpack.c.l.b16 %v2037
        %v4684 = vunpack.c.l.b16 %v2038
        %v4685 = vunpack.c.l.b16 %v2039
        %v4686 = vunpack.c.l.b16 %v2040
        %v4687 = vunpack.c.l.b16 %v2041
        %v4688 = vunpack.c.l.b16 %v2042
        %v4689 = vunpack.c.l.b16 %v2043
        %v4690 = vunpack.c.l.b16 %v2044
        %v4691 = vunpack.c.l.b16 %v2045
        %v4692 = vunpack.c.l.b16 %v2046
        %v4693 = vunpack.c.l.b16 %v2047
        %v4694 = vunpack.c.l.b16 %v2048
        %v4695 = vunpack.c.l.b16 %v2049
        %v4696 = vunpack.c.l.b16 %v2050
        %v4697 = vunpack.c.l.b16 %v2051
        %v4698 = vunpack.c.l.b16 %v2052
        %v4699 = vunpack.c.l.b16 %v2053
        %v4700 = vunpack.c.l.b16 %v2054
        %v4701 = vunpack.c.l.b16 %v2055
        %v4702 = vunpack.c.l.b16 %v2056
        %v4703 = vunpack.c.l.b16 %v2057
        %v4704 = vpack.c.b16 %v4673, %v4672
        %v4705 = vpack.c.b16 %v4675, %v4674
        %v4706 = vpack.c.b16 %v4677, %v4676
        %v4707 = vpack.c.b16 %v4679, %v4678
        %v4708 = vpack.c.b16 %v4681, %v4680
        %v4709 = vpack.c.b16 %v4683, %v4682
        %v4710 = vpack.c.b16 %v4685, %v4684
        %v4711 = vpack.c.b16 %v4687, %v4686
        %v4712 = vpack.c.b16 %v4689, %v4688
        %v4713 = vpack.c.b16 %v4691, %v4690
        %v4714 = vpack.c.b16 %v4693, %v4692
        %v4715 = vpack.c.b16 %v4695, %v4694
        %v4716 = vpack.c.b16 %v4697, %v4696
        %v4717 = vpack.c.b16 %v4699, %v4698
        %v4718 = vpack.c.b16 %v4701, %v4700
        %v4719 = vpack.c.b16 %v4703, %v4702
        %4736 = vmatpush.bf16.msra.mxu0 %v4711
        %4737 = vmatpush.bf16.msra.mxu0 %v4710
        %4738 = vmatpush.bf16.msra.mxu0 %v4709
        %4739 = vmatpush.bf16.msra.mxu0 %v4708
        %4740 = vmatpush.bf16.msra.mxu0 %v4707
        %4741 = vmatpush.bf16.msra.mxu0 %v4706
        %4742 = vmatpush.bf16.msra.mxu0 %v4705
        %4743 = vmatpush.bf16.msra.mxu0 %v4704
        %4744 = vmatmul.bf16.gmra.mxu0 %v2270
        %v4745 = vpop.f32.mrf.mxu0
        %v4746 = vadd.f32 %v3277, %v4745
        %v4747 = vpop.f32.mrf.mxu0
        %4748 = vdwg.mxu0
        %4749 = vmatpush.bf16.msra.mxu0 %v4719
        %4750 = vmatpush.bf16.msra.mxu0 %v4718
        %4751 = vmatpush.bf16.msra.mxu0 %v4717
        %4752 = vmatpush.bf16.msra.mxu0 %v4716
        %4753 = vmatpush.bf16.msra.mxu0 %v4715
        %4754 = vmatpush.bf16.msra.mxu0 %v4714
        %4755 = vmatpush.bf16.msra.mxu0 %v4713
        %4756 = vmatpush.bf16.msra.mxu0 %v4712
        %4757 = vmatmul.bf16.gmra.mxu0 %v2271
        %v4758 = vpop.f32.mrf.mxu0
        %v4759 = vadd.f32 %v4746, %v4758
        %v4760 = vpop.f32.mrf.mxu0
        %4761 = vdwg.mxu0
        %v4794 = vunpack.c.l.b16 %v2058
        %v4795 = vunpack.c.l.b16 %v2059
        %v4796 = vunpack.c.l.b16 %v2060
        %v4797 = vunpack.c.l.b16 %v2061
        %v4798 = vunpack.c.l.b16 %v2062
        %v4799 = vunpack.c.l.b16 %v2063
        %v4800 = vunpack.c.l.b16 %v2064
        %v4801 = vunpack.c.l.b16 %v2065
        %v4802 = vunpack.c.l.b16 %v2066
        %v4803 = vunpack.c.l.b16 %v2067
        %v4804 = vunpack.c.l.b16 %v2068
        %v4805 = vunpack.c.l.b16 %v2069
        %v4806 = vunpack.c.l.b16 %v2070
        %v4807 = vunpack.c.l.b16 %v2071
        %v4808 = vunpack.c.l.b16 %v2072
        %v4809 = vunpack.c.l.b16 %v2073
        %v4810 = vunpack.c.l.b16 %v2074
        %v4811 = vunpack.c.l.b16 %v2075
        %v4812 = vunpack.c.l.b16 %v2076
        %v4813 = vunpack.c.l.b16 %v2077
        %v4814 = vunpack.c.l.b16 %v2078
        %v4815 = vunpack.c.l.b16 %v2079
        %v4816 = vunpack.c.l.b16 %v2080
        %v4817 = vunpack.c.l.b16 %v2081
        %v4818 = vunpack.c.l.b16 %v2082
        %v4819 = vunpack.c.l.b16 %v2083
        %v4820 = vunpack.c.l.b16 %v2084
        %v4821 = vunpack.c.l.b16 %v2085
        %v4822 = vunpack.c.l.b16 %v2086
        %v4823 = vunpack.c.l.b16 %v2087
        %v4824 = vunpack.c.l.b16 %v2088
        %v4825 = vunpack.c.l.b16 %v2089
        %v4826 = vpack.c.b16 %v4795, %v4794
        %v4827 = vpack.c.b16 %v4797, %v4796
        %v4828 = vpack.c.b16 %v4799, %v4798
        %v4829 = vpack.c.b16 %v4801, %v4800
        %v4830 = vpack.c.b16 %v4803, %v4802
        %v4831 = vpack.c.b16 %v4805, %v4804
        %v4832 = vpack.c.b16 %v4807, %v4806
        %v4833 = vpack.c.b16 %v4809, %v4808
        %v4834 = vpack.c.b16 %v4811, %v4810
        %v4835 = vpack.c.b16 %v4813, %v4812
        %v4836 = vpack.c.b16 %v4815, %v4814
        %v4837 = vpack.c.b16 %v4817, %v4816
        %v4838 = vpack.c.b16 %v4819, %v4818
        %v4839 = vpack.c.b16 %v4821, %v4820
        %v4840 = vpack.c.b16 %v4823, %v4822
        %v4841 = vpack.c.b16 %v4825, %v4824
        %4858 = vmatpush.bf16.msra.mxu0 %v4833
        %4859 = vmatpush.bf16.msra.mxu0 %v4832
        %4860 = vmatpush.bf16.msra.mxu0 %v4831
        %4861 = vmatpush.bf16.msra.mxu0 %v4830
        %4862 = vmatpush.bf16.msra.mxu0 %v4829
        %4863 = vmatpush.bf16.msra.mxu0 %v4828
        %4864 = vmatpush.bf16.msra.mxu0 %v4827
        %4865 = vmatpush.bf16.msra.mxu0 %v4826
        %4866 = vmatmul.bf16.gmra.mxu0 %v2270
        %v4867 = vpop.f32.mrf.mxu0
        %v4868 = vadd.f32 %v3278, %v4867
        %v4869 = vpop.f32.mrf.mxu0
        %4870 = vdwg.mxu0
        %4871 = vmatpush.bf16.msra.mxu0 %v4841
        %4872 = vmatpush.bf16.msra.mxu0 %v4840
        %4873 = vmatpush.bf16.msra.mxu0 %v4839
        %4874 = vmatpush.bf16.msra.mxu0 %v4838
        %4875 = vmatpush.bf16.msra.mxu0 %v4837
        %4876 = vmatpush.bf16.msra.mxu0 %v4836
        %4877 = vmatpush.bf16.msra.mxu0 %v4835
        %4878 = vmatpush.bf16.msra.mxu0 %v4834
        %4879 = vmatmul.bf16.gmra.mxu0 %v2271
        %v4880 = vpop.f32.mrf.mxu0
        %v4881 = vadd.f32 %v4868, %v4880
        %v4882 = vpop.f32.mrf.mxu0
        %4883 = vdwg.mxu0
        %v4916 = vunpack.c.l.b16 %v2090
        %v4917 = vunpack.c.l.b16 %v2091
        %v4918 = vunpack.c.l.b16 %v2092
        %v4919 = vunpack.c.l.b16 %v2093
        %v4920 = vunpack.c.l.b16 %v2094
        %v4921 = vunpack.c.l.b16 %v2095
        %v4922 = vunpack.c.l.b16 %v2096
        %v4923 = vunpack.c.l.b16 %v2097
        %v4924 = vunpack.c.l.b16 %v2098
        %v4925 = vunpack.c.l.b16 %v2099
        %v4926 = vunpack.c.l.b16 %v2100
        %v4927 = vunpack.c.l.b16 %v2101
        %v4928 = vunpack.c.l.b16 %v2102
        %v4929 = vunpack.c.l.b16 %v2103
        %v4930 = vunpack.c.l.b16 %v2104
        %v4931 = vunpack.c.l.b16 %v2105
        %v4932 = vunpack.c.l.b16 %v2106
        %v4933 = vunpack.c.l.b16 %v2107
        %v4934 = vunpack.c.l.b16 %v2108
        %v4935 = vunpack.c.l.b16 %v2109
        %v4936 = vunpack.c.l.b16 %v2110
        %v4937 = vunpack.c.l.b16 %v2111
        %v4938 = vunpack.c.l.b16 %v2112
        %v4939 = vunpack.c.l.b16 %v2113
        %v4940 = vunpack.c.l.b16 %v2114
        %v4941 = vunpack.c.l.b16 %v2115
        %v4942 = vunpack.c.l.b16 %v2116
        %v4943 = vunpack.c.l.b16 %v2117
        %v4944 = vunpack.c.l.b16 %v2118
        %v4945 = vunpack.c.l.b16 %v2119
        %v4946 = vunpack.c.l.b16 %v2120
        %v4947 = vunpack.c.l.b16 %v2121
        %v4948 = vpack.c.b16 %v4917, %v4916
        %v4949 = vpack.c.b16 %v4919, %v4918
        %v4950 = vpack.c.b16 %v4921, %v4920
        %v4951 = vpack.c.b16 %v4923, %v4922
        %v4952 = vpack.c.b16 %v4925, %v4924
        %v4953 = vpack.c.b16 %v4927, %v4926
        %v4954 = vpack.c.b16 %v4929, %v4928
        %v4955 = vpack.c.b16 %v4931, %v4930
        %v4956 = vpack.c.b16 %v4933, %v4932
        %v4957 = vpack.c.b16 %v4935, %v4934
        %v4958 = vpack.c.b16 %v4937, %v4936
        %v4959 = vpack.c.b16 %v4939, %v4938
        %v4960 = vpack.c.b16 %v4941, %v4940
        %v4961 = vpack.c.b16 %v4943, %v4942
        %v4962 = vpack.c.b16 %v4945, %v4944
        %v4963 = vpack.c.b16 %v4947, %v4946
        %4980 = vmatpush.bf16.msra.mxu0 %v4955
        %4981 = vmatpush.bf16.msra.mxu0 %v4954
        %4982 = vmatpush.bf16.msra.mxu0 %v4953
        %4983 = vmatpush.bf16.msra.mxu0 %v4952
        %4984 = vmatpush.bf16.msra.mxu0 %v4951
        %4985 = vmatpush.bf16.msra.mxu0 %v4950
        %4986 = vmatpush.bf16.msra.mxu0 %v4949
        %4987 = vmatpush.bf16.msra.mxu0 %v4948
        %4988 = vmatmul.bf16.gmra.mxu0 %v2270
        %v4989 = vpop.f32.mrf.mxu0
        %v4990 = vadd.f32 %v3279, %v4989
        %v4991 = vpop.f32.mrf.mxu0
        %4992 = vdwg.mxu0
        %4993 = vmatpush.bf16.msra.mxu0 %v4963
        %4994 = vmatpush.bf16.msra.mxu0 %v4962
        %4995 = vmatpush.bf16.msra.mxu0 %v4961
        %4996 = vmatpush.bf16.msra.mxu0 %v4960
        %4997 = vmatpush.bf16.msra.mxu0 %v4959
        %4998 = vmatpush.bf16.msra.mxu0 %v4958
        %4999 = vmatpush.bf16.msra.mxu0 %v4957
        %5000 = vmatpush.bf16.msra.mxu0 %v4956
        %5001 = vmatmul.bf16.gmra.mxu0 %v2271
        %v5002 = vpop.f32.mrf.mxu0
        %v5003 = vadd.f32 %v4990, %v5002
        %v5004 = vpop.f32.mrf.mxu0
        %5005 = vdwg.mxu0
        %v5038 = vunpack.c.l.b16 %v2122
        %v5039 = vunpack.c.l.b16 %v2123
        %v5040 = vunpack.c.l.b16 %v2124
        %v5041 = vunpack.c.l.b16 %v2125
        %v5042 = vunpack.c.l.b16 %v2126
        %v5043 = vunpack.c.l.b16 %v2127
        %v5044 = vunpack.c.l.b16 %v2128
        %v5045 = vunpack.c.l.b16 %v2129
        %v5046 = vunpack.c.l.b16 %v2130
        %v5047 = vunpack.c.l.b16 %v2131
        %v5048 = vunpack.c.l.b16 %v2132
        %v5049 = vunpack.c.l.b16 %v2133
        %v5050 = vunpack.c.l.b16 %v2134
        %v5051 = vunpack.c.l.b16 %v2135
        %v5052 = vunpack.c.l.b16 %v2136
        %v5053 = vunpack.c.l.b16 %v2137
        %v5054 = vunpack.c.l.b16 %v2138
        %v5055 = vunpack.c.l.b16 %v2139
        %v5056 = vunpack.c.l.b16 %v2140
        %v5057 = vunpack.c.l.b16 %v2141
        %v5058 = vunpack.c.l.b16 %v2142
        %v5059 = vunpack.c.l.b16 %v2143
        %v5060 = vunpack.c.l.b16 %v2144
        %v5061 = vunpack.c.l.b16 %v2145
        %v5062 = vunpack.c.l.b16 %v2146
        %v5063 = vunpack.c.l.b16 %v2147
        %v5064 = vunpack.c.l.b16 %v2148
        %v5065 = vunpack.c.l.b16 %v2149
        %v5066 = vunpack.c.l.b16 %v2150
        %v5067 = vunpack.c.l.b16 %v2151
        %v5068 = vunpack.c.l.b16 %v2152
        %v5069 = vunpack.c.l.b16 %v2153
        %v5070 = vpack.c.b16 %v5039, %v5038
        %v5071 = vpack.c.b16 %v5041, %v5040
        %v5072 = vpack.c.b16 %v5043, %v5042
        %v5073 = vpack.c.b16 %v5045, %v5044
        %v5074 = vpack.c.b16 %v5047, %v5046
        %v5075 = vpack.c.b16 %v5049, %v5048
        %v5076 = vpack.c.b16 %v5051, %v5050
        %v5077 = vpack.c.b16 %v5053, %v5052
        %v5078 = vpack.c.b16 %v5055, %v5054
        %v5079 = vpack.c.b16 %v5057, %v5056
        %v5080 = vpack.c.b16 %v5059, %v5058
        %v5081 = vpack.c.b16 %v5061, %v5060
        %v5082 = vpack.c.b16 %v5063, %v5062
        %v5083 = vpack.c.b16 %v5065, %v5064
        %v5084 = vpack.c.b16 %v5067, %v5066
        %v5085 = vpack.c.b16 %v5069, %v5068
        %5102 = vmatpush.bf16.msra.mxu0 %v5077
        %5103 = vmatpush.bf16.msra.mxu0 %v5076
        %5104 = vmatpush.bf16.msra.mxu0 %v5075
        %5105 = vmatpush.bf16.msra.mxu0 %v5074
        %5106 = vmatpush.bf16.msra.mxu0 %v5073
        %5107 = vmatpush.bf16.msra.mxu0 %v5072
        %5108 = vmatpush.bf16.msra.mxu0 %v5071
        %5109 = vmatpush.bf16.msra.mxu0 %v5070
        %5110 = vmatmul.bf16.gmra.mxu0 %v2270
        %v5111 = vpop.f32.mrf.mxu0
        %v5112 = vadd.f32 %v3280, %v5111
        %v5113 = vpop.f32.mrf.mxu0
        %5114 = vdwg.mxu0
        %5115 = vmatpush.bf16.msra.mxu0 %v5085
        %5116 = vmatpush.bf16.msra.mxu0 %v5084
        %5117 = vmatpush.bf16.msra.mxu0 %v5083
        %5118 = vmatpush.bf16.msra.mxu0 %v5082
        %5119 = vmatpush.bf16.msra.mxu0 %v5081
        %5120 = vmatpush.bf16.msra.mxu0 %v5080
        %5121 = vmatpush.bf16.msra.mxu0 %v5079
        %5122 = vmatpush.bf16.msra.mxu0 %v5078
        %5123 = vmatmul.bf16.gmra.mxu0 %v2271
        %v5124 = vpop.f32.mrf.mxu0
        %v5125 = vadd.f32 %v5112, %v5124
        %v5126 = vpop.f32.mrf.mxu0
        %5127 = vdwg.mxu0
        %v5160 = vunpack.c.l.b16 %v2154
        %v5161 = vunpack.c.l.b16 %v2155
        %v5162 = vunpack.c.l.b16 %v2156
        %v5163 = vunpack.c.l.b16 %v2157
        %v5164 = vunpack.c.l.b16 %v2158
        %v5165 = vunpack.c.l.b16 %v2159
        %v5166 = vunpack.c.l.b16 %v2160
        %v5167 = vunpack.c.l.b16 %v2161
        %v5168 = vunpack.c.l.b16 %v2162
        %v5169 = vunpack.c.l.b16 %v2163
        %v5170 = vunpack.c.l.b16 %v2164
        %v5171 = vunpack.c.l.b16 %v2165
        %v5172 = vunpack.c.l.b16 %v2166
        %v5173 = vunpack.c.l.b16 %v2167
        %v5174 = vunpack.c.l.b16 %v2168
        %v5175 = vunpack.c.l.b16 %v2169
        %v5176 = vunpack.c.l.b16 %v2170
        %v5177 = vunpack.c.l.b16 %v2171
        %v5178 = vunpack.c.l.b16 %v2172
        %v5179 = vunpack.c.l.b16 %v2173
        %v5180 = vunpack.c.l.b16 %v2174
        %v5181 = vunpack.c.l.b16 %v2175
        %v5182 = vunpack.c.l.b16 %v2176
        %v5183 = vunpack.c.l.b16 %v2177
        %v5184 = vunpack.c.l.b16 %v2178
        %v5185 = vunpack.c.l.b16 %v2179
        %v5186 = vunpack.c.l.b16 %v2180
        %v5187 = vunpack.c.l.b16 %v2181
        %v5188 = vunpack.c.l.b16 %v2182
        %v5189 = vunpack.c.l.b16 %v2183
        %v5190 = vunpack.c.l.b16 %v2184
        %v5191 = vunpack.c.l.b16 %v2185
        %v5192 = vpack.c.b16 %v5161, %v5160
        %v5193 = vpack.c.b16 %v5163, %v5162
        %v5194 = vpack.c.b16 %v5165, %v5164
        %v5195 = vpack.c.b16 %v5167, %v5166
        %v5196 = vpack.c.b16 %v5169, %v5168
        %v5197 = vpack.c.b16 %v5171, %v5170
        %v5198 = vpack.c.b16 %v5173, %v5172
        %v5199 = vpack.c.b16 %v5175, %v5174
        %v5200 = vpack.c.b16 %v5177, %v5176
        %v5201 = vpack.c.b16 %v5179, %v5178
        %v5202 = vpack.c.b16 %v5181, %v5180
        %v5203 = vpack.c.b16 %v5183, %v5182
        %v5204 = vpack.c.b16 %v5185, %v5184
        %v5205 = vpack.c.b16 %v5187, %v5186
        %v5206 = vpack.c.b16 %v5189, %v5188
        %v5207 = vpack.c.b16 %v5191, %v5190
        %5224 = vmatpush.bf16.msra.mxu0 %v5199
        %5225 = vmatpush.bf16.msra.mxu0 %v5198
        %5226 = vmatpush.bf16.msra.mxu0 %v5197
        %5227 = vmatpush.bf16.msra.mxu0 %v5196
        %5228 = vmatpush.bf16.msra.mxu0 %v5195
        %5229 = vmatpush.bf16.msra.mxu0 %v5194
        %5230 = vmatpush.bf16.msra.mxu0 %v5193
        %5231 = vmatpush.bf16.msra.mxu0 %v5192
        %5232 = vmatmul.bf16.gmra.mxu0 %v2270
        %v5233 = vpop.f32.mrf.mxu0
        %v5234 = vadd.f32 %v3281, %v5233
        %v5235 = vpop.f32.mrf.mxu0
        %5236 = vdwg.mxu0
        %5237 = vmatpush.bf16.msra.mxu0 %v5207
        %5238 = vmatpush.bf16.msra.mxu0 %v5206
        %5239 = vmatpush.bf16.msra.mxu0 %v5205
        %5240 = vmatpush.bf16.msra.mxu0 %v5204
        %5241 = vmatpush.bf16.msra.mxu0 %v5203
        %5242 = vmatpush.bf16.msra.mxu0 %v5202
        %5243 = vmatpush.bf16.msra.mxu0 %v5201
        %5244 = vmatpush.bf16.msra.mxu0 %v5200
        %5245 = vmatmul.bf16.gmra.mxu0 %v2271
        %v5246 = vpop.f32.mrf.mxu0
        %v5247 = vadd.f32 %v5234, %v5246
        %v5248 = vpop.f32.mrf.mxu0
        %5249 = vdwg.mxu0
        %v5250 = vpack.c.bf16 %v2393, %v2393
        %v5251 = vpack.c.bf16 %v2515, %v2515
        %v5252 = vpack.c.bf16 %v2637, %v2637
        %v5253 = vpack.c.bf16 %v2759, %v2759
        %v5254 = vpack.c.bf16 %v2881, %v2881
        %v5255 = vpack.c.bf16 %v3003, %v3003
        %v5256 = vpack.c.bf16 %v3125, %v3125
        %v5257 = vpack.c.bf16 %v3247, %v3247
        %v5258 = vpack.c.bf16 %v3417, %v3417
        %v5259 = vpack.c.bf16 %v3539, %v3539
        %v5260 = vpack.c.bf16 %v3661, %v3661
        %v5261 = vpack.c.bf16 %v3783, %v3783
        %v5262 = vpack.c.bf16 %v3905, %v3905
        %v5263 = vpack.c.bf16 %v4027, %v4027
        %v5264 = vpack.c.bf16 %v4149, %v4149
        %v5265 = vpack.c.bf16 %v4271, %v4271
        %vm5266 = vcmask 261120
        %v5268 = vsel %vm5266, %v5250, 0
        %v5271 = vsel %vm5266, %v5258, 0
        %5273 = vmatpush.bf16.xpose.msra.mxu0 0
        %5274 = vmatpush.bf16.xpose.msra.mxu0 0
        %5275 = vmatpush.bf16.xpose.msra.mxu0 0
        %5276 = vmatpush.bf16.xpose.msra.mxu0 0
        %5277 = vmatpush.bf16.xpose.msra.mxu0 0
        %5278 = vmatpush.bf16.xpose.msra.mxu0 0
        %5279 = vmatpush.bf16.xpose.msra.mxu0 0
        %5280 = vmatpush.bf16.xpose.msra.mxu0 %v5271
        %5281 = vmatmul.bf16.gmra.mxu0 %v5268
        %v5282 = vpop.f32.mrf.mxu0
        %v5283 = vadd.f32 0.0, %v5282
        %v5284 = vpop.f32.mrf.mxu0
        %5285 = vdwg.mxu0
        %v5287 = vsel %vm5266, %v5251, 0
        %v5290 = vsel %vm5266, %v5259, 0
        %5292 = vmatpush.bf16.xpose.msra.mxu0 0
        %5293 = vmatpush.bf16.xpose.msra.mxu0 0
        %5294 = vmatpush.bf16.xpose.msra.mxu0 0
        %5295 = vmatpush.bf16.xpose.msra.mxu0 0
        %5296 = vmatpush.bf16.xpose.msra.mxu0 0
        %5297 = vmatpush.bf16.xpose.msra.mxu0 0
        %5298 = vmatpush.bf16.xpose.msra.mxu0 0
        %5299 = vmatpush.bf16.xpose.msra.mxu0 %v5290
        %5300 = vmatmul.bf16.gmra.mxu0 %v5287
        %v5301 = vpop.f32.mrf.mxu0
        %v5302 = vadd.f32 0.0, %v5301
        %v5303 = vpop.f32.mrf.mxu0
        %5304 = vdwg.mxu0
        %v5306 = vsel %vm5266, %v5252, 0
        %v5309 = vsel %vm5266, %v5260, 0
        %5311 = vmatpush.bf16.xpose.msra.mxu0 0
        %5312 = vmatpush.bf16.xpose.msra.mxu0 0
        %5313 = vmatpush.bf16.xpose.msra.mxu0 0
        %5314 = vmatpush.bf16.xpose.msra.mxu0 0
        %5315 = vmatpush.bf16.xpose.msra.mxu0 0
        %5316 = vmatpush.bf16.xpose.msra.mxu0 0
        %5317 = vmatpush.bf16.xpose.msra.mxu0 0
        %5318 = vmatpush.bf16.xpose.msra.mxu0 %v5309
        %5319 = vmatmul.bf16.gmra.mxu0 %v5306
        %v5320 = vpop.f32.mrf.mxu0
        %v5321 = vadd.f32 0.0, %v5320
        %v5322 = vpop.f32.mrf.mxu0
        %5323 = vdwg.mxu0
        %v5325 = vsel %vm5266, %v5253, 0
        %v5328 = vsel %vm5266, %v5261, 0
        %5330 = vmatpush.bf16.xpose.msra.mxu0 0
        %5331 = vmatpush.bf16.xpose.msra.mxu0 0
        %5332 = vmatpush.bf16.xpose.msra.mxu0 0
        %5333 = vmatpush.bf16.xpose.msra.mxu0 0
        %5334 = vmatpush.bf16.xpose.msra.mxu0 0
        %5335 = vmatpush.bf16.xpose.msra.mxu0 0
        %5336 = vmatpush.bf16.xpose.msra.mxu0 0
        %5337 = vmatpush.bf16.xpose.msra.mxu0 %v5328
        %5338 = vmatmul.bf16.gmra.mxu0 %v5325
        %v5339 = vpop.f32.mrf.mxu0
        %v5340 = vadd.f32 0.0, %v5339
        %v5341 = vpop.f32.mrf.mxu0
        %5342 = vdwg.mxu0
        %v5344 = vsel %vm5266, %v5254, 0
        %v5347 = vsel %vm5266, %v5262, 0
        %5349 = vmatpush.bf16.xpose.msra.mxu0 0
        %5350 = vmatpush.bf16.xpose.msra.mxu0 0
        %5351 = vmatpush.bf16.xpose.msra.mxu0 0
        %5352 = vmatpush.bf16.xpose.msra.mxu0 0
        %5353 = vmatpush.bf16.xpose.msra.mxu0 0
        %5354 = vmatpush.bf16.xpose.msra.mxu0 0
        %5355 = vmatpush.bf16.xpose.msra.mxu0 0
        %5356 = vmatpush.bf16.xpose.msra.mxu0 %v5347
        %5357 = vmatmul.bf16.gmra.mxu0 %v5344
        %v5358 = vpop.f32.mrf.mxu0
        %v5359 = vadd.f32 0.0, %v5358
        %v5360 = vpop.f32.mrf.mxu0
        %5361 = vdwg.mxu0
        %v5363 = vsel %vm5266, %v5255, 0
        %v5366 = vsel %vm5266, %v5263, 0
        %5368 = vmatpush.bf16.xpose.msra.mxu0 0
        %5369 = vmatpush.bf16.xpose.msra.mxu0 0
        %5370 = vmatpush.bf16.xpose.msra.mxu0 0
        %5371 = vmatpush.bf16.xpose.msra.mxu0 0
        %5372 = vmatpush.bf16.xpose.msra.mxu0 0
        %5373 = vmatpush.bf16.xpose.msra.mxu0 0
        %5374 = vmatpush.bf16.xpose.msra.mxu0 0
        %5375 = vmatpush.bf16.xpose.msra.mxu0 %v5366
        %5376 = vmatmul.bf16.gmra.mxu0 %v5363
        %v5377 = vpop.f32.mrf.mxu0
        %v5378 = vadd.f32 0.0, %v5377
        %v5379 = vpop.f32.mrf.mxu0
        %5380 = vdwg.mxu0
        %v5382 = vsel %vm5266, %v5256, 0
        %v5385 = vsel %vm5266, %v5264, 0
        %5387 = vmatpush.bf16.xpose.msra.mxu0 0
        %5388 = vmatpush.bf16.xpose.msra.mxu0 0
        %5389 = vmatpush.bf16.xpose.msra.mxu0 0
        %5390 = vmatpush.bf16.xpose.msra.mxu0 0
        %5391 = vmatpush.bf16.xpose.msra.mxu0 0
        %5392 = vmatpush.bf16.xpose.msra.mxu0 0
        %5393 = vmatpush.bf16.xpose.msra.mxu0 0
        %5394 = vmatpush.bf16.xpose.msra.mxu0 %v5385
        %5395 = vmatmul.bf16.gmra.mxu0 %v5382
        %v5396 = vpop.f32.mrf.mxu0
        %v5397 = vadd.f32 0.0, %v5396
        %v5398 = vpop.f32.mrf.mxu0
        %5399 = vdwg.mxu0
        %v5401 = vsel %vm5266, %v5257, 0
        %v5404 = vsel %vm5266, %v5265, 0
        %5406 = vmatpush.bf16.xpose.msra.mxu0 0
        %5407 = vmatpush.bf16.xpose.msra.mxu0 0
        %5408 = vmatpush.bf16.xpose.msra.mxu0 0
        %5409 = vmatpush.bf16.xpose.msra.mxu0 0
        %5410 = vmatpush.bf16.xpose.msra.mxu0 0
        %5411 = vmatpush.bf16.xpose.msra.mxu0 0
        %5412 = vmatpush.bf16.xpose.msra.mxu0 0
        %5413 = vmatpush.bf16.xpose.msra.mxu0 %v5404
        %5414 = vmatmul.bf16.gmra.mxu0 %v5401
        %v5415 = vpop.f32.mrf.mxu0
        %v5416 = vadd.f32 0.0, %v5415
        %v5417 = vpop.f32.mrf.mxu0
        %5418 = vdwg.mxu0
        %v5419 = vmul.f32 %v5283, 0.17677669
        %v5420 = vmul.f32 %v5302, 0.17677669
        %v5421 = vmul.f32 %v5321, 0.17677669
        %v5422 = vmul.f32 %v5340, 0.17677669
        %v5423 = vmul.f32 %v5359, 0.17677669
        %v5424 = vmul.f32 %v5378, 0.17677669
        %v5425 = vmul.f32 %v5397, 0.17677669
        %v5426 = vmul.f32 %v5416, 0.17677669
        %vm5427 = vcmask 64512
        %v5428 = vsel %vm5427, %v5419, -inf
        %5429 = vmax.xlane.f32.xlu0 %v5428
        %v5430 = vpop.xlane.xlu0 %5429
        %v5431 = vsel %vm5427, %v5420, -inf
        %5432 = vmax.xlane.f32.xlu0 %v5431
        %v5433 = vpop.xlane.xlu0 %5432
        %v5434 = vsel %vm5427, %v5421, -inf
        %5435 = vmax.xlane.f32.xlu0 %v5434
        %v5436 = vpop.xlane.xlu0 %5435
        %v5437 = vsel %vm5427, %v5422, -inf
        %5438 = vmax.xlane.f32.xlu0 %v5437
        %v5439 = vpop.xlane.xlu0 %5438
        %v5440 = vsel %vm5427, %v5423, -inf
        %5441 = vmax.xlane.f32.xlu0 %v5440
        %v5442 = vpop.xlane.xlu0 %5441
        %v5443 = vsel %vm5427, %v5424, -inf
        %5444 = vmax.xlane.f32.xlu0 %v5443
        %v5445 = vpop.xlane.xlu0 %5444
        %v5446 = vsel %vm5427, %v5425, -inf
        %5447 = vmax.xlane.f32.xlu0 %v5446
        %v5448 = vpop.xlane.xlu0 %5447
        %v5449 = vsel %vm5427, %v5426, -inf
        %5450 = vmax.xlane.f32.xlu0 %v5449
        %v5451 = vpop.xlane.xlu0 %5450
        %v5452 = vsub.f32 %v5419, %v5430
        %v5453 = vsub.f32 %v5420, %v5433
        %v5454 = vsub.f32 %v5421, %v5436
        %v5455 = vsub.f32 %v5422, %v5439
        %v5456 = vsub.f32 %v5423, %v5442
        %v5457 = vsub.f32 %v5424, %v5445
        %v5458 = vsub.f32 %v5425, %v5448
        %v5459 = vsub.f32 %v5426, %v5451
        %v5460 = vmul.f32 %v5452, 1.442695
        %v5461 = vpow.pop %v5460
        %v5462 = vmul.f32 %v5453, 1.442695
        %v5463 = vpow.pop %v5462
        %v5464 = vmul.f32 %v5454, 1.442695
        %v5465 = vpow.pop %v5464
        %v5466 = vmul.f32 %v5455, 1.442695
        %v5467 = vpow.pop %v5466
        %v5468 = vmul.f32 %v5456, 1.442695
        %v5469 = vpow.pop %v5468
        %v5470 = vmul.f32 %v5457, 1.442695
        %v5471 = vpow.pop %v5470
        %v5472 = vmul.f32 %v5458, 1.442695
        %v5473 = vpow.pop %v5472
        %v5474 = vmul.f32 %v5459, 1.442695
        %v5475 = vpow.pop %v5474
        %v5476 = vsel %vm5427, %v5461, 0.0
        %5477 = vadd.xlane.f32.xlu0 %v5476
        %v5478 = vpop.xlane.xlu0 %5477
        %v5479 = vsel %vm5427, %v5463, 0.0
        %5480 = vadd.xlane.f32.xlu0 %v5479
        %v5481 = vpop.xlane.xlu0 %5480
        %v5482 = vsel %vm5427, %v5465, 0.0
        %5483 = vadd.xlane.f32.xlu0 %v5482
        %v5484 = vpop.xlane.xlu0 %5483
        %v5485 = vsel %vm5427, %v5467, 0.0
        %5486 = vadd.xlane.f32.xlu0 %v5485
        %v5487 = vpop.xlane.xlu0 %5486
        %v5488 = vsel %vm5427, %v5469, 0.0
        %5489 = vadd.xlane.f32.xlu0 %v5488
        %v5490 = vpop.xlane.xlu0 %5489
        %v5491 = vsel %vm5427, %v5471, 0.0
        %5492 = vadd.xlane.f32.xlu0 %v5491
        %v5493 = vpop.xlane.xlu0 %5492
        %v5494 = vsel %vm5427, %v5473, 0.0
        %5495 = vadd.xlane.f32.xlu0 %v5494
        %v5496 = vpop.xlane.xlu0 %5495
        %v5497 = vsel %vm5427, %v5475, 0.0
        %5498 = vadd.xlane.f32.xlu0 %v5497
        %v5499 = vpop.xlane.xlu0 %5498
        %v5500 = vrcp.pop %v5478
        %v5501 = vrcp.pop %v5481
        %v5502 = vrcp.pop %v5484
        %v5503 = vrcp.pop %v5487
        %v5504 = vrcp.pop %v5490
        %v5505 = vrcp.pop %v5493
        %v5506 = vrcp.pop %v5496
        %v5507 = vrcp.pop %v5499
        %v5508 = vmul.f32 %v5461, %v5500
        %v5509 = vmul.f32 %v5463, %v5501
        %v5510 = vmul.f32 %v5465, %v5502
        %v5511 = vmul.f32 %v5467, %v5503
        %v5512 = vmul.f32 %v5469, %v5504
        %v5513 = vmul.f32 %v5471, %v5505
        %v5514 = vmul.f32 %v5473, %v5506
        %v5515 = vmul.f32 %v5475, %v5507
        %v5516 = vpack.c.bf16 %v5508, %v5508
        %v5517 = vpack.c.bf16 %v5509, %v5509
        %v5518 = vpack.c.bf16 %v5510, %v5510
        %v5519 = vpack.c.bf16 %v5511, %v5511
        %v5520 = vpack.c.bf16 %v5512, %v5512
        %v5521 = vpack.c.bf16 %v5513, %v5513
        %v5522 = vpack.c.bf16 %v5514, %v5514
        %v5523 = vpack.c.bf16 %v5515, %v5515
        %v5524 = vpack.c.bf16 %v4393, %v4393
        %v5525 = vpack.c.bf16 %v4515, %v4515
        %v5526 = vpack.c.bf16 %v4637, %v4637
        %v5527 = vpack.c.bf16 %v4759, %v4759
        %v5528 = vpack.c.bf16 %v4881, %v4881
        %v5529 = vpack.c.bf16 %v5003, %v5003
        %v5530 = vpack.c.bf16 %v5125, %v5125
        %v5531 = vpack.c.bf16 %v5247, %v5247
        %v5533 = vsel %vm5427, %v5516, 0
        %vm5535 = vcmask 1043456
        %v5537 = vsel %vm5535, %v5524, 0
        %5539 = vmatpush.bf16.msra.mxu0 0
        %5540 = vmatpush.bf16.msra.mxu0 0
        %5541 = vmatpush.bf16.msra.mxu0 0
        %5542 = vmatpush.bf16.msra.mxu0 0
        %5543 = vmatpush.bf16.msra.mxu0 0
        %5544 = vmatpush.bf16.msra.mxu0 0
        %5545 = vmatpush.bf16.msra.mxu0 0
        %5546 = vmatpush.bf16.msra.mxu0 %v5537
        %5547 = vmatmul.bf16.gmra.mxu0 %v5533
        %v5548 = vpop.f32.mrf.mxu0
        %v5549 = vadd.f32 0.0, %v5548
        %v5550 = vpop.f32.mrf.mxu0
        %5551 = vdwg.mxu0
        %v5553 = vsel %vm5427, %v5517, 0
        %v5556 = vsel %vm5535, %v5525, 0
        %5558 = vmatpush.bf16.msra.mxu0 0
        %5559 = vmatpush.bf16.msra.mxu0 0
        %5560 = vmatpush.bf16.msra.mxu0 0
        %5561 = vmatpush.bf16.msra.mxu0 0
        %5562 = vmatpush.bf16.msra.mxu0 0
        %5563 = vmatpush.bf16.msra.mxu0 0
        %5564 = vmatpush.bf16.msra.mxu0 0
        %5565 = vmatpush.bf16.msra.mxu0 %v5556
        %5566 = vmatmul.bf16.gmra.mxu0 %v5553
        %v5567 = vpop.f32.mrf.mxu0
        %v5568 = vadd.f32 0.0, %v5567
        %v5569 = vpop.f32.mrf.mxu0
        %5570 = vdwg.mxu0
        %v5572 = vsel %vm5427, %v5518, 0
        %v5575 = vsel %vm5535, %v5526, 0
        %5577 = vmatpush.bf16.msra.mxu0 0
        %5578 = vmatpush.bf16.msra.mxu0 0
        %5579 = vmatpush.bf16.msra.mxu0 0
        %5580 = vmatpush.bf16.msra.mxu0 0
        %5581 = vmatpush.bf16.msra.mxu0 0
        %5582 = vmatpush.bf16.msra.mxu0 0
        %5583 = vmatpush.bf16.msra.mxu0 0
        %5584 = vmatpush.bf16.msra.mxu0 %v5575
        %5585 = vmatmul.bf16.gmra.mxu0 %v5572
        %v5586 = vpop.f32.mrf.mxu0
        %v5587 = vadd.f32 0.0, %v5586
        %v5588 = vpop.f32.mrf.mxu0
        %5589 = vdwg.mxu0
        %v5591 = vsel %vm5427, %v5519, 0
        %v5594 = vsel %vm5535, %v5527, 0
        %5596 = vmatpush.bf16.msra.mxu0 0
        %5597 = vmatpush.bf16.msra.mxu0 0
        %5598 = vmatpush.bf16.msra.mxu0 0
        %5599 = vmatpush.bf16.msra.mxu0 0
        %5600 = vmatpush.bf16.msra.mxu0 0
        %5601 = vmatpush.bf16.msra.mxu0 0
        %5602 = vmatpush.bf16.msra.mxu0 0
        %5603 = vmatpush.bf16.msra.mxu0 %v5594
        %5604 = vmatmul.bf16.gmra.mxu0 %v5591
        %v5605 = vpop.f32.mrf.mxu0
        %v5606 = vadd.f32 0.0, %v5605
        %v5607 = vpop.f32.mrf.mxu0
        %5608 = vdwg.mxu0
        %v5610 = vsel %vm5427, %v5520, 0
        %v5613 = vsel %vm5535, %v5528, 0
        %5615 = vmatpush.bf16.msra.mxu0 0
        %5616 = vmatpush.bf16.msra.mxu0 0
        %5617 = vmatpush.bf16.msra.mxu0 0
        %5618 = vmatpush.bf16.msra.mxu0 0
        %5619 = vmatpush.bf16.msra.mxu0 0
        %5620 = vmatpush.bf16.msra.mxu0 0
        %5621 = vmatpush.bf16.msra.mxu0 0
        %5622 = vmatpush.bf16.msra.mxu0 %v5613
        %5623 = vmatmul.bf16.gmra.mxu0 %v5610
        %v5624 = vpop.f32.mrf.mxu0
        %v5625 = vadd.f32 0.0, %v5624
        %v5626 = vpop.f32.mrf.mxu0
        %5627 = vdwg.mxu0
        %v5629 = vsel %vm5427, %v5521, 0
        %v5632 = vsel %vm5535, %v5529, 0
        %5634 = vmatpush.bf16.msra.mxu0 0
        %5635 = vmatpush.bf16.msra.mxu0 0
        %5636 = vmatpush.bf16.msra.mxu0 0
        %5637 = vmatpush.bf16.msra.mxu0 0
        %5638 = vmatpush.bf16.msra.mxu0 0
        %5639 = vmatpush.bf16.msra.mxu0 0
        %5640 = vmatpush.bf16.msra.mxu0 0
        %5641 = vmatpush.bf16.msra.mxu0 %v5632
        %5642 = vmatmul.bf16.gmra.mxu0 %v5629
        %v5643 = vpop.f32.mrf.mxu0
        %v5644 = vadd.f32 0.0, %v5643
        %v5645 = vpop.f32.mrf.mxu0
        %5646 = vdwg.mxu0
        %v5648 = vsel %vm5427, %v5522, 0
        %v5651 = vsel %vm5535, %v5530, 0
        %5653 = vmatpush.bf16.msra.mxu0 0
        %5654 = vmatpush.bf16.msra.mxu0 0
        %5655 = vmatpush.bf16.msra.mxu0 0
        %5656 = vmatpush.bf16.msra.mxu0 0
        %5657 = vmatpush.bf16.msra.mxu0 0
        %5658 = vmatpush.bf16.msra.mxu0 0
        %5659 = vmatpush.bf16.msra.mxu0 0
        %5660 = vmatpush.bf16.msra.mxu0 %v5651
        %5661 = vmatmul.bf16.gmra.mxu0 %v5648
        %v5662 = vpop.f32.mrf.mxu0
        %v5663 = vadd.f32 0.0, %v5662
        %v5664 = vpop.f32.mrf.mxu0
        %5665 = vdwg.mxu0
        %v5667 = vsel %vm5427, %v5523, 0
        %v5670 = vsel %vm5535, %v5531, 0
        %5672 = vmatpush.bf16.msra.mxu0 0
        %5673 = vmatpush.bf16.msra.mxu0 0
        %5674 = vmatpush.bf16.msra.mxu0 0
        %5675 = vmatpush.bf16.msra.mxu0 0
        %5676 = vmatpush.bf16.msra.mxu0 0
        %5677 = vmatpush.bf16.msra.mxu0 0
        %5678 = vmatpush.bf16.msra.mxu0 0
        %5679 = vmatpush.bf16.msra.mxu0 %v5670
        %5680 = vmatmul.bf16.gmra.mxu0 %v5667
        %v5681 = vpop.f32.mrf.mxu0
        %v5682 = vadd.f32 0.0, %v5681
        %v5683 = vpop.f32.mrf.mxu0
        %5684 = vdwg.mxu0
        %v5685 = vpack.c.bf16 %v5549, %v5549
        %v5686 = vpack.c.bf16 %v5568, %v5568
        %v5687 = vpack.c.bf16 %v5587, %v5587
        %v5688 = vpack.c.bf16 %v5606, %v5606
        %v5689 = vpack.c.bf16 %v5625, %v5625
        %v5690 = vpack.c.bf16 %v5644, %v5644
        %v5691 = vpack.c.bf16 %v5663, %v5663
        %v5692 = vpack.c.bf16 %v5682, %v5682
        %v5697 = vunpack.c.l.b16 %v2210
        %v5698 = vunpack.c.h.b16 %v2210
        %v5699 = vunpack.c.l.b16 %v2211
        %v5700 = vunpack.c.h.b16 %v2211
        %v5701 = vunpack.c.l.b16 %v2212
        %v5702 = vunpack.c.h.b16 %v2212
        %v5703 = vunpack.c.l.b16 %v2213
        %v5704 = vunpack.c.h.b16 %v2213
        %v5705 = vpack.c.b16 %v5699, %v5697
        %v5706 = vpack.c.b16 %v5700, %v5698
        %v5707 = vpack.c.b16 %v5703, %v5701
        %v5708 = vpack.c.b16 %v5704, %v5702
        %v5714 = vsel %vm5266, %v5685, 0
        %5716 = vmatpush.bf16.msra.mxu0 0
        %5717 = vmatpush.bf16.msra.mxu0 0
        %5718 = vmatpush.bf16.msra.mxu0 0
        %5719 = vmatpush.bf16.msra.mxu0 0
        %5720 = vmatpush.bf16.msra.mxu0 0
        %5721 = vmatpush.bf16.msra.mxu0 0
        %5722 = vmatpush.bf16.msra.mxu0 %v5707
        %5723 = vmatpush.bf16.msra.mxu0 %v5705
        %5724 = vmatmul.bf16.gmra.mxu0 %v5714
        %v5725 = vpop.f32.mrf.mxu0
        %v5726 = vadd.f32 0.0, %v5725
        %v5727 = vpop.f32.mrf.mxu0
        %5728 = vdwg.mxu0
        %5729 = vmatpush.bf16.msra.mxu0 0
        %5730 = vmatpush.bf16.msra.mxu0 0
        %5731 = vmatpush.bf16.msra.mxu0 0
        %5732 = vmatpush.bf16.msra.mxu0 0
        %5733 = vmatpush.bf16.msra.mxu0 0
        %5734 = vmatpush.bf16.msra.mxu0 0
        %5735 = vmatpush.bf16.msra.mxu0 %v5708
        %5736 = vmatpush.bf16.msra.mxu0 %v5706
        %5737 = vmatmul.bf16.gmra.mxu0 %v5714
        %v5738 = vpop.f32.mrf.mxu0
        %v5739 = vadd.f32 0.0, %v5738
        %v5740 = vpop.f32.mrf.mxu0
        %5741 = vdwg.mxu0
        %v5746 = vunpack.c.l.b16 %v2214
        %v5747 = vunpack.c.h.b16 %v2214
        %v5748 = vunpack.c.l.b16 %v2215
        %v5749 = vunpack.c.h.b16 %v2215
        %v5750 = vunpack.c.l.b16 %v2216
        %v5751 = vunpack.c.h.b16 %v2216
        %v5752 = vunpack.c.l.b16 %v2217
        %v5753 = vunpack.c.h.b16 %v2217
        %v5754 = vpack.c.b16 %v5748, %v5746
        %v5755 = vpack.c.b16 %v5749, %v5747
        %v5756 = vpack.c.b16 %v5752, %v5750
        %v5757 = vpack.c.b16 %v5753, %v5751
        %v5763 = vsel %vm5266, %v5686, 0
        %5765 = vmatpush.bf16.msra.mxu0 0
        %5766 = vmatpush.bf16.msra.mxu0 0
        %5767 = vmatpush.bf16.msra.mxu0 0
        %5768 = vmatpush.bf16.msra.mxu0 0
        %5769 = vmatpush.bf16.msra.mxu0 0
        %5770 = vmatpush.bf16.msra.mxu0 0
        %5771 = vmatpush.bf16.msra.mxu0 %v5756
        %5772 = vmatpush.bf16.msra.mxu0 %v5754
        %5773 = vmatmul.bf16.gmra.mxu0 %v5763
        %v5774 = vpop.f32.mrf.mxu0
        %v5775 = vadd.f32 0.0, %v5774
        %v5776 = vpop.f32.mrf.mxu0
        %5777 = vdwg.mxu0
        %5778 = vmatpush.bf16.msra.mxu0 0
        %5779 = vmatpush.bf16.msra.mxu0 0
        %5780 = vmatpush.bf16.msra.mxu0 0
        %5781 = vmatpush.bf16.msra.mxu0 0
        %5782 = vmatpush.bf16.msra.mxu0 0
        %5783 = vmatpush.bf16.msra.mxu0 0
        %5784 = vmatpush.bf16.msra.mxu0 %v5757
        %5785 = vmatpush.bf16.msra.mxu0 %v5755
        %5786 = vmatmul.bf16.gmra.mxu0 %v5763
        %v5787 = vpop.f32.mrf.mxu0
        %v5788 = vadd.f32 0.0, %v5787
        %v5789 = vpop.f32.mrf.mxu0
        %5790 = vdwg.mxu0
        %v5795 = vunpack.c.l.b16 %v2218
        %v5796 = vunpack.c.h.b16 %v2218
        %v5797 = vunpack.c.l.b16 %v2219
        %v5798 = vunpack.c.h.b16 %v2219
        %v5799 = vunpack.c.l.b16 %v2220
        %v5800 = vunpack.c.h.b16 %v2220
        %v5801 = vunpack.c.l.b16 %v2221
        %v5802 = vunpack.c.h.b16 %v2221
        %v5803 = vpack.c.b16 %v5797, %v5795
        %v5804 = vpack.c.b16 %v5798, %v5796
        %v5805 = vpack.c.b16 %v5801, %v5799
        %v5806 = vpack.c.b16 %v5802, %v5800
        %v5812 = vsel %vm5266, %v5687, 0
        %5814 = vmatpush.bf16.msra.mxu0 0
        %5815 = vmatpush.bf16.msra.mxu0 0
        %5816 = vmatpush.bf16.msra.mxu0 0
        %5817 = vmatpush.bf16.msra.mxu0 0
        %5818 = vmatpush.bf16.msra.mxu0 0
        %5819 = vmatpush.bf16.msra.mxu0 0
        %5820 = vmatpush.bf16.msra.mxu0 %v5805
        %5821 = vmatpush.bf16.msra.mxu0 %v5803
        %5822 = vmatmul.bf16.gmra.mxu0 %v5812
        %v5823 = vpop.f32.mrf.mxu0
        %v5824 = vadd.f32 0.0, %v5823
        %v5825 = vpop.f32.mrf.mxu0
        %5826 = vdwg.mxu0
        %5827 = vmatpush.bf16.msra.mxu0 0
        %5828 = vmatpush.bf16.msra.mxu0 0
        %5829 = vmatpush.bf16.msra.mxu0 0
        %5830 = vmatpush.bf16.msra.mxu0 0
        %5831 = vmatpush.bf16.msra.mxu0 0
        %5832 = vmatpush.bf16.msra.mxu0 0
        %5833 = vmatpush.bf16.msra.mxu0 %v5806
        %5834 = vmatpush.bf16.msra.mxu0 %v5804
        %5835 = vmatmul.bf16.gmra.mxu0 %v5812
        %v5836 = vpop.f32.mrf.mxu0
        %v5837 = vadd.f32 0.0, %v5836
        %v5838 = vpop.f32.mrf.mxu0
        %5839 = vdwg.mxu0
        %v5844 = vunpack.c.l.b16 %v2222
        %v5845 = vunpack.c.h.b16 %v2222
        %v5846 = vunpack.c.l.b16 %v2223
        %v5847 = vunpack.c.h.b16 %v2223
        %v5848 = vunpack.c.l.b16 %v2224
        %v5849 = vunpack.c.h.b16 %v2224
        %v5850 = vunpack.c.l.b16 %v2225
        %v5851 = vunpack.c.h.b16 %v2225
        %v5852 = vpack.c.b16 %v5846, %v5844
        %v5853 = vpack.c.b16 %v5847, %v5845
        %v5854 = vpack.c.b16 %v5850, %v5848
        %v5855 = vpack.c.b16 %v5851, %v5849
        %v5861 = vsel %vm5266, %v5688, 0
        %5863 = vmatpush.bf16.msra.mxu0 0
        %5864 = vmatpush.bf16.msra.mxu0 0
        %5865 = vmatpush.bf16.msra.mxu0 0
        %5866 = vmatpush.bf16.msra.mxu0 0
        %5867 = vmatpush.bf16.msra.mxu0 0
        %5868 = vmatpush.bf16.msra.mxu0 0
        %5869 = vmatpush.bf16.msra.mxu0 %v5854
        %5870 = vmatpush.bf16.msra.mxu0 %v5852
        %5871 = vmatmul.bf16.gmra.mxu0 %v5861
        %v5872 = vpop.f32.mrf.mxu0
        %v5873 = vadd.f32 0.0, %v5872
        %v5874 = vpop.f32.mrf.mxu0
        %5875 = vdwg.mxu0
        %5876 = vmatpush.bf16.msra.mxu0 0
        %5877 = vmatpush.bf16.msra.mxu0 0
        %5878 = vmatpush.bf16.msra.mxu0 0
        %5879 = vmatpush.bf16.msra.mxu0 0
        %5880 = vmatpush.bf16.msra.mxu0 0
        %5881 = vmatpush.bf16.msra.mxu0 0
        %5882 = vmatpush.bf16.msra.mxu0 %v5855
        %5883 = vmatpush.bf16.msra.mxu0 %v5853
        %5884 = vmatmul.bf16.gmra.mxu0 %v5861
        %v5885 = vpop.f32.mrf.mxu0
        %v5886 = vadd.f32 0.0, %v5885
        %v5887 = vpop.f32.mrf.mxu0
        %5888 = vdwg.mxu0
        %v5893 = vunpack.c.l.b16 %v2226
        %v5894 = vunpack.c.h.b16 %v2226
        %v5895 = vunpack.c.l.b16 %v2227
        %v5896 = vunpack.c.h.b16 %v2227
        %v5897 = vunpack.c.l.b16 %v2228
        %v5898 = vunpack.c.h.b16 %v2228
        %v5899 = vunpack.c.l.b16 %v2229
        %v5900 = vunpack.c.h.b16 %v2229
        %v5901 = vpack.c.b16 %v5895, %v5893
        %v5902 = vpack.c.b16 %v5896, %v5894
        %v5903 = vpack.c.b16 %v5899, %v5897
        %v5904 = vpack.c.b16 %v5900, %v5898
        %v5910 = vsel %vm5266, %v5689, 0
        %5912 = vmatpush.bf16.msra.mxu0 0
        %5913 = vmatpush.bf16.msra.mxu0 0
        %5914 = vmatpush.bf16.msra.mxu0 0
        %5915 = vmatpush.bf16.msra.mxu0 0
        %5916 = vmatpush.bf16.msra.mxu0 0
        %5917 = vmatpush.bf16.msra.mxu0 0
        %5918 = vmatpush.bf16.msra.mxu0 %v5903
        %5919 = vmatpush.bf16.msra.mxu0 %v5901
        %5920 = vmatmul.bf16.gmra.mxu0 %v5910
        %v5921 = vpop.f32.mrf.mxu0
        %v5922 = vadd.f32 0.0, %v5921
        %v5923 = vpop.f32.mrf.mxu0
        %5924 = vdwg.mxu0
        %5925 = vmatpush.bf16.msra.mxu0 0
        %5926 = vmatpush.bf16.msra.mxu0 0
        %5927 = vmatpush.bf16.msra.mxu0 0
        %5928 = vmatpush.bf16.msra.mxu0 0
        %5929 = vmatpush.bf16.msra.mxu0 0
        %5930 = vmatpush.bf16.msra.mxu0 0
        %5931 = vmatpush.bf16.msra.mxu0 %v5904
        %5932 = vmatpush.bf16.msra.mxu0 %v5902
        %5933 = vmatmul.bf16.gmra.mxu0 %v5910
        %v5934 = vpop.f32.mrf.mxu0
        %v5935 = vadd.f32 0.0, %v5934
        %v5936 = vpop.f32.mrf.mxu0
        %5937 = vdwg.mxu0
        %v5942 = vunpack.c.l.b16 %v2230
        %v5943 = vunpack.c.h.b16 %v2230
        %v5944 = vunpack.c.l.b16 %v2231
        %v5945 = vunpack.c.h.b16 %v2231
        %v5946 = vunpack.c.l.b16 %v2232
        %v5947 = vunpack.c.h.b16 %v2232
        %v5948 = vunpack.c.l.b16 %v2233
        %v5949 = vunpack.c.h.b16 %v2233
        %v5950 = vpack.c.b16 %v5944, %v5942
        %v5951 = vpack.c.b16 %v5945, %v5943
        %v5952 = vpack.c.b16 %v5948, %v5946
        %v5953 = vpack.c.b16 %v5949, %v5947
        %v5959 = vsel %vm5266, %v5690, 0
        %5961 = vmatpush.bf16.msra.mxu0 0
        %5962 = vmatpush.bf16.msra.mxu0 0
        %5963 = vmatpush.bf16.msra.mxu0 0
        %5964 = vmatpush.bf16.msra.mxu0 0
        %5965 = vmatpush.bf16.msra.mxu0 0
        %5966 = vmatpush.bf16.msra.mxu0 0
        %5967 = vmatpush.bf16.msra.mxu0 %v5952
        %5968 = vmatpush.bf16.msra.mxu0 %v5950
        %5969 = vmatmul.bf16.gmra.mxu0 %v5959
        %v5970 = vpop.f32.mrf.mxu0
        %v5971 = vadd.f32 0.0, %v5970
        %v5972 = vpop.f32.mrf.mxu0
        %5973 = vdwg.mxu0
        %5974 = vmatpush.bf16.msra.mxu0 0
        %5975 = vmatpush.bf16.msra.mxu0 0
        %5976 = vmatpush.bf16.msra.mxu0 0
        %5977 = vmatpush.bf16.msra.mxu0 0
        %5978 = vmatpush.bf16.msra.mxu0 0
        %5979 = vmatpush.bf16.msra.mxu0 0
        %5980 = vmatpush.bf16.msra.mxu0 %v5953
        %5981 = vmatpush.bf16.msra.mxu0 %v5951
        %5982 = vmatmul.bf16.gmra.mxu0 %v5959
        %v5983 = vpop.f32.mrf.mxu0
        %v5984 = vadd.f32 0.0, %v5983
        %v5985 = vpop.f32.mrf.mxu0
        %5986 = vdwg.mxu0
        %v5991 = vunpack.c.l.b16 %v2234
        %v5992 = vunpack.c.h.b16 %v2234
        %v5993 = vunpack.c.l.b16 %v2235
        %v5994 = vunpack.c.h.b16 %v2235
        %v5995 = vunpack.c.l.b16 %v2236
        %v5996 = vunpack.c.h.b16 %v2236
        %v5997 = vunpack.c.l.b16 %v2237
        %v5998 = vunpack.c.h.b16 %v2237
        %v5999 = vpack.c.b16 %v5993, %v5991
        %v6000 = vpack.c.b16 %v5994, %v5992
        %v6001 = vpack.c.b16 %v5997, %v5995
        %v6002 = vpack.c.b16 %v5998, %v5996
        %v6008 = vsel %vm5266, %v5691, 0
        %6010 = vmatpush.bf16.msra.mxu0 0
        %6011 = vmatpush.bf16.msra.mxu0 0
        %6012 = vmatpush.bf16.msra.mxu0 0
        %6013 = vmatpush.bf16.msra.mxu0 0
        %6014 = vmatpush.bf16.msra.mxu0 0
        %6015 = vmatpush.bf16.msra.mxu0 0
        %6016 = vmatpush.bf16.msra.mxu0 %v6001
        %6017 = vmatpush.bf16.msra.mxu0 %v5999
        %6018 = vmatmul.bf16.gmra.mxu0 %v6008
        %v6019 = vpop.f32.mrf.mxu0
        %v6020 = vadd.f32 0.0, %v6019
        %v6021 = vpop.f32.mrf.mxu0
        %6022 = vdwg.mxu0
        %6023 = vmatpush.bf16.msra.mxu0 0
        %6024 = vmatpush.bf16.msra.mxu0 0
        %6025 = vmatpush.bf16.msra.mxu0 0
        %6026 = vmatpush.bf16.msra.mxu0 0
        %6027 = vmatpush.bf16.msra.mxu0 0
        %6028 = vmatpush.bf16.msra.mxu0 0
        %6029 = vmatpush.bf16.msra.mxu0 %v6002
        %6030 = vmatpush.bf16.msra.mxu0 %v6000
        %6031 = vmatmul.bf16.gmra.mxu0 %v6008
        %v6032 = vpop.f32.mrf.mxu0
        %v6033 = vadd.f32 0.0, %v6032
        %v6034 = vpop.f32.mrf.mxu0
        %6035 = vdwg.mxu0
        %v6040 = vunpack.c.l.b16 %v2238
        %v6041 = vunpack.c.h.b16 %v2238
        %v6042 = vunpack.c.l.b16 %v2239
        %v6043 = vunpack.c.h.b16 %v2239
        %v6044 = vunpack.c.l.b16 %v2240
        %v6045 = vunpack.c.h.b16 %v2240
        %v6046 = vunpack.c.l.b16 %v2241
        %v6047 = vunpack.c.h.b16 %v2241
        %v6048 = vpack.c.b16 %v6042, %v6040
        %v6049 = vpack.c.b16 %v6043, %v6041
        %v6050 = vpack.c.b16 %v6046, %v6044
        %v6051 = vpack.c.b16 %v6047, %v6045
        %v6057 = vsel %vm5266, %v5692, 0
        %6059 = vmatpush.bf16.msra.mxu0 0
        %6060 = vmatpush.bf16.msra.mxu0 0
        %6061 = vmatpush.bf16.msra.mxu0 0
        %6062 = vmatpush.bf16.msra.mxu0 0
        %6063 = vmatpush.bf16.msra.mxu0 0
        %6064 = vmatpush.bf16.msra.mxu0 0
        %6065 = vmatpush.bf16.msra.mxu0 %v6050
        %6066 = vmatpush.bf16.msra.mxu0 %v6048
        %6067 = vmatmul.bf16.gmra.mxu0 %v6057
        %v6068 = vpop.f32.mrf.mxu0
        %v6069 = vadd.f32 0.0, %v6068
        %v6070 = vpop.f32.mrf.mxu0
        %6071 = vdwg.mxu0
        %6072 = vmatpush.bf16.msra.mxu0 0
        %6073 = vmatpush.bf16.msra.mxu0 0
        %6074 = vmatpush.bf16.msra.mxu0 0
        %6075 = vmatpush.bf16.msra.mxu0 0
        %6076 = vmatpush.bf16.msra.mxu0 0
        %6077 = vmatpush.bf16.msra.mxu0 0
        %6078 = vmatpush.bf16.msra.mxu0 %v6051
        %6079 = vmatpush.bf16.msra.mxu0 %v6049
        %6080 = vmatmul.bf16.gmra.mxu0 %v6057
        %v6081 = vpop.f32.mrf.mxu0
        %v6082 = vadd.f32 0.0, %v6081
        %v6083 = vpop.f32.mrf.mxu0
        %6084 = vdwg.mxu0
        %v6085 = vadd.f32 %v5726, %v5775
        %v6086 = vadd.f32 %v6085, %v5824
        %v6087 = vadd.f32 %v6086, %v5873
        %v6088 = vadd.f32 %v6087, %v5922
        %v6089 = vadd.f32 %v6088, %v5971
        %v6090 = vadd.f32 %v6089, %v6020
        %v6091 = vadd.f32 %v6090, %v6069
        %v6092 = vadd.f32 %v5739, %v5788
        %v6093 = vadd.f32 %v6092, %v5837
        %v6094 = vadd.f32 %v6093, %v5886
        %v6095 = vadd.f32 %v6094, %v5935
        %v6096 = vadd.f32 %v6095, %v5984
        %v6097 = vadd.f32 %v6096, %v6033
        %v6098 = vadd.f32 %v6097, %v6082
        %v6099 = vld [vmem:[%s1035] sm:$0x3]
        %v6101 = vperm.slane %v6099, 0
        %v6102 = vperm.slane %v6099, 1
        %v6105 = vadd.f32 %v6091, %v6101
        %v6106 = vadd.f32 %v6098, %v6102
        %v6107 = vadd.f32 %v1413, %v6105
        %v6108 = vadd.f32 %v1414, %v6106
        %v6109 = vadd.f32 %v6107, %v6108
        %6110 = vadd.xlane.f32.xlu0 %v6109
        %v6111 = vpop.xlane.xlu0 %6110
        %v6112 = vrcp.pop 256.0
        %v6113 = vmul.f32 256.0, %v6112
        %v6114 = vsub.f32 1.0, %v6113
        %v6115 = vmul.f32 %v6112, %v6114
        %v6116 = vadd.f32 %v6112, %v6115
        %vm6117 = vweird.f32 %v6112
        %v6118 = vsel %vm6117, %v6112, %v6116
        %v6119 = vmul.f32 %v6111, %v6118
        %v6120 = vsub.f32 %v6107, %v6119
        %v6121 = vsub.f32 %v6108, %v6119
        %v6122 = vmul.f32 %v6120, %v6120
        %v6123 = vmul.f32 %v6121, %v6121
        %v6124 = vadd.f32 %v6122, %v6123
        %6125 = vadd.xlane.f32.xlu0 %v6124
        %v6126 = vpop.xlane.xlu0 %6125
        %v6127 = vmul.f32 %v6126, %v6118
        %v6128 = vadd.f32 %v6127, 1e-05
        %v6129 = vrsqrt.pop %v6128
        %v6130 = vmul.f32 %v6129, %v6128
        %v6131 = vmul.f32 %v6130, %v6129
        %v6132 = vmul.f32 0.5, %v6131
        %v6133 = vsub.f32 1.5, %v6132
        %v6134 = vmul.f32 %v6129, %v6133
        %vm6135 = vweird.f32 %v6128
        %vm6136 = vweird.f32 %v6129
        %vm6137 = vmor %vm6135, %vm6136
        %v6138 = vsel %vm6137, %v6129, %v6134
        %v6139 = vmul.f32 %v6120, %v6138
        %v6140 = vmul.f32 %v6121, %v6138
        %v6142 = vperm.slane %v1416, 0
        %v6143 = vperm.slane %v1416, 4
        %v6146 = vperm.slane %v6142, 0
        %v6147 = vperm.slane %v6143, 0
        %v6148 = vmul.f32 %v6139, %v6146
        %v6149 = vmul.f32 %v6140, %v6147
        %v6151 = vperm.slane %v1417, 0
        %v6152 = vperm.slane %v1417, 4
        %v6155 = vperm.slane %v6151, 0
        %v6156 = vperm.slane %v6152, 0
        %v6157 = vadd.f32 %v6148, %v6155
        %v6158 = vadd.f32 %v6149, %v6156
        %v6159 = vld [vmem:[%s1040] sm:$0xf]
        %v6160 = vld [vmem:[%s1040 + $0x4] sm:$0xf]
        %v6161 = vld [vmem:[%s1040 + $0x8] sm:$0xf]
        %v6162 = vld [vmem:[%s1040 + $0xc] sm:$0xf]
        %v6163 = vld [vmem:[%s1040 + $0x10] sm:$0xf]
        %v6164 = vld [vmem:[%s1040 + $0x14] sm:$0xf]
        %v6165 = vld [vmem:[%s1040 + $0x18] sm:$0xf]
        %v6166 = vld [vmem:[%s1040 + $0x1c] sm:$0xf]
        %v6167 = vld [vmem:[%s1040 + $0x20] sm:$0xf]
        %v6168 = vld [vmem:[%s1040 + $0x24] sm:$0xf]
        %v6169 = vld [vmem:[%s1040 + $0x28] sm:$0xf]
        %v6170 = vld [vmem:[%s1040 + $0x2c] sm:$0xf]
        %v6171 = vld [vmem:[%s1040 + $0x30] sm:$0xf]
        %v6172 = vld [vmem:[%s1040 + $0x34] sm:$0xf]
        %v6173 = vld [vmem:[%s1040 + $0x38] sm:$0xf]
        %v6174 = vld [vmem:[%s1040 + $0x3c] sm:$0xf]
        %v6175 = vld [vmem:[%s1040 + $0x40] sm:$0xf]
        %v6176 = vld [vmem:[%s1040 + $0x44] sm:$0xf]
        %v6177 = vld [vmem:[%s1040 + $0x48] sm:$0xf]
        %v6178 = vld [vmem:[%s1040 + $0x4c] sm:$0xf]
        %v6179 = vld [vmem:[%s1040 + $0x50] sm:$0xf]
        %v6180 = vld [vmem:[%s1040 + $0x54] sm:$0xf]
        %v6181 = vld [vmem:[%s1040 + $0x58] sm:$0xf]
        %v6182 = vld [vmem:[%s1040 + $0x5c] sm:$0xf]
        %v6183 = vld [vmem:[%s1040 + $0x60] sm:$0xf]
        %v6184 = vld [vmem:[%s1040 + $0x64] sm:$0xf]
        %v6185 = vld [vmem:[%s1040 + $0x68] sm:$0xf]
        %v6186 = vld [vmem:[%s1040 + $0x6c] sm:$0xf]
        %v6187 = vld [vmem:[%s1040 + $0x70] sm:$0xf]
        %v6188 = vld [vmem:[%s1040 + $0x74] sm:$0xf]
        %v6189 = vld [vmem:[%s1040 + $0x78] sm:$0xf]
        %v6190 = vld [vmem:[%s1040 + $0x7c] sm:$0xf]
        %v6191 = vld [vmem:[%s1040 + $0x80] sm:$0xf]
        %v6192 = vld [vmem:[%s1040 + $0x84] sm:$0xf]
        %v6193 = vld [vmem:[%s1040 + $0x88] sm:$0xf]
        %v6194 = vld [vmem:[%s1040 + $0x8c] sm:$0xf]
        %v6195 = vld [vmem:[%s1040 + $0x90] sm:$0xf]
        %v6196 = vld [vmem:[%s1040 + $0x94] sm:$0xf]
        %v6197 = vld [vmem:[%s1040 + $0x98] sm:$0xf]
        %v6198 = vld [vmem:[%s1040 + $0x9c] sm:$0xf]
        %v6199 = vld [vmem:[%s1040 + $0xa0] sm:$0xf]
        %v6200 = vld [vmem:[%s1040 + $0xa4] sm:$0xf]
        %v6201 = vld [vmem:[%s1040 + $0xa8] sm:$0xf]
        %v6202 = vld [vmem:[%s1040 + $0xac] sm:$0xf]
        %v6203 = vld [vmem:[%s1040 + $0xb0] sm:$0xf]
        %v6204 = vld [vmem:[%s1040 + $0xb4] sm:$0xf]
        %v6205 = vld [vmem:[%s1040 + $0xb8] sm:$0xf]
        %v6206 = vld [vmem:[%s1040 + $0xbc] sm:$0xf]
        %v6207 = vld [vmem:[%s1040 + $0xc0] sm:$0xf]
        %v6208 = vld [vmem:[%s1040 + $0xc4] sm:$0xf]
        %v6209 = vld [vmem:[%s1040 + $0xc8] sm:$0xf]
        %v6210 = vld [vmem:[%s1040 + $0xcc] sm:$0xf]
        %v6211 = vld [vmem:[%s1040 + $0xd0] sm:$0xf]
        %v6212 = vld [vmem:[%s1040 + $0xd4] sm:$0xf]
        %v6213 = vld [vmem:[%s1040 + $0xd8] sm:$0xf]
        %v6214 = vld [vmem:[%s1040 + $0xdc] sm:$0xf]
        %v6215 = vld [vmem:[%s1040 + $0xe0] sm:$0xf]
        %v6216 = vld [vmem:[%s1040 + $0xe4] sm:$0xf]
        %v6217 = vld [vmem:[%s1040 + $0xe8] sm:$0xf]
        %v6218 = vld [vmem:[%s1040 + $0xec] sm:$0xf]
        %v6219 = vld [vmem:[%s1040 + $0xf0] sm:$0xf]
        %v6220 = vld [vmem:[%s1040 + $0xf4] sm:$0xf]
        %v6221 = vld [vmem:[%s1040 + $0xf8] sm:$0xf]
        %v6222 = vld [vmem:[%s1040 + $0xfc] sm:$0xf]
        %v6223 = vld [vmem:[%s1040 + $0x100] sm:$0xf]
        %v6224 = vld [vmem:[%s1040 + $0x104] sm:$0xf]
        %v6225 = vld [vmem:[%s1040 + $0x108] sm:$0xf]
        %v6226 = vld [vmem:[%s1040 + $0x10c] sm:$0xf]
        %v6227 = vld [vmem:[%s1040 + $0x110] sm:$0xf]
        %v6228 = vld [vmem:[%s1040 + $0x114] sm:$0xf]
        %v6229 = vld [vmem:[%s1040 + $0x118] sm:$0xf]
        %v6230 = vld [vmem:[%s1040 + $0x11c] sm:$0xf]
        %v6231 = vld [vmem:[%s1040 + $0x120] sm:$0xf]
        %v6232 = vld [vmem:[%s1040 + $0x124] sm:$0xf]
        %v6233 = vld [vmem:[%s1040 + $0x128] sm:$0xf]
        %v6234 = vld [vmem:[%s1040 + $0x12c] sm:$0xf]
        %v6235 = vld [vmem:[%s1040 + $0x130] sm:$0xf]
        %v6236 = vld [vmem:[%s1040 + $0x134] sm:$0xf]
        %v6237 = vld [vmem:[%s1040 + $0x138] sm:$0xf]
        %v6238 = vld [vmem:[%s1040 + $0x13c] sm:$0xf]
        %v6239 = vld [vmem:[%s1040 + $0x140] sm:$0xf]
        %v6240 = vld [vmem:[%s1040 + $0x144] sm:$0xf]
        %v6241 = vld [vmem:[%s1040 + $0x148] sm:$0xf]
        %v6242 = vld [vmem:[%s1040 + $0x14c] sm:$0xf]
        %v6243 = vld [vmem:[%s1040 + $0x150] sm:$0xf]
        %v6244 = vld [vmem:[%s1040 + $0x154] sm:$0xf]
        %v6245 = vld [vmem:[%s1040 + $0x158] sm:$0xf]
        %v6246 = vld [vmem:[%s1040 + $0x15c] sm:$0xf]
        %v6247 = vld [vmem:[%s1040 + $0x160] sm:$0xf]
        %v6248 = vld [vmem:[%s1040 + $0x164] sm:$0xf]
        %v6249 = vld [vmem:[%s1040 + $0x168] sm:$0xf]
        %v6250 = vld [vmem:[%s1040 + $0x16c] sm:$0xf]
        %v6251 = vld [vmem:[%s1040 + $0x170] sm:$0xf]
        %v6252 = vld [vmem:[%s1040 + $0x174] sm:$0xf]
        %v6253 = vld [vmem:[%s1040 + $0x178] sm:$0xf]
        %v6254 = vld [vmem:[%s1040 + $0x17c] sm:$0xf]
        %v6255 = vld [vmem:[%s1040 + $0x180] sm:$0xf]
        %v6256 = vld [vmem:[%s1040 + $0x184] sm:$0xf]
        %v6257 = vld [vmem:[%s1040 + $0x188] sm:$0xf]
        %v6258 = vld [vmem:[%s1040 + $0x18c] sm:$0xf]
        %v6259 = vld [vmem:[%s1040 + $0x190] sm:$0xf]
        %v6260 = vld [vmem:[%s1040 + $0x194] sm:$0xf]
        %v6261 = vld [vmem:[%s1040 + $0x198] sm:$0xf]
        %v6262 = vld [vmem:[%s1040 + $0x19c] sm:$0xf]
        %v6263 = vld [vmem:[%s1040 + $0x1a0] sm:$0xf]
        %v6264 = vld [vmem:[%s1040 + $0x1a4] sm:$0xf]
        %v6265 = vld [vmem:[%s1040 + $0x1a8] sm:$0xf]
        %v6266 = vld [vmem:[%s1040 + $0x1ac] sm:$0xf]
        %v6267 = vld [vmem:[%s1040 + $0x1b0] sm:$0xf]
        %v6268 = vld [vmem:[%s1040 + $0x1b4] sm:$0xf]
        %v6269 = vld [vmem:[%s1040 + $0x1b8] sm:$0xf]
        %v6270 = vld [vmem:[%s1040 + $0x1bc] sm:$0xf]
        %v6271 = vld [vmem:[%s1040 + $0x1c0] sm:$0xf]
        %v6272 = vld [vmem:[%s1040 + $0x1c4] sm:$0xf]
        %v6273 = vld [vmem:[%s1040 + $0x1c8] sm:$0xf]
        %v6274 = vld [vmem:[%s1040 + $0x1cc] sm:$0xf]
        %v6275 = vld [vmem:[%s1040 + $0x1d0] sm:$0xf]
        %v6276 = vld [vmem:[%s1040 + $0x1d4] sm:$0xf]
        %v6277 = vld [vmem:[%s1040 + $0x1d8] sm:$0xf]
        %v6278 = vld [vmem:[%s1040 + $0x1dc] sm:$0xf]
        %v6279 = vld [vmem:[%s1040 + $0x1e0] sm:$0xf]
        %v6280 = vld [vmem:[%s1040 + $0x1e4] sm:$0xf]
        %v6281 = vld [vmem:[%s1040 + $0x1e8] sm:$0xf]
        %v6282 = vld [vmem:[%s1040 + $0x1ec] sm:$0xf]
        %v6283 = vld [vmem:[%s1040 + $0x1f0] sm:$0xf]
        %v6284 = vld [vmem:[%s1040 + $0x1f4] sm:$0xf]
        %v6285 = vld [vmem:[%s1040 + $0x1f8] sm:$0xf]
        %v6286 = vld [vmem:[%s1040 + $0x1fc] sm:$0xf]
        %v6287 = vld [vmem:[%s1040 + $0x200] sm:$0xf]
        %v6288 = vld [vmem:[%s1040 + $0x204] sm:$0xf]
        %v6289 = vld [vmem:[%s1040 + $0x208] sm:$0xf]
        %v6290 = vld [vmem:[%s1040 + $0x20c] sm:$0xf]
        %v6291 = vld [vmem:[%s1040 + $0x210] sm:$0xf]
        %v6292 = vld [vmem:[%s1040 + $0x214] sm:$0xf]
        %v6293 = vld [vmem:[%s1040 + $0x218] sm:$0xf]
        %v6294 = vld [vmem:[%s1040 + $0x21c] sm:$0xf]
        %v6295 = vld [vmem:[%s1040 + $0x220] sm:$0xf]
        %v6296 = vld [vmem:[%s1040 + $0x224] sm:$0xf]
        %v6297 = vld [vmem:[%s1040 + $0x228] sm:$0xf]
        %v6298 = vld [vmem:[%s1040 + $0x22c] sm:$0xf]
        %v6299 = vld [vmem:[%s1040 + $0x230] sm:$0xf]
        %v6300 = vld [vmem:[%s1040 + $0x234] sm:$0xf]
        %v6301 = vld [vmem:[%s1040 + $0x238] sm:$0xf]
        %v6302 = vld [vmem:[%s1040 + $0x23c] sm:$0xf]
        %v6303 = vld [vmem:[%s1040 + $0x240] sm:$0xf]
        %v6304 = vld [vmem:[%s1040 + $0x244] sm:$0xf]
        %v6305 = vld [vmem:[%s1040 + $0x248] sm:$0xf]
        %v6306 = vld [vmem:[%s1040 + $0x24c] sm:$0xf]
        %v6307 = vld [vmem:[%s1040 + $0x250] sm:$0xf]
        %v6308 = vld [vmem:[%s1040 + $0x254] sm:$0xf]
        %v6309 = vld [vmem:[%s1040 + $0x258] sm:$0xf]
        %v6310 = vld [vmem:[%s1040 + $0x25c] sm:$0xf]
        %v6311 = vld [vmem:[%s1040 + $0x260] sm:$0xf]
        %v6312 = vld [vmem:[%s1040 + $0x264] sm:$0xf]
        %v6313 = vld [vmem:[%s1040 + $0x268] sm:$0xf]
        %v6314 = vld [vmem:[%s1040 + $0x26c] sm:$0xf]
        %v6315 = vld [vmem:[%s1040 + $0x270] sm:$0xf]
        %v6316 = vld [vmem:[%s1040 + $0x274] sm:$0xf]
        %v6317 = vld [vmem:[%s1040 + $0x278] sm:$0xf]
        %v6318 = vld [vmem:[%s1040 + $0x27c] sm:$0xf]
        %v6319 = vld [vmem:[%s1040 + $0x280] sm:$0xf]
        %v6320 = vld [vmem:[%s1040 + $0x284] sm:$0xf]
        %v6321 = vld [vmem:[%s1040 + $0x288] sm:$0xf]
        %v6322 = vld [vmem:[%s1040 + $0x28c] sm:$0xf]
        %v6323 = vld [vmem:[%s1040 + $0x290] sm:$0xf]
        %v6324 = vld [vmem:[%s1040 + $0x294] sm:$0xf]
        %v6325 = vld [vmem:[%s1040 + $0x298] sm:$0xf]
        %v6326 = vld [vmem:[%s1040 + $0x29c] sm:$0xf]
        %v6327 = vld [vmem:[%s1040 + $0x2a0] sm:$0xf]
        %v6328 = vld [vmem:[%s1040 + $0x2a4] sm:$0xf]
        %v6329 = vld [vmem:[%s1040 + $0x2a8] sm:$0xf]
        %v6330 = vld [vmem:[%s1040 + $0x2ac] sm:$0xf]
        %v6331 = vld [vmem:[%s1040 + $0x2b0] sm:$0xf]
        %v6332 = vld [vmem:[%s1040 + $0x2b4] sm:$0xf]
        %v6333 = vld [vmem:[%s1040 + $0x2b8] sm:$0xf]
        %v6334 = vld [vmem:[%s1040 + $0x2bc] sm:$0xf]
        %v6335 = vld [vmem:[%s1040 + $0x2c0] sm:$0xf]
        %v6336 = vld [vmem:[%s1040 + $0x2c4] sm:$0xf]
        %v6337 = vld [vmem:[%s1040 + $0x2c8] sm:$0xf]
        %v6338 = vld [vmem:[%s1040 + $0x2cc] sm:$0xf]
        %v6339 = vld [vmem:[%s1040 + $0x2d0] sm:$0xf]
        %v6340 = vld [vmem:[%s1040 + $0x2d4] sm:$0xf]
        %v6341 = vld [vmem:[%s1040 + $0x2d8] sm:$0xf]
        %v6342 = vld [vmem:[%s1040 + $0x2dc] sm:$0xf]
        %v6343 = vld [vmem:[%s1040 + $0x2e0] sm:$0xf]
        %v6344 = vld [vmem:[%s1040 + $0x2e4] sm:$0xf]
        %v6345 = vld [vmem:[%s1040 + $0x2e8] sm:$0xf]
        %v6346 = vld [vmem:[%s1040 + $0x2ec] sm:$0xf]
        %v6347 = vld [vmem:[%s1040 + $0x2f0] sm:$0xf]
        %v6348 = vld [vmem:[%s1040 + $0x2f4] sm:$0xf]
        %v6349 = vld [vmem:[%s1040 + $0x2f8] sm:$0xf]
        %v6350 = vld [vmem:[%s1040 + $0x2fc] sm:$0xf]
        %v6351 = vld [vmem:[%s1040 + $0x300] sm:$0xf]
        %v6352 = vld [vmem:[%s1040 + $0x304] sm:$0xf]
        %v6353 = vld [vmem:[%s1040 + $0x308] sm:$0xf]
        %v6354 = vld [vmem:[%s1040 + $0x30c] sm:$0xf]
        %v6355 = vld [vmem:[%s1040 + $0x310] sm:$0xf]
        %v6356 = vld [vmem:[%s1040 + $0x314] sm:$0xf]
        %v6357 = vld [vmem:[%s1040 + $0x318] sm:$0xf]
        %v6358 = vld [vmem:[%s1040 + $0x31c] sm:$0xf]
        %v6359 = vld [vmem:[%s1040 + $0x320] sm:$0xf]
        %v6360 = vld [vmem:[%s1040 + $0x324] sm:$0xf]
        %v6361 = vld [vmem:[%s1040 + $0x328] sm:$0xf]
        %v6362 = vld [vmem:[%s1040 + $0x32c] sm:$0xf]
        %v6363 = vld [vmem:[%s1040 + $0x330] sm:$0xf]
        %v6364 = vld [vmem:[%s1040 + $0x334] sm:$0xf]
        %v6365 = vld [vmem:[%s1040 + $0x338] sm:$0xf]
        %v6366 = vld [vmem:[%s1040 + $0x33c] sm:$0xf]
        %v6367 = vld [vmem:[%s1040 + $0x340] sm:$0xf]
        %v6368 = vld [vmem:[%s1040 + $0x344] sm:$0xf]
        %v6369 = vld [vmem:[%s1040 + $0x348] sm:$0xf]
        %v6370 = vld [vmem:[%s1040 + $0x34c] sm:$0xf]
        %v6371 = vld [vmem:[%s1040 + $0x350] sm:$0xf]
        %v6372 = vld [vmem:[%s1040 + $0x354] sm:$0xf]
        %v6373 = vld [vmem:[%s1040 + $0x358] sm:$0xf]
        %v6374 = vld [vmem:[%s1040 + $0x35c] sm:$0xf]
        %v6375 = vld [vmem:[%s1040 + $0x360] sm:$0xf]
        %v6376 = vld [vmem:[%s1040 + $0x364] sm:$0xf]
        %v6377 = vld [vmem:[%s1040 + $0x368] sm:$0xf]
        %v6378 = vld [vmem:[%s1040 + $0x36c] sm:$0xf]
        %v6379 = vld [vmem:[%s1040 + $0x370] sm:$0xf]
        %v6380 = vld [vmem:[%s1040 + $0x374] sm:$0xf]
        %v6381 = vld [vmem:[%s1040 + $0x378] sm:$0xf]
        %v6382 = vld [vmem:[%s1040 + $0x37c] sm:$0xf]
        %v6383 = vld [vmem:[%s1040 + $0x380] sm:$0xf]
        %v6384 = vld [vmem:[%s1040 + $0x384] sm:$0xf]
        %v6385 = vld [vmem:[%s1040 + $0x388] sm:$0xf]
        %v6386 = vld [vmem:[%s1040 + $0x38c] sm:$0xf]
        %v6387 = vld [vmem:[%s1040 + $0x390] sm:$0xf]
        %v6388 = vld [vmem:[%s1040 + $0x394] sm:$0xf]
        %v6389 = vld [vmem:[%s1040 + $0x398] sm:$0xf]
        %v6390 = vld [vmem:[%s1040 + $0x39c] sm:$0xf]
        %v6391 = vld [vmem:[%s1040 + $0x3a0] sm:$0xf]
        %v6392 = vld [vmem:[%s1040 + $0x3a4] sm:$0xf]
        %v6393 = vld [vmem:[%s1040 + $0x3a8] sm:$0xf]
        %v6394 = vld [vmem:[%s1040 + $0x3ac] sm:$0xf]
        %v6395 = vld [vmem:[%s1040 + $0x3b0] sm:$0xf]
        %v6396 = vld [vmem:[%s1040 + $0x3b4] sm:$0xf]
        %v6397 = vld [vmem:[%s1040 + $0x3b8] sm:$0xf]
        %v6398 = vld [vmem:[%s1040 + $0x3bc] sm:$0xf]
        %v6399 = vld [vmem:[%s1040 + $0x3c0] sm:$0xf]
        %v6400 = vld [vmem:[%s1040 + $0x3c4] sm:$0xf]
        %v6401 = vld [vmem:[%s1040 + $0x3c8] sm:$0xf]
        %v6402 = vld [vmem:[%s1040 + $0x3cc] sm:$0xf]
        %v6403 = vld [vmem:[%s1040 + $0x3d0] sm:$0xf]
        %v6404 = vld [vmem:[%s1040 + $0x3d4] sm:$0xf]
        %v6405 = vld [vmem:[%s1040 + $0x3d8] sm:$0xf]
        %v6406 = vld [vmem:[%s1040 + $0x3dc] sm:$0xf]
        %v6407 = vld [vmem:[%s1040 + $0x3e0] sm:$0xf]
        %v6408 = vld [vmem:[%s1040 + $0x3e4] sm:$0xf]
        %v6409 = vld [vmem:[%s1040 + $0x3e8] sm:$0xf]
        %v6410 = vld [vmem:[%s1040 + $0x3ec] sm:$0xf]
        %v6411 = vld [vmem:[%s1040 + $0x3f0] sm:$0xf]
        %v6412 = vld [vmem:[%s1040 + $0x3f4] sm:$0xf]
        %v6413 = vld [vmem:[%s1040 + $0x3f8] sm:$0xf]
        %v6414 = vld [vmem:[%s1040 + $0x3fc] sm:$0xf]
        %v6415 = vld [vmem:[%s1040 + $0x400] sm:$0xf]
        %v6416 = vld [vmem:[%s1040 + $0x404] sm:$0xf]
        %v6417 = vld [vmem:[%s1040 + $0x408] sm:$0xf]
        %v6418 = vld [vmem:[%s1040 + $0x40c] sm:$0xf]
        %v6419 = vld [vmem:[%s1040 + $0x410] sm:$0xf]
        %v6420 = vld [vmem:[%s1040 + $0x414] sm:$0xf]
        %v6421 = vld [vmem:[%s1040 + $0x418] sm:$0xf]
        %v6422 = vld [vmem:[%s1040 + $0x41c] sm:$0xf]
        %v6423 = vld [vmem:[%s1040 + $0x420] sm:$0xf]
        %v6424 = vld [vmem:[%s1040 + $0x424] sm:$0xf]
        %v6425 = vld [vmem:[%s1040 + $0x428] sm:$0xf]
        %v6426 = vld [vmem:[%s1040 + $0x42c] sm:$0xf]
        %v6427 = vld [vmem:[%s1040 + $0x430] sm:$0xf]
        %v6428 = vld [vmem:[%s1040 + $0x434] sm:$0xf]
        %v6429 = vld [vmem:[%s1040 + $0x438] sm:$0xf]
        %v6430 = vld [vmem:[%s1040 + $0x43c] sm:$0xf]
        %v6431 = vld [vmem:[%s1040 + $0x440] sm:$0xf]
        %v6432 = vld [vmem:[%s1040 + $0x444] sm:$0xf]
        %v6433 = vld [vmem:[%s1040 + $0x448] sm:$0xf]
        %v6434 = vld [vmem:[%s1040 + $0x44c] sm:$0xf]
        %v6435 = vld [vmem:[%s1040 + $0x450] sm:$0xf]
        %v6436 = vld [vmem:[%s1040 + $0x454] sm:$0xf]
        %v6437 = vld [vmem:[%s1040 + $0x458] sm:$0xf]
        %v6438 = vld [vmem:[%s1040 + $0x45c] sm:$0xf]
        %v6439 = vld [vmem:[%s1040 + $0x460] sm:$0xf]
        %v6440 = vld [vmem:[%s1040 + $0x464] sm:$0xf]
        %v6441 = vld [vmem:[%s1040 + $0x468] sm:$0xf]
        %v6442 = vld [vmem:[%s1040 + $0x46c] sm:$0xf]
        %v6443 = vld [vmem:[%s1040 + $0x470] sm:$0xf]
        %v6444 = vld [vmem:[%s1040 + $0x474] sm:$0xf]
        %v6445 = vld [vmem:[%s1040 + $0x478] sm:$0xf]
        %v6446 = vld [vmem:[%s1040 + $0x47c] sm:$0xf]
        %v6447 = vld [vmem:[%s1040 + $0x480] sm:$0xf]
        %v6448 = vld [vmem:[%s1040 + $0x484] sm:$0xf]
        %v6449 = vld [vmem:[%s1040 + $0x488] sm:$0xf]
        %v6450 = vld [vmem:[%s1040 + $0x48c] sm:$0xf]
        %v6451 = vld [vmem:[%s1040 + $0x490] sm:$0xf]
        %v6452 = vld [vmem:[%s1040 + $0x494] sm:$0xf]
        %v6453 = vld [vmem:[%s1040 + $0x498] sm:$0xf]
        %v6454 = vld [vmem:[%s1040 + $0x49c] sm:$0xf]
        %v6455 = vld [vmem:[%s1040 + $0x4a0] sm:$0xf]
        %v6456 = vld [vmem:[%s1040 + $0x4a4] sm:$0xf]
        %v6457 = vld [vmem:[%s1040 + $0x4a8] sm:$0xf]
        %v6458 = vld [vmem:[%s1040 + $0x4ac] sm:$0xf]
        %v6459 = vld [vmem:[%s1040 + $0x4b0] sm:$0xf]
        %v6460 = vld [vmem:[%s1040 + $0x4b4] sm:$0xf]
        %v6461 = vld [vmem:[%s1040 + $0x4b8] sm:$0xf]
        %v6462 = vld [vmem:[%s1040 + $0x4bc] sm:$0xf]
        %v6463 = vld [vmem:[%s1040 + $0x4c0] sm:$0xf]
        %v6464 = vld [vmem:[%s1040 + $0x4c4] sm:$0xf]
        %v6465 = vld [vmem:[%s1040 + $0x4c8] sm:$0xf]
        %v6466 = vld [vmem:[%s1040 + $0x4cc] sm:$0xf]
        %v6467 = vld [vmem:[%s1040 + $0x4d0] sm:$0xf]
        %v6468 = vld [vmem:[%s1040 + $0x4d4] sm:$0xf]
        %v6469 = vld [vmem:[%s1040 + $0x4d8] sm:$0xf]
        %v6470 = vld [vmem:[%s1040 + $0x4dc] sm:$0xf]
        %v6471 = vld [vmem:[%s1040 + $0x4e0] sm:$0xf]
        %v6472 = vld [vmem:[%s1040 + $0x4e4] sm:$0xf]
        %v6473 = vld [vmem:[%s1040 + $0x4e8] sm:$0xf]
        %v6474 = vld [vmem:[%s1040 + $0x4ec] sm:$0xf]
        %v6475 = vld [vmem:[%s1040 + $0x4f0] sm:$0xf]
        %v6476 = vld [vmem:[%s1040 + $0x4f4] sm:$0xf]
        %v6477 = vld [vmem:[%s1040 + $0x4f8] sm:$0xf]
        %v6478 = vld [vmem:[%s1040 + $0x4fc] sm:$0xf]
        %v6479 = vld [vmem:[%s1040 + $0x500] sm:$0xf]
        %v6480 = vld [vmem:[%s1040 + $0x504] sm:$0xf]
        %v6481 = vld [vmem:[%s1040 + $0x508] sm:$0xf]
        %v6482 = vld [vmem:[%s1040 + $0x50c] sm:$0xf]
        %v6483 = vld [vmem:[%s1040 + $0x510] sm:$0xf]
        %v6484 = vld [vmem:[%s1040 + $0x514] sm:$0xf]
        %v6485 = vld [vmem:[%s1040 + $0x518] sm:$0xf]
        %v6486 = vld [vmem:[%s1040 + $0x51c] sm:$0xf]
        %v6487 = vld [vmem:[%s1040 + $0x520] sm:$0xf]
        %v6488 = vld [vmem:[%s1040 + $0x524] sm:$0xf]
        %v6489 = vld [vmem:[%s1040 + $0x528] sm:$0xf]
        %v6490 = vld [vmem:[%s1040 + $0x52c] sm:$0xf]
        %v6491 = vld [vmem:[%s1040 + $0x530] sm:$0xf]
        %v6492 = vld [vmem:[%s1040 + $0x534] sm:$0xf]
        %v6493 = vld [vmem:[%s1040 + $0x538] sm:$0xf]
        %v6494 = vld [vmem:[%s1040 + $0x53c] sm:$0xf]
        %v6495 = vld [vmem:[%s1040 + $0x540] sm:$0xf]
        %v6496 = vld [vmem:[%s1040 + $0x544] sm:$0xf]
        %v6497 = vld [vmem:[%s1040 + $0x548] sm:$0xf]
        %v6498 = vld [vmem:[%s1040 + $0x54c] sm:$0xf]
        %v6499 = vld [vmem:[%s1040 + $0x550] sm:$0xf]
        %v6500 = vld [vmem:[%s1040 + $0x554] sm:$0xf]
        %v6501 = vld [vmem:[%s1040 + $0x558] sm:$0xf]
        %v6502 = vld [vmem:[%s1040 + $0x55c] sm:$0xf]
        %v6503 = vld [vmem:[%s1040 + $0x560] sm:$0xf]
        %v6504 = vld [vmem:[%s1040 + $0x564] sm:$0xf]
        %v6505 = vld [vmem:[%s1040 + $0x568] sm:$0xf]
        %v6506 = vld [vmem:[%s1040 + $0x56c] sm:$0xf]
        %v6507 = vld [vmem:[%s1040 + $0x570] sm:$0xf]
        %v6508 = vld [vmem:[%s1040 + $0x574] sm:$0xf]
        %v6509 = vld [vmem:[%s1040 + $0x578] sm:$0xf]
        %v6510 = vld [vmem:[%s1040 + $0x57c] sm:$0xf]
        %v6511 = vld [vmem:[%s1040 + $0x580] sm:$0xf]
        %v6512 = vld [vmem:[%s1040 + $0x584] sm:$0xf]
        %v6513 = vld [vmem:[%s1040 + $0x588] sm:$0xf]
        %v6514 = vld [vmem:[%s1040 + $0x58c] sm:$0xf]
        %v6515 = vld [vmem:[%s1040 + $0x590] sm:$0xf]
        %v6516 = vld [vmem:[%s1040 + $0x594] sm:$0xf]
        %v6517 = vld [vmem:[%s1040 + $0x598] sm:$0xf]
        %v6518 = vld [vmem:[%s1040 + $0x59c] sm:$0xf]
        %v6519 = vld [vmem:[%s1040 + $0x5a0] sm:$0xf]
        %v6520 = vld [vmem:[%s1040 + $0x5a4] sm:$0xf]
        %v6521 = vld [vmem:[%s1040 + $0x5a8] sm:$0xf]
        %v6522 = vld [vmem:[%s1040 + $0x5ac] sm:$0xf]
        %v6523 = vld [vmem:[%s1040 + $0x5b0] sm:$0xf]
        %v6524 = vld [vmem:[%s1040 + $0x5b4] sm:$0xf]
        %v6525 = vld [vmem:[%s1040 + $0x5b8] sm:$0xf]
        %v6526 = vld [vmem:[%s1040 + $0x5bc] sm:$0xf]
        %v6527 = vld [vmem:[%s1040 + $0x5c0] sm:$0xf]
        %v6528 = vld [vmem:[%s1040 + $0x5c4] sm:$0xf]
        %v6529 = vld [vmem:[%s1040 + $0x5c8] sm:$0xf]
        %v6530 = vld [vmem:[%s1040 + $0x5cc] sm:$0xf]
        %v6531 = vld [vmem:[%s1040 + $0x5d0] sm:$0xf]
        %v6532 = vld [vmem:[%s1040 + $0x5d4] sm:$0xf]
        %v6533 = vld [vmem:[%s1040 + $0x5d8] sm:$0xf]
        %v6534 = vld [vmem:[%s1040 + $0x5dc] sm:$0xf]
        %v6535 = vld [vmem:[%s1040 + $0x5e0] sm:$0xf]
        %v6536 = vld [vmem:[%s1040 + $0x5e4] sm:$0xf]
        %v6537 = vld [vmem:[%s1040 + $0x5e8] sm:$0xf]
        %v6538 = vld [vmem:[%s1040 + $0x5ec] sm:$0xf]
        %v6539 = vld [vmem:[%s1040 + $0x5f0] sm:$0xf]
        %v6540 = vld [vmem:[%s1040 + $0x5f4] sm:$0xf]
        %v6541 = vld [vmem:[%s1040 + $0x5f8] sm:$0xf]
        %v6542 = vld [vmem:[%s1040 + $0x5fc] sm:$0xf]
        %v6543 = vld [vmem:[%s1040 + $0x600] sm:$0xf]
        %v6544 = vld [vmem:[%s1040 + $0x604] sm:$0xf]
        %v6545 = vld [vmem:[%s1040 + $0x608] sm:$0xf]
        %v6546 = vld [vmem:[%s1040 + $0x60c] sm:$0xf]
        %v6547 = vld [vmem:[%s1040 + $0x610] sm:$0xf]
        %v6548 = vld [vmem:[%s1040 + $0x614] sm:$0xf]
        %v6549 = vld [vmem:[%s1040 + $0x618] sm:$0xf]
        %v6550 = vld [vmem:[%s1040 + $0x61c] sm:$0xf]
        %v6551 = vld [vmem:[%s1040 + $0x620] sm:$0xf]
        %v6552 = vld [vmem:[%s1040 + $0x624] sm:$0xf]
        %v6553 = vld [vmem:[%s1040 + $0x628] sm:$0xf]
        %v6554 = vld [vmem:[%s1040 + $0x62c] sm:$0xf]
        %v6555 = vld [vmem:[%s1040 + $0x630] sm:$0xf]
        %v6556 = vld [vmem:[%s1040 + $0x634] sm:$0xf]
        %v6557 = vld [vmem:[%s1040 + $0x638] sm:$0xf]
        %v6558 = vld [vmem:[%s1040 + $0x63c] sm:$0xf]
        %v6559 = vld [vmem:[%s1040 + $0x640] sm:$0xf]
        %v6560 = vld [vmem:[%s1040 + $0x644] sm:$0xf]
        %v6561 = vld [vmem:[%s1040 + $0x648] sm:$0xf]
        %v6562 = vld [vmem:[%s1040 + $0x64c] sm:$0xf]
        %v6563 = vld [vmem:[%s1040 + $0x650] sm:$0xf]
        %v6564 = vld [vmem:[%s1040 + $0x654] sm:$0xf]
        %v6565 = vld [vmem:[%s1040 + $0x658] sm:$0xf]
        %v6566 = vld [vmem:[%s1040 + $0x65c] sm:$0xf]
        %v6567 = vld [vmem:[%s1040 + $0x660] sm:$0xf]
        %v6568 = vld [vmem:[%s1040 + $0x664] sm:$0xf]
        %v6569 = vld [vmem:[%s1040 + $0x668] sm:$0xf]
        %v6570 = vld [vmem:[%s1040 + $0x66c] sm:$0xf]
        %v6571 = vld [vmem:[%s1040 + $0x670] sm:$0xf]
        %v6572 = vld [vmem:[%s1040 + $0x674] sm:$0xf]
        %v6573 = vld [vmem:[%s1040 + $0x678] sm:$0xf]
        %v6574 = vld [vmem:[%s1040 + $0x67c] sm:$0xf]
        %v6575 = vld [vmem:[%s1040 + $0x680] sm:$0xf]
        %v6576 = vld [vmem:[%s1040 + $0x684] sm:$0xf]
        %v6577 = vld [vmem:[%s1040 + $0x688] sm:$0xf]
        %v6578 = vld [vmem:[%s1040 + $0x68c] sm:$0xf]
        %v6579 = vld [vmem:[%s1040 + $0x690] sm:$0xf]
        %v6580 = vld [vmem:[%s1040 + $0x694] sm:$0xf]
        %v6581 = vld [vmem:[%s1040 + $0x698] sm:$0xf]
        %v6582 = vld [vmem:[%s1040 + $0x69c] sm:$0xf]
        %v6583 = vld [vmem:[%s1040 + $0x6a0] sm:$0xf]
        %v6584 = vld [vmem:[%s1040 + $0x6a4] sm:$0xf]
        %v6585 = vld [vmem:[%s1040 + $0x6a8] sm:$0xf]
        %v6586 = vld [vmem:[%s1040 + $0x6ac] sm:$0xf]
        %v6587 = vld [vmem:[%s1040 + $0x6b0] sm:$0xf]
        %v6588 = vld [vmem:[%s1040 + $0x6b4] sm:$0xf]
        %v6589 = vld [vmem:[%s1040 + $0x6b8] sm:$0xf]
        %v6590 = vld [vmem:[%s1040 + $0x6bc] sm:$0xf]
        %v6591 = vld [vmem:[%s1040 + $0x6c0] sm:$0xf]
        %v6592 = vld [vmem:[%s1040 + $0x6c4] sm:$0xf]
        %v6593 = vld [vmem:[%s1040 + $0x6c8] sm:$0xf]
        %v6594 = vld [vmem:[%s1040 + $0x6cc] sm:$0xf]
        %v6595 = vld [vmem:[%s1040 + $0x6d0] sm:$0xf]
        %v6596 = vld [vmem:[%s1040 + $0x6d4] sm:$0xf]
        %v6597 = vld [vmem:[%s1040 + $0x6d8] sm:$0xf]
        %v6598 = vld [vmem:[%s1040 + $0x6dc] sm:$0xf]
        %v6599 = vld [vmem:[%s1040 + $0x6e0] sm:$0xf]
        %v6600 = vld [vmem:[%s1040 + $0x6e4] sm:$0xf]
        %v6601 = vld [vmem:[%s1040 + $0x6e8] sm:$0xf]
        %v6602 = vld [vmem:[%s1040 + $0x6ec] sm:$0xf]
        %v6603 = vld [vmem:[%s1040 + $0x6f0] sm:$0xf]
        %v6604 = vld [vmem:[%s1040 + $0x6f4] sm:$0xf]
        %v6605 = vld [vmem:[%s1040 + $0x6f8] sm:$0xf]
        %v6606 = vld [vmem:[%s1040 + $0x6fc] sm:$0xf]
        %v6607 = vld [vmem:[%s1040 + $0x700] sm:$0xf]
        %v6608 = vld [vmem:[%s1040 + $0x704] sm:$0xf]
        %v6609 = vld [vmem:[%s1040 + $0x708] sm:$0xf]
        %v6610 = vld [vmem:[%s1040 + $0x70c] sm:$0xf]
        %v6611 = vld [vmem:[%s1040 + $0x710] sm:$0xf]
        %v6612 = vld [vmem:[%s1040 + $0x714] sm:$0xf]
        %v6613 = vld [vmem:[%s1040 + $0x718] sm:$0xf]
        %v6614 = vld [vmem:[%s1040 + $0x71c] sm:$0xf]
        %v6615 = vld [vmem:[%s1040 + $0x720] sm:$0xf]
        %v6616 = vld [vmem:[%s1040 + $0x724] sm:$0xf]
        %v6617 = vld [vmem:[%s1040 + $0x728] sm:$0xf]
        %v6618 = vld [vmem:[%s1040 + $0x72c] sm:$0xf]
        %v6619 = vld [vmem:[%s1040 + $0x730] sm:$0xf]
        %v6620 = vld [vmem:[%s1040 + $0x734] sm:$0xf]
        %v6621 = vld [vmem:[%s1040 + $0x738] sm:$0xf]
        %v6622 = vld [vmem:[%s1040 + $0x73c] sm:$0xf]
        %v6623 = vld [vmem:[%s1040 + $0x740] sm:$0xf]
        %v6624 = vld [vmem:[%s1040 + $0x744] sm:$0xf]
        %v6625 = vld [vmem:[%s1040 + $0x748] sm:$0xf]
        %v6626 = vld [vmem:[%s1040 + $0x74c] sm:$0xf]
        %v6627 = vld [vmem:[%s1040 + $0x750] sm:$0xf]
        %v6628 = vld [vmem:[%s1040 + $0x754] sm:$0xf]
        %v6629 = vld [vmem:[%s1040 + $0x758] sm:$0xf]
        %v6630 = vld [vmem:[%s1040 + $0x75c] sm:$0xf]
        %v6631 = vld [vmem:[%s1040 + $0x760] sm:$0xf]
        %v6632 = vld [vmem:[%s1040 + $0x764] sm:$0xf]
        %v6633 = vld [vmem:[%s1040 + $0x768] sm:$0xf]
        %v6634 = vld [vmem:[%s1040 + $0x76c] sm:$0xf]
        %v6635 = vld [vmem:[%s1040 + $0x770] sm:$0xf]
        %v6636 = vld [vmem:[%s1040 + $0x774] sm:$0xf]
        %v6637 = vld [vmem:[%s1040 + $0x778] sm:$0xf]
        %v6638 = vld [vmem:[%s1040 + $0x77c] sm:$0xf]
        %v6639 = vld [vmem:[%s1040 + $0x780] sm:$0xf]
        %v6640 = vld [vmem:[%s1040 + $0x784] sm:$0xf]
        %v6641 = vld [vmem:[%s1040 + $0x788] sm:$0xf]
        %v6642 = vld [vmem:[%s1040 + $0x78c] sm:$0xf]
        %v6643 = vld [vmem:[%s1040 + $0x790] sm:$0xf]
        %v6644 = vld [vmem:[%s1040 + $0x794] sm:$0xf]
        %v6645 = vld [vmem:[%s1040 + $0x798] sm:$0xf]
        %v6646 = vld [vmem:[%s1040 + $0x79c] sm:$0xf]
        %v6647 = vld [vmem:[%s1040 + $0x7a0] sm:$0xf]
        %v6648 = vld [vmem:[%s1040 + $0x7a4] sm:$0xf]
        %v6649 = vld [vmem:[%s1040 + $0x7a8] sm:$0xf]
        %v6650 = vld [vmem:[%s1040 + $0x7ac] sm:$0xf]
        %v6651 = vld [vmem:[%s1040 + $0x7b0] sm:$0xf]
        %v6652 = vld [vmem:[%s1040 + $0x7b4] sm:$0xf]
        %v6653 = vld [vmem:[%s1040 + $0x7b8] sm:$0xf]
        %v6654 = vld [vmem:[%s1040 + $0x7bc] sm:$0xf]
        %v6655 = vld [vmem:[%s1040 + $0x7c0] sm:$0xf]
        %v6656 = vld [vmem:[%s1040 + $0x7c4] sm:$0xf]
        %v6657 = vld [vmem:[%s1040 + $0x7c8] sm:$0xf]
        %v6658 = vld [vmem:[%s1040 + $0x7cc] sm:$0xf]
        %v6659 = vld [vmem:[%s1040 + $0x7d0] sm:$0xf]
        %v6660 = vld [vmem:[%s1040 + $0x7d4] sm:$0xf]
        %v6661 = vld [vmem:[%s1040 + $0x7d8] sm:$0xf]
        %v6662 = vld [vmem:[%s1040 + $0x7dc] sm:$0xf]
        %v6663 = vld [vmem:[%s1040 + $0x7e0] sm:$0xf]
        %v6664 = vld [vmem:[%s1040 + $0x7e4] sm:$0xf]
        %v6665 = vld [vmem:[%s1040 + $0x7e8] sm:$0xf]
        %v6666 = vld [vmem:[%s1040 + $0x7ec] sm:$0xf]
        %v6667 = vld [vmem:[%s1040 + $0x7f0] sm:$0xf]
        %v6668 = vld [vmem:[%s1040 + $0x7f4] sm:$0xf]
        %v6669 = vld [vmem:[%s1040 + $0x7f8] sm:$0xf]
        %v6670 = vld [vmem:[%s1040 + $0x7fc] sm:$0xf]
        %v6671 = vld [vmem:[%s1040 + $0x800] sm:$0xf]
        %v6672 = vld [vmem:[%s1040 + $0x804] sm:$0xf]
        %v6673 = vld [vmem:[%s1040 + $0x808] sm:$0xf]
        %v6674 = vld [vmem:[%s1040 + $0x80c] sm:$0xf]
        %v6675 = vld [vmem:[%s1040 + $0x810] sm:$0xf]
        %v6676 = vld [vmem:[%s1040 + $0x814] sm:$0xf]
        %v6677 = vld [vmem:[%s1040 + $0x818] sm:$0xf]
        %v6678 = vld [vmem:[%s1040 + $0x81c] sm:$0xf]
        %v6679 = vld [vmem:[%s1040 + $0x820] sm:$0xf]
        %v6680 = vld [vmem:[%s1040 + $0x824] sm:$0xf]
        %v6681 = vld [vmem:[%s1040 + $0x828] sm:$0xf]
        %v6682 = vld [vmem:[%s1040 + $0x82c] sm:$0xf]
        %v6683 = vld [vmem:[%s1040 + $0x830] sm:$0xf]
        %v6684 = vld [vmem:[%s1040 + $0x834] sm:$0xf]
        %v6685 = vld [vmem:[%s1040 + $0x838] sm:$0xf]
        %v6686 = vld [vmem:[%s1040 + $0x83c] sm:$0xf]
        %v6687 = vld [vmem:[%s1040 + $0x840] sm:$0xf]
        %v6688 = vld [vmem:[%s1040 + $0x844] sm:$0xf]
        %v6689 = vld [vmem:[%s1040 + $0x848] sm:$0xf]
        %v6690 = vld [vmem:[%s1040 + $0x84c] sm:$0xf]
        %v6691 = vld [vmem:[%s1040 + $0x850] sm:$0xf]
        %v6692 = vld [vmem:[%s1040 + $0x854] sm:$0xf]
        %v6693 = vld [vmem:[%s1040 + $0x858] sm:$0xf]
        %v6694 = vld [vmem:[%s1040 + $0x85c] sm:$0xf]
        %v6695 = vld [vmem:[%s1040 + $0x860] sm:$0xf]
        %v6696 = vld [vmem:[%s1040 + $0x864] sm:$0xf]
        %v6697 = vld [vmem:[%s1040 + $0x868] sm:$0xf]
        %v6698 = vld [vmem:[%s1040 + $0x86c] sm:$0xf]
        %v6699 = vld [vmem:[%s1040 + $0x870] sm:$0xf]
        %v6700 = vld [vmem:[%s1040 + $0x874] sm:$0xf]
        %v6701 = vld [vmem:[%s1040 + $0x878] sm:$0xf]
        %v6702 = vld [vmem:[%s1040 + $0x87c] sm:$0xf]
        %v6703 = vld [vmem:[%s1040 + $0x880] sm:$0xf]
        %v6704 = vld [vmem:[%s1040 + $0x884] sm:$0xf]
        %v6705 = vld [vmem:[%s1040 + $0x888] sm:$0xf]
        %v6706 = vld [vmem:[%s1040 + $0x88c] sm:$0xf]
        %v6707 = vld [vmem:[%s1040 + $0x890] sm:$0xf]
        %v6708 = vld [vmem:[%s1040 + $0x894] sm:$0xf]
        %v6709 = vld [vmem:[%s1040 + $0x898] sm:$0xf]
        %v6710 = vld [vmem:[%s1040 + $0x89c] sm:$0xf]
        %v6711 = vld [vmem:[%s1040 + $0x8a0] sm:$0xf]
        %v6712 = vld [vmem:[%s1040 + $0x8a4] sm:$0xf]
        %v6713 = vld [vmem:[%s1040 + $0x8a8] sm:$0xf]
        %v6714 = vld [vmem:[%s1040 + $0x8ac] sm:$0xf]
        %v6715 = vld [vmem:[%s1040 + $0x8b0] sm:$0xf]
        %v6716 = vld [vmem:[%s1040 + $0x8b4] sm:$0xf]
        %v6717 = vld [vmem:[%s1040 + $0x8b8] sm:$0xf]
        %v6718 = vld [vmem:[%s1040 + $0x8bc] sm:$0xf]
        %v6719 = vld [vmem:[%s1040 + $0x8c0] sm:$0xf]
        %v6720 = vld [vmem:[%s1040 + $0x8c4] sm:$0xf]
        %v6721 = vld [vmem:[%s1040 + $0x8c8] sm:$0xf]
        %v6722 = vld [vmem:[%s1040 + $0x8cc] sm:$0xf]
        %v6723 = vld [vmem:[%s1040 + $0x8d0] sm:$0xf]
        %v6724 = vld [vmem:[%s1040 + $0x8d4] sm:$0xf]
        %v6725 = vld [vmem:[%s1040 + $0x8d8] sm:$0xf]
        %v6726 = vld [vmem:[%s1040 + $0x8dc] sm:$0xf]
        %v6727 = vld [vmem:[%s1040 + $0x8e0] sm:$0xf]
        %v6728 = vld [vmem:[%s1040 + $0x8e4] sm:$0xf]
        %v6729 = vld [vmem:[%s1040 + $0x8e8] sm:$0xf]
        %v6730 = vld [vmem:[%s1040 + $0x8ec] sm:$0xf]
        %v6731 = vld [vmem:[%s1040 + $0x8f0] sm:$0xf]
        %v6732 = vld [vmem:[%s1040 + $0x8f4] sm:$0xf]
        %v6733 = vld [vmem:[%s1040 + $0x8f8] sm:$0xf]
        %v6734 = vld [vmem:[%s1040 + $0x8fc] sm:$0xf]
        %v6735 = vld [vmem:[%s1040 + $0x900] sm:$0xf]
        %v6736 = vld [vmem:[%s1040 + $0x904] sm:$0xf]
        %v6737 = vld [vmem:[%s1040 + $0x908] sm:$0xf]
        %v6738 = vld [vmem:[%s1040 + $0x90c] sm:$0xf]
        %v6739 = vld [vmem:[%s1040 + $0x910] sm:$0xf]
        %v6740 = vld [vmem:[%s1040 + $0x914] sm:$0xf]
        %v6741 = vld [vmem:[%s1040 + $0x918] sm:$0xf]
        %v6742 = vld [vmem:[%s1040 + $0x91c] sm:$0xf]
        %v6743 = vld [vmem:[%s1040 + $0x920] sm:$0xf]
        %v6744 = vld [vmem:[%s1040 + $0x924] sm:$0xf]
        %v6745 = vld [vmem:[%s1040 + $0x928] sm:$0xf]
        %v6746 = vld [vmem:[%s1040 + $0x92c] sm:$0xf]
        %v6747 = vld [vmem:[%s1040 + $0x930] sm:$0xf]
        %v6748 = vld [vmem:[%s1040 + $0x934] sm:$0xf]
        %v6749 = vld [vmem:[%s1040 + $0x938] sm:$0xf]
        %v6750 = vld [vmem:[%s1040 + $0x93c] sm:$0xf]
        %v6751 = vld [vmem:[%s1040 + $0x940] sm:$0xf]
        %v6752 = vld [vmem:[%s1040 + $0x944] sm:$0xf]
        %v6753 = vld [vmem:[%s1040 + $0x948] sm:$0xf]
        %v6754 = vld [vmem:[%s1040 + $0x94c] sm:$0xf]
        %v6755 = vld [vmem:[%s1040 + $0x950] sm:$0xf]
        %v6756 = vld [vmem:[%s1040 + $0x954] sm:$0xf]
        %v6757 = vld [vmem:[%s1040 + $0x958] sm:$0xf]
        %v6758 = vld [vmem:[%s1040 + $0x95c] sm:$0xf]
        %v6759 = vld [vmem:[%s1040 + $0x960] sm:$0xf]
        %v6760 = vld [vmem:[%s1040 + $0x964] sm:$0xf]
        %v6761 = vld [vmem:[%s1040 + $0x968] sm:$0xf]
        %v6762 = vld [vmem:[%s1040 + $0x96c] sm:$0xf]
        %v6763 = vld [vmem:[%s1040 + $0x970] sm:$0xf]
        %v6764 = vld [vmem:[%s1040 + $0x974] sm:$0xf]
        %v6765 = vld [vmem:[%s1040 + $0x978] sm:$0xf]
        %v6766 = vld [vmem:[%s1040 + $0x97c] sm:$0xf]
        %v6767 = vld [vmem:[%s1040 + $0x980] sm:$0xf]
        %v6768 = vld [vmem:[%s1040 + $0x984] sm:$0xf]
        %v6769 = vld [vmem:[%s1040 + $0x988] sm:$0xf]
        %v6770 = vld [vmem:[%s1040 + $0x98c] sm:$0xf]
        %v6771 = vld [vmem:[%s1040 + $0x990] sm:$0xf]
        %v6772 = vld [vmem:[%s1040 + $0x994] sm:$0xf]
        %v6773 = vld [vmem:[%s1040 + $0x998] sm:$0xf]
        %v6774 = vld [vmem:[%s1040 + $0x99c] sm:$0xf]
        %v6775 = vld [vmem:[%s1040 + $0x9a0] sm:$0xf]
        %v6776 = vld [vmem:[%s1040 + $0x9a4] sm:$0xf]
        %v6777 = vld [vmem:[%s1040 + $0x9a8] sm:$0xf]
        %v6778 = vld [vmem:[%s1040 + $0x9ac] sm:$0xf]
        %v6779 = vld [vmem:[%s1040 + $0x9b0] sm:$0xf]
        %v6780 = vld [vmem:[%s1040 + $0x9b4] sm:$0xf]
        %v6781 = vld [vmem:[%s1040 + $0x9b8] sm:$0xf]
        %v6782 = vld [vmem:[%s1040 + $0x9bc] sm:$0xf]
        %v6783 = vld [vmem:[%s1040 + $0x9c0] sm:$0xf]
        %v6784 = vld [vmem:[%s1040 + $0x9c4] sm:$0xf]
        %v6785 = vld [vmem:[%s1040 + $0x9c8] sm:$0xf]
        %v6786 = vld [vmem:[%s1040 + $0x9cc] sm:$0xf]
        %v6787 = vld [vmem:[%s1040 + $0x9d0] sm:$0xf]
        %v6788 = vld [vmem:[%s1040 + $0x9d4] sm:$0xf]
        %v6789 = vld [vmem:[%s1040 + $0x9d8] sm:$0xf]
        %v6790 = vld [vmem:[%s1040 + $0x9dc] sm:$0xf]
        %v6791 = vld [vmem:[%s1040 + $0x9e0] sm:$0xf]
        %v6792 = vld [vmem:[%s1040 + $0x9e4] sm:$0xf]
        %v6793 = vld [vmem:[%s1040 + $0x9e8] sm:$0xf]
        %v6794 = vld [vmem:[%s1040 + $0x9ec] sm:$0xf]
        %v6795 = vld [vmem:[%s1040 + $0x9f0] sm:$0xf]
        %v6796 = vld [vmem:[%s1040 + $0x9f4] sm:$0xf]
        %v6797 = vld [vmem:[%s1040 + $0x9f8] sm:$0xf]
        %v6798 = vld [vmem:[%s1040 + $0x9fc] sm:$0xf]
        %v6799 = vld [vmem:[%s1040 + $0xa00] sm:$0xf]
        %v6800 = vld [vmem:[%s1040 + $0xa04] sm:$0xf]
        %v6801 = vld [vmem:[%s1040 + $0xa08] sm:$0xf]
        %v6802 = vld [vmem:[%s1040 + $0xa0c] sm:$0xf]
        %v6803 = vld [vmem:[%s1040 + $0xa10] sm:$0xf]
        %v6804 = vld [vmem:[%s1040 + $0xa14] sm:$0xf]
        %v6805 = vld [vmem:[%s1040 + $0xa18] sm:$0xf]
        %v6806 = vld [vmem:[%s1040 + $0xa1c] sm:$0xf]
        %v6807 = vld [vmem:[%s1040 + $0xa20] sm:$0xf]
        %v6808 = vld [vmem:[%s1040 + $0xa24] sm:$0xf]
        %v6809 = vld [vmem:[%s1040 + $0xa28] sm:$0xf]
        %v6810 = vld [vmem:[%s1040 + $0xa2c] sm:$0xf]
        %v6811 = vld [vmem:[%s1040 + $0xa30] sm:$0xf]
        %v6812 = vld [vmem:[%s1040 + $0xa34] sm:$0xf]
        %v6813 = vld [vmem:[%s1040 + $0xa38] sm:$0xf]
        %v6814 = vld [vmem:[%s1040 + $0xa3c] sm:$0xf]
        %v6815 = vld [vmem:[%s1040 + $0xa40] sm:$0xf]
        %v6816 = vld [vmem:[%s1040 + $0xa44] sm:$0xf]
        %v6817 = vld [vmem:[%s1040 + $0xa48] sm:$0xf]
        %v6818 = vld [vmem:[%s1040 + $0xa4c] sm:$0xf]
        %v6819 = vld [vmem:[%s1040 + $0xa50] sm:$0xf]
        %v6820 = vld [vmem:[%s1040 + $0xa54] sm:$0xf]
        %v6821 = vld [vmem:[%s1040 + $0xa58] sm:$0xf]
        %v6822 = vld [vmem:[%s1040 + $0xa5c] sm:$0xf]
        %v6823 = vld [vmem:[%s1040 + $0xa60] sm:$0xf]
        %v6824 = vld [vmem:[%s1040 + $0xa64] sm:$0xf]
        %v6825 = vld [vmem:[%s1040 + $0xa68] sm:$0xf]
        %v6826 = vld [vmem:[%s1040 + $0xa6c] sm:$0xf]
        %v6827 = vld [vmem:[%s1040 + $0xa70] sm:$0xf]
        %v6828 = vld [vmem:[%s1040 + $0xa74] sm:$0xf]
        %v6829 = vld [vmem:[%s1040 + $0xa78] sm:$0xf]
        %v6830 = vld [vmem:[%s1040 + $0xa7c] sm:$0xf]
        %v6831 = vld [vmem:[%s1040 + $0xa80] sm:$0xf]
        %v6832 = vld [vmem:[%s1040 + $0xa84] sm:$0xf]
        %v6833 = vld [vmem:[%s1040 + $0xa88] sm:$0xf]
        %v6834 = vld [vmem:[%s1040 + $0xa8c] sm:$0xf]
        %v6835 = vld [vmem:[%s1040 + $0xa90] sm:$0xf]
        %v6836 = vld [vmem:[%s1040 + $0xa94] sm:$0xf]
        %v6837 = vld [vmem:[%s1040 + $0xa98] sm:$0xf]
        %v6838 = vld [vmem:[%s1040 + $0xa9c] sm:$0xf]
        %v6839 = vld [vmem:[%s1040 + $0xaa0] sm:$0xf]
        %v6840 = vld [vmem:[%s1040 + $0xaa4] sm:$0xf]
        %v6841 = vld [vmem:[%s1040 + $0xaa8] sm:$0xf]
        %v6842 = vld [vmem:[%s1040 + $0xaac] sm:$0xf]
        %v6843 = vld [vmem:[%s1040 + $0xab0] sm:$0xf]
        %v6844 = vld [vmem:[%s1040 + $0xab4] sm:$0xf]
        %v6845 = vld [vmem:[%s1040 + $0xab8] sm:$0xf]
        %v6846 = vld [vmem:[%s1040 + $0xabc] sm:$0xf]
        %v6847 = vld [vmem:[%s1040 + $0xac0] sm:$0xf]
        %v6848 = vld [vmem:[%s1040 + $0xac4] sm:$0xf]
        %v6849 = vld [vmem:[%s1040 + $0xac8] sm:$0xf]
        %v6850 = vld [vmem:[%s1040 + $0xacc] sm:$0xf]
        %v6851 = vld [vmem:[%s1040 + $0xad0] sm:$0xf]
        %v6852 = vld [vmem:[%s1040 + $0xad4] sm:$0xf]
        %v6853 = vld [vmem:[%s1040 + $0xad8] sm:$0xf]
        %v6854 = vld [vmem:[%s1040 + $0xadc] sm:$0xf]
        %v6855 = vld [vmem:[%s1040 + $0xae0] sm:$0xf]
        %v6856 = vld [vmem:[%s1040 + $0xae4] sm:$0xf]
        %v6857 = vld [vmem:[%s1040 + $0xae8] sm:$0xf]
        %v6858 = vld [vmem:[%s1040 + $0xaec] sm:$0xf]
        %v6859 = vld [vmem:[%s1040 + $0xaf0] sm:$0xf]
        %v6860 = vld [vmem:[%s1040 + $0xaf4] sm:$0xf]
        %v6861 = vld [vmem:[%s1040 + $0xaf8] sm:$0xf]
        %v6862 = vld [vmem:[%s1040 + $0xafc] sm:$0xf]
        %v6863 = vld [vmem:[%s1040 + $0xb00] sm:$0xf]
        %v6864 = vld [vmem:[%s1040 + $0xb04] sm:$0xf]
        %v6865 = vld [vmem:[%s1040 + $0xb08] sm:$0xf]
        %v6866 = vld [vmem:[%s1040 + $0xb0c] sm:$0xf]
        %v6867 = vld [vmem:[%s1040 + $0xb10] sm:$0xf]
        %v6868 = vld [vmem:[%s1040 + $0xb14] sm:$0xf]
        %v6869 = vld [vmem:[%s1040 + $0xb18] sm:$0xf]
        %v6870 = vld [vmem:[%s1040 + $0xb1c] sm:$0xf]
        %v6871 = vld [vmem:[%s1040 + $0xb20] sm:$0xf]
        %v6872 = vld [vmem:[%s1040 + $0xb24] sm:$0xf]
        %v6873 = vld [vmem:[%s1040 + $0xb28] sm:$0xf]
        %v6874 = vld [vmem:[%s1040 + $0xb2c] sm:$0xf]
        %v6875 = vld [vmem:[%s1040 + $0xb30] sm:$0xf]
        %v6876 = vld [vmem:[%s1040 + $0xb34] sm:$0xf]
        %v6877 = vld [vmem:[%s1040 + $0xb38] sm:$0xf]
        %v6878 = vld [vmem:[%s1040 + $0xb3c] sm:$0xf]
        %v6879 = vld [vmem:[%s1040 + $0xb40] sm:$0xf]
        %v6880 = vld [vmem:[%s1040 + $0xb44] sm:$0xf]
        %v6881 = vld [vmem:[%s1040 + $0xb48] sm:$0xf]
        %v6882 = vld [vmem:[%s1040 + $0xb4c] sm:$0xf]
        %v6883 = vld [vmem:[%s1040 + $0xb50] sm:$0xf]
        %v6884 = vld [vmem:[%s1040 + $0xb54] sm:$0xf]
        %v6885 = vld [vmem:[%s1040 + $0xb58] sm:$0xf]
        %v6886 = vld [vmem:[%s1040 + $0xb5c] sm:$0xf]
        %v6887 = vld [vmem:[%s1040 + $0xb60] sm:$0xf]
        %v6888 = vld [vmem:[%s1040 + $0xb64] sm:$0xf]
        %v6889 = vld [vmem:[%s1040 + $0xb68] sm:$0xf]
        %v6890 = vld [vmem:[%s1040 + $0xb6c] sm:$0xf]
        %v6891 = vld [vmem:[%s1040 + $0xb70] sm:$0xf]
        %v6892 = vld [vmem:[%s1040 + $0xb74] sm:$0xf]
        %v6893 = vld [vmem:[%s1040 + $0xb78] sm:$0xf]
        %v6894 = vld [vmem:[%s1040 + $0xb7c] sm:$0xf]
        %v6895 = vld [vmem:[%s1040 + $0xb80] sm:$0xf]
        %v6896 = vld [vmem:[%s1040 + $0xb84] sm:$0xf]
        %v6897 = vld [vmem:[%s1040 + $0xb88] sm:$0xf]
        %v6898 = vld [vmem:[%s1040 + $0xb8c] sm:$0xf]
        %v6899 = vld [vmem:[%s1040 + $0xb90] sm:$0xf]
        %v6900 = vld [vmem:[%s1040 + $0xb94] sm:$0xf]
        %v6901 = vld [vmem:[%s1040 + $0xb98] sm:$0xf]
        %v6902 = vld [vmem:[%s1040 + $0xb9c] sm:$0xf]
        %v6903 = vld [vmem:[%s1040 + $0xba0] sm:$0xf]
        %v6904 = vld [vmem:[%s1040 + $0xba4] sm:$0xf]
        %v6905 = vld [vmem:[%s1040 + $0xba8] sm:$0xf]
        %v6906 = vld [vmem:[%s1040 + $0xbac] sm:$0xf]
        %v6907 = vld [vmem:[%s1040 + $0xbb0] sm:$0xf]
        %v6908 = vld [vmem:[%s1040 + $0xbb4] sm:$0xf]
        %v6909 = vld [vmem:[%s1040 + $0xbb8] sm:$0xf]
        %v6910 = vld [vmem:[%s1040 + $0xbbc] sm:$0xf]
        %v6911 = vld [vmem:[%s1040 + $0xbc0] sm:$0xf]
        %v6912 = vld [vmem:[%s1040 + $0xbc4] sm:$0xf]
        %v6913 = vld [vmem:[%s1040 + $0xbc8] sm:$0xf]
        %v6914 = vld [vmem:[%s1040 + $0xbcc] sm:$0xf]
        %v6915 = vld [vmem:[%s1040 + $0xbd0] sm:$0xf]
        %v6916 = vld [vmem:[%s1040 + $0xbd4] sm:$0xf]
        %v6917 = vld [vmem:[%s1040 + $0xbd8] sm:$0xf]
        %v6918 = vld [vmem:[%s1040 + $0xbdc] sm:$0xf]
        %v6919 = vld [vmem:[%s1040 + $0xbe0] sm:$0xf]
        %v6920 = vld [vmem:[%s1040 + $0xbe4] sm:$0xf]
        %v6921 = vld [vmem:[%s1040 + $0xbe8] sm:$0xf]
        %v6922 = vld [vmem:[%s1040 + $0xbec] sm:$0xf]
        %v6923 = vld [vmem:[%s1040 + $0xbf0] sm:$0xf]
        %v6924 = vld [vmem:[%s1040 + $0xbf4] sm:$0xf]
        %v6925 = vld [vmem:[%s1040 + $0xbf8] sm:$0xf]
        %v6926 = vld [vmem:[%s1040 + $0xbfc] sm:$0xf]
        %v6927 = vld [vmem:[%s1044] sm:$0x1]
        %v6928 = vld [vmem:[%s1044 + $0x1] sm:$0x1]
        %v6929 = vld [vmem:[%s1044 + $0x2] sm:$0x1]
        %v6930 = vld [vmem:[%s1044 + $0x3] sm:$0x1]
        %v6931 = vld [vmem:[%s1044 + $0x4] sm:$0x1]
        %v6932 = vld [vmem:[%s1044 + $0x5] sm:$0x1]
        %v6933 = vld [vmem:[%s1044 + $0x6] sm:$0x1]
        %v6934 = vld [vmem:[%s1044 + $0x7] sm:$0x1]
        %v6935 = vld [vmem:[%s1044 + $0x8] sm:$0x1]
        %v6936 = vld [vmem:[%s1044 + $0x9] sm:$0x1]
        %v6937 = vld [vmem:[%s1044 + $0xa] sm:$0x1]
        %v6938 = vld [vmem:[%s1044 + $0xb] sm:$0x1]
        %v6939 = vld [vmem:[%s1044 + $0xc] sm:$0x1]
        %v6940 = vld [vmem:[%s1044 + $0xd] sm:$0x1]
        %v6941 = vld [vmem:[%s1044 + $0xe] sm:$0x1]
        %v6942 = vld [vmem:[%s1044 + $0xf] sm:$0x1]
        %v6943 = vld [vmem:[%s1044 + $0x10] sm:$0x1]
        %v6944 = vld [vmem:[%s1044 + $0x11] sm:$0x1]
        %v6945 = vld [vmem:[%s1044 + $0x12] sm:$0x1]
        %v6946 = vld [vmem:[%s1044 + $0x13] sm:$0x1]
        %v6947 = vld [vmem:[%s1044 + $0x14] sm:$0x1]
        %v6948 = vld [vmem:[%s1044 + $0x15] sm:$0x1]
        %v6949 = vld [vmem:[%s1044 + $0x16] sm:$0x1]
        %v6950 = vld [vmem:[%s1044 + $0x17] sm:$0x1]
        %v6951 = vld [vmem:[%s1049] sm:$0xff]
        %v6952 = vld [vmem:[%s1049 + $0x8] sm:$0xff]
        %v6953 = vld [vmem:[%s1049 + $0x10] sm:$0xff]
        %v6954 = vld [vmem:[%s1049 + $0x18] sm:$0xff]
        %v6955 = vld [vmem:[%s1049 + $0x20] sm:$0xff]
        %v6956 = vld [vmem:[%s1049 + $0x28] sm:$0xff]
        %v6957 = vld [vmem:[%s1049 + $0x30] sm:$0xff]
        %v6958 = vld [vmem:[%s1049 + $0x38] sm:$0xff]
        %v6959 = vld [vmem:[%s1049 + $0x40] sm:$0xff]
        %v6960 = vld [vmem:[%s1049 + $0x48] sm:$0xff]
        %v6961 = vld [vmem:[%s1049 + $0x50] sm:$0xff]
        %v6962 = vld [vmem:[%s1049 + $0x58] sm:$0xff]
        %v6963 = vld [vmem:[%s1049 + $0x60] sm:$0xff]
        %v6964 = vld [vmem:[%s1049 + $0x68] sm:$0xff]
        %v6965 = vld [vmem:[%s1049 + $0x70] sm:$0xff]
        %v6966 = vld [vmem:[%s1049 + $0x78] sm:$0xff]
        %v6967 = vld [vmem:[%s1049 + $0x80] sm:$0xff]
        %v6968 = vld [vmem:[%s1049 + $0x88] sm:$0xff]
        %v6969 = vld [vmem:[%s1049 + $0x90] sm:$0xff]
        %v6970 = vld [vmem:[%s1049 + $0x98] sm:$0xff]
        %v6971 = vld [vmem:[%s1049 + $0xa0] sm:$0xff]
        %v6972 = vld [vmem:[%s1049 + $0xa8] sm:$0xff]
        %v6973 = vld [vmem:[%s1049 + $0xb0] sm:$0xff]
        %v6974 = vld [vmem:[%s1049 + $0xb8] sm:$0xff]
        %v6975 = vld [vmem:[%s1049 + $0xc0] sm:$0xff]
        %v6976 = vld [vmem:[%s1049 + $0xc8] sm:$0xff]
        %v6977 = vld [vmem:[%s1049 + $0xd0] sm:$0xff]
        %v6978 = vld [vmem:[%s1049 + $0xd8] sm:$0xff]
        %v6979 = vld [vmem:[%s1049 + $0xe0] sm:$0xff]
        %v6980 = vld [vmem:[%s1049 + $0xe8] sm:$0xff]
        %v6981 = vld [vmem:[%s1049 + $0xf0] sm:$0xff]
        %v6982 = vld [vmem:[%s1049 + $0xf8] sm:$0xff]
        %v6983 = vpack.c.bf16 %v6158, %v6157
        %v6992 = vperm.slane %v6927, 0
        %v6993 = vperm.slane %v6928, 0
        %v6994 = vperm.slane %v6929, 0
        %v6995 = vperm.slane %v6930, 0
        %v6996 = vperm.slane %v6931, 0
        %v6997 = vperm.slane %v6932, 0
        %v6998 = vperm.slane %v6933, 0
        %v6999 = vperm.slane %v6934, 0
        %v7009 = vunpack.c.l.b16 %v6983
        %v7010 = vunpack.c.h.b16 %v6983
        %v7011 = vpack.c.b16 %v7009, %v7009
        %v7012 = vpack.c.b16 %v7010, %v7010
        %v7047 = vunpack.c.l.b16 %v6159
        %v7048 = vunpack.c.l.b16 %v6160
        %v7049 = vunpack.c.l.b16 %v6161
        %v7050 = vunpack.c.l.b16 %v6162
        %v7051 = vunpack.c.l.b16 %v6163
        %v7052 = vunpack.c.l.b16 %v6164
        %v7053 = vunpack.c.l.b16 %v6165
        %v7054 = vunpack.c.l.b16 %v6166
        %v7055 = vunpack.c.l.b16 %v6167
        %v7056 = vunpack.c.l.b16 %v6168
        %v7057 = vunpack.c.l.b16 %v6169
        %v7058 = vunpack.c.l.b16 %v6170
        %v7059 = vunpack.c.l.b16 %v6171
        %v7060 = vunpack.c.l.b16 %v6172
        %v7061 = vunpack.c.l.b16 %v6173
        %v7062 = vunpack.c.l.b16 %v6174
        %v7063 = vunpack.c.l.b16 %v6175
        %v7064 = vunpack.c.l.b16 %v6176
        %v7065 = vunpack.c.l.b16 %v6177
        %v7066 = vunpack.c.l.b16 %v6178
        %v7067 = vunpack.c.l.b16 %v6179
        %v7068 = vunpack.c.l.b16 %v6180
        %v7069 = vunpack.c.l.b16 %v6181
        %v7070 = vunpack.c.l.b16 %v6182
        %v7071 = vunpack.c.l.b16 %v6183
        %v7072 = vunpack.c.l.b16 %v6184
        %v7073 = vunpack.c.l.b16 %v6185
        %v7074 = vunpack.c.l.b16 %v6186
        %v7075 = vunpack.c.l.b16 %v6187
        %v7076 = vunpack.c.l.b16 %v6188
        %v7077 = vunpack.c.l.b16 %v6189
        %v7078 = vunpack.c.l.b16 %v6190
        %v7079 = vpack.c.b16 %v7048, %v7047
        %v7080 = vpack.c.b16 %v7050, %v7049
        %v7081 = vpack.c.b16 %v7052, %v7051
        %v7082 = vpack.c.b16 %v7054, %v7053
        %v7083 = vpack.c.b16 %v7056, %v7055
        %v7084 = vpack.c.b16 %v7058, %v7057
        %v7085 = vpack.c.b16 %v7060, %v7059
        %v7086 = vpack.c.b16 %v7062, %v7061
        %v7087 = vpack.c.b16 %v7064, %v7063
        %v7088 = vpack.c.b16 %v7066, %v7065
        %v7089 = vpack.c.b16 %v7068, %v7067
        %v7090 = vpack.c.b16 %v7070, %v7069
        %v7091 = vpack.c.b16 %v7072, %v7071
        %v7092 = vpack.c.b16 %v7074, %v7073
        %v7093 = vpack.c.b16 %v7076, %v7075
        %v7094 = vpack.c.b16 %v7078, %v7077
        %7111 = vmatpush.bf16.msra.mxu0 %v7086
        %7112 = vmatpush.bf16.msra.mxu0 %v7085
        %7113 = vmatpush.bf16.msra.mxu0 %v7084
        %7114 = vmatpush.bf16.msra.mxu0 %v7083
        %7115 = vmatpush.bf16.msra.mxu0 %v7082
        %7116 = vmatpush.bf16.msra.mxu0 %v7081
        %7117 = vmatpush.bf16.msra.mxu0 %v7080
        %7118 = vmatpush.bf16.msra.mxu0 %v7079
        %7119 = vmatmul.bf16.gmra.mxu0 %v7011
        %v7120 = vpop.f32.mrf.mxu0
        %v7121 = vadd.f32 %v6992, %v7120
        %v7122 = vpop.f32.mrf.mxu0
        %7123 = vdwg.mxu0
        %7124 = vmatpush.bf16.msra.mxu0 %v7094
        %7125 = vmatpush.bf16.msra.mxu0 %v7093
        %7126 = vmatpush.bf16.msra.mxu0 %v7092
        %7127 = vmatpush.bf16.msra.mxu0 %v7091
        %7128 = vmatpush.bf16.msra.mxu0 %v7090
        %7129 = vmatpush.bf16.msra.mxu0 %v7089
        %7130 = vmatpush.bf16.msra.mxu0 %v7088
        %7131 = vmatpush.bf16.msra.mxu0 %v7087
        %7132 = vmatmul.bf16.gmra.mxu0 %v7012
        %v7133 = vpop.f32.mrf.mxu0
        %v7134 = vadd.f32 %v7121, %v7133
        %v7135 = vpop.f32.mrf.mxu0
        %7136 = vdwg.mxu0
        %v7169 = vunpack.c.l.b16 %v6191
        %v7170 = vunpack.c.l.b16 %v6192
        %v7171 = vunpack.c.l.b16 %v6193
        %v7172 = vunpack.c.l.b16 %v6194
        %v7173 = vunpack.c.l.b16 %v6195
        %v7174 = vunpack.c.l.b16 %v6196
        %v7175 = vunpack.c.l.b16 %v6197
        %v7176 = vunpack.c.l.b16 %v6198
        %v7177 = vunpack.c.l.b16 %v6199
        %v7178 = vunpack.c.l.b16 %v6200
        %v7179 = vunpack.c.l.b16 %v6201
        %v7180 = vunpack.c.l.b16 %v6202
        %v7181 = vunpack.c.l.b16 %v6203
        %v7182 = vunpack.c.l.b16 %v6204
        %v7183 = vunpack.c.l.b16 %v6205
        %v7184 = vunpack.c.l.b16 %v6206
        %v7185 = vunpack.c.l.b16 %v6207
        %v7186 = vunpack.c.l.b16 %v6208
        %v7187 = vunpack.c.l.b16 %v6209
        %v7188 = vunpack.c.l.b16 %v6210
        %v7189 = vunpack.c.l.b16 %v6211
        %v7190 = vunpack.c.l.b16 %v6212
        %v7191 = vunpack.c.l.b16 %v6213
        %v7192 = vunpack.c.l.b16 %v6214
        %v7193 = vunpack.c.l.b16 %v6215
        %v7194 = vunpack.c.l.b16 %v6216
        %v7195 = vunpack.c.l.b16 %v6217
        %v7196 = vunpack.c.l.b16 %v6218
        %v7197 = vunpack.c.l.b16 %v6219
        %v7198 = vunpack.c.l.b16 %v6220
        %v7199 = vunpack.c.l.b16 %v6221
        %v7200 = vunpack.c.l.b16 %v6222
        %v7201 = vpack.c.b16 %v7170, %v7169
        %v7202 = vpack.c.b16 %v7172, %v7171
        %v7203 = vpack.c.b16 %v7174, %v7173
        %v7204 = vpack.c.b16 %v7176, %v7175
        %v7205 = vpack.c.b16 %v7178, %v7177
        %v7206 = vpack.c.b16 %v7180, %v7179
        %v7207 = vpack.c.b16 %v7182, %v7181
        %v7208 = vpack.c.b16 %v7184, %v7183
        %v7209 = vpack.c.b16 %v7186, %v7185
        %v7210 = vpack.c.b16 %v7188, %v7187
        %v7211 = vpack.c.b16 %v7190, %v7189
        %v7212 = vpack.c.b16 %v7192, %v7191
        %v7213 = vpack.c.b16 %v7194, %v7193
        %v7214 = vpack.c.b16 %v7196, %v7195
        %v7215 = vpack.c.b16 %v7198, %v7197
        %v7216 = vpack.c.b16 %v7200, %v7199
        %7233 = vmatpush.bf16.msra.mxu0 %v7208
        %7234 = vmatpush.bf16.msra.mxu0 %v7207
        %7235 = vmatpush.bf16.msra.mxu0 %v7206
        %7236 = vmatpush.bf16.msra.mxu0 %v7205
        %7237 = vmatpush.bf16.msra.mxu0 %v7204
        %7238 = vmatpush.bf16.msra.mxu0 %v7203
        %7239 = vmatpush.bf16.msra.mxu0 %v7202
        %7240 = vmatpush.bf16.msra.mxu0 %v7201
        %7241 = vmatmul.bf16.gmra.mxu0 %v7011
        %v7242 = vpop.f32.mrf.mxu0
        %v7243 = vadd.f32 %v6993, %v7242
        %v7244 = vpop.f32.mrf.mxu0
        %7245 = vdwg.mxu0
        %7246 = vmatpush.bf16.msra.mxu0 %v7216
        %7247 = vmatpush.bf16.msra.mxu0 %v7215
        %7248 = vmatpush.bf16.msra.mxu0 %v7214
        %7249 = vmatpush.bf16.msra.mxu0 %v7213
        %7250 = vmatpush.bf16.msra.mxu0 %v7212
        %7251 = vmatpush.bf16.msra.mxu0 %v7211
        %7252 = vmatpush.bf16.msra.mxu0 %v7210
        %7253 = vmatpush.bf16.msra.mxu0 %v7209
        %7254 = vmatmul.bf16.gmra.mxu0 %v7012
        %v7255 = vpop.f32.mrf.mxu0
        %v7256 = vadd.f32 %v7243, %v7255
        %v7257 = vpop.f32.mrf.mxu0
        %7258 = vdwg.mxu0
        %v7291 = vunpack.c.l.b16 %v6223
        %v7292 = vunpack.c.l.b16 %v6224
        %v7293 = vunpack.c.l.b16 %v6225
        %v7294 = vunpack.c.l.b16 %v6226
        %v7295 = vunpack.c.l.b16 %v6227
        %v7296 = vunpack.c.l.b16 %v6228
        %v7297 = vunpack.c.l.b16 %v6229
        %v7298 = vunpack.c.l.b16 %v6230
        %v7299 = vunpack.c.l.b16 %v6231
        %v7300 = vunpack.c.l.b16 %v6232
        %v7301 = vunpack.c.l.b16 %v6233
        %v7302 = vunpack.c.l.b16 %v6234
        %v7303 = vunpack.c.l.b16 %v6235
        %v7304 = vunpack.c.l.b16 %v6236
        %v7305 = vunpack.c.l.b16 %v6237
        %v7306 = vunpack.c.l.b16 %v6238
        %v7307 = vunpack.c.l.b16 %v6239
        %v7308 = vunpack.c.l.b16 %v6240
        %v7309 = vunpack.c.l.b16 %v6241
        %v7310 = vunpack.c.l.b16 %v6242
        %v7311 = vunpack.c.l.b16 %v6243
        %v7312 = vunpack.c.l.b16 %v6244
        %v7313 = vunpack.c.l.b16 %v6245
        %v7314 = vunpack.c.l.b16 %v6246
        %v7315 = vunpack.c.l.b16 %v6247
        %v7316 = vunpack.c.l.b16 %v6248
        %v7317 = vunpack.c.l.b16 %v6249
        %v7318 = vunpack.c.l.b16 %v6250
        %v7319 = vunpack.c.l.b16 %v6251
        %v7320 = vunpack.c.l.b16 %v6252
        %v7321 = vunpack.c.l.b16 %v6253
        %v7322 = vunpack.c.l.b16 %v6254
        %v7323 = vpack.c.b16 %v7292, %v7291
        %v7324 = vpack.c.b16 %v7294, %v7293
        %v7325 = vpack.c.b16 %v7296, %v7295
        %v7326 = vpack.c.b16 %v7298, %v7297
        %v7327 = vpack.c.b16 %v7300, %v7299
        %v7328 = vpack.c.b16 %v7302, %v7301
        %v7329 = vpack.c.b16 %v7304, %v7303
        %v7330 = vpack.c.b16 %v7306, %v7305
        %v7331 = vpack.c.b16 %v7308, %v7307
        %v7332 = vpack.c.b16 %v7310, %v7309
        %v7333 = vpack.c.b16 %v7312, %v7311
        %v7334 = vpack.c.b16 %v7314, %v7313
        %v7335 = vpack.c.b16 %v7316, %v7315
        %v7336 = vpack.c.b16 %v7318, %v7317
        %v7337 = vpack.c.b16 %v7320, %v7319
        %v7338 = vpack.c.b16 %v7322, %v7321
        %7355 = vmatpush.bf16.msra.mxu0 %v7330
        %7356 = vmatpush.bf16.msra.mxu0 %v7329
        %7357 = vmatpush.bf16.msra.mxu0 %v7328
        %7358 = vmatpush.bf16.msra.mxu0 %v7327
        %7359 = vmatpush.bf16.msra.mxu0 %v7326
        %7360 = vmatpush.bf16.msra.mxu0 %v7325
        %7361 = vmatpush.bf16.msra.mxu0 %v7324
        %7362 = vmatpush.bf16.msra.mxu0 %v7323
        %7363 = vmatmul.bf16.gmra.mxu0 %v7011
        %v7364 = vpop.f32.mrf.mxu0
        %v7365 = vadd.f32 %v6994, %v7364
        %v7366 = vpop.f32.mrf.mxu0
        %7367 = vdwg.mxu0
        %7368 = vmatpush.bf16.msra.mxu0 %v7338
        %7369 = vmatpush.bf16.msra.mxu0 %v7337
        %7370 = vmatpush.bf16.msra.mxu0 %v7336
        %7371 = vmatpush.bf16.msra.mxu0 %v7335
        %7372 = vmatpush.bf16.msra.mxu0 %v7334
        %7373 = vmatpush.bf16.msra.mxu0 %v7333
        %7374 = vmatpush.bf16.msra.mxu0 %v7332
        %7375 = vmatpush.bf16.msra.mxu0 %v7331
        %7376 = vmatmul.bf16.gmra.mxu0 %v7012
        %v7377 = vpop.f32.mrf.mxu0
        %v7378 = vadd.f32 %v7365, %v7377
        %v7379 = vpop.f32.mrf.mxu0
        %7380 = vdwg.mxu0
        %v7413 = vunpack.c.l.b16 %v6255
        %v7414 = vunpack.c.l.b16 %v6256
        %v7415 = vunpack.c.l.b16 %v6257
        %v7416 = vunpack.c.l.b16 %v6258
        %v7417 = vunpack.c.l.b16 %v6259
        %v7418 = vunpack.c.l.b16 %v6260
        %v7419 = vunpack.c.l.b16 %v6261
        %v7420 = vunpack.c.l.b16 %v6262
        %v7421 = vunpack.c.l.b16 %v6263
        %v7422 = vunpack.c.l.b16 %v6264
        %v7423 = vunpack.c.l.b16 %v6265
        %v7424 = vunpack.c.l.b16 %v6266
        %v7425 = vunpack.c.l.b16 %v6267
        %v7426 = vunpack.c.l.b16 %v6268
        %v7427 = vunpack.c.l.b16 %v6269
        %v7428 = vunpack.c.l.b16 %v6270
        %v7429 = vunpack.c.l.b16 %v6271
        %v7430 = vunpack.c.l.b16 %v6272
        %v7431 = vunpack.c.l.b16 %v6273
        %v7432 = vunpack.c.l.b16 %v6274
        %v7433 = vunpack.c.l.b16 %v6275
        %v7434 = vunpack.c.l.b16 %v6276
        %v7435 = vunpack.c.l.b16 %v6277
        %v7436 = vunpack.c.l.b16 %v6278
        %v7437 = vunpack.c.l.b16 %v6279
        %v7438 = vunpack.c.l.b16 %v6280
        %v7439 = vunpack.c.l.b16 %v6281
        %v7440 = vunpack.c.l.b16 %v6282
        %v7441 = vunpack.c.l.b16 %v6283
        %v7442 = vunpack.c.l.b16 %v6284
        %v7443 = vunpack.c.l.b16 %v6285
        %v7444 = vunpack.c.l.b16 %v6286
        %v7445 = vpack.c.b16 %v7414, %v7413
        %v7446 = vpack.c.b16 %v7416, %v7415
        %v7447 = vpack.c.b16 %v7418, %v7417
        %v7448 = vpack.c.b16 %v7420, %v7419
        %v7449 = vpack.c.b16 %v7422, %v7421
        %v7450 = vpack.c.b16 %v7424, %v7423
        %v7451 = vpack.c.b16 %v7426, %v7425
        %v7452 = vpack.c.b16 %v7428, %v7427
        %v7453 = vpack.c.b16 %v7430, %v7429
        %v7454 = vpack.c.b16 %v7432, %v7431
        %v7455 = vpack.c.b16 %v7434, %v7433
        %v7456 = vpack.c.b16 %v7436, %v7435
        %v7457 = vpack.c.b16 %v7438, %v7437
        %v7458 = vpack.c.b16 %v7440, %v7439
        %v7459 = vpack.c.b16 %v7442, %v7441
        %v7460 = vpack.c.b16 %v7444, %v7443
        %7477 = vmatpush.bf16.msra.mxu0 %v7452
        %7478 = vmatpush.bf16.msra.mxu0 %v7451
        %7479 = vmatpush.bf16.msra.mxu0 %v7450
        %7480 = vmatpush.bf16.msra.mxu0 %v7449
        %7481 = vmatpush.bf16.msra.mxu0 %v7448
        %7482 = vmatpush.bf16.msra.mxu0 %v7447
        %7483 = vmatpush.bf16.msra.mxu0 %v7446
        %7484 = vmatpush.bf16.msra.mxu0 %v7445
        %7485 = vmatmul.bf16.gmra.mxu0 %v7011
        %v7486 = vpop.f32.mrf.mxu0
        %v7487 = vadd.f32 %v6995, %v7486
        %v7488 = vpop.f32.mrf.mxu0
        %7489 = vdwg.mxu0
        %7490 = vmatpush.bf16.msra.mxu0 %v7460
        %7491 = vmatpush.bf16.msra.mxu0 %v7459
        %7492 = vmatpush.bf16.msra.mxu0 %v7458
        %7493 = vmatpush.bf16.msra.mxu0 %v7457
        %7494 = vmatpush.bf16.msra.mxu0 %v7456
        %7495 = vmatpush.bf16.msra.mxu0 %v7455
        %7496 = vmatpush.bf16.msra.mxu0 %v7454
        %7497 = vmatpush.bf16.msra.mxu0 %v7453
        %7498 = vmatmul.bf16.gmra.mxu0 %v7012
        %v7499 = vpop.f32.mrf.mxu0
        %v7500 = vadd.f32 %v7487, %v7499
        %v7501 = vpop.f32.mrf.mxu0
        %7502 = vdwg.mxu0
        %v7535 = vunpack.c.l.b16 %v6287
        %v7536 = vunpack.c.l.b16 %v6288
        %v7537 = vunpack.c.l.b16 %v6289
        %v7538 = vunpack.c.l.b16 %v6290
        %v7539 = vunpack.c.l.b16 %v6291
        %v7540 = vunpack.c.l.b16 %v6292
        %v7541 = vunpack.c.l.b16 %v6293
        %v7542 = vunpack.c.l.b16 %v6294
        %v7543 = vunpack.c.l.b16 %v6295
        %v7544 = vunpack.c.l.b16 %v6296
        %v7545 = vunpack.c.l.b16 %v6297
        %v7546 = vunpack.c.l.b16 %v6298
        %v7547 = vunpack.c.l.b16 %v6299
        %v7548 = vunpack.c.l.b16 %v6300
        %v7549 = vunpack.c.l.b16 %v6301
        %v7550 = vunpack.c.l.b16 %v6302
        %v7551 = vunpack.c.l.b16 %v6303
        %v7552 = vunpack.c.l.b16 %v6304
        %v7553 = vunpack.c.l.b16 %v6305
        %v7554 = vunpack.c.l.b16 %v6306
        %v7555 = vunpack.c.l.b16 %v6307
        %v7556 = vunpack.c.l.b16 %v6308
        %v7557 = vunpack.c.l.b16 %v6309
        %v7558 = vunpack.c.l.b16 %v6310
        %v7559 = vunpack.c.l.b16 %v6311
        %v7560 = vunpack.c.l.b16 %v6312
        %v7561 = vunpack.c.l.b16 %v6313
        %v7562 = vunpack.c.l.b16 %v6314
        %v7563 = vunpack.c.l.b16 %v6315
        %v7564 = vunpack.c.l.b16 %v6316
        %v7565 = vunpack.c.l.b16 %v6317
        %v7566 = vunpack.c.l.b16 %v6318
        %v7567 = vpack.c.b16 %v7536, %v7535
        %v7568 = vpack.c.b16 %v7538, %v7537
        %v7569 = vpack.c.b16 %v7540, %v7539
        %v7570 = vpack.c.b16 %v7542, %v7541
        %v7571 = vpack.c.b16 %v7544, %v7543
        %v7572 = vpack.c.b16 %v7546, %v7545
        %v7573 = vpack.c.b16 %v7548, %v7547
        %v7574 = vpack.c.b16 %v7550, %v7549
        %v7575 = vpack.c.b16 %v7552, %v7551
        %v7576 = vpack.c.b16 %v7554, %v7553
        %v7577 = vpack.c.b16 %v7556, %v7555
        %v7578 = vpack.c.b16 %v7558, %v7557
        %v7579 = vpack.c.b16 %v7560, %v7559
        %v7580 = vpack.c.b16 %v7562, %v7561
        %v7581 = vpack.c.b16 %v7564, %v7563
        %v7582 = vpack.c.b16 %v7566, %v7565
        %7599 = vmatpush.bf16.msra.mxu0 %v7574
        %7600 = vmatpush.bf16.msra.mxu0 %v7573
        %7601 = vmatpush.bf16.msra.mxu0 %v7572
        %7602 = vmatpush.bf16.msra.mxu0 %v7571
        %7603 = vmatpush.bf16.msra.mxu0 %v7570
        %7604 = vmatpush.bf16.msra.mxu0 %v7569
        %7605 = vmatpush.bf16.msra.mxu0 %v7568
        %7606 = vmatpush.bf16.msra.mxu0 %v7567
        %7607 = vmatmul.bf16.gmra.mxu0 %v7011
        %v7608 = vpop.f32.mrf.mxu0
        %v7609 = vadd.f32 %v6996, %v7608
        %v7610 = vpop.f32.mrf.mxu0
        %7611 = vdwg.mxu0
        %7612 = vmatpush.bf16.msra.mxu0 %v7582
        %7613 = vmatpush.bf16.msra.mxu0 %v7581
        %7614 = vmatpush.bf16.msra.mxu0 %v7580
        %7615 = vmatpush.bf16.msra.mxu0 %v7579
        %7616 = vmatpush.bf16.msra.mxu0 %v7578
        %7617 = vmatpush.bf16.msra.mxu0 %v7577
        %7618 = vmatpush.bf16.msra.mxu0 %v7576
        %7619 = vmatpush.bf16.msra.mxu0 %v7575
        %7620 = vmatmul.bf16.gmra.mxu0 %v7012
        %v7621 = vpop.f32.mrf.mxu0
        %v7622 = vadd.f32 %v7609, %v7621
        %v7623 = vpop.f32.mrf.mxu0
        %7624 = vdwg.mxu0
        %v7657 = vunpack.c.l.b16 %v6319
        %v7658 = vunpack.c.l.b16 %v6320
        %v7659 = vunpack.c.l.b16 %v6321
        %v7660 = vunpack.c.l.b16 %v6322
        %v7661 = vunpack.c.l.b16 %v6323
        %v7662 = vunpack.c.l.b16 %v6324
        %v7663 = vunpack.c.l.b16 %v6325
        %v7664 = vunpack.c.l.b16 %v6326
        %v7665 = vunpack.c.l.b16 %v6327
        %v7666 = vunpack.c.l.b16 %v6328
        %v7667 = vunpack.c.l.b16 %v6329
        %v7668 = vunpack.c.l.b16 %v6330
        %v7669 = vunpack.c.l.b16 %v6331
        %v7670 = vunpack.c.l.b16 %v6332
        %v7671 = vunpack.c.l.b16 %v6333
        %v7672 = vunpack.c.l.b16 %v6334
        %v7673 = vunpack.c.l.b16 %v6335
        %v7674 = vunpack.c.l.b16 %v6336
        %v7675 = vunpack.c.l.b16 %v6337
        %v7676 = vunpack.c.l.b16 %v6338
        %v7677 = vunpack.c.l.b16 %v6339
        %v7678 = vunpack.c.l.b16 %v6340
        %v7679 = vunpack.c.l.b16 %v6341
        %v7680 = vunpack.c.l.b16 %v6342
        %v7681 = vunpack.c.l.b16 %v6343
        %v7682 = vunpack.c.l.b16 %v6344
        %v7683 = vunpack.c.l.b16 %v6345
        %v7684 = vunpack.c.l.b16 %v6346
        %v7685 = vunpack.c.l.b16 %v6347
        %v7686 = vunpack.c.l.b16 %v6348
        %v7687 = vunpack.c.l.b16 %v6349
        %v7688 = vunpack.c.l.b16 %v6350
        %v7689 = vpack.c.b16 %v7658, %v7657
        %v7690 = vpack.c.b16 %v7660, %v7659
        %v7691 = vpack.c.b16 %v7662, %v7661
        %v7692 = vpack.c.b16 %v7664, %v7663
        %v7693 = vpack.c.b16 %v7666, %v7665
        %v7694 = vpack.c.b16 %v7668, %v7667
        %v7695 = vpack.c.b16 %v7670, %v7669
        %v7696 = vpack.c.b16 %v7672, %v7671
        %v7697 = vpack.c.b16 %v7674, %v7673
        %v7698 = vpack.c.b16 %v7676, %v7675
        %v7699 = vpack.c.b16 %v7678, %v7677
        %v7700 = vpack.c.b16 %v7680, %v7679
        %v7701 = vpack.c.b16 %v7682, %v7681
        %v7702 = vpack.c.b16 %v7684, %v7683
        %v7703 = vpack.c.b16 %v7686, %v7685
        %v7704 = vpack.c.b16 %v7688, %v7687
        %7721 = vmatpush.bf16.msra.mxu0 %v7696
        %7722 = vmatpush.bf16.msra.mxu0 %v7695
        %7723 = vmatpush.bf16.msra.mxu0 %v7694
        %7724 = vmatpush.bf16.msra.mxu0 %v7693
        %7725 = vmatpush.bf16.msra.mxu0 %v7692
        %7726 = vmatpush.bf16.msra.mxu0 %v7691
        %7727 = vmatpush.bf16.msra.mxu0 %v7690
        %7728 = vmatpush.bf16.msra.mxu0 %v7689
        %7729 = vmatmul.bf16.gmra.mxu0 %v7011
        %v7730 = vpop.f32.mrf.mxu0
        %v7731 = vadd.f32 %v6997, %v7730
        %v7732 = vpop.f32.mrf.mxu0
        %7733 = vdwg.mxu0
        %7734 = vmatpush.bf16.msra.mxu0 %v7704
        %7735 = vmatpush.bf16.msra.mxu0 %v7703
        %7736 = vmatpush.bf16.msra.mxu0 %v7702
        %7737 = vmatpush.bf16.msra.mxu0 %v7701
        %7738 = vmatpush.bf16.msra.mxu0 %v7700
        %7739 = vmatpush.bf16.msra.mxu0 %v7699
        %7740 = vmatpush.bf16.msra.mxu0 %v7698
        %7741 = vmatpush.bf16.msra.mxu0 %v7697
        %7742 = vmatmul.bf16.gmra.mxu0 %v7012
        %v7743 = vpop.f32.mrf.mxu0
        %v7744 = vadd.f32 %v7731, %v7743
        %v7745 = vpop.f32.mrf.mxu0
        %7746 = vdwg.mxu0
        %v7779 = vunpack.c.l.b16 %v6351
        %v7780 = vunpack.c.l.b16 %v6352
        %v7781 = vunpack.c.l.b16 %v6353
        %v7782 = vunpack.c.l.b16 %v6354
        %v7783 = vunpack.c.l.b16 %v6355
        %v7784 = vunpack.c.l.b16 %v6356
        %v7785 = vunpack.c.l.b16 %v6357
        %v7786 = vunpack.c.l.b16 %v6358
        %v7787 = vunpack.c.l.b16 %v6359
        %v7788 = vunpack.c.l.b16 %v6360
        %v7789 = vunpack.c.l.b16 %v6361
        %v7790 = vunpack.c.l.b16 %v6362
        %v7791 = vunpack.c.l.b16 %v6363
        %v7792 = vunpack.c.l.b16 %v6364
        %v7793 = vunpack.c.l.b16 %v6365
        %v7794 = vunpack.c.l.b16 %v6366
        %v7795 = vunpack.c.l.b16 %v6367
        %v7796 = vunpack.c.l.b16 %v6368
        %v7797 = vunpack.c.l.b16 %v6369
        %v7798 = vunpack.c.l.b16 %v6370
        %v7799 = vunpack.c.l.b16 %v6371
        %v7800 = vunpack.c.l.b16 %v6372
        %v7801 = vunpack.c.l.b16 %v6373
        %v7802 = vunpack.c.l.b16 %v6374
        %v7803 = vunpack.c.l.b16 %v6375
        %v7804 = vunpack.c.l.b16 %v6376
        %v7805 = vunpack.c.l.b16 %v6377
        %v7806 = vunpack.c.l.b16 %v6378
        %v7807 = vunpack.c.l.b16 %v6379
        %v7808 = vunpack.c.l.b16 %v6380
        %v7809 = vunpack.c.l.b16 %v6381
        %v7810 = vunpack.c.l.b16 %v6382
        %v7811 = vpack.c.b16 %v7780, %v7779
        %v7812 = vpack.c.b16 %v7782, %v7781
        %v7813 = vpack.c.b16 %v7784, %v7783
        %v7814 = vpack.c.b16 %v7786, %v7785
        %v7815 = vpack.c.b16 %v7788, %v7787
        %v7816 = vpack.c.b16 %v7790, %v7789
        %v7817 = vpack.c.b16 %v7792, %v7791
        %v7818 = vpack.c.b16 %v7794, %v7793
        %v7819 = vpack.c.b16 %v7796, %v7795
        %v7820 = vpack.c.b16 %v7798, %v7797
        %v7821 = vpack.c.b16 %v7800, %v7799
        %v7822 = vpack.c.b16 %v7802, %v7801
        %v7823 = vpack.c.b16 %v7804, %v7803
        %v7824 = vpack.c.b16 %v7806, %v7805
        %v7825 = vpack.c.b16 %v7808, %v7807
        %v7826 = vpack.c.b16 %v7810, %v7809
        %7843 = vmatpush.bf16.msra.mxu0 %v7818
        %7844 = vmatpush.bf16.msra.mxu0 %v7817
        %7845 = vmatpush.bf16.msra.mxu0 %v7816
        %7846 = vmatpush.bf16.msra.mxu0 %v7815
        %7847 = vmatpush.bf16.msra.mxu0 %v7814
        %7848 = vmatpush.bf16.msra.mxu0 %v7813
        %7849 = vmatpush.bf16.msra.mxu0 %v7812
        %7850 = vmatpush.bf16.msra.mxu0 %v7811
        %7851 = vmatmul.bf16.gmra.mxu0 %v7011
        %v7852 = vpop.f32.mrf.mxu0
        %v7853 = vadd.f32 %v6998, %v7852
        %v7854 = vpop.f32.mrf.mxu0
        %7855 = vdwg.mxu0
        %7856 = vmatpush.bf16.msra.mxu0 %v7826
        %7857 = vmatpush.bf16.msra.mxu0 %v7825
        %7858 = vmatpush.bf16.msra.mxu0 %v7824
        %7859 = vmatpush.bf16.msra.mxu0 %v7823
        %7860 = vmatpush.bf16.msra.mxu0 %v7822
        %7861 = vmatpush.bf16.msra.mxu0 %v7821
        %7862 = vmatpush.bf16.msra.mxu0 %v7820
        %7863 = vmatpush.bf16.msra.mxu0 %v7819
        %7864 = vmatmul.bf16.gmra.mxu0 %v7012
        %v7865 = vpop.f32.mrf.mxu0
        %v7866 = vadd.f32 %v7853, %v7865
        %v7867 = vpop.f32.mrf.mxu0
        %7868 = vdwg.mxu0
        %v7901 = vunpack.c.l.b16 %v6383
        %v7902 = vunpack.c.l.b16 %v6384
        %v7903 = vunpack.c.l.b16 %v6385
        %v7904 = vunpack.c.l.b16 %v6386
        %v7905 = vunpack.c.l.b16 %v6387
        %v7906 = vunpack.c.l.b16 %v6388
        %v7907 = vunpack.c.l.b16 %v6389
        %v7908 = vunpack.c.l.b16 %v6390
        %v7909 = vunpack.c.l.b16 %v6391
        %v7910 = vunpack.c.l.b16 %v6392
        %v7911 = vunpack.c.l.b16 %v6393
        %v7912 = vunpack.c.l.b16 %v6394
        %v7913 = vunpack.c.l.b16 %v6395
        %v7914 = vunpack.c.l.b16 %v6396
        %v7915 = vunpack.c.l.b16 %v6397
        %v7916 = vunpack.c.l.b16 %v6398
        %v7917 = vunpack.c.l.b16 %v6399
        %v7918 = vunpack.c.l.b16 %v6400
        %v7919 = vunpack.c.l.b16 %v6401
        %v7920 = vunpack.c.l.b16 %v6402
        %v7921 = vunpack.c.l.b16 %v6403
        %v7922 = vunpack.c.l.b16 %v6404
        %v7923 = vunpack.c.l.b16 %v6405
        %v7924 = vunpack.c.l.b16 %v6406
        %v7925 = vunpack.c.l.b16 %v6407
        %v7926 = vunpack.c.l.b16 %v6408
        %v7927 = vunpack.c.l.b16 %v6409
        %v7928 = vunpack.c.l.b16 %v6410
        %v7929 = vunpack.c.l.b16 %v6411
        %v7930 = vunpack.c.l.b16 %v6412
        %v7931 = vunpack.c.l.b16 %v6413
        %v7932 = vunpack.c.l.b16 %v6414
        %v7933 = vpack.c.b16 %v7902, %v7901
        %v7934 = vpack.c.b16 %v7904, %v7903
        %v7935 = vpack.c.b16 %v7906, %v7905
        %v7936 = vpack.c.b16 %v7908, %v7907
        %v7937 = vpack.c.b16 %v7910, %v7909
        %v7938 = vpack.c.b16 %v7912, %v7911
        %v7939 = vpack.c.b16 %v7914, %v7913
        %v7940 = vpack.c.b16 %v7916, %v7915
        %v7941 = vpack.c.b16 %v7918, %v7917
        %v7942 = vpack.c.b16 %v7920, %v7919
        %v7943 = vpack.c.b16 %v7922, %v7921
        %v7944 = vpack.c.b16 %v7924, %v7923
        %v7945 = vpack.c.b16 %v7926, %v7925
        %v7946 = vpack.c.b16 %v7928, %v7927
        %v7947 = vpack.c.b16 %v7930, %v7929
        %v7948 = vpack.c.b16 %v7932, %v7931
        %7965 = vmatpush.bf16.msra.mxu0 %v7940
        %7966 = vmatpush.bf16.msra.mxu0 %v7939
        %7967 = vmatpush.bf16.msra.mxu0 %v7938
        %7968 = vmatpush.bf16.msra.mxu0 %v7937
        %7969 = vmatpush.bf16.msra.mxu0 %v7936
        %7970 = vmatpush.bf16.msra.mxu0 %v7935
        %7971 = vmatpush.bf16.msra.mxu0 %v7934
        %7972 = vmatpush.bf16.msra.mxu0 %v7933
        %7973 = vmatmul.bf16.gmra.mxu0 %v7011
        %v7974 = vpop.f32.mrf.mxu0
        %v7975 = vadd.f32 %v6999, %v7974
        %v7976 = vpop.f32.mrf.mxu0
        %7977 = vdwg.mxu0
        %7978 = vmatpush.bf16.msra.mxu0 %v7948
        %7979 = vmatpush.bf16.msra.mxu0 %v7947
        %7980 = vmatpush.bf16.msra.mxu0 %v7946
        %7981 = vmatpush.bf16.msra.mxu0 %v7945
        %7982 = vmatpush.bf16.msra.mxu0 %v7944
        %7983 = vmatpush.bf16.msra.mxu0 %v7943
        %7984 = vmatpush.bf16.msra.mxu0 %v7942
        %7985 = vmatpush.bf16.msra.mxu0 %v7941
        %7986 = vmatmul.bf16.gmra.mxu0 %v7012
        %v7987 = vpop.f32.mrf.mxu0
        %v7988 = vadd.f32 %v7975, %v7987
        %v7989 = vpop.f32.mrf.mxu0
        %7990 = vdwg.mxu0
        %v8007 = vperm.slane %v6935, 0
        %v8008 = vperm.slane %v6936, 0
        %v8009 = vperm.slane %v6937, 0
        %v8010 = vperm.slane %v6938, 0
        %v8011 = vperm.slane %v6939, 0
        %v8012 = vperm.slane %v6940, 0
        %v8013 = vperm.slane %v6941, 0
        %v8014 = vperm.slane %v6942, 0
        %v8015 = vperm.slane %v6943, 0
        %v8016 = vperm.slane %v6944, 0
        %v8017 = vperm.slane %v6945, 0
        %v8018 = vperm.slane %v6946, 0
        %v8019 = vperm.slane %v6947, 0
        %v8020 = vperm.slane %v6948, 0
        %v8021 = vperm.slane %v6949, 0
        %v8022 = vperm.slane %v6950, 0
        %v8040 = vunpack.c.l.b16 %v1415
        %v8041 = vunpack.c.h.b16 %v1415
        %v8042 = vpack.c.b16 %v8040, %v8040
        %v8043 = vpack.c.b16 %v8041, %v8041
        %v8078 = vunpack.c.l.b16 %v6415
        %v8079 = vunpack.c.l.b16 %v6416
        %v8080 = vunpack.c.l.b16 %v6417
        %v8081 = vunpack.c.l.b16 %v6418
        %v8082 = vunpack.c.l.b16 %v6419
        %v8083 = vunpack.c.l.b16 %v6420
        %v8084 = vunpack.c.l.b16 %v6421
        %v8085 = vunpack.c.l.b16 %v6422
        %v8086 = vunpack.c.l.b16 %v6423
        %v8087 = vunpack.c.l.b16 %v6424
        %v8088 = vunpack.c.l.b16 %v6425
        %v8089 = vunpack.c.l.b16 %v6426
        %v8090 = vunpack.c.l.b16 %v6427
        %v8091 = vunpack.c.l.b16 %v6428
        %v8092 = vunpack.c.l.b16 %v6429
        %v8093 = vunpack.c.l.b16 %v6430
        %v8094 = vunpack.c.l.b16 %v6431
        %v8095 = vunpack.c.l.b16 %v6432
        %v8096 = vunpack.c.l.b16 %v6433
        %v8097 = vunpack.c.l.b16 %v6434
        %v8098 = vunpack.c.l.b16 %v6435
        %v8099 = vunpack.c.l.b16 %v6436
        %v8100 = vunpack.c.l.b16 %v6437
        %v8101 = vunpack.c.l.b16 %v6438
        %v8102 = vunpack.c.l.b16 %v6439
        %v8103 = vunpack.c.l.b16 %v6440
        %v8104 = vunpack.c.l.b16 %v6441
        %v8105 = vunpack.c.l.b16 %v6442
        %v8106 = vunpack.c.l.b16 %v6443
        %v8107 = vunpack.c.l.b16 %v6444
        %v8108 = vunpack.c.l.b16 %v6445
        %v8109 = vunpack.c.l.b16 %v6446
        %v8110 = vpack.c.b16 %v8079, %v8078
        %v8111 = vpack.c.b16 %v8081, %v8080
        %v8112 = vpack.c.b16 %v8083, %v8082
        %v8113 = vpack.c.b16 %v8085, %v8084
        %v8114 = vpack.c.b16 %v8087, %v8086
        %v8115 = vpack.c.b16 %v8089, %v8088
        %v8116 = vpack.c.b16 %v8091, %v8090
        %v8117 = vpack.c.b16 %v8093, %v8092
        %v8118 = vpack.c.b16 %v8095, %v8094
        %v8119 = vpack.c.b16 %v8097, %v8096
        %v8120 = vpack.c.b16 %v8099, %v8098
        %v8121 = vpack.c.b16 %v8101, %v8100
        %v8122 = vpack.c.b16 %v8103, %v8102
        %v8123 = vpack.c.b16 %v8105, %v8104
        %v8124 = vpack.c.b16 %v8107, %v8106
        %v8125 = vpack.c.b16 %v8109, %v8108
        %8142 = vmatpush.bf16.msra.mxu0 %v8117
        %8143 = vmatpush.bf16.msra.mxu0 %v8116
        %8144 = vmatpush.bf16.msra.mxu0 %v8115
        %8145 = vmatpush.bf16.msra.mxu0 %v8114
        %8146 = vmatpush.bf16.msra.mxu0 %v8113
        %8147 = vmatpush.bf16.msra.mxu0 %v8112
        %8148 = vmatpush.bf16.msra.mxu0 %v8111
        %8149 = vmatpush.bf16.msra.mxu0 %v8110
        %8150 = vmatmul.bf16.gmra.mxu0 %v8042
        %v8151 = vpop.f32.mrf.mxu0
        %v8152 = vadd.f32 %v8007, %v8151
        %v8153 = vpop.f32.mrf.mxu0
        %8154 = vdwg.mxu0
        %8155 = vmatpush.bf16.msra.mxu0 %v8125
        %8156 = vmatpush.bf16.msra.mxu0 %v8124
        %8157 = vmatpush.bf16.msra.mxu0 %v8123
        %8158 = vmatpush.bf16.msra.mxu0 %v8122
        %8159 = vmatpush.bf16.msra.mxu0 %v8121
        %8160 = vmatpush.bf16.msra.mxu0 %v8120
        %8161 = vmatpush.bf16.msra.mxu0 %v8119
        %8162 = vmatpush.bf16.msra.mxu0 %v8118
        %8163 = vmatmul.bf16.gmra.mxu0 %v8043
        %v8164 = vpop.f32.mrf.mxu0
        %v8165 = vadd.f32 %v8152, %v8164
        %v8166 = vpop.f32.mrf.mxu0
        %8167 = vdwg.mxu0
        %v8200 = vunpack.c.l.b16 %v6447
        %v8201 = vunpack.c.l.b16 %v6448
        %v8202 = vunpack.c.l.b16 %v6449
        %v8203 = vunpack.c.l.b16 %v6450
        %v8204 = vunpack.c.l.b16 %v6451
        %v8205 = vunpack.c.l.b16 %v6452
        %v8206 = vunpack.c.l.b16 %v6453
        %v8207 = vunpack.c.l.b16 %v6454
        %v8208 = vunpack.c.l.b16 %v6455
        %v8209 = vunpack.c.l.b16 %v6456
        %v8210 = vunpack.c.l.b16 %v6457
        %v8211 = vunpack.c.l.b16 %v6458
        %v8212 = vunpack.c.l.b16 %v6459
        %v8213 = vunpack.c.l.b16 %v6460
        %v8214 = vunpack.c.l.b16 %v6461
        %v8215 = vunpack.c.l.b16 %v6462
        %v8216 = vunpack.c.l.b16 %v6463
        %v8217 = vunpack.c.l.b16 %v6464
        %v8218 = vunpack.c.l.b16 %v6465
        %v8219 = vunpack.c.l.b16 %v6466
        %v8220 = vunpack.c.l.b16 %v6467
        %v8221 = vunpack.c.l.b16 %v6468
        %v8222 = vunpack.c.l.b16 %v6469
        %v8223 = vunpack.c.l.b16 %v6470
        %v8224 = vunpack.c.l.b16 %v6471
        %v8225 = vunpack.c.l.b16 %v6472
        %v8226 = vunpack.c.l.b16 %v6473
        %v8227 = vunpack.c.l.b16 %v6474
        %v8228 = vunpack.c.l.b16 %v6475
        %v8229 = vunpack.c.l.b16 %v6476
        %v8230 = vunpack.c.l.b16 %v6477
        %v8231 = vunpack.c.l.b16 %v6478
        %v8232 = vpack.c.b16 %v8201, %v8200
        %v8233 = vpack.c.b16 %v8203, %v8202
        %v8234 = vpack.c.b16 %v8205, %v8204
        %v8235 = vpack.c.b16 %v8207, %v8206
        %v8236 = vpack.c.b16 %v8209, %v8208
        %v8237 = vpack.c.b16 %v8211, %v8210
        %v8238 = vpack.c.b16 %v8213, %v8212
        %v8239 = vpack.c.b16 %v8215, %v8214
        %v8240 = vpack.c.b16 %v8217, %v8216
        %v8241 = vpack.c.b16 %v8219, %v8218
        %v8242 = vpack.c.b16 %v8221, %v8220
        %v8243 = vpack.c.b16 %v8223, %v8222
        %v8244 = vpack.c.b16 %v8225, %v8224
        %v8245 = vpack.c.b16 %v8227, %v8226
        %v8246 = vpack.c.b16 %v8229, %v8228
        %v8247 = vpack.c.b16 %v8231, %v8230
        %8264 = vmatpush.bf16.msra.mxu0 %v8239
        %8265 = vmatpush.bf16.msra.mxu0 %v8238
        %8266 = vmatpush.bf16.msra.mxu0 %v8237
        %8267 = vmatpush.bf16.msra.mxu0 %v8236
        %8268 = vmatpush.bf16.msra.mxu0 %v8235
        %8269 = vmatpush.bf16.msra.mxu0 %v8234
        %8270 = vmatpush.bf16.msra.mxu0 %v8233
        %8271 = vmatpush.bf16.msra.mxu0 %v8232
        %8272 = vmatmul.bf16.gmra.mxu0 %v8042
        %v8273 = vpop.f32.mrf.mxu0
        %v8274 = vadd.f32 %v8008, %v8273
        %v8275 = vpop.f32.mrf.mxu0
        %8276 = vdwg.mxu0
        %8277 = vmatpush.bf16.msra.mxu0 %v8247
        %8278 = vmatpush.bf16.msra.mxu0 %v8246
        %8279 = vmatpush.bf16.msra.mxu0 %v8245
        %8280 = vmatpush.bf16.msra.mxu0 %v8244
        %8281 = vmatpush.bf16.msra.mxu0 %v8243
        %8282 = vmatpush.bf16.msra.mxu0 %v8242
        %8283 = vmatpush.bf16.msra.mxu0 %v8241
        %8284 = vmatpush.bf16.msra.mxu0 %v8240
        %8285 = vmatmul.bf16.gmra.mxu0 %v8043
        %v8286 = vpop.f32.mrf.mxu0
        %v8287 = vadd.f32 %v8274, %v8286
        %v8288 = vpop.f32.mrf.mxu0
        %8289 = vdwg.mxu0
        %v8322 = vunpack.c.l.b16 %v6479
        %v8323 = vunpack.c.l.b16 %v6480
        %v8324 = vunpack.c.l.b16 %v6481
        %v8325 = vunpack.c.l.b16 %v6482
        %v8326 = vunpack.c.l.b16 %v6483
        %v8327 = vunpack.c.l.b16 %v6484
        %v8328 = vunpack.c.l.b16 %v6485
        %v8329 = vunpack.c.l.b16 %v6486
        %v8330 = vunpack.c.l.b16 %v6487
        %v8331 = vunpack.c.l.b16 %v6488
        %v8332 = vunpack.c.l.b16 %v6489
        %v8333 = vunpack.c.l.b16 %v6490
        %v8334 = vunpack.c.l.b16 %v6491
        %v8335 = vunpack.c.l.b16 %v6492
        %v8336 = vunpack.c.l.b16 %v6493
        %v8337 = vunpack.c.l.b16 %v6494
        %v8338 = vunpack.c.l.b16 %v6495
        %v8339 = vunpack.c.l.b16 %v6496
        %v8340 = vunpack.c.l.b16 %v6497
        %v8341 = vunpack.c.l.b16 %v6498
        %v8342 = vunpack.c.l.b16 %v6499
        %v8343 = vunpack.c.l.b16 %v6500
        %v8344 = vunpack.c.l.b16 %v6501
        %v8345 = vunpack.c.l.b16 %v6502
        %v8346 = vunpack.c.l.b16 %v6503
        %v8347 = vunpack.c.l.b16 %v6504
        %v8348 = vunpack.c.l.b16 %v6505
        %v8349 = vunpack.c.l.b16 %v6506
        %v8350 = vunpack.c.l.b16 %v6507
        %v8351 = vunpack.c.l.b16 %v6508
        %v8352 = vunpack.c.l.b16 %v6509
        %v8353 = vunpack.c.l.b16 %v6510
        %v8354 = vpack.c.b16 %v8323, %v8322
        %v8355 = vpack.c.b16 %v8325, %v8324
        %v8356 = vpack.c.b16 %v8327, %v8326
        %v8357 = vpack.c.b16 %v8329, %v8328
        %v8358 = vpack.c.b16 %v8331, %v8330
        %v8359 = vpack.c.b16 %v8333, %v8332
        %v8360 = vpack.c.b16 %v8335, %v8334
        %v8361 = vpack.c.b16 %v8337, %v8336
        %v8362 = vpack.c.b16 %v8339, %v8338
        %v8363 = vpack.c.b16 %v8341, %v8340
        %v8364 = vpack.c.b16 %v8343, %v8342
        %v8365 = vpack.c.b16 %v8345, %v8344
        %v8366 = vpack.c.b16 %v8347, %v8346
        %v8367 = vpack.c.b16 %v8349, %v8348
        %v8368 = vpack.c.b16 %v8351, %v8350
        %v8369 = vpack.c.b16 %v8353, %v8352
        %8386 = vmatpush.bf16.msra.mxu0 %v8361
        %8387 = vmatpush.bf16.msra.mxu0 %v8360
        %8388 = vmatpush.bf16.msra.mxu0 %v8359
        %8389 = vmatpush.bf16.msra.mxu0 %v8358
        %8390 = vmatpush.bf16.msra.mxu0 %v8357
        %8391 = vmatpush.bf16.msra.mxu0 %v8356
        %8392 = vmatpush.bf16.msra.mxu0 %v8355
        %8393 = vmatpush.bf16.msra.mxu0 %v8354
        %8394 = vmatmul.bf16.gmra.mxu0 %v8042
        %v8395 = vpop.f32.mrf.mxu0
        %v8396 = vadd.f32 %v8009, %v8395
        %v8397 = vpop.f32.mrf.mxu0
        %8398 = vdwg.mxu0
        %8399 = vmatpush.bf16.msra.mxu0 %v8369
        %8400 = vmatpush.bf16.msra.mxu0 %v8368
        %8401 = vmatpush.bf16.msra.mxu0 %v8367
        %8402 = vmatpush.bf16.msra.mxu0 %v8366
        %8403 = vmatpush.bf16.msra.mxu0 %v8365
        %8404 = vmatpush.bf16.msra.mxu0 %v8364
        %8405 = vmatpush.bf16.msra.mxu0 %v8363
        %8406 = vmatpush.bf16.msra.mxu0 %v8362
        %8407 = vmatmul.bf16.gmra.mxu0 %v8043
        %v8408 = vpop.f32.mrf.mxu0
        %v8409 = vadd.f32 %v8396, %v8408
        %v8410 = vpop.f32.mrf.mxu0
        %8411 = vdwg.mxu0
        %v8444 = vunpack.c.l.b16 %v6511
        %v8445 = vunpack.c.l.b16 %v6512
        %v8446 = vunpack.c.l.b16 %v6513
        %v8447 = vunpack.c.l.b16 %v6514
        %v8448 = vunpack.c.l.b16 %v6515
        %v8449 = vunpack.c.l.b16 %v6516
        %v8450 = vunpack.c.l.b16 %v6517
        %v8451 = vunpack.c.l.b16 %v6518
        %v8452 = vunpack.c.l.b16 %v6519
        %v8453 = vunpack.c.l.b16 %v6520
        %v8454 = vunpack.c.l.b16 %v6521
        %v8455 = vunpack.c.l.b16 %v6522
        %v8456 = vunpack.c.l.b16 %v6523
        %v8457 = vunpack.c.l.b16 %v6524
        %v8458 = vunpack.c.l.b16 %v6525
        %v8459 = vunpack.c.l.b16 %v6526
        %v8460 = vunpack.c.l.b16 %v6527
        %v8461 = vunpack.c.l.b16 %v6528
        %v8462 = vunpack.c.l.b16 %v6529
        %v8463 = vunpack.c.l.b16 %v6530
        %v8464 = vunpack.c.l.b16 %v6531
        %v8465 = vunpack.c.l.b16 %v6532
        %v8466 = vunpack.c.l.b16 %v6533
        %v8467 = vunpack.c.l.b16 %v6534
        %v8468 = vunpack.c.l.b16 %v6535
        %v8469 = vunpack.c.l.b16 %v6536
        %v8470 = vunpack.c.l.b16 %v6537
        %v8471 = vunpack.c.l.b16 %v6538
        %v8472 = vunpack.c.l.b16 %v6539
        %v8473 = vunpack.c.l.b16 %v6540
        %v8474 = vunpack.c.l.b16 %v6541
        %v8475 = vunpack.c.l.b16 %v6542
        %v8476 = vpack.c.b16 %v8445, %v8444
        %v8477 = vpack.c.b16 %v8447, %v8446
        %v8478 = vpack.c.b16 %v8449, %v8448
        %v8479 = vpack.c.b16 %v8451, %v8450
        %v8480 = vpack.c.b16 %v8453, %v8452
        %v8481 = vpack.c.b16 %v8455, %v8454
        %v8482 = vpack.c.b16 %v8457, %v8456
        %v8483 = vpack.c.b16 %v8459, %v8458
        %v8484 = vpack.c.b16 %v8461, %v8460
        %v8485 = vpack.c.b16 %v8463, %v8462
        %v8486 = vpack.c.b16 %v8465, %v8464
        %v8487 = vpack.c.b16 %v8467, %v8466
        %v8488 = vpack.c.b16 %v8469, %v8468
        %v8489 = vpack.c.b16 %v8471, %v8470
        %v8490 = vpack.c.b16 %v8473, %v8472
        %v8491 = vpack.c.b16 %v8475, %v8474
        %8508 = vmatpush.bf16.msra.mxu0 %v8483
        %8509 = vmatpush.bf16.msra.mxu0 %v8482
        %8510 = vmatpush.bf16.msra.mxu0 %v8481
        %8511 = vmatpush.bf16.msra.mxu0 %v8480
        %8512 = vmatpush.bf16.msra.mxu0 %v8479
        %8513 = vmatpush.bf16.msra.mxu0 %v8478
        %8514 = vmatpush.bf16.msra.mxu0 %v8477
        %8515 = vmatpush.bf16.msra.mxu0 %v8476
        %8516 = vmatmul.bf16.gmra.mxu0 %v8042
        %v8517 = vpop.f32.mrf.mxu0
        %v8518 = vadd.f32 %v8010, %v8517
        %v8519 = vpop.f32.mrf.mxu0
        %8520 = vdwg.mxu0
        %8521 = vmatpush.bf16.msra.mxu0 %v8491
        %8522 = vmatpush.bf16.msra.mxu0 %v8490
        %8523 = vmatpush.bf16.msra.mxu0 %v8489
        %8524 = vmatpush.bf16.msra.mxu0 %v8488
        %8525 = vmatpush.bf16.msra.mxu0 %v8487
        %8526 = vmatpush.bf16.msra.mxu0 %v8486
        %8527 = vmatpush.bf16.msra.mxu0 %v8485
        %8528 = vmatpush.bf16.msra.mxu0 %v8484
        %8529 = vmatmul.bf16.gmra.mxu0 %v8043
        %v8530 = vpop.f32.mrf.mxu0
        %v8531 = vadd.f32 %v8518, %v8530
        %v8532 = vpop.f32.mrf.mxu0
        %8533 = vdwg.mxu0
        %v8566 = vunpack.c.l.b16 %v6543
        %v8567 = vunpack.c.l.b16 %v6544
        %v8568 = vunpack.c.l.b16 %v6545
        %v8569 = vunpack.c.l.b16 %v6546
        %v8570 = vunpack.c.l.b16 %v6547
        %v8571 = vunpack.c.l.b16 %v6548
        %v8572 = vunpack.c.l.b16 %v6549
        %v8573 = vunpack.c.l.b16 %v6550
        %v8574 = vunpack.c.l.b16 %v6551
        %v8575 = vunpack.c.l.b16 %v6552
        %v8576 = vunpack.c.l.b16 %v6553
        %v8577 = vunpack.c.l.b16 %v6554
        %v8578 = vunpack.c.l.b16 %v6555
        %v8579 = vunpack.c.l.b16 %v6556
        %v8580 = vunpack.c.l.b16 %v6557
        %v8581 = vunpack.c.l.b16 %v6558
        %v8582 = vunpack.c.l.b16 %v6559
        %v8583 = vunpack.c.l.b16 %v6560
        %v8584 = vunpack.c.l.b16 %v6561
        %v8585 = vunpack.c.l.b16 %v6562
        %v8586 = vunpack.c.l.b16 %v6563
        %v8587 = vunpack.c.l.b16 %v6564
        %v8588 = vunpack.c.l.b16 %v6565
        %v8589 = vunpack.c.l.b16 %v6566
        %v8590 = vunpack.c.l.b16 %v6567
        %v8591 = vunpack.c.l.b16 %v6568
        %v8592 = vunpack.c.l.b16 %v6569
        %v8593 = vunpack.c.l.b16 %v6570
        %v8594 = vunpack.c.l.b16 %v6571
        %v8595 = vunpack.c.l.b16 %v6572
        %v8596 = vunpack.c.l.b16 %v6573
        %v8597 = vunpack.c.l.b16 %v6574
        %v8598 = vpack.c.b16 %v8567, %v8566
        %v8599 = vpack.c.b16 %v8569, %v8568
        %v8600 = vpack.c.b16 %v8571, %v8570
        %v8601 = vpack.c.b16 %v8573, %v8572
        %v8602 = vpack.c.b16 %v8575, %v8574
        %v8603 = vpack.c.b16 %v8577, %v8576
        %v8604 = vpack.c.b16 %v8579, %v8578
        %v8605 = vpack.c.b16 %v8581, %v8580
        %v8606 = vpack.c.b16 %v8583, %v8582
        %v8607 = vpack.c.b16 %v8585, %v8584
        %v8608 = vpack.c.b16 %v8587, %v8586
        %v8609 = vpack.c.b16 %v8589, %v8588
        %v8610 = vpack.c.b16 %v8591, %v8590
        %v8611 = vpack.c.b16 %v8593, %v8592
        %v8612 = vpack.c.b16 %v8595, %v8594
        %v8613 = vpack.c.b16 %v8597, %v8596
        %8630 = vmatpush.bf16.msra.mxu0 %v8605
        %8631 = vmatpush.bf16.msra.mxu0 %v8604
        %8632 = vmatpush.bf16.msra.mxu0 %v8603
        %8633 = vmatpush.bf16.msra.mxu0 %v8602
        %8634 = vmatpush.bf16.msra.mxu0 %v8601
        %8635 = vmatpush.bf16.msra.mxu0 %v8600
        %8636 = vmatpush.bf16.msra.mxu0 %v8599
        %8637 = vmatpush.bf16.msra.mxu0 %v8598
        %8638 = vmatmul.bf16.gmra.mxu0 %v8042
        %v8639 = vpop.f32.mrf.mxu0
        %v8640 = vadd.f32 %v8011, %v8639
        %v8641 = vpop.f32.mrf.mxu0
        %8642 = vdwg.mxu0
        %8643 = vmatpush.bf16.msra.mxu0 %v8613
        %8644 = vmatpush.bf16.msra.mxu0 %v8612
        %8645 = vmatpush.bf16.msra.mxu0 %v8611
        %8646 = vmatpush.bf16.msra.mxu0 %v8610
        %8647 = vmatpush.bf16.msra.mxu0 %v8609
        %8648 = vmatpush.bf16.msra.mxu0 %v8608
        %8649 = vmatpush.bf16.msra.mxu0 %v8607
        %8650 = vmatpush.bf16.msra.mxu0 %v8606
        %8651 = vmatmul.bf16.gmra.mxu0 %v8043
        %v8652 = vpop.f32.mrf.mxu0
        %v8653 = vadd.f32 %v8640, %v8652
        %v8654 = vpop.f32.mrf.mxu0
        %8655 = vdwg.mxu0
        %v8688 = vunpack.c.l.b16 %v6575
        %v8689 = vunpack.c.l.b16 %v6576
        %v8690 = vunpack.c.l.b16 %v6577
        %v8691 = vunpack.c.l.b16 %v6578
        %v8692 = vunpack.c.l.b16 %v6579
        %v8693 = vunpack.c.l.b16 %v6580
        %v8694 = vunpack.c.l.b16 %v6581
        %v8695 = vunpack.c.l.b16 %v6582
        %v8696 = vunpack.c.l.b16 %v6583
        %v8697 = vunpack.c.l.b16 %v6584
        %v8698 = vunpack.c.l.b16 %v6585
        %v8699 = vunpack.c.l.b16 %v6586
        %v8700 = vunpack.c.l.b16 %v6587
        %v8701 = vunpack.c.l.b16 %v6588
        %v8702 = vunpack.c.l.b16 %v6589
        %v8703 = vunpack.c.l.b16 %v6590
        %v8704 = vunpack.c.l.b16 %v6591
        %v8705 = vunpack.c.l.b16 %v6592
        %v8706 = vunpack.c.l.b16 %v6593
        %v8707 = vunpack.c.l.b16 %v6594
        %v8708 = vunpack.c.l.b16 %v6595
        %v8709 = vunpack.c.l.b16 %v6596
        %v8710 = vunpack.c.l.b16 %v6597
        %v8711 = vunpack.c.l.b16 %v6598
        %v8712 = vunpack.c.l.b16 %v6599
        %v8713 = vunpack.c.l.b16 %v6600
        %v8714 = vunpack.c.l.b16 %v6601
        %v8715 = vunpack.c.l.b16 %v6602
        %v8716 = vunpack.c.l.b16 %v6603
        %v8717 = vunpack.c.l.b16 %v6604
        %v8718 = vunpack.c.l.b16 %v6605
        %v8719 = vunpack.c.l.b16 %v6606
        %v8720 = vpack.c.b16 %v8689, %v8688
        %v8721 = vpack.c.b16 %v8691, %v8690
        %v8722 = vpack.c.b16 %v8693, %v8692
        %v8723 = vpack.c.b16 %v8695, %v8694
        %v8724 = vpack.c.b16 %v8697, %v8696
        %v8725 = vpack.c.b16 %v8699, %v8698
        %v8726 = vpack.c.b16 %v8701, %v8700
        %v8727 = vpack.c.b16 %v8703, %v8702
        %v8728 = vpack.c.b16 %v8705, %v8704
        %v8729 = vpack.c.b16 %v8707, %v8706
        %v8730 = vpack.c.b16 %v8709, %v8708
        %v8731 = vpack.c.b16 %v8711, %v8710
        %v8732 = vpack.c.b16 %v8713, %v8712
        %v8733 = vpack.c.b16 %v8715, %v8714
        %v8734 = vpack.c.b16 %v8717, %v8716
        %v8735 = vpack.c.b16 %v8719, %v8718
        %8752 = vmatpush.bf16.msra.mxu0 %v8727
        %8753 = vmatpush.bf16.msra.mxu0 %v8726
        %8754 = vmatpush.bf16.msra.mxu0 %v8725
        %8755 = vmatpush.bf16.msra.mxu0 %v8724
        %8756 = vmatpush.bf16.msra.mxu0 %v8723
        %8757 = vmatpush.bf16.msra.mxu0 %v8722
        %8758 = vmatpush.bf16.msra.mxu0 %v8721
        %8759 = vmatpush.bf16.msra.mxu0 %v8720
        %8760 = vmatmul.bf16.gmra.mxu0 %v8042
        %v8761 = vpop.f32.mrf.mxu0
        %v8762 = vadd.f32 %v8012, %v8761
        %v8763 = vpop.f32.mrf.mxu0
        %8764 = vdwg.mxu0
        %8765 = vmatpush.bf16.msra.mxu0 %v8735
        %8766 = vmatpush.bf16.msra.mxu0 %v8734
        %8767 = vmatpush.bf16.msra.mxu0 %v8733
        %8768 = vmatpush.bf16.msra.mxu0 %v8732
        %8769 = vmatpush.bf16.msra.mxu0 %v8731
        %8770 = vmatpush.bf16.msra.mxu0 %v8730
        %8771 = vmatpush.bf16.msra.mxu0 %v8729
        %8772 = vmatpush.bf16.msra.mxu0 %v8728
        %8773 = vmatmul.bf16.gmra.mxu0 %v8043
        %v8774 = vpop.f32.mrf.mxu0
        %v8775 = vadd.f32 %v8762, %v8774
        %v8776 = vpop.f32.mrf.mxu0
        %8777 = vdwg.mxu0
        %v8810 = vunpack.c.l.b16 %v6607
        %v8811 = vunpack.c.l.b16 %v6608
        %v8812 = vunpack.c.l.b16 %v6609
        %v8813 = vunpack.c.l.b16 %v6610
        %v8814 = vunpack.c.l.b16 %v6611
        %v8815 = vunpack.c.l.b16 %v6612
        %v8816 = vunpack.c.l.b16 %v6613
        %v8817 = vunpack.c.l.b16 %v6614
        %v8818 = vunpack.c.l.b16 %v6615
        %v8819 = vunpack.c.l.b16 %v6616
        %v8820 = vunpack.c.l.b16 %v6617
        %v8821 = vunpack.c.l.b16 %v6618
        %v8822 = vunpack.c.l.b16 %v6619
        %v8823 = vunpack.c.l.b16 %v6620
        %v8824 = vunpack.c.l.b16 %v6621
        %v8825 = vunpack.c.l.b16 %v6622
        %v8826 = vunpack.c.l.b16 %v6623
        %v8827 = vunpack.c.l.b16 %v6624
        %v8828 = vunpack.c.l.b16 %v6625
        %v8829 = vunpack.c.l.b16 %v6626
        %v8830 = vunpack.c.l.b16 %v6627
        %v8831 = vunpack.c.l.b16 %v6628
        %v8832 = vunpack.c.l.b16 %v6629
        %v8833 = vunpack.c.l.b16 %v6630
        %v8834 = vunpack.c.l.b16 %v6631
        %v8835 = vunpack.c.l.b16 %v6632
        %v8836 = vunpack.c.l.b16 %v6633
        %v8837 = vunpack.c.l.b16 %v6634
        %v8838 = vunpack.c.l.b16 %v6635
        %v8839 = vunpack.c.l.b16 %v6636
        %v8840 = vunpack.c.l.b16 %v6637
        %v8841 = vunpack.c.l.b16 %v6638
        %v8842 = vpack.c.b16 %v8811, %v8810
        %v8843 = vpack.c.b16 %v8813, %v8812
        %v8844 = vpack.c.b16 %v8815, %v8814
        %v8845 = vpack.c.b16 %v8817, %v8816
        %v8846 = vpack.c.b16 %v8819, %v8818
        %v8847 = vpack.c.b16 %v8821, %v8820
        %v8848 = vpack.c.b16 %v8823, %v8822
        %v8849 = vpack.c.b16 %v8825, %v8824
        %v8850 = vpack.c.b16 %v8827, %v8826
        %v8851 = vpack.c.b16 %v8829, %v8828
        %v8852 = vpack.c.b16 %v8831, %v8830
        %v8853 = vpack.c.b16 %v8833, %v8832
        %v8854 = vpack.c.b16 %v8835, %v8834
        %v8855 = vpack.c.b16 %v8837, %v8836
        %v8856 = vpack.c.b16 %v8839, %v8838
        %v8857 = vpack.c.b16 %v8841, %v8840
        %8874 = vmatpush.bf16.msra.mxu0 %v8849
        %8875 = vmatpush.bf16.msra.mxu0 %v8848
        %8876 = vmatpush.bf16.msra.mxu0 %v8847
        %8877 = vmatpush.bf16.msra.mxu0 %v8846
        %8878 = vmatpush.bf16.msra.mxu0 %v8845
        %8879 = vmatpush.bf16.msra.mxu0 %v8844
        %8880 = vmatpush.bf16.msra.mxu0 %v8843
        %8881 = vmatpush.bf16.msra.mxu0 %v8842
        %8882 = vmatmul.bf16.gmra.mxu0 %v8042
        %v8883 = vpop.f32.mrf.mxu0
        %v8884 = vadd.f32 %v8013, %v8883
        %v8885 = vpop.f32.mrf.mxu0
        %8886 = vdwg.mxu0
        %8887 = vmatpush.bf16.msra.mxu0 %v8857
        %8888 = vmatpush.bf16.msra.mxu0 %v8856
        %8889 = vmatpush.bf16.msra.mxu0 %v8855
        %8890 = vmatpush.bf16.msra.mxu0 %v8854
        %8891 = vmatpush.bf16.msra.mxu0 %v8853
        %8892 = vmatpush.bf16.msra.mxu0 %v8852
        %8893 = vmatpush.bf16.msra.mxu0 %v8851
        %8894 = vmatpush.bf16.msra.mxu0 %v8850
        %8895 = vmatmul.bf16.gmra.mxu0 %v8043
        %v8896 = vpop.f32.mrf.mxu0
        %v8897 = vadd.f32 %v8884, %v8896
        %v8898 = vpop.f32.mrf.mxu0
        %8899 = vdwg.mxu0
        %v8932 = vunpack.c.l.b16 %v6639
        %v8933 = vunpack.c.l.b16 %v6640
        %v8934 = vunpack.c.l.b16 %v6641
        %v8935 = vunpack.c.l.b16 %v6642
        %v8936 = vunpack.c.l.b16 %v6643
        %v8937 = vunpack.c.l.b16 %v6644
        %v8938 = vunpack.c.l.b16 %v6645
        %v8939 = vunpack.c.l.b16 %v6646
        %v8940 = vunpack.c.l.b16 %v6647
        %v8941 = vunpack.c.l.b16 %v6648
        %v8942 = vunpack.c.l.b16 %v6649
        %v8943 = vunpack.c.l.b16 %v6650
        %v8944 = vunpack.c.l.b16 %v6651
        %v8945 = vunpack.c.l.b16 %v6652
        %v8946 = vunpack.c.l.b16 %v6653
        %v8947 = vunpack.c.l.b16 %v6654
        %v8948 = vunpack.c.l.b16 %v6655
        %v8949 = vunpack.c.l.b16 %v6656
        %v8950 = vunpack.c.l.b16 %v6657
        %v8951 = vunpack.c.l.b16 %v6658
        %v8952 = vunpack.c.l.b16 %v6659
        %v8953 = vunpack.c.l.b16 %v6660
        %v8954 = vunpack.c.l.b16 %v6661
        %v8955 = vunpack.c.l.b16 %v6662
        %v8956 = vunpack.c.l.b16 %v6663
        %v8957 = vunpack.c.l.b16 %v6664
        %v8958 = vunpack.c.l.b16 %v6665
        %v8959 = vunpack.c.l.b16 %v6666
        %v8960 = vunpack.c.l.b16 %v6667
        %v8961 = vunpack.c.l.b16 %v6668
        %v8962 = vunpack.c.l.b16 %v6669
        %v8963 = vunpack.c.l.b16 %v6670
        %v8964 = vpack.c.b16 %v8933, %v8932
        %v8965 = vpack.c.b16 %v8935, %v8934
        %v8966 = vpack.c.b16 %v8937, %v8936
        %v8967 = vpack.c.b16 %v8939, %v8938
        %v8968 = vpack.c.b16 %v8941, %v8940
        %v8969 = vpack.c.b16 %v8943, %v8942
        %v8970 = vpack.c.b16 %v8945, %v8944
        %v8971 = vpack.c.b16 %v8947, %v8946
        %v8972 = vpack.c.b16 %v8949, %v8948
        %v8973 = vpack.c.b16 %v8951, %v8950
        %v8974 = vpack.c.b16 %v8953, %v8952
        %v8975 = vpack.c.b16 %v8955, %v8954
        %v8976 = vpack.c.b16 %v8957, %v8956
        %v8977 = vpack.c.b16 %v8959, %v8958
        %v8978 = vpack.c.b16 %v8961, %v8960
        %v8979 = vpack.c.b16 %v8963, %v8962
        %8996 = vmatpush.bf16.msra.mxu0 %v8971
        %8997 = vmatpush.bf16.msra.mxu0 %v8970
        %8998 = vmatpush.bf16.msra.mxu0 %v8969
        %8999 = vmatpush.bf16.msra.mxu0 %v8968
        %9000 = vmatpush.bf16.msra.mxu0 %v8967
        %9001 = vmatpush.bf16.msra.mxu0 %v8966
        %9002 = vmatpush.bf16.msra.mxu0 %v8965
        %9003 = vmatpush.bf16.msra.mxu0 %v8964
        %9004 = vmatmul.bf16.gmra.mxu0 %v8042
        %v9005 = vpop.f32.mrf.mxu0
        %v9006 = vadd.f32 %v8014, %v9005
        %v9007 = vpop.f32.mrf.mxu0
        %9008 = vdwg.mxu0
        %9009 = vmatpush.bf16.msra.mxu0 %v8979
        %9010 = vmatpush.bf16.msra.mxu0 %v8978
        %9011 = vmatpush.bf16.msra.mxu0 %v8977
        %9012 = vmatpush.bf16.msra.mxu0 %v8976
        %9013 = vmatpush.bf16.msra.mxu0 %v8975
        %9014 = vmatpush.bf16.msra.mxu0 %v8974
        %9015 = vmatpush.bf16.msra.mxu0 %v8973
        %9016 = vmatpush.bf16.msra.mxu0 %v8972
        %9017 = vmatmul.bf16.gmra.mxu0 %v8043
        %v9018 = vpop.f32.mrf.mxu0
        %v9019 = vadd.f32 %v9006, %v9018
        %v9020 = vpop.f32.mrf.mxu0
        %9021 = vdwg.mxu0
        %v9054 = vunpack.c.l.b16 %v6671
        %v9055 = vunpack.c.l.b16 %v6672
        %v9056 = vunpack.c.l.b16 %v6673
        %v9057 = vunpack.c.l.b16 %v6674
        %v9058 = vunpack.c.l.b16 %v6675
        %v9059 = vunpack.c.l.b16 %v6676
        %v9060 = vunpack.c.l.b16 %v6677
        %v9061 = vunpack.c.l.b16 %v6678
        %v9062 = vunpack.c.l.b16 %v6679
        %v9063 = vunpack.c.l.b16 %v6680
        %v9064 = vunpack.c.l.b16 %v6681
        %v9065 = vunpack.c.l.b16 %v6682
        %v9066 = vunpack.c.l.b16 %v6683
        %v9067 = vunpack.c.l.b16 %v6684
        %v9068 = vunpack.c.l.b16 %v6685
        %v9069 = vunpack.c.l.b16 %v6686
        %v9070 = vunpack.c.l.b16 %v6687
        %v9071 = vunpack.c.l.b16 %v6688
        %v9072 = vunpack.c.l.b16 %v6689
        %v9073 = vunpack.c.l.b16 %v6690
        %v9074 = vunpack.c.l.b16 %v6691
        %v9075 = vunpack.c.l.b16 %v6692
        %v9076 = vunpack.c.l.b16 %v6693
        %v9077 = vunpack.c.l.b16 %v6694
        %v9078 = vunpack.c.l.b16 %v6695
        %v9079 = vunpack.c.l.b16 %v6696
        %v9080 = vunpack.c.l.b16 %v6697
        %v9081 = vunpack.c.l.b16 %v6698
        %v9082 = vunpack.c.l.b16 %v6699
        %v9083 = vunpack.c.l.b16 %v6700
        %v9084 = vunpack.c.l.b16 %v6701
        %v9085 = vunpack.c.l.b16 %v6702
        %v9086 = vpack.c.b16 %v9055, %v9054
        %v9087 = vpack.c.b16 %v9057, %v9056
        %v9088 = vpack.c.b16 %v9059, %v9058
        %v9089 = vpack.c.b16 %v9061, %v9060
        %v9090 = vpack.c.b16 %v9063, %v9062
        %v9091 = vpack.c.b16 %v9065, %v9064
        %v9092 = vpack.c.b16 %v9067, %v9066
        %v9093 = vpack.c.b16 %v9069, %v9068
        %v9094 = vpack.c.b16 %v9071, %v9070
        %v9095 = vpack.c.b16 %v9073, %v9072
        %v9096 = vpack.c.b16 %v9075, %v9074
        %v9097 = vpack.c.b16 %v9077, %v9076
        %v9098 = vpack.c.b16 %v9079, %v9078
        %v9099 = vpack.c.b16 %v9081, %v9080
        %v9100 = vpack.c.b16 %v9083, %v9082
        %v9101 = vpack.c.b16 %v9085, %v9084
        %9118 = vmatpush.bf16.msra.mxu0 %v9093
        %9119 = vmatpush.bf16.msra.mxu0 %v9092
        %9120 = vmatpush.bf16.msra.mxu0 %v9091
        %9121 = vmatpush.bf16.msra.mxu0 %v9090
        %9122 = vmatpush.bf16.msra.mxu0 %v9089
        %9123 = vmatpush.bf16.msra.mxu0 %v9088
        %9124 = vmatpush.bf16.msra.mxu0 %v9087
        %9125 = vmatpush.bf16.msra.mxu0 %v9086
        %9126 = vmatmul.bf16.gmra.mxu0 %v8042
        %v9127 = vpop.f32.mrf.mxu0
        %v9128 = vadd.f32 %v8015, %v9127
        %v9129 = vpop.f32.mrf.mxu0
        %9130 = vdwg.mxu0
        %9131 = vmatpush.bf16.msra.mxu0 %v9101
        %9132 = vmatpush.bf16.msra.mxu0 %v9100
        %9133 = vmatpush.bf16.msra.mxu0 %v9099
        %9134 = vmatpush.bf16.msra.mxu0 %v9098
        %9135 = vmatpush.bf16.msra.mxu0 %v9097
        %9136 = vmatpush.bf16.msra.mxu0 %v9096
        %9137 = vmatpush.bf16.msra.mxu0 %v9095
        %9138 = vmatpush.bf16.msra.mxu0 %v9094
        %9139 = vmatmul.bf16.gmra.mxu0 %v8043
        %v9140 = vpop.f32.mrf.mxu0
        %v9141 = vadd.f32 %v9128, %v9140
        %v9142 = vpop.f32.mrf.mxu0
        %9143 = vdwg.mxu0
        %v9176 = vunpack.c.l.b16 %v6703
        %v9177 = vunpack.c.l.b16 %v6704
        %v9178 = vunpack.c.l.b16 %v6705
        %v9179 = vunpack.c.l.b16 %v6706
        %v9180 = vunpack.c.l.b16 %v6707
        %v9181 = vunpack.c.l.b16 %v6708
        %v9182 = vunpack.c.l.b16 %v6709
        %v9183 = vunpack.c.l.b16 %v6710
        %v9184 = vunpack.c.l.b16 %v6711
        %v9185 = vunpack.c.l.b16 %v6712
        %v9186 = vunpack.c.l.b16 %v6713
        %v9187 = vunpack.c.l.b16 %v6714
        %v9188 = vunpack.c.l.b16 %v6715
        %v9189 = vunpack.c.l.b16 %v6716
        %v9190 = vunpack.c.l.b16 %v6717
        %v9191 = vunpack.c.l.b16 %v6718
        %v9192 = vunpack.c.l.b16 %v6719
        %v9193 = vunpack.c.l.b16 %v6720
        %v9194 = vunpack.c.l.b16 %v6721
        %v9195 = vunpack.c.l.b16 %v6722
        %v9196 = vunpack.c.l.b16 %v6723
        %v9197 = vunpack.c.l.b16 %v6724
        %v9198 = vunpack.c.l.b16 %v6725
        %v9199 = vunpack.c.l.b16 %v6726
        %v9200 = vunpack.c.l.b16 %v6727
        %v9201 = vunpack.c.l.b16 %v6728
        %v9202 = vunpack.c.l.b16 %v6729
        %v9203 = vunpack.c.l.b16 %v6730
        %v9204 = vunpack.c.l.b16 %v6731
        %v9205 = vunpack.c.l.b16 %v6732
        %v9206 = vunpack.c.l.b16 %v6733
        %v9207 = vunpack.c.l.b16 %v6734
        %v9208 = vpack.c.b16 %v9177, %v9176
        %v9209 = vpack.c.b16 %v9179, %v9178
        %v9210 = vpack.c.b16 %v9181, %v9180
        %v9211 = vpack.c.b16 %v9183, %v9182
        %v9212 = vpack.c.b16 %v9185, %v9184
        %v9213 = vpack.c.b16 %v9187, %v9186
        %v9214 = vpack.c.b16 %v9189, %v9188
        %v9215 = vpack.c.b16 %v9191, %v9190
        %v9216 = vpack.c.b16 %v9193, %v9192
        %v9217 = vpack.c.b16 %v9195, %v9194
        %v9218 = vpack.c.b16 %v9197, %v9196
        %v9219 = vpack.c.b16 %v9199, %v9198
        %v9220 = vpack.c.b16 %v9201, %v9200
        %v9221 = vpack.c.b16 %v9203, %v9202
        %v9222 = vpack.c.b16 %v9205, %v9204
        %v9223 = vpack.c.b16 %v9207, %v9206
        %9240 = vmatpush.bf16.msra.mxu0 %v9215
        %9241 = vmatpush.bf16.msra.mxu0 %v9214
        %9242 = vmatpush.bf16.msra.mxu0 %v9213
        %9243 = vmatpush.bf16.msra.mxu0 %v9212
        %9244 = vmatpush.bf16.msra.mxu0 %v9211
        %9245 = vmatpush.bf16.msra.mxu0 %v9210
        %9246 = vmatpush.bf16.msra.mxu0 %v9209
        %9247 = vmatpush.bf16.msra.mxu0 %v9208
        %9248 = vmatmul.bf16.gmra.mxu0 %v8042
        %v9249 = vpop.f32.mrf.mxu0
        %v9250 = vadd.f32 %v8016, %v9249
        %v9251 = vpop.f32.mrf.mxu0
        %9252 = vdwg.mxu0
        %9253 = vmatpush.bf16.msra.mxu0 %v9223
        %9254 = vmatpush.bf16.msra.mxu0 %v9222
        %9255 = vmatpush.bf16.msra.mxu0 %v9221
        %9256 = vmatpush.bf16.msra.mxu0 %v9220
        %9257 = vmatpush.bf16.msra.mxu0 %v9219
        %9258 = vmatpush.bf16.msra.mxu0 %v9218
        %9259 = vmatpush.bf16.msra.mxu0 %v9217
        %9260 = vmatpush.bf16.msra.mxu0 %v9216
        %9261 = vmatmul.bf16.gmra.mxu0 %v8043
        %v9262 = vpop.f32.mrf.mxu0
        %v9263 = vadd.f32 %v9250, %v9262
        %v9264 = vpop.f32.mrf.mxu0
        %9265 = vdwg.mxu0
        %v9298 = vunpack.c.l.b16 %v6735
        %v9299 = vunpack.c.l.b16 %v6736
        %v9300 = vunpack.c.l.b16 %v6737
        %v9301 = vunpack.c.l.b16 %v6738
        %v9302 = vunpack.c.l.b16 %v6739
        %v9303 = vunpack.c.l.b16 %v6740
        %v9304 = vunpack.c.l.b16 %v6741
        %v9305 = vunpack.c.l.b16 %v6742
        %v9306 = vunpack.c.l.b16 %v6743
        %v9307 = vunpack.c.l.b16 %v6744
        %v9308 = vunpack.c.l.b16 %v6745
        %v9309 = vunpack.c.l.b16 %v6746
        %v9310 = vunpack.c.l.b16 %v6747
        %v9311 = vunpack.c.l.b16 %v6748
        %v9312 = vunpack.c.l.b16 %v6749
        %v9313 = vunpack.c.l.b16 %v6750
        %v9314 = vunpack.c.l.b16 %v6751
        %v9315 = vunpack.c.l.b16 %v6752
        %v9316 = vunpack.c.l.b16 %v6753
        %v9317 = vunpack.c.l.b16 %v6754
        %v9318 = vunpack.c.l.b16 %v6755
        %v9319 = vunpack.c.l.b16 %v6756
        %v9320 = vunpack.c.l.b16 %v6757
        %v9321 = vunpack.c.l.b16 %v6758
        %v9322 = vunpack.c.l.b16 %v6759
        %v9323 = vunpack.c.l.b16 %v6760
        %v9324 = vunpack.c.l.b16 %v6761
        %v9325 = vunpack.c.l.b16 %v6762
        %v9326 = vunpack.c.l.b16 %v6763
        %v9327 = vunpack.c.l.b16 %v6764
        %v9328 = vunpack.c.l.b16 %v6765
        %v9329 = vunpack.c.l.b16 %v6766
        %v9330 = vpack.c.b16 %v9299, %v9298
        %v9331 = vpack.c.b16 %v9301, %v9300
        %v9332 = vpack.c.b16 %v9303, %v9302
        %v9333 = vpack.c.b16 %v9305, %v9304
        %v9334 = vpack.c.b16 %v9307, %v9306
        %v9335 = vpack.c.b16 %v9309, %v9308
        %v9336 = vpack.c.b16 %v9311, %v9310
        %v9337 = vpack.c.b16 %v9313, %v9312
        %v9338 = vpack.c.b16 %v9315, %v9314
        %v9339 = vpack.c.b16 %v9317, %v9316
        %v9340 = vpack.c.b16 %v9319, %v9318
        %v9341 = vpack.c.b16 %v9321, %v9320
        %v9342 = vpack.c.b16 %v9323, %v9322
        %v9343 = vpack.c.b16 %v9325, %v9324
        %v9344 = vpack.c.b16 %v9327, %v9326
        %v9345 = vpack.c.b16 %v9329, %v9328
        %9362 = vmatpush.bf16.msra.mxu0 %v9337
        %9363 = vmatpush.bf16.msra.mxu0 %v9336
        %9364 = vmatpush.bf16.msra.mxu0 %v9335
        %9365 = vmatpush.bf16.msra.mxu0 %v9334
        %9366 = vmatpush.bf16.msra.mxu0 %v9333
        %9367 = vmatpush.bf16.msra.mxu0 %v9332
        %9368 = vmatpush.bf16.msra.mxu0 %v9331
        %9369 = vmatpush.bf16.msra.mxu0 %v9330
        %9370 = vmatmul.bf16.gmra.mxu0 %v8042
        %v9371 = vpop.f32.mrf.mxu0
        %v9372 = vadd.f32 %v8017, %v9371
        %v9373 = vpop.f32.mrf.mxu0
        %9374 = vdwg.mxu0
        %9375 = vmatpush.bf16.msra.mxu0 %v9345
        %9376 = vmatpush.bf16.msra.mxu0 %v9344
        %9377 = vmatpush.bf16.msra.mxu0 %v9343
        %9378 = vmatpush.bf16.msra.mxu0 %v9342
        %9379 = vmatpush.bf16.msra.mxu0 %v9341
        %9380 = vmatpush.bf16.msra.mxu0 %v9340
        %9381 = vmatpush.bf16.msra.mxu0 %v9339
        %9382 = vmatpush.bf16.msra.mxu0 %v9338
        %9383 = vmatmul.bf16.gmra.mxu0 %v8043
        %v9384 = vpop.f32.mrf.mxu0
        %v9385 = vadd.f32 %v9372, %v9384
        %v9386 = vpop.f32.mrf.mxu0
        %9387 = vdwg.mxu0
        %v9420 = vunpack.c.l.b16 %v6767
        %v9421 = vunpack.c.l.b16 %v6768
        %v9422 = vunpack.c.l.b16 %v6769
        %v9423 = vunpack.c.l.b16 %v6770
        %v9424 = vunpack.c.l.b16 %v6771
        %v9425 = vunpack.c.l.b16 %v6772
        %v9426 = vunpack.c.l.b16 %v6773
        %v9427 = vunpack.c.l.b16 %v6774
        %v9428 = vunpack.c.l.b16 %v6775
        %v9429 = vunpack.c.l.b16 %v6776
        %v9430 = vunpack.c.l.b16 %v6777
        %v9431 = vunpack.c.l.b16 %v6778
        %v9432 = vunpack.c.l.b16 %v6779
        %v9433 = vunpack.c.l.b16 %v6780
        %v9434 = vunpack.c.l.b16 %v6781
        %v9435 = vunpack.c.l.b16 %v6782
        %v9436 = vunpack.c.l.b16 %v6783
        %v9437 = vunpack.c.l.b16 %v6784
        %v9438 = vunpack.c.l.b16 %v6785
        %v9439 = vunpack.c.l.b16 %v6786
        %v9440 = vunpack.c.l.b16 %v6787
        %v9441 = vunpack.c.l.b16 %v6788
        %v9442 = vunpack.c.l.b16 %v6789
        %v9443 = vunpack.c.l.b16 %v6790
        %v9444 = vunpack.c.l.b16 %v6791
        %v9445 = vunpack.c.l.b16 %v6792
        %v9446 = vunpack.c.l.b16 %v6793
        %v9447 = vunpack.c.l.b16 %v6794
        %v9448 = vunpack.c.l.b16 %v6795
        %v9449 = vunpack.c.l.b16 %v6796
        %v9450 = vunpack.c.l.b16 %v6797
        %v9451 = vunpack.c.l.b16 %v6798
        %v9452 = vpack.c.b16 %v9421, %v9420
        %v9453 = vpack.c.b16 %v9423, %v9422
        %v9454 = vpack.c.b16 %v9425, %v9424
        %v9455 = vpack.c.b16 %v9427, %v9426
        %v9456 = vpack.c.b16 %v9429, %v9428
        %v9457 = vpack.c.b16 %v9431, %v9430
        %v9458 = vpack.c.b16 %v9433, %v9432
        %v9459 = vpack.c.b16 %v9435, %v9434
        %v9460 = vpack.c.b16 %v9437, %v9436
        %v9461 = vpack.c.b16 %v9439, %v9438
        %v9462 = vpack.c.b16 %v9441, %v9440
        %v9463 = vpack.c.b16 %v9443, %v9442
        %v9464 = vpack.c.b16 %v9445, %v9444
        %v9465 = vpack.c.b16 %v9447, %v9446
        %v9466 = vpack.c.b16 %v9449, %v9448
        %v9467 = vpack.c.b16 %v9451, %v9450
        %9484 = vmatpush.bf16.msra.mxu0 %v9459
        %9485 = vmatpush.bf16.msra.mxu0 %v9458
        %9486 = vmatpush.bf16.msra.mxu0 %v9457
        %9487 = vmatpush.bf16.msra.mxu0 %v9456
        %9488 = vmatpush.bf16.msra.mxu0 %v9455
        %9489 = vmatpush.bf16.msra.mxu0 %v9454
        %9490 = vmatpush.bf16.msra.mxu0 %v9453
        %9491 = vmatpush.bf16.msra.mxu0 %v9452
        %9492 = vmatmul.bf16.gmra.mxu0 %v8042
        %v9493 = vpop.f32.mrf.mxu0
        %v9494 = vadd.f32 %v8018, %v9493
        %v9495 = vpop.f32.mrf.mxu0
        %9496 = vdwg.mxu0
        %9497 = vmatpush.bf16.msra.mxu0 %v9467
        %9498 = vmatpush.bf16.msra.mxu0 %v9466
        %9499 = vmatpush.bf16.msra.mxu0 %v9465
        %9500 = vmatpush.bf16.msra.mxu0 %v9464
        %9501 = vmatpush.bf16.msra.mxu0 %v9463
        %9502 = vmatpush.bf16.msra.mxu0 %v9462
        %9503 = vmatpush.bf16.msra.mxu0 %v9461
        %9504 = vmatpush.bf16.msra.mxu0 %v9460
        %9505 = vmatmul.bf16.gmra.mxu0 %v8043
        %v9506 = vpop.f32.mrf.mxu0
        %v9507 = vadd.f32 %v9494, %v9506
        %v9508 = vpop.f32.mrf.mxu0
        %9509 = vdwg.mxu0
        %v9542 = vunpack.c.l.b16 %v6799
        %v9543 = vunpack.c.l.b16 %v6800
        %v9544 = vunpack.c.l.b16 %v6801
        %v9545 = vunpack.c.l.b16 %v6802
        %v9546 = vunpack.c.l.b16 %v6803
        %v9547 = vunpack.c.l.b16 %v6804
        %v9548 = vunpack.c.l.b16 %v6805
        %v9549 = vunpack.c.l.b16 %v6806
        %v9550 = vunpack.c.l.b16 %v6807
        %v9551 = vunpack.c.l.b16 %v6808
        %v9552 = vunpack.c.l.b16 %v6809
        %v9553 = vunpack.c.l.b16 %v6810
        %v9554 = vunpack.c.l.b16 %v6811
        %v9555 = vunpack.c.l.b16 %v6812
        %v9556 = vunpack.c.l.b16 %v6813
        %v9557 = vunpack.c.l.b16 %v6814
        %v9558 = vunpack.c.l.b16 %v6815
        %v9559 = vunpack.c.l.b16 %v6816
        %v9560 = vunpack.c.l.b16 %v6817
        %v9561 = vunpack.c.l.b16 %v6818
        %v9562 = vunpack.c.l.b16 %v6819
        %v9563 = vunpack.c.l.b16 %v6820
        %v9564 = vunpack.c.l.b16 %v6821
        %v9565 = vunpack.c.l.b16 %v6822
        %v9566 = vunpack.c.l.b16 %v6823
        %v9567 = vunpack.c.l.b16 %v6824
        %v9568 = vunpack.c.l.b16 %v6825
        %v9569 = vunpack.c.l.b16 %v6826
        %v9570 = vunpack.c.l.b16 %v6827
        %v9571 = vunpack.c.l.b16 %v6828
        %v9572 = vunpack.c.l.b16 %v6829
        %v9573 = vunpack.c.l.b16 %v6830
        %v9574 = vpack.c.b16 %v9543, %v9542
        %v9575 = vpack.c.b16 %v9545, %v9544
        %v9576 = vpack.c.b16 %v9547, %v9546
        %v9577 = vpack.c.b16 %v9549, %v9548
        %v9578 = vpack.c.b16 %v9551, %v9550
        %v9579 = vpack.c.b16 %v9553, %v9552
        %v9580 = vpack.c.b16 %v9555, %v9554
        %v9581 = vpack.c.b16 %v9557, %v9556
        %v9582 = vpack.c.b16 %v9559, %v9558
        %v9583 = vpack.c.b16 %v9561, %v9560
        %v9584 = vpack.c.b16 %v9563, %v9562
        %v9585 = vpack.c.b16 %v9565, %v9564
        %v9586 = vpack.c.b16 %v9567, %v9566
        %v9587 = vpack.c.b16 %v9569, %v9568
        %v9588 = vpack.c.b16 %v9571, %v9570
        %v9589 = vpack.c.b16 %v9573, %v9572
        %9606 = vmatpush.bf16.msra.mxu0 %v9581
        %9607 = vmatpush.bf16.msra.mxu0 %v9580
        %9608 = vmatpush.bf16.msra.mxu0 %v9579
        %9609 = vmatpush.bf16.msra.mxu0 %v9578
        %9610 = vmatpush.bf16.msra.mxu0 %v9577
        %9611 = vmatpush.bf16.msra.mxu0 %v9576
        %9612 = vmatpush.bf16.msra.mxu0 %v9575
        %9613 = vmatpush.bf16.msra.mxu0 %v9574
        %9614 = vmatmul.bf16.gmra.mxu0 %v8042
        %v9615 = vpop.f32.mrf.mxu0
        %v9616 = vadd.f32 %v8019, %v9615
        %v9617 = vpop.f32.mrf.mxu0
        %9618 = vdwg.mxu0
        %9619 = vmatpush.bf16.msra.mxu0 %v9589
        %9620 = vmatpush.bf16.msra.mxu0 %v9588
        %9621 = vmatpush.bf16.msra.mxu0 %v9587
        %9622 = vmatpush.bf16.msra.mxu0 %v9586
        %9623 = vmatpush.bf16.msra.mxu0 %v9585
        %9624 = vmatpush.bf16.msra.mxu0 %v9584
        %9625 = vmatpush.bf16.msra.mxu0 %v9583
        %9626 = vmatpush.bf16.msra.mxu0 %v9582
        %9627 = vmatmul.bf16.gmra.mxu0 %v8043
        %v9628 = vpop.f32.mrf.mxu0
        %v9629 = vadd.f32 %v9616, %v9628
        %v9630 = vpop.f32.mrf.mxu0
        %9631 = vdwg.mxu0
        %v9664 = vunpack.c.l.b16 %v6831
        %v9665 = vunpack.c.l.b16 %v6832
        %v9666 = vunpack.c.l.b16 %v6833
        %v9667 = vunpack.c.l.b16 %v6834
        %v9668 = vunpack.c.l.b16 %v6835
        %v9669 = vunpack.c.l.b16 %v6836
        %v9670 = vunpack.c.l.b16 %v6837
        %v9671 = vunpack.c.l.b16 %v6838
        %v9672 = vunpack.c.l.b16 %v6839
        %v9673 = vunpack.c.l.b16 %v6840
        %v9674 = vunpack.c.l.b16 %v6841
        %v9675 = vunpack.c.l.b16 %v6842
        %v9676 = vunpack.c.l.b16 %v6843
        %v9677 = vunpack.c.l.b16 %v6844
        %v9678 = vunpack.c.l.b16 %v6845
        %v9679 = vunpack.c.l.b16 %v6846
        %v9680 = vunpack.c.l.b16 %v6847
        %v9681 = vunpack.c.l.b16 %v6848
        %v9682 = vunpack.c.l.b16 %v6849
        %v9683 = vunpack.c.l.b16 %v6850
        %v9684 = vunpack.c.l.b16 %v6851
        %v9685 = vunpack.c.l.b16 %v6852
        %v9686 = vunpack.c.l.b16 %v6853
        %v9687 = vunpack.c.l.b16 %v6854
        %v9688 = vunpack.c.l.b16 %v6855
        %v9689 = vunpack.c.l.b16 %v6856
        %v9690 = vunpack.c.l.b16 %v6857
        %v9691 = vunpack.c.l.b16 %v6858
        %v9692 = vunpack.c.l.b16 %v6859
        %v9693 = vunpack.c.l.b16 %v6860
        %v9694 = vunpack.c.l.b16 %v6861
        %v9695 = vunpack.c.l.b16 %v6862
        %v9696 = vpack.c.b16 %v9665, %v9664
        %v9697 = vpack.c.b16 %v9667, %v9666
        %v9698 = vpack.c.b16 %v9669, %v9668
        %v9699 = vpack.c.b16 %v9671, %v9670
        %v9700 = vpack.c.b16 %v9673, %v9672
        %v9701 = vpack.c.b16 %v9675, %v9674
        %v9702 = vpack.c.b16 %v9677, %v9676
        %v9703 = vpack.c.b16 %v9679, %v9678
        %v9704 = vpack.c.b16 %v9681, %v9680
        %v9705 = vpack.c.b16 %v9683, %v9682
        %v9706 = vpack.c.b16 %v9685, %v9684
        %v9707 = vpack.c.b16 %v9687, %v9686
        %v9708 = vpack.c.b16 %v9689, %v9688
        %v9709 = vpack.c.b16 %v9691, %v9690
        %v9710 = vpack.c.b16 %v9693, %v9692
        %v9711 = vpack.c.b16 %v9695, %v9694
        %9728 = vmatpush.bf16.msra.mxu0 %v9703
        %9729 = vmatpush.bf16.msra.mxu0 %v9702
        %9730 = vmatpush.bf16.msra.mxu0 %v9701
        %9731 = vmatpush.bf16.msra.mxu0 %v9700
        %9732 = vmatpush.bf16.msra.mxu0 %v9699
        %9733 = vmatpush.bf16.msra.mxu0 %v9698
        %9734 = vmatpush.bf16.msra.mxu0 %v9697
        %9735 = vmatpush.bf16.msra.mxu0 %v9696
        %9736 = vmatmul.bf16.gmra.mxu0 %v8042
        %v9737 = vpop.f32.mrf.mxu0
        %v9738 = vadd.f32 %v8020, %v9737
        %v9739 = vpop.f32.mrf.mxu0
        %9740 = vdwg.mxu0
        %9741 = vmatpush.bf16.msra.mxu0 %v9711
        %9742 = vmatpush.bf16.msra.mxu0 %v9710
        %9743 = vmatpush.bf16.msra.mxu0 %v9709
        %9744 = vmatpush.bf16.msra.mxu0 %v9708
        %9745 = vmatpush.bf16.msra.mxu0 %v9707
        %9746 = vmatpush.bf16.msra.mxu0 %v9706
        %9747 = vmatpush.bf16.msra.mxu0 %v9705
        %9748 = vmatpush.bf16.msra.mxu0 %v9704
        %9749 = vmatmul.bf16.gmra.mxu0 %v8043
        %v9750 = vpop.f32.mrf.mxu0
        %v9751 = vadd.f32 %v9738, %v9750
        %v9752 = vpop.f32.mrf.mxu0
        %9753 = vdwg.mxu0
        %v9786 = vunpack.c.l.b16 %v6863
        %v9787 = vunpack.c.l.b16 %v6864
        %v9788 = vunpack.c.l.b16 %v6865
        %v9789 = vunpack.c.l.b16 %v6866
        %v9790 = vunpack.c.l.b16 %v6867
        %v9791 = vunpack.c.l.b16 %v6868
        %v9792 = vunpack.c.l.b16 %v6869
        %v9793 = vunpack.c.l.b16 %v6870
        %v9794 = vunpack.c.l.b16 %v6871
        %v9795 = vunpack.c.l.b16 %v6872
        %v9796 = vunpack.c.l.b16 %v6873
        %v9797 = vunpack.c.l.b16 %v6874
        %v9798 = vunpack.c.l.b16 %v6875
        %v9799 = vunpack.c.l.b16 %v6876
        %v9800 = vunpack.c.l.b16 %v6877
        %v9801 = vunpack.c.l.b16 %v6878
        %v9802 = vunpack.c.l.b16 %v6879
        %v9803 = vunpack.c.l.b16 %v6880
        %v9804 = vunpack.c.l.b16 %v6881
        %v9805 = vunpack.c.l.b16 %v6882
        %v9806 = vunpack.c.l.b16 %v6883
        %v9807 = vunpack.c.l.b16 %v6884
        %v9808 = vunpack.c.l.b16 %v6885
        %v9809 = vunpack.c.l.b16 %v6886
        %v9810 = vunpack.c.l.b16 %v6887
        %v9811 = vunpack.c.l.b16 %v6888
        %v9812 = vunpack.c.l.b16 %v6889
        %v9813 = vunpack.c.l.b16 %v6890
        %v9814 = vunpack.c.l.b16 %v6891
        %v9815 = vunpack.c.l.b16 %v6892
        %v9816 = vunpack.c.l.b16 %v6893
        %v9817 = vunpack.c.l.b16 %v6894
        %v9818 = vpack.c.b16 %v9787, %v9786
        %v9819 = vpack.c.b16 %v9789, %v9788
        %v9820 = vpack.c.b16 %v9791, %v9790
        %v9821 = vpack.c.b16 %v9793, %v9792
        %v9822 = vpack.c.b16 %v9795, %v9794
        %v9823 = vpack.c.b16 %v9797, %v9796
        %v9824 = vpack.c.b16 %v9799, %v9798
        %v9825 = vpack.c.b16 %v9801, %v9800
        %v9826 = vpack.c.b16 %v9803, %v9802
        %v9827 = vpack.c.b16 %v9805, %v9804
        %v9828 = vpack.c.b16 %v9807, %v9806
        %v9829 = vpack.c.b16 %v9809, %v9808
        %v9830 = vpack.c.b16 %v9811, %v9810
        %v9831 = vpack.c.b16 %v9813, %v9812
        %v9832 = vpack.c.b16 %v9815, %v9814
        %v9833 = vpack.c.b16 %v9817, %v9816
        %9850 = vmatpush.bf16.msra.mxu0 %v9825
        %9851 = vmatpush.bf16.msra.mxu0 %v9824
        %9852 = vmatpush.bf16.msra.mxu0 %v9823
        %9853 = vmatpush.bf16.msra.mxu0 %v9822
        %9854 = vmatpush.bf16.msra.mxu0 %v9821
        %9855 = vmatpush.bf16.msra.mxu0 %v9820
        %9856 = vmatpush.bf16.msra.mxu0 %v9819
        %9857 = vmatpush.bf16.msra.mxu0 %v9818
        %9858 = vmatmul.bf16.gmra.mxu0 %v8042
        %v9859 = vpop.f32.mrf.mxu0
        %v9860 = vadd.f32 %v8021, %v9859
        %v9861 = vpop.f32.mrf.mxu0
        %9862 = vdwg.mxu0
        %9863 = vmatpush.bf16.msra.mxu0 %v9833
        %9864 = vmatpush.bf16.msra.mxu0 %v9832
        %9865 = vmatpush.bf16.msra.mxu0 %v9831
        %9866 = vmatpush.bf16.msra.mxu0 %v9830
        %9867 = vmatpush.bf16.msra.mxu0 %v9829
        %9868 = vmatpush.bf16.msra.mxu0 %v9828
        %9869 = vmatpush.bf16.msra.mxu0 %v9827
        %9870 = vmatpush.bf16.msra.mxu0 %v9826
        %9871 = vmatmul.bf16.gmra.mxu0 %v8043
        %v9872 = vpop.f32.mrf.mxu0
        %v9873 = vadd.f32 %v9860, %v9872
        %v9874 = vpop.f32.mrf.mxu0
        %9875 = vdwg.mxu0
        %v9908 = vunpack.c.l.b16 %v6895
        %v9909 = vunpack.c.l.b16 %v6896
        %v9910 = vunpack.c.l.b16 %v6897
        %v9911 = vunpack.c.l.b16 %v6898
        %v9912 = vunpack.c.l.b16 %v6899
        %v9913 = vunpack.c.l.b16 %v6900
        %v9914 = vunpack.c.l.b16 %v6901
        %v9915 = vunpack.c.l.b16 %v6902
        %v9916 = vunpack.c.l.b16 %v6903
        %v9917 = vunpack.c.l.b16 %v6904
        %v9918 = vunpack.c.l.b16 %v6905
        %v9919 = vunpack.c.l.b16 %v6906
        %v9920 = vunpack.c.l.b16 %v6907
        %v9921 = vunpack.c.l.b16 %v6908
        %v9922 = vunpack.c.l.b16 %v6909
        %v9923 = vunpack.c.l.b16 %v6910
        %v9924 = vunpack.c.l.b16 %v6911
        %v9925 = vunpack.c.l.b16 %v6912
        %v9926 = vunpack.c.l.b16 %v6913
        %v9927 = vunpack.c.l.b16 %v6914
        %v9928 = vunpack.c.l.b16 %v6915
        %v9929 = vunpack.c.l.b16 %v6916
        %v9930 = vunpack.c.l.b16 %v6917
        %v9931 = vunpack.c.l.b16 %v6918
        %v9932 = vunpack.c.l.b16 %v6919
        %v9933 = vunpack.c.l.b16 %v6920
        %v9934 = vunpack.c.l.b16 %v6921
        %v9935 = vunpack.c.l.b16 %v6922
        %v9936 = vunpack.c.l.b16 %v6923
        %v9937 = vunpack.c.l.b16 %v6924
        %v9938 = vunpack.c.l.b16 %v6925
        %v9939 = vunpack.c.l.b16 %v6926
        %v9940 = vpack.c.b16 %v9909, %v9908
        %v9941 = vpack.c.b16 %v9911, %v9910
        %v9942 = vpack.c.b16 %v9913, %v9912
        %v9943 = vpack.c.b16 %v9915, %v9914
        %v9944 = vpack.c.b16 %v9917, %v9916
        %v9945 = vpack.c.b16 %v9919, %v9918
        %v9946 = vpack.c.b16 %v9921, %v9920
        %v9947 = vpack.c.b16 %v9923, %v9922
        %v9948 = vpack.c.b16 %v9925, %v9924
        %v9949 = vpack.c.b16 %v9927, %v9926
        %v9950 = vpack.c.b16 %v9929, %v9928
        %v9951 = vpack.c.b16 %v9931, %v9930
        %v9952 = vpack.c.b16 %v9933, %v9932
        %v9953 = vpack.c.b16 %v9935, %v9934
        %v9954 = vpack.c.b16 %v9937, %v9936
        %v9955 = vpack.c.b16 %v9939, %v9938
        %9972 = vmatpush.bf16.msra.mxu0 %v9947
        %9973 = vmatpush.bf16.msra.mxu0 %v9946
        %9974 = vmatpush.bf16.msra.mxu0 %v9945
        %9975 = vmatpush.bf16.msra.mxu0 %v9944
        %9976 = vmatpush.bf16.msra.mxu0 %v9943
        %9977 = vmatpush.bf16.msra.mxu0 %v9942
        %9978 = vmatpush.bf16.msra.mxu0 %v9941
        %9979 = vmatpush.bf16.msra.mxu0 %v9940
        %9980 = vmatmul.bf16.gmra.mxu0 %v8042
        %v9981 = vpop.f32.mrf.mxu0
        %v9982 = vadd.f32 %v8022, %v9981
        %v9983 = vpop.f32.mrf.mxu0
        %9984 = vdwg.mxu0
        %9985 = vmatpush.bf16.msra.mxu0 %v9955
        %9986 = vmatpush.bf16.msra.mxu0 %v9954
        %9987 = vmatpush.bf16.msra.mxu0 %v9953
        %9988 = vmatpush.bf16.msra.mxu0 %v9952
        %9989 = vmatpush.bf16.msra.mxu0 %v9951
        %9990 = vmatpush.bf16.msra.mxu0 %v9950
        %9991 = vmatpush.bf16.msra.mxu0 %v9949
        %9992 = vmatpush.bf16.msra.mxu0 %v9948
        %9993 = vmatmul.bf16.gmra.mxu0 %v8043
        %v9994 = vpop.f32.mrf.mxu0
        %v9995 = vadd.f32 %v9982, %v9994
        %v9996 = vpop.f32.mrf.mxu0
        %9997 = vdwg.mxu0
        %v9998 = vpack.c.bf16 %v7134, %v7134
        %v9999 = vpack.c.bf16 %v7256, %v7256
        %v10000 = vpack.c.bf16 %v7378, %v7378
        %v10001 = vpack.c.bf16 %v7500, %v7500
        %v10002 = vpack.c.bf16 %v7622, %v7622
        %v10003 = vpack.c.bf16 %v7744, %v7744
        %v10004 = vpack.c.bf16 %v7866, %v7866
        %v10005 = vpack.c.bf16 %v7988, %v7988
        %v10006 = vpack.c.bf16 %v8165, %v8165
        %v10007 = vpack.c.bf16 %v8287, %v8287
        %v10008 = vpack.c.bf16 %v8409, %v8409
        %v10009 = vpack.c.bf16 %v8531, %v8531
        %v10010 = vpack.c.bf16 %v8653, %v8653
        %v10011 = vpack.c.bf16 %v8775, %v8775
        %v10012 = vpack.c.bf16 %v8897, %v8897
        %v10013 = vpack.c.bf16 %v9019, %v9019
        %v10015 = vsel %vm5266, %v9998, 0
        %v10018 = vsel %vm5266, %v10006, 0
        %10020 = vmatpush.bf16.xpose.msra.mxu0 0
        %10021 = vmatpush.bf16.xpose.msra.mxu0 0
        %10022 = vmatpush.bf16.xpose.msra.mxu0 0
        %10023 = vmatpush.bf16.xpose.msra.mxu0 0
        %10024 = vmatpush.bf16.xpose.msra.mxu0 0
        %10025 = vmatpush.bf16.xpose.msra.mxu0 0
        %10026 = vmatpush.bf16.xpose.msra.mxu0 0
        %10027 = vmatpush.bf16.xpose.msra.mxu0 %v10018
        %10028 = vmatmul.bf16.gmra.mxu0 %v10015
        %v10029 = vpop.f32.mrf.mxu0
        %v10030 = vadd.f32 0.0, %v10029
        %v10031 = vpop.f32.mrf.mxu0
        %10032 = vdwg.mxu0
        %v10034 = vsel %vm5266, %v9999, 0
        %v10037 = vsel %vm5266, %v10007, 0
        %10039 = vmatpush.bf16.xpose.msra.mxu0 0
        %10040 = vmatpush.bf16.xpose.msra.mxu0 0
        %10041 = vmatpush.bf16.xpose.msra.mxu0 0
        %10042 = vmatpush.bf16.xpose.msra.mxu0 0
        %10043 = vmatpush.bf16.xpose.msra.mxu0 0
        %10044 = vmatpush.bf16.xpose.msra.mxu0 0
        %10045 = vmatpush.bf16.xpose.msra.mxu0 0
        %10046 = vmatpush.bf16.xpose.msra.mxu0 %v10037
        %10047 = vmatmul.bf16.gmra.mxu0 %v10034
        %v10048 = vpop.f32.mrf.mxu0
        %v10049 = vadd.f32 0.0, %v10048
        %v10050 = vpop.f32.mrf.mxu0
        %10051 = vdwg.mxu0
        %v10053 = vsel %vm5266, %v10000, 0
        %v10056 = vsel %vm5266, %v10008, 0
        %10058 = vmatpush.bf16.xpose.msra.mxu0 0
        %10059 = vmatpush.bf16.xpose.msra.mxu0 0
        %10060 = vmatpush.bf16.xpose.msra.mxu0 0
        %10061 = vmatpush.bf16.xpose.msra.mxu0 0
        %10062 = vmatpush.bf16.xpose.msra.mxu0 0
        %10063 = vmatpush.bf16.xpose.msra.mxu0 0
        %10064 = vmatpush.bf16.xpose.msra.mxu0 0
        %10065 = vmatpush.bf16.xpose.msra.mxu0 %v10056
        %10066 = vmatmul.bf16.gmra.mxu0 %v10053
        %v10067 = vpop.f32.mrf.mxu0
        %v10068 = vadd.f32 0.0, %v10067
        %v10069 = vpop.f32.mrf.mxu0
        %10070 = vdwg.mxu0
        %v10072 = vsel %vm5266, %v10001, 0
        %v10075 = vsel %vm5266, %v10009, 0
        %10077 = vmatpush.bf16.xpose.msra.mxu0 0
        %10078 = vmatpush.bf16.xpose.msra.mxu0 0
        %10079 = vmatpush.bf16.xpose.msra.mxu0 0
        %10080 = vmatpush.bf16.xpose.msra.mxu0 0
        %10081 = vmatpush.bf16.xpose.msra.mxu0 0
        %10082 = vmatpush.bf16.xpose.msra.mxu0 0
        %10083 = vmatpush.bf16.xpose.msra.mxu0 0
        %10084 = vmatpush.bf16.xpose.msra.mxu0 %v10075
        %10085 = vmatmul.bf16.gmra.mxu0 %v10072
        %v10086 = vpop.f32.mrf.mxu0
        %v10087 = vadd.f32 0.0, %v10086
        %v10088 = vpop.f32.mrf.mxu0
        %10089 = vdwg.mxu0
        %v10091 = vsel %vm5266, %v10002, 0
        %v10094 = vsel %vm5266, %v10010, 0
        %10096 = vmatpush.bf16.xpose.msra.mxu0 0
        %10097 = vmatpush.bf16.xpose.msra.mxu0 0
        %10098 = vmatpush.bf16.xpose.msra.mxu0 0
        %10099 = vmatpush.bf16.xpose.msra.mxu0 0
        %10100 = vmatpush.bf16.xpose.msra.mxu0 0
        %10101 = vmatpush.bf16.xpose.msra.mxu0 0
        %10102 = vmatpush.bf16.xpose.msra.mxu0 0
        %10103 = vmatpush.bf16.xpose.msra.mxu0 %v10094
        %10104 = vmatmul.bf16.gmra.mxu0 %v10091
        %v10105 = vpop.f32.mrf.mxu0
        %v10106 = vadd.f32 0.0, %v10105
        %v10107 = vpop.f32.mrf.mxu0
        %10108 = vdwg.mxu0
        %v10110 = vsel %vm5266, %v10003, 0
        %v10113 = vsel %vm5266, %v10011, 0
        %10115 = vmatpush.bf16.xpose.msra.mxu0 0
        %10116 = vmatpush.bf16.xpose.msra.mxu0 0
        %10117 = vmatpush.bf16.xpose.msra.mxu0 0
        %10118 = vmatpush.bf16.xpose.msra.mxu0 0
        %10119 = vmatpush.bf16.xpose.msra.mxu0 0
        %10120 = vmatpush.bf16.xpose.msra.mxu0 0
        %10121 = vmatpush.bf16.xpose.msra.mxu0 0
        %10122 = vmatpush.bf16.xpose.msra.mxu0 %v10113
        %10123 = vmatmul.bf16.gmra.mxu0 %v10110
        %v10124 = vpop.f32.mrf.mxu0
        %v10125 = vadd.f32 0.0, %v10124
        %v10126 = vpop.f32.mrf.mxu0
        %10127 = vdwg.mxu0
        %v10129 = vsel %vm5266, %v10004, 0
        %v10132 = vsel %vm5266, %v10012, 0
        %10134 = vmatpush.bf16.xpose.msra.mxu0 0
        %10135 = vmatpush.bf16.xpose.msra.mxu0 0
        %10136 = vmatpush.bf16.xpose.msra.mxu0 0
        %10137 = vmatpush.bf16.xpose.msra.mxu0 0
        %10138 = vmatpush.bf16.xpose.msra.mxu0 0
        %10139 = vmatpush.bf16.xpose.msra.mxu0 0
        %10140 = vmatpush.bf16.xpose.msra.mxu0 0
        %10141 = vmatpush.bf16.xpose.msra.mxu0 %v10132
        %10142 = vmatmul.bf16.gmra.mxu0 %v10129
        %v10143 = vpop.f32.mrf.mxu0
        %v10144 = vadd.f32 0.0, %v10143
        %v10145 = vpop.f32.mrf.mxu0
        %10146 = vdwg.mxu0
        %v10148 = vsel %vm5266, %v10005, 0
        %v10151 = vsel %vm5266, %v10013, 0
        %10153 = vmatpush.bf16.xpose.msra.mxu0 0
        %10154 = vmatpush.bf16.xpose.msra.mxu0 0
        %10155 = vmatpush.bf16.xpose.msra.mxu0 0
        %10156 = vmatpush.bf16.xpose.msra.mxu0 0
        %10157 = vmatpush.bf16.xpose.msra.mxu0 0
        %10158 = vmatpush.bf16.xpose.msra.mxu0 0
        %10159 = vmatpush.bf16.xpose.msra.mxu0 0
        %10160 = vmatpush.bf16.xpose.msra.mxu0 %v10151
        %10161 = vmatmul.bf16.gmra.mxu0 %v10148
        %v10162 = vpop.f32.mrf.mxu0
        %v10163 = vadd.f32 0.0, %v10162
        %v10164 = vpop.f32.mrf.mxu0
        %10165 = vdwg.mxu0
        %v10166 = vmul.f32 %v10030, 0.17677669
        %v10167 = vmul.f32 %v10049, 0.17677669
        %v10168 = vmul.f32 %v10068, 0.17677669
        %v10169 = vmul.f32 %v10087, 0.17677669
        %v10170 = vmul.f32 %v10106, 0.17677669
        %v10171 = vmul.f32 %v10125, 0.17677669
        %v10172 = vmul.f32 %v10144, 0.17677669
        %v10173 = vmul.f32 %v10163, 0.17677669
        %v10174 = vsel %vm5427, %v10166, -inf
        %10175 = vmax.xlane.f32.xlu0 %v10174
        %v10176 = vpop.xlane.xlu0 %10175
        %v10177 = vsel %vm5427, %v10167, -inf
        %10178 = vmax.xlane.f32.xlu0 %v10177
        %v10179 = vpop.xlane.xlu0 %10178
        %v10180 = vsel %vm5427, %v10168, -inf
        %10181 = vmax.xlane.f32.xlu0 %v10180
        %v10182 = vpop.xlane.xlu0 %10181
        %v10183 = vsel %vm5427, %v10169, -inf
        %10184 = vmax.xlane.f32.xlu0 %v10183
        %v10185 = vpop.xlane.xlu0 %10184
        %v10186 = vsel %vm5427, %v10170, -inf
        %10187 = vmax.xlane.f32.xlu0 %v10186
        %v10188 = vpop.xlane.xlu0 %10187
        %v10189 = vsel %vm5427, %v10171, -inf
        %10190 = vmax.xlane.f32.xlu0 %v10189
        %v10191 = vpop.xlane.xlu0 %10190
        %v10192 = vsel %vm5427, %v10172, -inf
        %10193 = vmax.xlane.f32.xlu0 %v10192
        %v10194 = vpop.xlane.xlu0 %10193
        %v10195 = vsel %vm5427, %v10173, -inf
        %10196 = vmax.xlane.f32.xlu0 %v10195
        %v10197 = vpop.xlane.xlu0 %10196
        %v10198 = vsub.f32 %v10166, %v10176
        %v10199 = vsub.f32 %v10167, %v10179
        %v10200 = vsub.f32 %v10168, %v10182
        %v10201 = vsub.f32 %v10169, %v10185
        %v10202 = vsub.f32 %v10170, %v10188
        %v10203 = vsub.f32 %v10171, %v10191
        %v10204 = vsub.f32 %v10172, %v10194
        %v10205 = vsub.f32 %v10173, %v10197
        %v10206 = vmul.f32 %v10198, 1.442695
        %v10207 = vpow.pop %v10206
        %v10208 = vmul.f32 %v10199, 1.442695
        %v10209 = vpow.pop %v10208
        %v10210 = vmul.f32 %v10200, 1.442695
        %v10211 = vpow.pop %v10210
        %v10212 = vmul.f32 %v10201, 1.442695
        %v10213 = vpow.pop %v10212
        %v10214 = vmul.f32 %v10202, 1.442695
        %v10215 = vpow.pop %v10214
        %v10216 = vmul.f32 %v10203, 1.442695
        %v10217 = vpow.pop %v10216
        %v10218 = vmul.f32 %v10204, 1.442695
        %v10219 = vpow.pop %v10218
        %v10220 = vmul.f32 %v10205, 1.442695
        %v10221 = vpow.pop %v10220
        %v10222 = vsel %vm5427, %v10207, 0.0
        %10223 = vadd.xlane.f32.xlu0 %v10222
        %v10224 = vpop.xlane.xlu0 %10223
        %v10225 = vsel %vm5427, %v10209, 0.0
        %10226 = vadd.xlane.f32.xlu0 %v10225
        %v10227 = vpop.xlane.xlu0 %10226
        %v10228 = vsel %vm5427, %v10211, 0.0
        %10229 = vadd.xlane.f32.xlu0 %v10228
        %v10230 = vpop.xlane.xlu0 %10229
        %v10231 = vsel %vm5427, %v10213, 0.0
        %10232 = vadd.xlane.f32.xlu0 %v10231
        %v10233 = vpop.xlane.xlu0 %10232
        %v10234 = vsel %vm5427, %v10215, 0.0
        %10235 = vadd.xlane.f32.xlu0 %v10234
        %v10236 = vpop.xlane.xlu0 %10235
        %v10237 = vsel %vm5427, %v10217, 0.0
        %10238 = vadd.xlane.f32.xlu0 %v10237
        %v10239 = vpop.xlane.xlu0 %10238
        %v10240 = vsel %vm5427, %v10219, 0.0
        %10241 = vadd.xlane.f32.xlu0 %v10240
        %v10242 = vpop.xlane.xlu0 %10241
        %v10243 = vsel %vm5427, %v10221, 0.0
        %10244 = vadd.xlane.f32.xlu0 %v10243
        %v10245 = vpop.xlane.xlu0 %10244
        %v10246 = vrcp.pop %v10224
        %v10247 = vrcp.pop %v10227
        %v10248 = vrcp.pop %v10230
        %v10249 = vrcp.pop %v10233
        %v10250 = vrcp.pop %v10236
        %v10251 = vrcp.pop %v10239
        %v10252 = vrcp.pop %v10242
        %v10253 = vrcp.pop %v10245
        %v10254 = vmul.f32 %v10207, %v10246
        %v10255 = vmul.f32 %v10209, %v10247
        %v10256 = vmul.f32 %v10211, %v10248
        %v10257 = vmul.f32 %v10213, %v10249
        %v10258 = vmul.f32 %v10215, %v10250
        %v10259 = vmul.f32 %v10217, %v10251
        %v10260 = vmul.f32 %v10219, %v10252
        %v10261 = vmul.f32 %v10221, %v10253
        %v10262 = vpack.c.bf16 %v10254, %v10254
        %v10263 = vpack.c.bf16 %v10255, %v10255
        %v10264 = vpack.c.bf16 %v10256, %v10256
        %v10265 = vpack.c.bf16 %v10257, %v10257
        %v10266 = vpack.c.bf16 %v10258, %v10258
        %v10267 = vpack.c.bf16 %v10259, %v10259
        %v10268 = vpack.c.bf16 %v10260, %v10260
        %v10269 = vpack.c.bf16 %v10261, %v10261
        %v10270 = vpack.c.bf16 %v9141, %v9141
        %v10271 = vpack.c.bf16 %v9263, %v9263
        %v10272 = vpack.c.bf16 %v9385, %v9385
        %v10273 = vpack.c.bf16 %v9507, %v9507
        %v10274 = vpack.c.bf16 %v9629, %v9629
        %v10275 = vpack.c.bf16 %v9751, %v9751
        %v10276 = vpack.c.bf16 %v9873, %v9873
        %v10277 = vpack.c.bf16 %v9995, %v9995
        %v10279 = vsel %vm5427, %v10262, 0
        %v10282 = vsel %vm5535, %v10270, 0
        %10284 = vmatpush.bf16.msra.mxu0 0
        %10285 = vmatpush.bf16.msra.mxu0 0
        %10286 = vmatpush.bf16.msra.mxu0 0
        %10287 = vmatpush.bf16.msra.mxu0 0
        %10288 = vmatpush.bf16.msra.mxu0 0
        %10289 = vmatpush.bf16.msra.mxu0 0
        %10290 = vmatpush.bf16.msra.mxu0 0
        %10291 = vmatpush.bf16.msra.mxu0 %v10282
        %10292 = vmatmul.bf16.gmra.mxu0 %v10279
        %v10293 = vpop.f32.mrf.mxu0
        %v10294 = vadd.f32 0.0, %v10293
        %v10295 = vpop.f32.mrf.mxu0
        %10296 = vdwg.mxu0
        %v10298 = vsel %vm5427, %v10263, 0
        %v10301 = vsel %vm5535, %v10271, 0
        %10303 = vmatpush.bf16.msra.mxu0 0
        %10304 = vmatpush.bf16.msra.mxu0 0
        %10305 = vmatpush.bf16.msra.mxu0 0
        %10306 = vmatpush.bf16.msra.mxu0 0
        %10307 = vmatpush.bf16.msra.mxu0 0
        %10308 = vmatpush.bf16.msra.mxu0 0
        %10309 = vmatpush.bf16.msra.mxu0 0
        %10310 = vmatpush.bf16.msra.mxu0 %v10301
        %10311 = vmatmul.bf16.gmra.mxu0 %v10298
        %v10312 = vpop.f32.mrf.mxu0
        %v10313 = vadd.f32 0.0, %v10312
        %v10314 = vpop.f32.mrf.mxu0
        %10315 = vdwg.mxu0
        %v10317 = vsel %vm5427, %v10264, 0
        %v10320 = vsel %vm5535, %v10272, 0
        %10322 = vmatpush.bf16.msra.mxu0 0
        %10323 = vmatpush.bf16.msra.mxu0 0
        %10324 = vmatpush.bf16.msra.mxu0 0
        %10325 = vmatpush.bf16.msra.mxu0 0
        %10326 = vmatpush.bf16.msra.mxu0 0
        %10327 = vmatpush.bf16.msra.mxu0 0
        %10328 = vmatpush.bf16.msra.mxu0 0
        %10329 = vmatpush.bf16.msra.mxu0 %v10320
        %10330 = vmatmul.bf16.gmra.mxu0 %v10317
        %v10331 = vpop.f32.mrf.mxu0
        %v10332 = vadd.f32 0.0, %v10331
        %v10333 = vpop.f32.mrf.mxu0
        %10334 = vdwg.mxu0
        %v10336 = vsel %vm5427, %v10265, 0
        %v10339 = vsel %vm5535, %v10273, 0
        %10341 = vmatpush.bf16.msra.mxu0 0
        %10342 = vmatpush.bf16.msra.mxu0 0
        %10343 = vmatpush.bf16.msra.mxu0 0
        %10344 = vmatpush.bf16.msra.mxu0 0
        %10345 = vmatpush.bf16.msra.mxu0 0
        %10346 = vmatpush.bf16.msra.mxu0 0
        %10347 = vmatpush.bf16.msra.mxu0 0
        %10348 = vmatpush.bf16.msra.mxu0 %v10339
        %10349 = vmatmul.bf16.gmra.mxu0 %v10336
        %v10350 = vpop.f32.mrf.mxu0
        %v10351 = vadd.f32 0.0, %v10350
        %v10352 = vpop.f32.mrf.mxu0
        %10353 = vdwg.mxu0
        %v10355 = vsel %vm5427, %v10266, 0
        %v10358 = vsel %vm5535, %v10274, 0
        %10360 = vmatpush.bf16.msra.mxu0 0
        %10361 = vmatpush.bf16.msra.mxu0 0
        %10362 = vmatpush.bf16.msra.mxu0 0
        %10363 = vmatpush.bf16.msra.mxu0 0
        %10364 = vmatpush.bf16.msra.mxu0 0
        %10365 = vmatpush.bf16.msra.mxu0 0
        %10366 = vmatpush.bf16.msra.mxu0 0
        %10367 = vmatpush.bf16.msra.mxu0 %v10358
        %10368 = vmatmul.bf16.gmra.mxu0 %v10355
        %v10369 = vpop.f32.mrf.mxu0
        %v10370 = vadd.f32 0.0, %v10369
        %v10371 = vpop.f32.mrf.mxu0
        %10372 = vdwg.mxu0
        %v10374 = vsel %vm5427, %v10267, 0
        %v10377 = vsel %vm5535, %v10275, 0
        %10379 = vmatpush.bf16.msra.mxu0 0
        %10380 = vmatpush.bf16.msra.mxu0 0
        %10381 = vmatpush.bf16.msra.mxu0 0
        %10382 = vmatpush.bf16.msra.mxu0 0
        %10383 = vmatpush.bf16.msra.mxu0 0
        %10384 = vmatpush.bf16.msra.mxu0 0
        %10385 = vmatpush.bf16.msra.mxu0 0
        %10386 = vmatpush.bf16.msra.mxu0 %v10377
        %10387 = vmatmul.bf16.gmra.mxu0 %v10374
        %v10388 = vpop.f32.mrf.mxu0
        %v10389 = vadd.f32 0.0, %v10388
        %v10390 = vpop.f32.mrf.mxu0
        %10391 = vdwg.mxu0
        %v10393 = vsel %vm5427, %v10268, 0
        %v10396 = vsel %vm5535, %v10276, 0
        %10398 = vmatpush.bf16.msra.mxu0 0
        %10399 = vmatpush.bf16.msra.mxu0 0
        %10400 = vmatpush.bf16.msra.mxu0 0
        %10401 = vmatpush.bf16.msra.mxu0 0
        %10402 = vmatpush.bf16.msra.mxu0 0
        %10403 = vmatpush.bf16.msra.mxu0 0
        %10404 = vmatpush.bf16.msra.mxu0 0
        %10405 = vmatpush.bf16.msra.mxu0 %v10396
        %10406 = vmatmul.bf16.gmra.mxu0 %v10393
        %v10407 = vpop.f32.mrf.mxu0
        %v10408 = vadd.f32 0.0, %v10407
        %v10409 = vpop.f32.mrf.mxu0
        %10410 = vdwg.mxu0
        %v10412 = vsel %vm5427, %v10269, 0
        %v10415 = vsel %vm5535, %v10277, 0
        %10417 = vmatpush.bf16.msra.mxu0 0
        %10418 = vmatpush.bf16.msra.mxu0 0
        %10419 = vmatpush.bf16.msra.mxu0 0
        %10420 = vmatpush.bf16.msra.mxu0 0
        %10421 = vmatpush.bf16.msra.mxu0 0
        %10422 = vmatpush.bf16.msra.mxu0 0
        %10423 = vmatpush.bf16.msra.mxu0 0
        %10424 = vmatpush.bf16.msra.mxu0 %v10415
        %10425 = vmatmul.bf16.gmra.mxu0 %v10412
        %v10426 = vpop.f32.mrf.mxu0
        %v10427 = vadd.f32 0.0, %v10426
        %v10428 = vpop.f32.mrf.mxu0
        %10429 = vdwg.mxu0
        %v10430 = vpack.c.bf16 %v10294, %v10294
        %v10431 = vpack.c.bf16 %v10313, %v10313
        %v10432 = vpack.c.bf16 %v10332, %v10332
        %v10433 = vpack.c.bf16 %v10351, %v10351
        %v10434 = vpack.c.bf16 %v10370, %v10370
        %v10435 = vpack.c.bf16 %v10389, %v10389
        %v10436 = vpack.c.bf16 %v10408, %v10408
        %v10437 = vpack.c.bf16 %v10427, %v10427
        %v10442 = vunpack.c.l.b16 %v6951
        %v10443 = vunpack.c.h.b16 %v6951
        %v10444 = vunpack.c.l.b16 %v6952
        %v10445 = vunpack.c.h.b16 %v6952
        %v10446 = vunpack.c.l.b16 %v6953
        %v10447 = vunpack.c.h.b16 %v6953
        %v10448 = vunpack.c.l.b16 %v6954
        %v10449 = vunpack.c.h.b16 %v6954
        %v10450 = vpack.c.b16 %v10444, %v10442
        %v10451 = vpack.c.b16 %v10445, %v10443
        %v10452 = vpack.c.b16 %v10448, %v10446
        %v10453 = vpack.c.b16 %v10449, %v10447
        %v10459 = vsel %vm5266, %v10430, 0
        %10461 = vmatpush.bf16.msra.mxu0 0
        %10462 = vmatpush.bf16.msra.mxu0 0
        %10463 = vmatpush.bf16.msra.mxu0 0
        %10464 = vmatpush.bf16.msra.mxu0 0
        %10465 = vmatpush.bf16.msra.mxu0 0
        %10466 = vmatpush.bf16.msra.mxu0 0
        %10467 = vmatpush.bf16.msra.mxu0 %v10452
        %10468 = vmatpush.bf16.msra.mxu0 %v10450
        %10469 = vmatmul.bf16.gmra.mxu0 %v10459
        %v10470 = vpop.f32.mrf.mxu0
        %v10471 = vadd.f32 0.0, %v10470
        %v10472 = vpop.f32.mrf.mxu0
        %10473 = vdwg.mxu0
        %10474 = vmatpush.bf16.msra.mxu0 0
        %10475 = vmatpush.bf16.msra.mxu0 0
        %10476 = vmatpush.bf16.msra.mxu0 0
        %10477 = vmatpush.bf16.msra.mxu0 0
        %10478 = vmatpush.bf16.msra.mxu0 0
        %10479 = vmatpush.bf16.msra.mxu0 0
        %10480 = vmatpush.bf16.msra.mxu0 %v10453
        %10481 = vmatpush.bf16.msra.mxu0 %v10451
        %10482 = vmatmul.bf16.gmra.mxu0 %v10459
        %v10483 = vpop.f32.mrf.mxu0
        %v10484 = vadd.f32 0.0, %v10483
        %v10485 = vpop.f32.mrf.mxu0
        %10486 = vdwg.mxu0
        %v10491 = vunpack.c.l.b16 %v6955
        %v10492 = vunpack.c.h.b16 %v6955
        %v10493 = vunpack.c.l.b16 %v6956
        %v10494 = vunpack.c.h.b16 %v6956
        %v10495 = vunpack.c.l.b16 %v6957
        %v10496 = vunpack.c.h.b16 %v6957
        %v10497 = vunpack.c.l.b16 %v6958
        %v10498 = vunpack.c.h.b16 %v6958
        %v10499 = vpack.c.b16 %v10493, %v10491
        %v10500 = vpack.c.b16 %v10494, %v10492
        %v10501 = vpack.c.b16 %v10497, %v10495
        %v10502 = vpack.c.b16 %v10498, %v10496
        %v10508 = vsel %vm5266, %v10431, 0
        %10510 = vmatpush.bf16.msra.mxu0 0
        %10511 = vmatpush.bf16.msra.mxu0 0
        %10512 = vmatpush.bf16.msra.mxu0 0
        %10513 = vmatpush.bf16.msra.mxu0 0
        %10514 = vmatpush.bf16.msra.mxu0 0
        %10515 = vmatpush.bf16.msra.mxu0 0
        %10516 = vmatpush.bf16.msra.mxu0 %v10501
        %10517 = vmatpush.bf16.msra.mxu0 %v10499
        %10518 = vmatmul.bf16.gmra.mxu0 %v10508
        %v10519 = vpop.f32.mrf.mxu0
        %v10520 = vadd.f32 0.0, %v10519
        %v10521 = vpop.f32.mrf.mxu0
        %10522 = vdwg.mxu0
        %10523 = vmatpush.bf16.msra.mxu0 0
        %10524 = vmatpush.bf16.msra.mxu0 0
        %10525 = vmatpush.bf16.msra.mxu0 0
        %10526 = vmatpush.bf16.msra.mxu0 0
        %10527 = vmatpush.bf16.msra.mxu0 0
        %10528 = vmatpush.bf16.msra.mxu0 0
        %10529 = vmatpush.bf16.msra.mxu0 %v10502
        %10530 = vmatpush.bf16.msra.mxu0 %v10500
        %10531 = vmatmul.bf16.gmra.mxu0 %v10508
        %v10532 = vpop.f32.mrf.mxu0
        %v10533 = vadd.f32 0.0, %v10532
        %v10534 = vpop.f32.mrf.mxu0
        %10535 = vdwg.mxu0
        %v10540 = vunpack.c.l.b16 %v6959
        %v10541 = vunpack.c.h.b16 %v6959
        %v10542 = vunpack.c.l.b16 %v6960
        %v10543 = vunpack.c.h.b16 %v6960
        %v10544 = vunpack.c.l.b16 %v6961
        %v10545 = vunpack.c.h.b16 %v6961
        %v10546 = vunpack.c.l.b16 %v6962
        %v10547 = vunpack.c.h.b16 %v6962
        %v10548 = vpack.c.b16 %v10542, %v10540
        %v10549 = vpack.c.b16 %v10543, %v10541
        %v10550 = vpack.c.b16 %v10546, %v10544
        %v10551 = vpack.c.b16 %v10547, %v10545
        %v10557 = vsel %vm5266, %v10432, 0
        %10559 = vmatpush.bf16.msra.mxu0 0
        %10560 = vmatpush.bf16.msra.mxu0 0
        %10561 = vmatpush.bf16.msra.mxu0 0
        %10562 = vmatpush.bf16.msra.mxu0 0
        %10563 = vmatpush.bf16.msra.mxu0 0
        %10564 = vmatpush.bf16.msra.mxu0 0
        %10565 = vmatpush.bf16.msra.mxu0 %v10550
        %10566 = vmatpush.bf16.msra.mxu0 %v10548
        %10567 = vmatmul.bf16.gmra.mxu0 %v10557
        %v10568 = vpop.f32.mrf.mxu0
        %v10569 = vadd.f32 0.0, %v10568
        %v10570 = vpop.f32.mrf.mxu0
        %10571 = vdwg.mxu0
        %10572 = vmatpush.bf16.msra.mxu0 0
        %10573 = vmatpush.bf16.msra.mxu0 0
        %10574 = vmatpush.bf16.msra.mxu0 0
        %10575 = vmatpush.bf16.msra.mxu0 0
        %10576 = vmatpush.bf16.msra.mxu0 0
        %10577 = vmatpush.bf16.msra.mxu0 0
        %10578 = vmatpush.bf16.msra.mxu0 %v10551
        %10579 = vmatpush.bf16.msra.mxu0 %v10549
        %10580 = vmatmul.bf16.gmra.mxu0 %v10557
        %v10581 = vpop.f32.mrf.mxu0
        %v10582 = vadd.f32 0.0, %v10581
        %v10583 = vpop.f32.mrf.mxu0
        %10584 = vdwg.mxu0
        %v10589 = vunpack.c.l.b16 %v6963
        %v10590 = vunpack.c.h.b16 %v6963
        %v10591 = vunpack.c.l.b16 %v6964
        %v10592 = vunpack.c.h.b16 %v6964
        %v10593 = vunpack.c.l.b16 %v6965
        %v10594 = vunpack.c.h.b16 %v6965
        %v10595 = vunpack.c.l.b16 %v6966
        %v10596 = vunpack.c.h.b16 %v6966
        %v10597 = vpack.c.b16 %v10591, %v10589
        %v10598 = vpack.c.b16 %v10592, %v10590
        %v10599 = vpack.c.b16 %v10595, %v10593
        %v10600 = vpack.c.b16 %v10596, %v10594
        %v10606 = vsel %vm5266, %v10433, 0
        %10608 = vmatpush.bf16.msra.mxu0 0
        %10609 = vmatpush.bf16.msra.mxu0 0
        %10610 = vmatpush.bf16.msra.mxu0 0
        %10611 = vmatpush.bf16.msra.mxu0 0
        %10612 = vmatpush.bf16.msra.mxu0 0
        %10613 = vmatpush.bf16.msra.mxu0 0
        %10614 = vmatpush.bf16.msra.mxu0 %v10599
        %10615 = vmatpush.bf16.msra.mxu0 %v10597
        %10616 = vmatmul.bf16.gmra.mxu0 %v10606
        %v10617 = vpop.f32.mrf.mxu0
        %v10618 = vadd.f32 0.0, %v10617
        %v10619 = vpop.f32.mrf.mxu0
        %10620 = vdwg.mxu0
        %10621 = vmatpush.bf16.msra.mxu0 0
        %10622 = vmatpush.bf16.msra.mxu0 0
        %10623 = vmatpush.bf16.msra.mxu0 0
        %10624 = vmatpush.bf16.msra.mxu0 0
        %10625 = vmatpush.bf16.msra.mxu0 0
        %10626 = vmatpush.bf16.msra.mxu0 0
        %10627 = vmatpush.bf16.msra.mxu0 %v10600
        %10628 = vmatpush.bf16.msra.mxu0 %v10598
        %10629 = vmatmul.bf16.gmra.mxu0 %v10606
        %v10630 = vpop.f32.mrf.mxu0
        %v10631 = vadd.f32 0.0, %v10630
        %v10632 = vpop.f32.mrf.mxu0
        %10633 = vdwg.mxu0
        %v10638 = vunpack.c.l.b16 %v6967
        %v10639 = vunpack.c.h.b16 %v6967
        %v10640 = vunpack.c.l.b16 %v6968
        %v10641 = vunpack.c.h.b16 %v6968
        %v10642 = vunpack.c.l.b16 %v6969
        %v10643 = vunpack.c.h.b16 %v6969
        %v10644 = vunpack.c.l.b16 %v6970
        %v10645 = vunpack.c.h.b16 %v6970
        %v10646 = vpack.c.b16 %v10640, %v10638
        %v10647 = vpack.c.b16 %v10641, %v10639
        %v10648 = vpack.c.b16 %v10644, %v10642
        %v10649 = vpack.c.b16 %v10645, %v10643
        %v10655 = vsel %vm5266, %v10434, 0
        %10657 = vmatpush.bf16.msra.mxu0 0
        %10658 = vmatpush.bf16.msra.mxu0 0
        %10659 = vmatpush.bf16.msra.mxu0 0
        %10660 = vmatpush.bf16.msra.mxu0 0
        %10661 = vmatpush.bf16.msra.mxu0 0
        %10662 = vmatpush.bf16.msra.mxu0 0
        %10663 = vmatpush.bf16.msra.mxu0 %v10648
        %10664 = vmatpush.bf16.msra.mxu0 %v10646
        %10665 = vmatmul.bf16.gmra.mxu0 %v10655
        %v10666 = vpop.f32.mrf.mxu0
        %v10667 = vadd.f32 0.0, %v10666
        %v10668 = vpop.f32.mrf.mxu0
        %10669 = vdwg.mxu0
        %10670 = vmatpush.bf16.msra.mxu0 0
        %10671 = vmatpush.bf16.msra.mxu0 0
        %10672 = vmatpush.bf16.msra.mxu0 0
        %10673 = vmatpush.bf16.msra.mxu0 0
        %10674 = vmatpush.bf16.msra.mxu0 0
        %10675 = vmatpush.bf16.msra.mxu0 0
        %10676 = vmatpush.bf16.msra.mxu0 %v10649
        %10677 = vmatpush.bf16.msra.mxu0 %v10647
        %10678 = vmatmul.bf16.gmra.mxu0 %v10655
        %v10679 = vpop.f32.mrf.mxu0
        %v10680 = vadd.f32 0.0, %v10679
        %v10681 = vpop.f32.mrf.mxu0
        %10682 = vdwg.mxu0
        %v10687 = vunpack.c.l.b16 %v6971
        %v10688 = vunpack.c.h.b16 %v6971
        %v10689 = vunpack.c.l.b16 %v6972
        %v10690 = vunpack.c.h.b16 %v6972
        %v10691 = vunpack.c.l.b16 %v6973
        %v10692 = vunpack.c.h.b16 %v6973
        %v10693 = vunpack.c.l.b16 %v6974
        %v10694 = vunpack.c.h.b16 %v6974
        %v10695 = vpack.c.b16 %v10689, %v10687
        %v10696 = vpack.c.b16 %v10690, %v10688
        %v10697 = vpack.c.b16 %v10693, %v10691
        %v10698 = vpack.c.b16 %v10694, %v10692
        %v10704 = vsel %vm5266, %v10435, 0
        %10706 = vmatpush.bf16.msra.mxu0 0
        %10707 = vmatpush.bf16.msra.mxu0 0
        %10708 = vmatpush.bf16.msra.mxu0 0
        %10709 = vmatpush.bf16.msra.mxu0 0
        %10710 = vmatpush.bf16.msra.mxu0 0
        %10711 = vmatpush.bf16.msra.mxu0 0
        %10712 = vmatpush.bf16.msra.mxu0 %v10697
        %10713 = vmatpush.bf16.msra.mxu0 %v10695
        %10714 = vmatmul.bf16.gmra.mxu0 %v10704
        %v10715 = vpop.f32.mrf.mxu0
        %v10716 = vadd.f32 0.0, %v10715
        %v10717 = vpop.f32.mrf.mxu0
        %10718 = vdwg.mxu0
        %10719 = vmatpush.bf16.msra.mxu0 0
        %10720 = vmatpush.bf16.msra.mxu0 0
        %10721 = vmatpush.bf16.msra.mxu0 0
        %10722 = vmatpush.bf16.msra.mxu0 0
        %10723 = vmatpush.bf16.msra.mxu0 0
        %10724 = vmatpush.bf16.msra.mxu0 0
        %10725 = vmatpush.bf16.msra.mxu0 %v10698
        %10726 = vmatpush.bf16.msra.mxu0 %v10696
        %10727 = vmatmul.bf16.gmra.mxu0 %v10704
        %v10728 = vpop.f32.mrf.mxu0
        %v10729 = vadd.f32 0.0, %v10728
        %v10730 = vpop.f32.mrf.mxu0
        %10731 = vdwg.mxu0
        %v10736 = vunpack.c.l.b16 %v6975
        %v10737 = vunpack.c.h.b16 %v6975
        %v10738 = vunpack.c.l.b16 %v6976
        %v10739 = vunpack.c.h.b16 %v6976
        %v10740 = vunpack.c.l.b16 %v6977
        %v10741 = vunpack.c.h.b16 %v6977
        %v10742 = vunpack.c.l.b16 %v6978
        %v10743 = vunpack.c.h.b16 %v6978
        %v10744 = vpack.c.b16 %v10738, %v10736
        %v10745 = vpack.c.b16 %v10739, %v10737
        %v10746 = vpack.c.b16 %v10742, %v10740
        %v10747 = vpack.c.b16 %v10743, %v10741
        %v10753 = vsel %vm5266, %v10436, 0
        %10755 = vmatpush.bf16.msra.mxu0 0
        %10756 = vmatpush.bf16.msra.mxu0 0
        %10757 = vmatpush.bf16.msra.mxu0 0
        %10758 = vmatpush.bf16.msra.mxu0 0
        %10759 = vmatpush.bf16.msra.mxu0 0
        %10760 = vmatpush.bf16.msra.mxu0 0
        %10761 = vmatpush.bf16.msra.mxu0 %v10746
        %10762 = vmatpush.bf16.msra.mxu0 %v10744
        %10763 = vmatmul.bf16.gmra.mxu0 %v10753
        %v10764 = vpop.f32.mrf.mxu0
        %v10765 = vadd.f32 0.0, %v10764
        %v10766 = vpop.f32.mrf.mxu0
        %10767 = vdwg.mxu0
        %10768 = vmatpush.bf16.msra.mxu0 0
        %10769 = vmatpush.bf16.msra.mxu0 0
        %10770 = vmatpush.bf16.msra.mxu0 0
        %10771 = vmatpush.bf16.msra.mxu0 0
        %10772 = vmatpush.bf16.msra.mxu0 0
        %10773 = vmatpush.bf16.msra.mxu0 0
        %10774 = vmatpush.bf16.msra.mxu0 %v10747
        %10775 = vmatpush.bf16.msra.mxu0 %v10745
        %10776 = vmatmul.bf16.gmra.mxu0 %v10753
        %v10777 = vpop.f32.mrf.mxu0
        %v10778 = vadd.f32 0.0, %v10777
        %v10779 = vpop.f32.mrf.mxu0
        %10780 = vdwg.mxu0
        %v10785 = vunpack.c.l.b16 %v6979
        %v10786 = vunpack.c.h.b16 %v6979
        %v10787 = vunpack.c.l.b16 %v6980
        %v10788 = vunpack.c.h.b16 %v6980
        %v10789 = vunpack.c.l.b16 %v6981
        %v10790 = vunpack.c.h.b16 %v6981
        %v10791 = vunpack.c.l.b16 %v6982
        %v10792 = vunpack.c.h.b16 %v6982
        %v10793 = vpack.c.b16 %v10787, %v10785
        %v10794 = vpack.c.b16 %v10788, %v10786
        %v10795 = vpack.c.b16 %v10791, %v10789
        %v10796 = vpack.c.b16 %v10792, %v10790
        %v10802 = vsel %vm5266, %v10437, 0
        %10804 = vmatpush.bf16.msra.mxu0 0
        %10805 = vmatpush.bf16.msra.mxu0 0
        %10806 = vmatpush.bf16.msra.mxu0 0
        %10807 = vmatpush.bf16.msra.mxu0 0
        %10808 = vmatpush.bf16.msra.mxu0 0
        %10809 = vmatpush.bf16.msra.mxu0 0
        %10810 = vmatpush.bf16.msra.mxu0 %v10795
        %10811 = vmatpush.bf16.msra.mxu0 %v10793
        %10812 = vmatmul.bf16.gmra.mxu0 %v10802
        %v10813 = vpop.f32.mrf.mxu0
        %v10814 = vadd.f32 0.0, %v10813
        %v10815 = vpop.f32.mrf.mxu0
        %10816 = vdwg.mxu0
        %10817 = vmatpush.bf16.msra.mxu0 0
        %10818 = vmatpush.bf16.msra.mxu0 0
        %10819 = vmatpush.bf16.msra.mxu0 0
        %10820 = vmatpush.bf16.msra.mxu0 0
        %10821 = vmatpush.bf16.msra.mxu0 0
        %10822 = vmatpush.bf16.msra.mxu0 0
        %10823 = vmatpush.bf16.msra.mxu0 %v10796
        %10824 = vmatpush.bf16.msra.mxu0 %v10794
        %10825 = vmatmul.bf16.gmra.mxu0 %v10802
        %v10826 = vpop.f32.mrf.mxu0
        %v10827 = vadd.f32 0.0, %v10826
        %v10828 = vpop.f32.mrf.mxu0
        %10829 = vdwg.mxu0
        %v10830 = vadd.f32 %v10471, %v10520
        %v10831 = vadd.f32 %v10830, %v10569
        %v10832 = vadd.f32 %v10831, %v10618
        %v10833 = vadd.f32 %v10832, %v10667
        %v10834 = vadd.f32 %v10833, %v10716
        %v10835 = vadd.f32 %v10834, %v10765
        %v10836 = vadd.f32 %v10835, %v10814
        %v10837 = vadd.f32 %v10484, %v10533
        %v10838 = vadd.f32 %v10837, %v10582
        %v10839 = vadd.f32 %v10838, %v10631
        %v10840 = vadd.f32 %v10839, %v10680
        %v10841 = vadd.f32 %v10840, %v10729
        %v10842 = vadd.f32 %v10841, %v10778
        %v10843 = vadd.f32 %v10842, %v10827
        %v10844 = vld [vmem:[%s1053] sm:$0x3]
        %v10846 = vperm.slane %v10844, 0
        %v10847 = vperm.slane %v10844, 1
        %v10850 = vadd.f32 %v10836, %v10846
        %v10851 = vadd.f32 %v10843, %v10847
        %v10852 = vadd.f32 %v6157, %v10850
        %v10853 = vadd.f32 %v6158, %v10851
        %v10854 = vadd.f32 %v10852, %v10853
        %10855 = vadd.xlane.f32.xlu0 %v10854
        %v10856 = vpop.xlane.xlu0 %10855
        %v10857 = vmul.f32 %v10856, %v6118
        %v10858 = vsub.f32 %v10852, %v10857
        %v10859 = vsub.f32 %v10853, %v10857
        %v10860 = vmul.f32 %v10858, %v10858
        %v10861 = vmul.f32 %v10859, %v10859
        %v10862 = vadd.f32 %v10860, %v10861
        %10863 = vadd.xlane.f32.xlu0 %v10862
        %v10864 = vpop.xlane.xlu0 %10863
        %v10865 = vmul.f32 %v10864, %v6118
        %v10866 = vadd.f32 %v10865, 1e-05
        %v10867 = vrsqrt.pop %v10866
        %v10868 = vmul.f32 %v10867, %v10866
        %v10869 = vmul.f32 %v10868, %v10867
        %v10870 = vmul.f32 0.5, %v10869
        %v10871 = vsub.f32 1.5, %v10870
        %v10872 = vmul.f32 %v10867, %v10871
        %vm10873 = vweird.f32 %v10866
        %vm10874 = vweird.f32 %v10867
        %vm10875 = vmor %vm10873, %vm10874
        %v10876 = vsel %vm10875, %v10867, %v10872
        %v10877 = vmul.f32 %v10858, %v10876
        %v10878 = vmul.f32 %v10859, %v10876
        %v10879 = vperm.slane %v1416, 1
        %v10880 = vperm.slane %v1416, 5
        %v10883 = vperm.slane %v10879, 1
        %v10884 = vperm.slane %v10880, 1
        %v10885 = vmul.f32 %v10877, %v10883
        %v10886 = vmul.f32 %v10878, %v10884
        %v10887 = vperm.slane %v1417, 1
        %v10888 = vperm.slane %v1417, 5
        %v10891 = vperm.slane %v10887, 1
        %v10892 = vperm.slane %v10888, 1
        %v10893 = vadd.f32 %v10885, %v10891
        %v10894 = vadd.f32 %v10886, %v10892
        %v10895 = vld [vmem:[%s1058] sm:$0xff]
        %v10896 = vld [vmem:[%s1058 + $0x8] sm:$0xff]
        %v10897 = vld [vmem:[%s1058 + $0x10] sm:$0xff]
        %v10898 = vld [vmem:[%s1058 + $0x18] sm:$0xff]
        %v10899 = vld [vmem:[%s1058 + $0x20] sm:$0xff]
        %v10900 = vld [vmem:[%s1058 + $0x28] sm:$0xff]
        %v10901 = vld [vmem:[%s1058 + $0x30] sm:$0xff]
        %v10902 = vld [vmem:[%s1058 + $0x38] sm:$0xff]
        %v10903 = vld [vmem:[%s1058 + $0x40] sm:$0xff]
        %v10904 = vld [vmem:[%s1058 + $0x48] sm:$0xff]
        %v10905 = vld [vmem:[%s1058 + $0x50] sm:$0xff]
        %v10906 = vld [vmem:[%s1058 + $0x58] sm:$0xff]
        %v10907 = vld [vmem:[%s1058 + $0x60] sm:$0xff]
        %v10908 = vld [vmem:[%s1058 + $0x68] sm:$0xff]
        %v10909 = vld [vmem:[%s1058 + $0x70] sm:$0xff]
        %v10910 = vld [vmem:[%s1058 + $0x78] sm:$0xff]
        %v10911 = vld [vmem:[%s1058 + $0x80] sm:$0xff]
        %v10912 = vld [vmem:[%s1058 + $0x88] sm:$0xff]
        %v10913 = vld [vmem:[%s1058 + $0x90] sm:$0xff]
        %v10914 = vld [vmem:[%s1058 + $0x98] sm:$0xff]
        %v10915 = vld [vmem:[%s1058 + $0xa0] sm:$0xff]
        %v10916 = vld [vmem:[%s1058 + $0xa8] sm:$0xff]
        %v10917 = vld [vmem:[%s1058 + $0xb0] sm:$0xff]
        %v10918 = vld [vmem:[%s1058 + $0xb8] sm:$0xff]
        %v10919 = vld [vmem:[%s1058 + $0xc0] sm:$0xff]
        %v10920 = vld [vmem:[%s1058 + $0xc8] sm:$0xff]
        %v10921 = vld [vmem:[%s1058 + $0xd0] sm:$0xff]
        %v10922 = vld [vmem:[%s1058 + $0xd8] sm:$0xff]
        %v10923 = vld [vmem:[%s1058 + $0xe0] sm:$0xff]
        %v10924 = vld [vmem:[%s1058 + $0xe8] sm:$0xff]
        %v10925 = vld [vmem:[%s1058 + $0xf0] sm:$0xff]
        %v10926 = vld [vmem:[%s1058 + $0xf8] sm:$0xff]
        %v10927 = vld [vmem:[%s1058 + $0x100] sm:$0xff]
        %v10928 = vld [vmem:[%s1058 + $0x108] sm:$0xff]
        %v10929 = vld [vmem:[%s1058 + $0x110] sm:$0xff]
        %v10930 = vld [vmem:[%s1058 + $0x118] sm:$0xff]
        %v10931 = vld [vmem:[%s1058 + $0x120] sm:$0xff]
        %v10932 = vld [vmem:[%s1058 + $0x128] sm:$0xff]
        %v10933 = vld [vmem:[%s1058 + $0x130] sm:$0xff]
        %v10934 = vld [vmem:[%s1058 + $0x138] sm:$0xff]
        %v10935 = vld [vmem:[%s1058 + $0x140] sm:$0xff]
        %v10936 = vld [vmem:[%s1058 + $0x148] sm:$0xff]
        %v10937 = vld [vmem:[%s1058 + $0x150] sm:$0xff]
        %v10938 = vld [vmem:[%s1058 + $0x158] sm:$0xff]
        %v10939 = vld [vmem:[%s1058 + $0x160] sm:$0xff]
        %v10940 = vld [vmem:[%s1058 + $0x168] sm:$0xff]
        %v10941 = vld [vmem:[%s1058 + $0x170] sm:$0xff]
        %v10942 = vld [vmem:[%s1058 + $0x178] sm:$0xff]
        %v10943 = vld [vmem:[%s1058 + $0x180] sm:$0xff]
        %v10944 = vld [vmem:[%s1058 + $0x188] sm:$0xff]
        %v10945 = vld [vmem:[%s1058 + $0x190] sm:$0xff]
        %v10946 = vld [vmem:[%s1058 + $0x198] sm:$0xff]
        %v10947 = vld [vmem:[%s1058 + $0x1a0] sm:$0xff]
        %v10948 = vld [vmem:[%s1058 + $0x1a8] sm:$0xff]
        %v10949 = vld [vmem:[%s1058 + $0x1b0] sm:$0xff]
        %v10950 = vld [vmem:[%s1058 + $0x1b8] sm:$0xff]
        %v10951 = vld [vmem:[%s1058 + $0x1c0] sm:$0xff]
        %v10952 = vld [vmem:[%s1058 + $0x1c8] sm:$0xff]
        %v10953 = vld [vmem:[%s1058 + $0x1d0] sm:$0xff]
        %v10954 = vld [vmem:[%s1058 + $0x1d8] sm:$0xff]
        %v10955 = vld [vmem:[%s1058 + $0x1e0] sm:$0xff]
        %v10956 = vld [vmem:[%s1058 + $0x1e8] sm:$0xff]
        %v10957 = vld [vmem:[%s1058 + $0x1f0] sm:$0xff]
        %v10958 = vld [vmem:[%s1058 + $0x1f8] sm:$0xff]
        %v10959 = vld [vmem:[%s1062] sm:$0xf]
        %v10960 = vpack.c.bf16 %v10893, %v10893
        %v10961 = vpack.c.bf16 %v10894, %v10894
        %v10963 = vperm.slane %v10959, 0
        %v10964 = vperm.slane %v10959, 1
        %v10965 = vperm.slane %v10959, 2
        %v10966 = vperm.slane %v10959, 3
        %v11035 = vunpack.c.l.b16 %v10895
        %v11036 = vunpack.c.h.b16 %v10895
        %v11037 = vunpack.c.l.b16 %v10896
        %v11038 = vunpack.c.h.b16 %v10896
        %v11039 = vunpack.c.l.b16 %v10897
        %v11040 = vunpack.c.h.b16 %v10897
        %v11041 = vunpack.c.l.b16 %v10898
        %v11042 = vunpack.c.h.b16 %v10898
        %v11043 = vunpack.c.l.b16 %v10899
        %v11044 = vunpack.c.h.b16 %v10899
        %v11045 = vunpack.c.l.b16 %v10900
        %v11046 = vunpack.c.h.b16 %v10900
        %v11047 = vunpack.c.l.b16 %v10901
        %v11048 = vunpack.c.h.b16 %v10901
        %v11049 = vunpack.c.l.b16 %v10902
        %v11050 = vunpack.c.h.b16 %v10902
        %v11051 = vunpack.c.l.b16 %v10903
        %v11052 = vunpack.c.h.b16 %v10903
        %v11053 = vunpack.c.l.b16 %v10904
        %v11054 = vunpack.c.h.b16 %v10904
        %v11055 = vunpack.c.l.b16 %v10905
        %v11056 = vunpack.c.h.b16 %v10905
        %v11057 = vunpack.c.l.b16 %v10906
        %v11058 = vunpack.c.h.b16 %v10906
        %v11059 = vunpack.c.l.b16 %v10907
        %v11060 = vunpack.c.h.b16 %v10907
        %v11061 = vunpack.c.l.b16 %v10908
        %v11062 = vunpack.c.h.b16 %v10908
        %v11063 = vunpack.c.l.b16 %v10909
        %v11064 = vunpack.c.h.b16 %v10909
        %v11065 = vunpack.c.l.b16 %v10910
        %v11066 = vunpack.c.h.b16 %v10910
        %v11067 = vunpack.c.l.b16 %v10911
        %v11068 = vunpack.c.h.b16 %v10911
        %v11069 = vunpack.c.l.b16 %v10912
        %v11070 = vunpack.c.h.b16 %v10912
        %v11071 = vunpack.c.l.b16 %v10913
        %v11072 = vunpack.c.h.b16 %v10913
        %v11073 = vunpack.c.l.b16 %v10914
        %v11074 = vunpack.c.h.b16 %v10914
        %v11075 = vunpack.c.l.b16 %v10915
        %v11076 = vunpack.c.h.b16 %v10915
        %v11077 = vunpack.c.l.b16 %v10916
        %v11078 = vunpack.c.h.b16 %v10916
        %v11079 = vunpack.c.l.b16 %v10917
        %v11080 = vunpack.c.h.b16 %v10917
        %v11081 = vunpack.c.l.b16 %v10918
        %v11082 = vunpack.c.h.b16 %v10918
        %v11083 = vunpack.c.l.b16 %v10919
        %v11084 = vunpack.c.h.b16 %v10919
        %v11085 = vunpack.c.l.b16 %v10920
        %v11086 = vunpack.c.h.b16 %v10920
        %v11087 = vunpack.c.l.b16 %v10921
        %v11088 = vunpack.c.h.b16 %v10921
        %v11089 = vunpack.c.l.b16 %v10922
        %v11090 = vunpack.c.h.b16 %v10922
        %v11091 = vunpack.c.l.b16 %v10923
        %v11092 = vunpack.c.h.b16 %v10923
        %v11093 = vunpack.c.l.b16 %v10924
        %v11094 = vunpack.c.h.b16 %v10924
        %v11095 = vunpack.c.l.b16 %v10925
        %v11096 = vunpack.c.h.b16 %v10925
        %v11097 = vunpack.c.l.b16 %v10926
        %v11098 = vunpack.c.h.b16 %v10926
        %v11099 = vunpack.c.l.b16 %v10927
        %v11100 = vunpack.c.h.b16 %v10927
        %v11101 = vunpack.c.l.b16 %v10928
        %v11102 = vunpack.c.h.b16 %v10928
        %v11103 = vunpack.c.l.b16 %v10929
        %v11104 = vunpack.c.h.b16 %v10929
        %v11105 = vunpack.c.l.b16 %v10930
        %v11106 = vunpack.c.h.b16 %v10930
        %v11107 = vunpack.c.l.b16 %v10931
        %v11108 = vunpack.c.h.b16 %v10931
        %v11109 = vunpack.c.l.b16 %v10932
        %v11110 = vunpack.c.h.b16 %v10932
        %v11111 = vunpack.c.l.b16 %v10933
        %v11112 = vunpack.c.h.b16 %v10933
        %v11113 = vunpack.c.l.b16 %v10934
        %v11114 = vunpack.c.h.b16 %v10934
        %v11115 = vunpack.c.l.b16 %v10935
        %v11116 = vunpack.c.h.b16 %v10935
        %v11117 = vunpack.c.l.b16 %v10936
        %v11118 = vunpack.c.h.b16 %v10936
        %v11119 = vunpack.c.l.b16 %v10937
        %v11120 = vunpack.c.h.b16 %v10937
        %v11121 = vunpack.c.l.b16 %v10938
        %v11122 = vunpack.c.h.b16 %v10938
        %v11123 = vunpack.c.l.b16 %v10939
        %v11124 = vunpack.c.h.b16 %v10939
        %v11125 = vunpack.c.l.b16 %v10940
        %v11126 = vunpack.c.h.b16 %v10940
        %v11127 = vunpack.c.l.b16 %v10941
        %v11128 = vunpack.c.h.b16 %v10941
        %v11129 = vunpack.c.l.b16 %v10942
        %v11130 = vunpack.c.h.b16 %v10942
        %v11131 = vunpack.c.l.b16 %v10943
        %v11132 = vunpack.c.h.b16 %v10943
        %v11133 = vunpack.c.l.b16 %v10944
        %v11134 = vunpack.c.h.b16 %v10944
        %v11135 = vunpack.c.l.b16 %v10945
        %v11136 = vunpack.c.h.b16 %v10945
        %v11137 = vunpack.c.l.b16 %v10946
        %v11138 = vunpack.c.h.b16 %v10946
        %v11139 = vunpack.c.l.b16 %v10947
        %v11140 = vunpack.c.h.b16 %v10947
        %v11141 = vunpack.c.l.b16 %v10948
        %v11142 = vunpack.c.h.b16 %v10948
        %v11143 = vunpack.c.l.b16 %v10949
        %v11144 = vunpack.c.h.b16 %v10949
        %v11145 = vunpack.c.l.b16 %v10950
        %v11146 = vunpack.c.h.b16 %v10950
        %v11147 = vunpack.c.l.b16 %v10951
        %v11148 = vunpack.c.h.b16 %v10951
        %v11149 = vunpack.c.l.b16 %v10952
        %v11150 = vunpack.c.h.b16 %v10952
        %v11151 = vunpack.c.l.b16 %v10953
        %v11152 = vunpack.c.h.b16 %v10953
        %v11153 = vunpack.c.l.b16 %v10954
        %v11154 = vunpack.c.h.b16 %v10954
        %v11155 = vunpack.c.l.b16 %v10955
        %v11156 = vunpack.c.h.b16 %v10955
        %v11157 = vunpack.c.l.b16 %v10956
        %v11158 = vunpack.c.h.b16 %v10956
        %v11159 = vunpack.c.l.b16 %v10957
        %v11160 = vunpack.c.h.b16 %v10957
        %v11161 = vunpack.c.l.b16 %v10958
        %v11162 = vunpack.c.h.b16 %v10958
        %v11163 = vpack.c.b16 %v11039, %v11035
        %v11164 = vpack.c.b16 %v11040, %v11036
        %v11165 = vpack.c.b16 %v11041, %v11037
        %v11166 = vpack.c.b16 %v11042, %v11038
        %v11167 = vpack.c.b16 %v11047, %v11043
        %v11168 = vpack.c.b16 %v11048, %v11044
        %v11169 = vpack.c.b16 %v11049, %v11045
        %v11170 = vpack.c.b16 %v11050, %v11046
        %v11171 = vpack.c.b16 %v11055, %v11051
        %v11172 = vpack.c.b16 %v11056, %v11052
        %v11173 = vpack.c.b16 %v11057, %v11053
        %v11174 = vpack.c.b16 %v11058, %v11054
        %v11175 = vpack.c.b16 %v11063, %v11059
        %v11176 = vpack.c.b16 %v11064, %v11060
        %v11177 = vpack.c.b16 %v11065, %v11061
        %v11178 = vpack.c.b16 %v11066, %v11062
        %v11179 = vpack.c.b16 %v11071, %v11067
        %v11180 = vpack.c.b16 %v11072, %v11068
        %v11181 = vpack.c.b16 %v11073, %v11069
        %v11182 = vpack.c.b16 %v11074, %v11070
        %v11183 = vpack.c.b16 %v11079, %v11075
        %v11184 = vpack.c.b16 %v11080, %v11076
        %v11185 = vpack.c.b16 %v11081, %v11077
        %v11186 = vpack.c.b16 %v11082, %v11078
        %v11187 = vpack.c.b16 %v11087, %v11083
        %v11188 = vpack.c.b16 %v11088, %v11084
        %v11189 = vpack.c.b16 %v11089, %v11085
        %v11190 = vpack.c.b16 %v11090, %v11086
        %v11191 = vpack.c.b16 %v11095, %v11091
        %v11192 = vpack.c.b16 %v11096, %v11092
        %v11193 = vpack.c.b16 %v11097, %v11093
        %v11194 = vpack.c.b16 %v11098, %v11094
        %v11195 = vpack.c.b16 %v11103, %v11099
        %v11196 = vpack.c.b16 %v11104, %v11100
        %v11197 = vpack.c.b16 %v11105, %v11101
        %v11198 = vpack.c.b16 %v11106, %v11102
        %v11199 = vpack.c.b16 %v11111, %v11107
        %v11200 = vpack.c.b16 %v11112, %v11108
        %v11201 = vpack.c.b16 %v11113, %v11109
        %v11202 = vpack.c.b16 %v11114, %v11110
        %v11203 = vpack.c.b16 %v11119, %v11115
        %v11204 = vpack.c.b16 %v11120, %v11116
        %v11205 = vpack.c.b16 %v11121, %v11117
        %v11206 = vpack.c.b16 %v11122, %v11118
        %v11207 = vpack.c.b16 %v11127, %v11123
        %v11208 = vpack.c.b16 %v11128, %v11124
        %v11209 = vpack.c.b16 %v11129, %v11125
        %v11210 = vpack.c.b16 %v11130, %v11126
        %v11211 = vpack.c.b16 %v11135, %v11131
        %v11212 = vpack.c.b16 %v11136, %v11132
        %v11213 = vpack.c.b16 %v11137, %v11133
        %v11214 = vpack.c.b16 %v11138, %v11134
        %v11215 = vpack.c.b16 %v11143, %v11139
        %v11216 = vpack.c.b16 %v11144, %v11140
        %v11217 = vpack.c.b16 %v11145, %v11141
        %v11218 = vpack.c.b16 %v11146, %v11142
        %v11219 = vpack.c.b16 %v11151, %v11147
        %v11220 = vpack.c.b16 %v11152, %v11148
        %v11221 = vpack.c.b16 %v11153, %v11149
        %v11222 = vpack.c.b16 %v11154, %v11150
        %v11223 = vpack.c.b16 %v11159, %v11155
        %v11224 = vpack.c.b16 %v11160, %v11156
        %v11225 = vpack.c.b16 %v11161, %v11157
        %v11226 = vpack.c.b16 %v11162, %v11158
        %11291 = vmatpush.bf16.msra.mxu0 %v11191
        %11292 = vmatpush.bf16.msra.mxu0 %v11187
        %11293 = vmatpush.bf16.msra.mxu0 %v11183
        %11294 = vmatpush.bf16.msra.mxu0 %v11179
        %11295 = vmatpush.bf16.msra.mxu0 %v11175
        %11296 = vmatpush.bf16.msra.mxu0 %v11171
        %11297 = vmatpush.bf16.msra.mxu0 %v11167
        %11298 = vmatpush.bf16.msra.mxu0 %v11163
        %11299 = vmatmul.bf16.gmra.mxu0 %v10960
        %v11300 = vpop.f32.mrf.mxu0
        %v11301 = vadd.f32 %v10963, %v11300
        %v11302 = vpop.f32.mrf.mxu0
        %11303 = vdwg.mxu0
        %11304 = vmatpush.bf16.msra.mxu0 %v11223
        %11305 = vmatpush.bf16.msra.mxu0 %v11219
        %11306 = vmatpush.bf16.msra.mxu0 %v11215
        %11307 = vmatpush.bf16.msra.mxu0 %v11211
        %11308 = vmatpush.bf16.msra.mxu0 %v11207
        %11309 = vmatpush.bf16.msra.mxu0 %v11203
        %11310 = vmatpush.bf16.msra.mxu0 %v11199
        %11311 = vmatpush.bf16.msra.mxu0 %v11195
        %11312 = vmatmul.bf16.gmra.mxu0 %v10961
        %v11313 = vpop.f32.mrf.mxu0
        %v11314 = vadd.f32 %v11301, %v11313
        %v11315 = vpop.f32.mrf.mxu0
        %11316 = vdwg.mxu0
        %11317 = vmatpush.bf16.msra.mxu0 %v11192
        %11318 = vmatpush.bf16.msra.mxu0 %v11188
        %11319 = vmatpush.bf16.msra.mxu0 %v11184
        %11320 = vmatpush.bf16.msra.mxu0 %v11180
        %11321 = vmatpush.bf16.msra.mxu0 %v11176
        %11322 = vmatpush.bf16.msra.mxu0 %v11172
        %11323 = vmatpush.bf16.msra.mxu0 %v11168
        %11324 = vmatpush.bf16.msra.mxu0 %v11164
        %11325 = vmatmul.bf16.gmra.mxu0 %v10960
        %v11326 = vpop.f32.mrf.mxu0
        %v11327 = vadd.f32 %v10964, %v11326
        %v11328 = vpop.f32.mrf.mxu0
        %11329 = vdwg.mxu0
        %11330 = vmatpush.bf16.msra.mxu0 %v11224
        %11331 = vmatpush.bf16.msra.mxu0 %v11220
        %11332 = vmatpush.bf16.msra.mxu0 %v11216
        %11333 = vmatpush.bf16.msra.mxu0 %v11212
        %11334 = vmatpush.bf16.msra.mxu0 %v11208
        %11335 = vmatpush.bf16.msra.mxu0 %v11204
        %11336 = vmatpush.bf16.msra.mxu0 %v11200
        %11337 = vmatpush.bf16.msra.mxu0 %v11196
        %11338 = vmatmul.bf16.gmra.mxu0 %v10961
        %v11339 = vpop.f32.mrf.mxu0
        %v11340 = vadd.f32 %v11327, %v11339
        %v11341 = vpop.f32.mrf.mxu0
        %11342 = vdwg.mxu0
        %11343 = vmatpush.bf16.msra.mxu0 %v11193
        %11344 = vmatpush.bf16.msra.mxu0 %v11189
        %11345 = vmatpush.bf16.msra.mxu0 %v11185
        %11346 = vmatpush.bf16.msra.mxu0 %v11181
        %11347 = vmatpush.bf16.msra.mxu0 %v11177
        %11348 = vmatpush.bf16.msra.mxu0 %v11173
        %11349 = vmatpush.bf16.msra.mxu0 %v11169
        %11350 = vmatpush.bf16.msra.mxu0 %v11165
        %11351 = vmatmul.bf16.gmra.mxu0 %v10960
        %v11352 = vpop.f32.mrf.mxu0
        %v11353 = vadd.f32 %v10965, %v11352
        %v11354 = vpop.f32.mrf.mxu0
        %11355 = vdwg.mxu0
        %11356 = vmatpush.bf16.msra.mxu0 %v11225
        %11357 = vmatpush.bf16.msra.mxu0 %v11221
        %11358 = vmatpush.bf16.msra.mxu0 %v11217
        %11359 = vmatpush.bf16.msra.mxu0 %v11213
        %11360 = vmatpush.bf16.msra.mxu0 %v11209
        %11361 = vmatpush.bf16.msra.mxu0 %v11205
        %11362 = vmatpush.bf16.msra.mxu0 %v11201
        %11363 = vmatpush.bf16.msra.mxu0 %v11197
        %11364 = vmatmul.bf16.gmra.mxu0 %v10961
        %v11365 = vpop.f32.mrf.mxu0
        %v11366 = vadd.f32 %v11353, %v11365
        %v11367 = vpop.f32.mrf.mxu0
        %11368 = vdwg.mxu0
        %11369 = vmatpush.bf16.msra.mxu0 %v11194
        %11370 = vmatpush.bf16.msra.mxu0 %v11190
        %11371 = vmatpush.bf16.msra.mxu0 %v11186
        %11372 = vmatpush.bf16.msra.mxu0 %v11182
        %11373 = vmatpush.bf16.msra.mxu0 %v11178
        %11374 = vmatpush.bf16.msra.mxu0 %v11174
        %11375 = vmatpush.bf16.msra.mxu0 %v11170
        %11376 = vmatpush.bf16.msra.mxu0 %v11166
        %11377 = vmatmul.bf16.gmra.mxu0 %v10960
        %v11378 = vpop.f32.mrf.mxu0
        %v11379 = vadd.f32 %v10966, %v11378
        %v11380 = vpop.f32.mrf.mxu0
        %11381 = vdwg.mxu0
        %11382 = vmatpush.bf16.msra.mxu0 %v11226
        %11383 = vmatpush.bf16.msra.mxu0 %v11222
        %11384 = vmatpush.bf16.msra.mxu0 %v11218
        %11385 = vmatpush.bf16.msra.mxu0 %v11214
        %11386 = vmatpush.bf16.msra.mxu0 %v11210
        %11387 = vmatpush.bf16.msra.mxu0 %v11206
        %11388 = vmatpush.bf16.msra.mxu0 %v11202
        %11389 = vmatpush.bf16.msra.mxu0 %v11198
        %11390 = vmatmul.bf16.gmra.mxu0 %v10961
        %v11391 = vpop.f32.mrf.mxu0
        %v11392 = vadd.f32 %v11379, %v11391
        %v11393 = vpop.f32.mrf.mxu0
        %11394 = vdwg.mxu0
        %v11395 = vmax.f32 %v11314, 0.0
        %v11396 = vmax.f32 %v11340, 0.0
        %v11397 = vmax.f32 %v11366, 0.0
        %v11398 = vmax.f32 %v11392, 0.0
        %v11399 = vld [vmem:[%s1067] sm:$0xff]
        %v11400 = vld [vmem:[%s1067 + $0x8] sm:$0xff]
        %v11401 = vld [vmem:[%s1067 + $0x10] sm:$0xff]
        %v11402 = vld [vmem:[%s1067 + $0x18] sm:$0xff]
        %v11403 = vld [vmem:[%s1067 + $0x20] sm:$0xff]
        %v11404 = vld [vmem:[%s1067 + $0x28] sm:$0xff]
        %v11405 = vld [vmem:[%s1067 + $0x30] sm:$0xff]
        %v11406 = vld [vmem:[%s1067 + $0x38] sm:$0xff]
        %v11407 = vld [vmem:[%s1067 + $0x40] sm:$0xff]
        %v11408 = vld [vmem:[%s1067 + $0x48] sm:$0xff]
        %v11409 = vld [vmem:[%s1067 + $0x50] sm:$0xff]
        %v11410 = vld [vmem:[%s1067 + $0x58] sm:$0xff]
        %v11411 = vld [vmem:[%s1067 + $0x60] sm:$0xff]
        %v11412 = vld [vmem:[%s1067 + $0x68] sm:$0xff]
        %v11413 = vld [vmem:[%s1067 + $0x70] sm:$0xff]
        %v11414 = vld [vmem:[%s1067 + $0x78] sm:$0xff]
        %v11415 = vld [vmem:[%s1067 + $0x80] sm:$0xff]
        %v11416 = vld [vmem:[%s1067 + $0x88] sm:$0xff]
        %v11417 = vld [vmem:[%s1067 + $0x90] sm:$0xff]
        %v11418 = vld [vmem:[%s1067 + $0x98] sm:$0xff]
        %v11419 = vld [vmem:[%s1067 + $0xa0] sm:$0xff]
        %v11420 = vld [vmem:[%s1067 + $0xa8] sm:$0xff]
        %v11421 = vld [vmem:[%s1067 + $0xb0] sm:$0xff]
        %v11422 = vld [vmem:[%s1067 + $0xb8] sm:$0xff]
        %v11423 = vld [vmem:[%s1067 + $0xc0] sm:$0xff]
        %v11424 = vld [vmem:[%s1067 + $0xc8] sm:$0xff]
        %v11425 = vld [vmem:[%s1067 + $0xd0] sm:$0xff]
        %v11426 = vld [vmem:[%s1067 + $0xd8] sm:$0xff]
        %v11427 = vld [vmem:[%s1067 + $0xe0] sm:$0xff]
        %v11428 = vld [vmem:[%s1067 + $0xe8] sm:$0xff]
        %v11429 = vld [vmem:[%s1067 + $0xf0] sm:$0xff]
        %v11430 = vld [vmem:[%s1067 + $0xf8] sm:$0xff]
        %v11431 = vld [vmem:[%s1067 + $0x100] sm:$0xff]
        %v11432 = vld [vmem:[%s1067 + $0x108] sm:$0xff]
        %v11433 = vld [vmem:[%s1067 + $0x110] sm:$0xff]
        %v11434 = vld [vmem:[%s1067 + $0x118] sm:$0xff]
        %v11435 = vld [vmem:[%s1067 + $0x120] sm:$0xff]
        %v11436 = vld [vmem:[%s1067 + $0x128] sm:$0xff]
        %v11437 = vld [vmem:[%s1067 + $0x130] sm:$0xff]
        %v11438 = vld [vmem:[%s1067 + $0x138] sm:$0xff]
        %v11439 = vld [vmem:[%s1067 + $0x140] sm:$0xff]
        %v11440 = vld [vmem:[%s1067 + $0x148] sm:$0xff]
        %v11441 = vld [vmem:[%s1067 + $0x150] sm:$0xff]
        %v11442 = vld [vmem:[%s1067 + $0x158] sm:$0xff]
        %v11443 = vld [vmem:[%s1067 + $0x160] sm:$0xff]
        %v11444 = vld [vmem:[%s1067 + $0x168] sm:$0xff]
        %v11445 = vld [vmem:[%s1067 + $0x170] sm:$0xff]
        %v11446 = vld [vmem:[%s1067 + $0x178] sm:$0xff]
        %v11447 = vld [vmem:[%s1067 + $0x180] sm:$0xff]
        %v11448 = vld [vmem:[%s1067 + $0x188] sm:$0xff]
        %v11449 = vld [vmem:[%s1067 + $0x190] sm:$0xff]
        %v11450 = vld [vmem:[%s1067 + $0x198] sm:$0xff]
        %v11451 = vld [vmem:[%s1067 + $0x1a0] sm:$0xff]
        %v11452 = vld [vmem:[%s1067 + $0x1a8] sm:$0xff]
        %v11453 = vld [vmem:[%s1067 + $0x1b0] sm:$0xff]
        %v11454 = vld [vmem:[%s1067 + $0x1b8] sm:$0xff]
        %v11455 = vld [vmem:[%s1067 + $0x1c0] sm:$0xff]
        %v11456 = vld [vmem:[%s1067 + $0x1c8] sm:$0xff]
        %v11457 = vld [vmem:[%s1067 + $0x1d0] sm:$0xff]
        %v11458 = vld [vmem:[%s1067 + $0x1d8] sm:$0xff]
        %v11459 = vld [vmem:[%s1067 + $0x1e0] sm:$0xff]
        %v11460 = vld [vmem:[%s1067 + $0x1e8] sm:$0xff]
        %v11461 = vld [vmem:[%s1067 + $0x1f0] sm:$0xff]
        %v11462 = vld [vmem:[%s1067 + $0x1f8] sm:$0xff]
        %v11463 = vld [vmem:[%s1071] sm:$0x3]
        %v11464 = vpack.c.bf16 %v11395, %v11395
        %v11465 = vpack.c.bf16 %v11396, %v11396
        %v11466 = vpack.c.bf16 %v11397, %v11397
        %v11467 = vpack.c.bf16 %v11398, %v11398
        %v11469 = vperm.slane %v11463, 0
        %v11470 = vperm.slane %v11463, 1
        %v11537 = vunpack.c.l.b16 %v11399
        %v11538 = vunpack.c.h.b16 %v11399
        %v11539 = vunpack.c.l.b16 %v11400
        %v11540 = vunpack.c.h.b16 %v11400
        %v11541 = vunpack.c.l.b16 %v11401
        %v11542 = vunpack.c.h.b16 %v11401
        %v11543 = vunpack.c.l.b16 %v11402
        %v11544 = vunpack.c.h.b16 %v11402
        %v11545 = vunpack.c.l.b16 %v11403
        %v11546 = vunpack.c.h.b16 %v11403
        %v11547 = vunpack.c.l.b16 %v11404
        %v11548 = vunpack.c.h.b16 %v11404
        %v11549 = vunpack.c.l.b16 %v11405
        %v11550 = vunpack.c.h.b16 %v11405
        %v11551 = vunpack.c.l.b16 %v11406
        %v11552 = vunpack.c.h.b16 %v11406
        %v11553 = vunpack.c.l.b16 %v11407
        %v11554 = vunpack.c.h.b16 %v11407
        %v11555 = vunpack.c.l.b16 %v11408
        %v11556 = vunpack.c.h.b16 %v11408
        %v11557 = vunpack.c.l.b16 %v11409
        %v11558 = vunpack.c.h.b16 %v11409
        %v11559 = vunpack.c.l.b16 %v11410
        %v11560 = vunpack.c.h.b16 %v11410
        %v11561 = vunpack.c.l.b16 %v11411
        %v11562 = vunpack.c.h.b16 %v11411
        %v11563 = vunpack.c.l.b16 %v11412
        %v11564 = vunpack.c.h.b16 %v11412
        %v11565 = vunpack.c.l.b16 %v11413
        %v11566 = vunpack.c.h.b16 %v11413
        %v11567 = vunpack.c.l.b16 %v11414
        %v11568 = vunpack.c.h.b16 %v11414
        %v11569 = vunpack.c.l.b16 %v11415
        %v11570 = vunpack.c.h.b16 %v11415
        %v11571 = vunpack.c.l.b16 %v11416
        %v11572 = vunpack.c.h.b16 %v11416
        %v11573 = vunpack.c.l.b16 %v11417
        %v11574 = vunpack.c.h.b16 %v11417
        %v11575 = vunpack.c.l.b16 %v11418
        %v11576 = vunpack.c.h.b16 %v11418
        %v11577 = vunpack.c.l.b16 %v11419
        %v11578 = vunpack.c.h.b16 %v11419
        %v11579 = vunpack.c.l.b16 %v11420
        %v11580 = vunpack.c.h.b16 %v11420
        %v11581 = vunpack.c.l.b16 %v11421
        %v11582 = vunpack.c.h.b16 %v11421
        %v11583 = vunpack.c.l.b16 %v11422
        %v11584 = vunpack.c.h.b16 %v11422
        %v11585 = vunpack.c.l.b16 %v11423
        %v11586 = vunpack.c.h.b16 %v11423
        %v11587 = vunpack.c.l.b16 %v11424
        %v11588 = vunpack.c.h.b16 %v11424
        %v11589 = vunpack.c.l.b16 %v11425
        %v11590 = vunpack.c.h.b16 %v11425
        %v11591 = vunpack.c.l.b16 %v11426
        %v11592 = vunpack.c.h.b16 %v11426
        %v11593 = vunpack.c.l.b16 %v11427
        %v11594 = vunpack.c.h.b16 %v11427
        %v11595 = vunpack.c.l.b16 %v11428
        %v11596 = vunpack.c.h.b16 %v11428
        %v11597 = vunpack.c.l.b16 %v11429
        %v11598 = vunpack.c.h.b16 %v11429
        %v11599 = vunpack.c.l.b16 %v11430
        %v11600 = vunpack.c.h.b16 %v11430
        %v11601 = vunpack.c.l.b16 %v11431
        %v11602 = vunpack.c.h.b16 %v11431
        %v11603 = vunpack.c.l.b16 %v11432
        %v11604 = vunpack.c.h.b16 %v11432
        %v11605 = vunpack.c.l.b16 %v11433
        %v11606 = vunpack.c.h.b16 %v11433
        %v11607 = vunpack.c.l.b16 %v11434
        %v11608 = vunpack.c.h.b16 %v11434
        %v11609 = vunpack.c.l.b16 %v11435
        %v11610 = vunpack.c.h.b16 %v11435
        %v11611 = vunpack.c.l.b16 %v11436
        %v11612 = vunpack.c.h.b16 %v11436
        %v11613 = vunpack.c.l.b16 %v11437
        %v11614 = vunpack.c.h.b16 %v11437
        %v11615 = vunpack.c.l.b16 %v11438
        %v11616 = vunpack.c.h.b16 %v11438
        %v11617 = vunpack.c.l.b16 %v11439
        %v11618 = vunpack.c.h.b16 %v11439
        %v11619 = vunpack.c.l.b16 %v11440
        %v11620 = vunpack.c.h.b16 %v11440
        %v11621 = vunpack.c.l.b16 %v11441
        %v11622 = vunpack.c.h.b16 %v11441
        %v11623 = vunpack.c.l.b16 %v11442
        %v11624 = vunpack.c.h.b16 %v11442
        %v11625 = vunpack.c.l.b16 %v11443
        %v11626 = vunpack.c.h.b16 %v11443
        %v11627 = vunpack.c.l.b16 %v11444
        %v11628 = vunpack.c.h.b16 %v11444
        %v11629 = vunpack.c.l.b16 %v11445
        %v11630 = vunpack.c.h.b16 %v11445
        %v11631 = vunpack.c.l.b16 %v11446
        %v11632 = vunpack.c.h.b16 %v11446
        %v11633 = vunpack.c.l.b16 %v11447
        %v11634 = vunpack.c.h.b16 %v11447
        %v11635 = vunpack.c.l.b16 %v11448
        %v11636 = vunpack.c.h.b16 %v11448
        %v11637 = vunpack.c.l.b16 %v11449
        %v11638 = vunpack.c.h.b16 %v11449
        %v11639 = vunpack.c.l.b16 %v11450
        %v11640 = vunpack.c.h.b16 %v11450
        %v11641 = vunpack.c.l.b16 %v11451
        %v11642 = vunpack.c.h.b16 %v11451
        %v11643 = vunpack.c.l.b16 %v11452
        %v11644 = vunpack.c.h.b16 %v11452
        %v11645 = vunpack.c.l.b16 %v11453
        %v11646 = vunpack.c.h.b16 %v11453
        %v11647 = vunpack.c.l.b16 %v11454
        %v11648 = vunpack.c.h.b16 %v11454
        %v11649 = vunpack.c.l.b16 %v11455
        %v11650 = vunpack.c.h.b16 %v11455
        %v11651 = vunpack.c.l.b16 %v11456
        %v11652 = vunpack.c.h.b16 %v11456
        %v11653 = vunpack.c.l.b16 %v11457
        %v11654 = vunpack.c.h.b16 %v11457
        %v11655 = vunpack.c.l.b16 %v11458
        %v11656 = vunpack.c.h.b16 %v11458
        %v11657 = vunpack.c.l.b16 %v11459
        %v11658 = vunpack.c.h.b16 %v11459
        %v11659 = vunpack.c.l.b16 %v11460
        %v11660 = vunpack.c.h.b16 %v11460
        %v11661 = vunpack.c.l.b16 %v11461
        %v11662 = vunpack.c.h.b16 %v11461
        %v11663 = vunpack.c.l.b16 %v11462
        %v11664 = vunpack.c.h.b16 %v11462
        %v11665 = vpack.c.b16 %v11539, %v11537
        %v11666 = vpack.c.b16 %v11540, %v11538
        %v11667 = vpack.c.b16 %v11543, %v11541
        %v11668 = vpack.c.b16 %v11544, %v11542
        %v11669 = vpack.c.b16 %v11547, %v11545
        %v11670 = vpack.c.b16 %v11548, %v11546
        %v11671 = vpack.c.b16 %v11551, %v11549
        %v11672 = vpack.c.b16 %v11552, %v11550
        %v11673 = vpack.c.b16 %v11555, %v11553
        %v11674 = vpack.c.b16 %v11556, %v11554
        %v11675 = vpack.c.b16 %v11559, %v11557
        %v11676 = vpack.c.b16 %v11560, %v11558
        %v11677 = vpack.c.b16 %v11563, %v11561
        %v11678 = vpack.c.b16 %v11564, %v11562
        %v11679 = vpack.c.b16 %v11567, %v11565
        %v11680 = vpack.c.b16 %v11568, %v11566
        %v11681 = vpack.c.b16 %v11571, %v11569
        %v11682 = vpack.c.b16 %v11572, %v11570
        %v11683 = vpack.c.b16 %v11575, %v11573
        %v11684 = vpack.c.b16 %v11576, %v11574
        %v11685 = vpack.c.b16 %v11579, %v11577
        %v11686 = vpack.c.b16 %v11580, %v11578
        %v11687 = vpack.c.b16 %v11583, %v11581
        %v11688 = vpack.c.b16 %v11584, %v11582
        %v11689 = vpack.c.b16 %v11587, %v11585
        %v11690 = vpack.c.b16 %v11588, %v11586
        %v11691 = vpack.c.b16 %v11591, %v11589
        %v11692 = vpack.c.b16 %v11592, %v11590
        %v11693 = vpack.c.b16 %v11595, %v11593
        %v11694 = vpack.c.b16 %v11596, %v11594
        %v11695 = vpack.c.b16 %v11599, %v11597
        %v11696 = vpack.c.b16 %v11600, %v11598
        %v11697 = vpack.c.b16 %v11603, %v11601
        %v11698 = vpack.c.b16 %v11604, %v11602
        %v11699 = vpack.c.b16 %v11607, %v11605
        %v11700 = vpack.c.b16 %v11608, %v11606
        %v11701 = vpack.c.b16 %v11611, %v11609
        %v11702 = vpack.c.b16 %v11612, %v11610
        %v11703 = vpack.c.b16 %v11615, %v11613
        %v11704 = vpack.c.b16 %v11616, %v11614
        %v11705 = vpack.c.b16 %v11619, %v11617
        %v11706 = vpack.c.b16 %v11620, %v11618
        %v11707 = vpack.c.b16 %v11623, %v11621
        %v11708 = vpack.c.b16 %v11624, %v11622
        %v11709 = vpack.c.b16 %v11627, %v11625
        %v11710 = vpack.c.b16 %v11628, %v11626
        %v11711 = vpack.c.b16 %v11631, %v11629
        %v11712 = vpack.c.b16 %v11632, %v11630
        %v11713 = vpack.c.b16 %v11635, %v11633
        %v11714 = vpack.c.b16 %v11636, %v11634
        %v11715 = vpack.c.b16 %v11639, %v11637
        %v11716 = vpack.c.b16 %v11640, %v11638
        %v11717 = vpack.c.b16 %v11643, %v11641
        %v11718 = vpack.c.b16 %v11644, %v11642
        %v11719 = vpack.c.b16 %v11647, %v11645
        %v11720 = vpack.c.b16 %v11648, %v11646
        %v11721 = vpack.c.b16 %v11651, %v11649
        %v11722 = vpack.c.b16 %v11652, %v11650
        %v11723 = vpack.c.b16 %v11655, %v11653
        %v11724 = vpack.c.b16 %v11656, %v11654
        %v11725 = vpack.c.b16 %v11659, %v11657
        %v11726 = vpack.c.b16 %v11660, %v11658
        %v11727 = vpack.c.b16 %v11663, %v11661
        %v11728 = vpack.c.b16 %v11664, %v11662
        %11793 = vmatpush.bf16.msra.mxu0 %v11679
        %11794 = vmatpush.bf16.msra.mxu0 %v11677
        %11795 = vmatpush.bf16.msra.mxu0 %v11675
        %11796 = vmatpush.bf16.msra.mxu0 %v11673
        %11797 = vmatpush.bf16.msra.mxu0 %v11671
        %11798 = vmatpush.bf16.msra.mxu0 %v11669
        %11799 = vmatpush.bf16.msra.mxu0 %v11667
        %11800 = vmatpush.bf16.msra.mxu0 %v11665
        %11801 = vmatmul.bf16.gmra.mxu0 %v11464
        %v11802 = vpop.f32.mrf.mxu0
        %v11803 = vadd.f32 %v11469, %v11802
        %v11804 = vpop.f32.mrf.mxu0
        %11805 = vdwg.mxu0
        %11806 = vmatpush.bf16.msra.mxu0 %v11695
        %11807 = vmatpush.bf16.msra.mxu0 %v11693
        %11808 = vmatpush.bf16.msra.mxu0 %v11691
        %11809 = vmatpush.bf16.msra.mxu0 %v11689
        %11810 = vmatpush.bf16.msra.mxu0 %v11687
        %11811 = vmatpush.bf16.msra.mxu0 %v11685
        %11812 = vmatpush.bf16.msra.mxu0 %v11683
        %11813 = vmatpush.bf16.msra.mxu0 %v11681
        %11814 = vmatmul.bf16.gmra.mxu0 %v11465
        %v11815 = vpop.f32.mrf.mxu0
        %v11816 = vadd.f32 %v11803, %v11815
        %v11817 = vpop.f32.mrf.mxu0
        %11818 = vdwg.mxu0
        %11819 = vmatpush.bf16.msra.mxu0 %v11711
        %11820 = vmatpush.bf16.msra.mxu0 %v11709
        %11821 = vmatpush.bf16.msra.mxu0 %v11707
        %11822 = vmatpush.bf16.msra.mxu0 %v11705
        %11823 = vmatpush.bf16.msra.mxu0 %v11703
        %11824 = vmatpush.bf16.msra.mxu0 %v11701
        %11825 = vmatpush.bf16.msra.mxu0 %v11699
        %11826 = vmatpush.bf16.msra.mxu0 %v11697
        %11827 = vmatmul.bf16.gmra.mxu0 %v11466
        %v11828 = vpop.f32.mrf.mxu0
        %v11829 = vadd.f32 %v11816, %v11828
        %v11830 = vpop.f32.mrf.mxu0
        %11831 = vdwg.mxu0
        %11832 = vmatpush.bf16.msra.mxu0 %v11727
        %11833 = vmatpush.bf16.msra.mxu0 %v11725
        %11834 = vmatpush.bf16.msra.mxu0 %v11723
        %11835 = vmatpush.bf16.msra.mxu0 %v11721
        %11836 = vmatpush.bf16.msra.mxu0 %v11719
        %11837 = vmatpush.bf16.msra.mxu0 %v11717
        %11838 = vmatpush.bf16.msra.mxu0 %v11715
        %11839 = vmatpush.bf16.msra.mxu0 %v11713
        %11840 = vmatmul.bf16.gmra.mxu0 %v11467
        %v11841 = vpop.f32.mrf.mxu0
        %v11842 = vadd.f32 %v11829, %v11841
        %v11843 = vpop.f32.mrf.mxu0
        %11844 = vdwg.mxu0
        %11845 = vmatpush.bf16.msra.mxu0 %v11680
        %11846 = vmatpush.bf16.msra.mxu0 %v11678
        %11847 = vmatpush.bf16.msra.mxu0 %v11676
        %11848 = vmatpush.bf16.msra.mxu0 %v11674
        %11849 = vmatpush.bf16.msra.mxu0 %v11672
        %11850 = vmatpush.bf16.msra.mxu0 %v11670
        %11851 = vmatpush.bf16.msra.mxu0 %v11668
        %11852 = vmatpush.bf16.msra.mxu0 %v11666
        %11853 = vmatmul.bf16.gmra.mxu0 %v11464
        %v11854 = vpop.f32.mrf.mxu0
        %v11855 = vadd.f32 %v11470, %v11854
        %v11856 = vpop.f32.mrf.mxu0
        %11857 = vdwg.mxu0
        %11858 = vmatpush.bf16.msra.mxu0 %v11696
        %11859 = vmatpush.bf16.msra.mxu0 %v11694
        %11860 = vmatpush.bf16.msra.mxu0 %v11692
        %11861 = vmatpush.bf16.msra.mxu0 %v11690
        %11862 = vmatpush.bf16.msra.mxu0 %v11688
        %11863 = vmatpush.bf16.msra.mxu0 %v11686
        %11864 = vmatpush.bf16.msra.mxu0 %v11684
        %11865 = vmatpush.bf16.msra.mxu0 %v11682
        %11866 = vmatmul.bf16.gmra.mxu0 %v11465
        %v11867 = vpop.f32.mrf.mxu0
        %v11868 = vadd.f32 %v11855, %v11867
        %v11869 = vpop.f32.mrf.mxu0
        %11870 = vdwg.mxu0
        %11871 = vmatpush.bf16.msra.mxu0 %v11712
        %11872 = vmatpush.bf16.msra.mxu0 %v11710
        %11873 = vmatpush.bf16.msra.mxu0 %v11708
        %11874 = vmatpush.bf16.msra.mxu0 %v11706
        %11875 = vmatpush.bf16.msra.mxu0 %v11704
        %11876 = vmatpush.bf16.msra.mxu0 %v11702
        %11877 = vmatpush.bf16.msra.mxu0 %v11700
        %11878 = vmatpush.bf16.msra.mxu0 %v11698
        %11879 = vmatmul.bf16.gmra.mxu0 %v11466
        %v11880 = vpop.f32.mrf.mxu0
        %v11881 = vadd.f32 %v11868, %v11880
        %v11882 = vpop.f32.mrf.mxu0
        %11883 = vdwg.mxu0
        %11884 = vmatpush.bf16.msra.mxu0 %v11728
        %11885 = vmatpush.bf16.msra.mxu0 %v11726
        %11886 = vmatpush.bf16.msra.mxu0 %v11724
        %11887 = vmatpush.bf16.msra.mxu0 %v11722
        %11888 = vmatpush.bf16.msra.mxu0 %v11720
        %11889 = vmatpush.bf16.msra.mxu0 %v11718
        %11890 = vmatpush.bf16.msra.mxu0 %v11716
        %11891 = vmatpush.bf16.msra.mxu0 %v11714
        %11892 = vmatmul.bf16.gmra.mxu0 %v11467
        %v11893 = vpop.f32.mrf.mxu0
        %v11894 = vadd.f32 %v11881, %v11893
        %v11895 = vpop.f32.mrf.mxu0
        %11896 = vdwg.mxu0
        %v11897 = vadd.f32 %v10893, %v11842
        %v11898 = vadd.f32 %v10894, %v11894
        %v11899 = vadd.f32 %v11897, %v11898
        %11900 = vadd.xlane.f32.xlu0 %v11899
        %v11901 = vpop.xlane.xlu0 %11900
        %v11902 = vmul.f32 %v11901, %v6118
        %v11903 = vsub.f32 %v11897, %v11902
        %v11904 = vsub.f32 %v11898, %v11902
        %v11905 = vmul.f32 %v11903, %v11903
        %v11906 = vmul.f32 %v11904, %v11904
        %v11907 = vadd.f32 %v11905, %v11906
        %11908 = vadd.xlane.f32.xlu0 %v11907
        %v11909 = vpop.xlane.xlu0 %11908
        %v11910 = vmul.f32 %v11909, %v6118
        %v11911 = vadd.f32 %v11910, 1e-05
        %v11912 = vrsqrt.pop %v11911
        %v11913 = vmul.f32 %v11912, %v11911
        %v11914 = vmul.f32 %v11913, %v11912
        %v11915 = vmul.f32 0.5, %v11914
        %v11916 = vsub.f32 1.5, %v11915
        %v11917 = vmul.f32 %v11912, %v11916
        %vm11918 = vweird.f32 %v11911
        %vm11919 = vweird.f32 %v11912
        %vm11920 = vmor %vm11918, %vm11919
        %v11921 = vsel %vm11920, %v11912, %v11917
        %v11922 = vmul.f32 %v11903, %v11921
        %v11923 = vmul.f32 %v11904, %v11921
        %v11924 = vperm.slane %v1416, 2
        %v11925 = vperm.slane %v1416, 6
        %v11928 = vperm.slane %v11924, 2
        %v11929 = vperm.slane %v11925, 2
        %v11930 = vmul.f32 %v11922, %v11928
        %v11931 = vmul.f32 %v11923, %v11929
        %v11932 = vperm.slane %v1417, 2
        %v11933 = vperm.slane %v1417, 6
        %v11936 = vperm.slane %v11932, 2
        %v11937 = vperm.slane %v11933, 2
        %v11938 = vadd.f32 %v11930, %v11936
        %v11939 = vadd.f32 %v11931, %v11937
        %11940 = vst [vmem:[#allocation2] sm:$0xff] %v11938
        %11941 = vst [vmem:[#allocation2 + $0x8] sm:$0xff] %v11939
        %p11942 = scmp.eq.s32.totalorder %s47, 3
        // Predicated region
        $region129: #{transformer_decoder_forward.1} parent=123 // pred_check
          %p11943 = pneg %p11942
        $region130: #{transformer_decoder_forward.1} parent=123 // pred_check_branch
          %11945 = sbr.rel (%p11943) target = $region132
        $region131: #{transformer_decoder_forward.1} parent=123 // pred_region
          %v11946 = vld [vmem:[%s22] sm:$0xf]
          %v11947 = vld [vmem:[%s22 + $0x4] sm:$0xf]
          %v11948 = vld [vmem:[%s22 + $0x8] sm:$0xf]
          %v11949 = vld [vmem:[%s22 + $0xc] sm:$0xf]
          %v11950 = vld [vmem:[%s22 + $0x10] sm:$0xf]
          %v11951 = vld [vmem:[%s22 + $0x14] sm:$0xf]
          %v11952 = vld [vmem:[%s22 + $0x18] sm:$0xf]
          %v11953 = vld [vmem:[%s22 + $0x1c] sm:$0xf]
          %v11954 = vld [vmem:[%s22 + $0x20] sm:$0xf]
          %v11955 = vld [vmem:[%s22 + $0x24] sm:$0xf]
          %v11956 = vld [vmem:[%s22 + $0x28] sm:$0xf]
          %v11957 = vld [vmem:[%s22 + $0x2c] sm:$0xf]
          %v11958 = vld [vmem:[%s22 + $0x30] sm:$0xf]
          %v11959 = vld [vmem:[%s22 + $0x34] sm:$0xf]
          %v11960 = vld [vmem:[%s22 + $0x38] sm:$0xf]
          %v11961 = vld [vmem:[%s22 + $0x3c] sm:$0xf]
          %v11962 = vld [vmem:[%s22 + $0x40] sm:$0xf]
          %v11963 = vld [vmem:[%s22 + $0x44] sm:$0xf]
          %v11964 = vld [vmem:[%s22 + $0x48] sm:$0xf]
          %v11965 = vld [vmem:[%s22 + $0x4c] sm:$0xf]
          %v11966 = vld [vmem:[%s22 + $0x50] sm:$0xf]
          %v11967 = vld [vmem:[%s22 + $0x54] sm:$0xf]
          %v11968 = vld [vmem:[%s22 + $0x58] sm:$0xf]
          %v11969 = vld [vmem:[%s22 + $0x5c] sm:$0xf]
          %v11970 = vld [vmem:[%s22 + $0x60] sm:$0xf]
          %v11971 = vld [vmem:[%s22 + $0x64] sm:$0xf]
          %v11972 = vld [vmem:[%s22 + $0x68] sm:$0xf]
          %v11973 = vld [vmem:[%s22 + $0x6c] sm:$0xf]
          %v11974 = vld [vmem:[%s22 + $0x70] sm:$0xf]
          %v11975 = vld [vmem:[%s22 + $0x74] sm:$0xf]
          %v11976 = vld [vmem:[%s22 + $0x78] sm:$0xf]
          %v11977 = vld [vmem:[%s22 + $0x7c] sm:$0xf]
          %v11978 = vld [vmem:[%s23] sm:$0x1]
          %v11979 = vpack.c.bf16 %v11938, %v11938
          %v11980 = vpack.c.bf16 %v11939, %v11939
          %v11982 = vperm.slane %v11978, 0
          %v12016 = vunpack.c.l.b16 %v11946
          %v12017 = vunpack.c.l.b16 %v11947
          %v12018 = vunpack.c.l.b16 %v11948
          %v12019 = vunpack.c.l.b16 %v11949
          %v12020 = vunpack.c.l.b16 %v11950
          %v12021 = vunpack.c.l.b16 %v11951
          %v12022 = vunpack.c.l.b16 %v11952
          %v12023 = vunpack.c.l.b16 %v11953
          %v12024 = vunpack.c.l.b16 %v11954
          %v12025 = vunpack.c.l.b16 %v11955
          %v12026 = vunpack.c.l.b16 %v11956
          %v12027 = vunpack.c.l.b16 %v11957
          %v12028 = vunpack.c.l.b16 %v11958
          %v12029 = vunpack.c.l.b16 %v11959
          %v12030 = vunpack.c.l.b16 %v11960
          %v12031 = vunpack.c.l.b16 %v11961
          %v12032 = vunpack.c.l.b16 %v11962
          %v12033 = vunpack.c.l.b16 %v11963
          %v12034 = vunpack.c.l.b16 %v11964
          %v12035 = vunpack.c.l.b16 %v11965
          %v12036 = vunpack.c.l.b16 %v11966
          %v12037 = vunpack.c.l.b16 %v11967
          %v12038 = vunpack.c.l.b16 %v11968
          %v12039 = vunpack.c.l.b16 %v11969
          %v12040 = vunpack.c.l.b16 %v11970
          %v12041 = vunpack.c.l.b16 %v11971
          %v12042 = vunpack.c.l.b16 %v11972
          %v12043 = vunpack.c.l.b16 %v11973
          %v12044 = vunpack.c.l.b16 %v11974
          %v12045 = vunpack.c.l.b16 %v11975
          %v12046 = vunpack.c.l.b16 %v11976
          %v12047 = vunpack.c.l.b16 %v11977
          %v12048 = vpack.c.b16 %v12017, %v12016
          %v12049 = vpack.c.b16 %v12019, %v12018
          %v12050 = vpack.c.b16 %v12021, %v12020
          %v12051 = vpack.c.b16 %v12023, %v12022
          %v12052 = vpack.c.b16 %v12025, %v12024
          %v12053 = vpack.c.b16 %v12027, %v12026
          %v12054 = vpack.c.b16 %v12029, %v12028
          %v12055 = vpack.c.b16 %v12031, %v12030
          %v12056 = vpack.c.b16 %v12033, %v12032
          %v12057 = vpack.c.b16 %v12035, %v12034
          %v12058 = vpack.c.b16 %v12037, %v12036
          %v12059 = vpack.c.b16 %v12039, %v12038
          %v12060 = vpack.c.b16 %v12041, %v12040
          %v12061 = vpack.c.b16 %v12043, %v12042
          %v12062 = vpack.c.b16 %v12045, %v12044
          %v12063 = vpack.c.b16 %v12047, %v12046
          %12080 = vmatpush.bf16.msra.mxu0 %v12055
          %12081 = vmatpush.bf16.msra.mxu0 %v12054
          %12082 = vmatpush.bf16.msra.mxu0 %v12053
          %12083 = vmatpush.bf16.msra.mxu0 %v12052
          %12084 = vmatpush.bf16.msra.mxu0 %v12051
          %12085 = vmatpush.bf16.msra.mxu0 %v12050
          %12086 = vmatpush.bf16.msra.mxu0 %v12049
          %12087 = vmatpush.bf16.msra.mxu0 %v12048
          %12088 = vmatmul.bf16.gmra.mxu0 %v11979
          %v12089 = vpop.f32.mrf.mxu0
          %v12090 = vadd.f32 %v11982, %v12089
          %v12091 = vpop.f32.mrf.mxu0
          %12092 = vdwg.mxu0
          %12093 = vmatpush.bf16.msra.mxu0 %v12063
          %12094 = vmatpush.bf16.msra.mxu0 %v12062
          %12095 = vmatpush.bf16.msra.mxu0 %v12061
          %12096 = vmatpush.bf16.msra.mxu0 %v12060
          %12097 = vmatpush.bf16.msra.mxu0 %v12059
          %12098 = vmatpush.bf16.msra.mxu0 %v12058
          %12099 = vmatpush.bf16.msra.mxu0 %v12057
          %12100 = vmatpush.bf16.msra.mxu0 %v12056
          %12101 = vmatmul.bf16.gmra.mxu0 %v11980
          %v12102 = vpop.f32.mrf.mxu0
          %v12103 = vadd.f32 %v12090, %v12102
          %v12104 = vpop.f32.mrf.mxu0
          %12105 = vdwg.mxu0
          %v12106 = vtanh.pop %v12103
          %v12107 = vld [vmem:[%s24] sm:$0x1]
          %v12108 = vld [vmem:[#allocation3] sm:$0x1]
          %12110 = vset.pattern.permute.xlu0 0
          %12111 = vperm.xlu0 %12110, %v12108
          %v12112 = vpop.permute.xlu0 %12111
          %v12114 = vperm.slane %v12112, 0
          %12115 = vmatpush.xpose.msra.mxu0 0.0
          %12116 = vmatpush.xpose.msra.mxu0 0.0
          %12117 = vmatpush.xpose.msra.mxu0 0.0
          %12118 = vmatpush.xpose.msra.mxu0 0.0
          %12119 = vmatpush.xpose.msra.mxu0 0.0
          %12120 = vmatpush.xpose.msra.mxu0 0.0
          %12121 = vmatpush.xpose.msra.mxu0 0.0
          %12122 = vmatpush.xpose.msra.mxu0 0.0
          %12123 = vmatpush.xpose.msra.mxu0 0.0
          %12124 = vmatpush.xpose.msra.mxu0 0.0
          %12125 = vmatpush.xpose.msra.mxu0 0.0
          %12126 = vmatpush.xpose.msra.mxu0 0.0
          %12127 = vmatpush.xpose.msra.mxu0 0.0
          %12128 = vmatpush.xpose.msra.mxu0 0.0
          %12129 = vmatpush.xpose.msra.mxu0 0.0
          %12130 = vmatpush.xpose.msra.mxu0 %v12106
          %12131 = vmatmul.f32.gmra.mxu0 %v12107
          %v12132 = vpop.f32.mrf.mxu0
          %v12133 = vadd.f32 %v12114, %v12132
          %12134 = vdwg.mxu0
          %vm12135 = vcmask 57344
          %12136 = vst.msk [vmem:[%s1008] sm:$0x1] %vm12135, %v12133
        $region132: #{transformer_decoder_forward.1} parent=123 // pred_fallthru
          _
        %s12137 = sand.u32 %s688, 1
        %s12138 = scalar_lea.sflag [#allocation5], %s12137
        %s12139 = sand.u32 %s688, 1
        %s12140 = scalar_lea.vmem [#allocation4], %s12139
        // Predicated region
        $region133: #{transformer_decoder_forward.1} parent=123 // pred_check
          %p12141 = pneg %p698
        $region134: #{transformer_decoder_forward.1} parent=123 // pred_check_branch
          %12143 = sbr.rel (%p12141) target = $region136
        $region135: #{transformer_decoder_forward.1} parent=123 // pred_region
          %12145 = vsyncadd %s12138, 0
          %s12146 = scalar_lea.hbm %s26, %s46
          %s12148 = sshll.u32 %s12140, 4
          %s12149 = int_to_ptr.vmem [resolvable:$true] %s12148
          %s12150 = sshll.u32 %s12146, 4
          %s12151 = int_to_ptr.hbm [resolvable:$true] %s12150
          %12153 = dma.vmem_to_hbm [thread:$0]  %s12149, 16, %s12151, %s12138
        $region136: #{transformer_decoder_forward.1} parent=123 // pred_fallthru
          _
      $region124: #{transformer_decoder_forward.1} parent=5 // pred_fallthru
        _
      %p12154 = scmp.le.s32.totalorder 2, %s37
      // Predicated region
      $region137: #{transformer_decoder_forward.1} parent=5 // pred_check
        %p12155 = pneg %p12154
      $region138: #{transformer_decoder_forward.1} parent=5 // pred_check_branch
        %12157 = sbr.rel (%p12155) target = $region140
      $region139: #{transformer_decoder_forward.1} parent=5 // pred_region
        %s12158 = ssub.s32 %s37, 2
        // Predicated region
        $region141: #{transformer_decoder_forward.1} parent=139 // pred_check
          %p12159 = pneg %p704
        $region142: #{transformer_decoder_forward.1} parent=139 // pred_check_branch
          %12161 = sbr.rel (%p12159) target = $region144
        $region143: #{transformer_decoder_forward.1} parent=139 // pred_region
          %s12162 = sand.u32 %s689, 1
          %s12163 = scalar_lea.sflag [#allocation5], %s12162
          %s12164 = sand.u32 %s689, 1
          %s12165 = scalar_lea.vmem [#allocation4], %s12164
          %12167 = dma.done %s12163, 16
        $region144: #{transformer_decoder_forward.1} parent=139 // pred_fallthru
          _
      $region140: #{transformer_decoder_forward.1} parent=5 // pred_fallthru
        _
    $region6: #{transformer_decoder_forward.1} parent=1 // loop_footer
      %s41 = sadd.s32 1, %s37
    $region7: #{transformer_decoder_forward.1} parent=1 // loop_footer_branch
      %36 = sbr.rel target = $region3
    $region8: #{transformer_decoder_forward.1} parent=1 // loop_exit
      _
    %12168 = vsyncpa [#allocation5], 1
    %s12169 = scalar_lea.sflag [#allocation5], 1
    %12170 = vsyncpa %s12169, 1

</llo_original>
